<compile_context>
chip_gen: v6e
topology: v6e:2x2x1
jax: 0.10.0
libtpu: 0.0.40
codegen_flags: <defaults>
</compile_context>

<pallas_src>
import functools

import jax
import jax.numpy as jnp
from jax.experimental import pallas as pl
from jax.experimental.pallas import tpu as pltpu


def _vmem_spec():
    return pl.BlockSpec(memory_space=pltpu.MemorySpace.VMEM)


# ----------------------------------------------------------------------------- #
# In-kernel helpers
# ----------------------------------------------------------------------------- #
def _erf(z):
    # TODO(synk): torch nn.GELU uses exact erf; lax.erf lowering is not guaranteed in
    # Pallas-TPU, so use Abramowitz & Stegun 7.1.26 (abs err ~1.5e-7, i.e. float32-exact).
    a1, a2, a3, a4, a5 = 0.254829592, -0.284496736, 1.421413741, -1.453152027, 1.061405429
    p = 0.3275911
    s = jnp.where(z >= 0.0, 1.0, -1.0)
    az = jnp.abs(z)
    t = 1.0 / (1.0 + p * az)
    poly = ((((a5 * t + a4) * t + a3) * t + a2) * t + a1) * t
    return s * (1.0 - poly * jnp.exp(-az * az))


def _gelu_exact(x):
    # GELU(x) = 0.5 * x * (1 + erf(x / sqrt(2)))   (torch default, approximate='none')
    return 0.5 * x * (1.0 + _erf(x * 0.7071067811865476))


# ----------------------------------------------------------------------------- #
# Fused fc chain: ReLU(ReLU(x @ W1 + b1) @ W2 + b2)   — one kernel, weights VMEM-resident
# ----------------------------------------------------------------------------- #
def _fc_chain_kernel(x_ref, w1_ref, b1_ref, w2_ref, b2_ref, o_ref):
    h = jnp.dot(x_ref[...], w1_ref[...], preferred_element_type=jnp.float32) + b1_ref[...]
    h = jnp.maximum(h, 0.0)
    h = jnp.dot(h, w2_ref[...], preferred_element_type=jnp.float32) + b2_ref[...]
    o_ref[...] = jnp.maximum(h, 0.0)


def fc_chain(x, w1, b1, w2, b2):
    B = x.shape[0]
    N = w2.shape[1]
    return pl.pallas_call(
        _fc_chain_kernel,
        out_shape=jax.ShapeDtypeStruct((B, N), jnp.float32),
        in_specs=[_vmem_spec() for _ in range(5)],
        out_specs=_vmem_spec(),
    )(x, w1, b1.reshape(1, -1), w2, b2.reshape(1, -1))


# ----------------------------------------------------------------------------- #
# Fused Conv2d(2x2,'same') + MaxPool(k) + ReLU
#
# JAX-side prep builds a patch tensor P of shape (k*k, B*Ho*Wo, 4*Cin):
#   P[dh*k+dw, (b*Ho+ho)*Wo+wo, (kh*2+kw)*Cin+cin] = x_padded[b, ho*k+dh+kh, wo*k+dw+kw, cin]
# The kernel does k*k 2-D matmuls against the (4*Cin, Cout) weight, max-reduces over the
# pool-window axis while everything is still in vregs, adds bias, ReLUs and stores the
# pooled (B*Ho*Wo, Cout) tile — the full-resolution conv output never touches HBM.
# ----------------------------------------------------------------------------- #
def _conv_pool_relu_kernel(p_ref, w_ref, b_ref, o_ref, *, k2):
    w = w_ref[...]
    acc = jnp.dot(p_ref[0], w, preferred_element_type=jnp.float32)
    for t in range(1, k2):  # static unroll, k2 <= 9
        acc = jnp.maximum(acc, jnp.dot(p_ref[t], w, preferred_element_type=jnp.float32))
    o_ref[...] = jnp.maximum(acc + b_ref[...], 0.0)


def _make_pool_patches(x, k):
    """x: (B, H, W, Cin) NHWC -> (k*k, B*Ho*Wo, 4*Cin) pool-window-major im2col patches."""
    B, H, W, Cin = x.shape
    Ho, Wo = H // k, W // k            # MaxPool2d floor behavior
    Hk, Wk = Ho * k, Wo * k
    # torch Conv2d padding='same' with k=2: pad 0 before / 1 after on H and W
    xp = jnp.pad(x, ((0, 0), (0, 1), (0, 1), (0, 0)))
    taps = [xp[:, kh:kh + Hk, kw:kw + Wk, :] for kh in range(2) for kw in range(2)]
    pat = jnp.concatenate(taps, axis=-1)                       # (B, Hk, Wk, 4*Cin)
    pat = pat.reshape(B, Ho, k, Wo, k, 4 * Cin)
    pat = jnp.transpose(pat, (2, 4, 0, 1, 3, 5))               # (k, k, B, Ho, Wo, 4*Cin)
    return pat.reshape(k * k, B * Ho * Wo, 4 * Cin), Ho, Wo


def conv_pool_relu(x, w, b, pool):
    """x: (B, H, W, Cin) NHWC, w: (2, 2, Cin, Cout), b: (Cout,) -> (B, H//k, W//k, Cout)."""
    B, H, W, Cin = x.shape
    Cout = w.shape[-1]
    k = pool
    patches, Ho, Wo = _make_pool_patches(x, k)
    wmat = w.reshape(4 * Cin, Cout)     # (kh, kw, cin) ordering matches the patch concat
    out = pl.pallas_call(
        functools.partial(_conv_pool_relu_kernel, k2=k * k),
        out_shape=jax.ShapeDtypeStruct((B * Ho * Wo, Cout), jnp.float32),
        in_specs=[_vmem_spec() for _ in range(3)],
        out_specs=_vmem_spec(),
    )(patches, wmat, b.reshape(1, Cout))
    return out.reshape(B, Ho, Wo, Cout)


# ----------------------------------------------------------------------------- #
# Fused fusion MLP + head:
#   GELU(xf @ W1a + xm @ W1b + b1) -> GELU(. @ W2 + b2) -> (. @ W3 + b3) -> LogSoftmax
# (W1 split by rows folds the torch.cat((fc_out, mel), dim=1) into the first matmul.)
# ----------------------------------------------------------------------------- #
def _fusion_head_kernel(xf_ref, xm_ref, w1a_ref, w1b_ref, b1_ref,
                        w2_ref, b2_ref, w3_ref, b3_ref, o_ref):
    h = (jnp.dot(xf_ref[...], w1a_ref[...], preferred_element_type=jnp.float32)
         + jnp.dot(xm_ref[...], w1b_ref[...], preferred_element_type=jnp.float32)
         + b1_ref[...])
    h = _gelu_exact(h)
    h = jnp.dot(h, w2_ref[...], preferred_element_type=jnp.float32) + b2_ref[...]
    h = _gelu_exact(h)
    y = jnp.dot(h, w3_ref[...], preferred_element_type=jnp.float32) + b3_ref[...]
    m = jnp.max(y, axis=-1, keepdims=True)
    o_ref[...] = (y - m) - jnp.log(jnp.sum(jnp.exp(y - m), axis=-1, keepdims=True))


def fusion_head(x_fc, x_mel, w1, b1, w2, b2, w3, b3):
    B = x_fc.shape[0]
    n_fc = x_fc.shape[1]
    w1a = w1[:n_fc]        # rows for the fc features (cat order: (fc_out, mel_feats))
    w1b = w1[n_fc:]        # rows for the mel features
    return pl.pallas_call(
        _fusion_head_kernel,
        out_shape=jax.ShapeDtypeStruct((B, w3.shape[1]), jnp.float32),
        in_specs=[_vmem_spec() for _ in range(9)],
        out_specs=_vmem_spec(),
    )(x_fc, x_mel, w1a, w1b, b1.reshape(1, -1),
      w2, b2.reshape(1, -1), w3, b3.reshape(1, -1))


# ----------------------------------------------------------------------------- #
# Parameters (deterministic synthetic init; shapes from the module's __init__)
# ----------------------------------------------------------------------------- #
def init_params(key, img_h, img_w):
    def lin(k, fan_in, fan_out):
        kw, kb = jax.random.split(k)
        s = 1.0 / jnp.sqrt(float(fan_in))
        return (jax.random.uniform(kw, (fan_in, fan_out), jnp.float32, -s, s),
                jax.random.uniform(kb, (fan_out,), jnp.float32, -s, s))

    def conv(k, cin, cout):
        kw, kb = jax.random.split(k)
        s = 1.0 / jnp.sqrt(float(cin * 4))
        return (jax.random.uniform(kw, (2, 2, cin, cout), jnp.float32, -s, s),
                jax.random.uniform(kb, (cout,), jnp.float32, -s, s))

    # flatten size after the 4 conv+pool stages (conv 'same' preserves H, W)
    hf = ((img_h // 3) // 3 // 2) // 2
    wf = ((img_w // 3) // 3 // 2) // 2
    s_fuse = 128 * hf * wf + 1024

    ks = jax.random.split(key, 9)
    p = {}
    p["fc1_w"], p["fc1_b"] = lin(ks[0], 300, 512)
    p["fc2_w"], p["fc2_b"] = lin(ks[1], 512, 1024)
    p["conv1_w"], p["conv1_b"] = conv(ks[2], 3, 16)
    p["conv2_w"], p["conv2_b"] = conv(ks[3], 16, 32)
    p["conv3_w"], p["conv3_b"] = conv(ks[4], 32, 64)
    p["conv4_w"], p["conv4_b"] = conv(ks[5], 64, 128)
    p["fus1_w"], p["fus1_b"] = lin(ks[6], s_fuse, 512)
    p["fus2_w"], p["fus2_b"] = lin(ks[7], 512, 1024)
    p["final_w"], p["final_b"] = lin(ks[8], 1024, 2)
    return p


# ----------------------------------------------------------------------------- #
# Forward pass (inference mode; Dropout layers are identity at eval time)
# ----------------------------------------------------------------------------- #
def forward(params, sent_vector, mel_data):
    # fc branch: one fused kernel (Linear+ReLU+Linear+ReLU)
    x = fc_chain(sent_vector, params["fc1_w"], params["fc1_b"],
                 params["fc2_w"], params["fc2_b"])

    # mel branch: 4 fused conv+pool+ReLU kernels (torch permutes NHWC -> NCHW; we stay NHWC)
    a = mel_data.astype(jnp.float32)
    a = conv_pool_relu(a, params["conv1_w"], params["conv1_b"], pool=3)
    a = conv_pool_relu(a, params["conv2_w"], params["conv2_b"], pool=3)
    a = conv_pool_relu(a, params["conv3_w"], params["conv3_b"], pool=2)
    a = conv_pool_relu(a, params["conv4_w"], params["conv4_b"], pool=2)

    # torch Flatten acts on NCHW -> order (C, H, W); transpose to match exactly
    B = a.shape[0]
    a = jnp.transpose(a, (0, 3, 1, 2)).reshape(B, -1)

    # fusion MLP + final head + LogSoftmax: one fused kernel
    # (cat((fc_out, mel_feats), dim=1) is folded into the first matmul via split weights)
    return fusion_head(x, a,
                       params["fus1_w"], params["fus1_b"],
                       params["fus2_w"], params["fus2_b"],
                       params["final_w"], params["final_b"])


if __name__ == "__main__":
    B, IMG_H, IMG_W = 2, 36, 36      # small shapes; FT vector size fixed at 300 by the module
    key = jax.random.PRNGKey(0)
    k_params, k_sent, k_mel = jax.random.split(key, 3)

    params = init_params(k_params, IMG_H, IMG_W)
    sent_vector = jax.random.normal(k_sent, (B, 300), jnp.float32)
    mel_data = jax.random.normal(k_mel, (B, IMG_H, IMG_W, 3), jnp.float32)  # NHWC, like torch input

    fwd = jax.jit(forward)
    out = fwd(params, sent_vector, mel_data)
    out = jax.block_until_ready(out)

    assert out.shape == (B, 2), out.shape
    # log-softmax rows must exponentiate to probability distributions
    assert jnp.allclose(jnp.sum(jnp.exp(out), axis=1), 1.0, atol=1e-4)
    print("KERNEL_OK")
</pallas_src>

<mosaic_0001>
module attributes {stable_mosaic.version = 11 : i64} {
  func.func @_conv_pool_relu_kernel(%arg0: memref<9x288x12xf32, #tpu.memory_space<vmem>>, %arg1: memref<12x16xf32, #tpu.memory_space<vmem>>, %arg2: memref<1x16xf32, #tpu.memory_space<vmem>>, %arg3: memref<288x16xf32, #tpu.memory_space<vmem>>) attributes {dimension_semantics = [], scalar_prefetch = 0 : i64, scratch_operands = 0 : i64, tpu.core_type = #tpu.core_type<tc>} {
    %c0 = arith.constant 0 : index
    %c0_0 = arith.constant 0 : index
    %0 = vector.load %arg1[%c0, %c0_0] : memref<12x16xf32, #tpu.memory_space<vmem>>, vector<12x16xf32>
    %c0_1 = arith.constant 0 : index
    %c0_2 = arith.constant 0 : index
    %c0_3 = arith.constant 0 : index
    %1 = vector.load %arg0[%c0_1, %c0_2, %c0_3] : memref<9x288x12xf32, #tpu.memory_space<vmem>>, vector<1x288x12xf32>
    %2 = vector.shape_cast %1 : vector<1x288x12xf32> to vector<288x12xf32>
    %cst = arith.constant dense<0.000000e+00> : vector<288x16xf32>
    %3 = tpu.matmul %2, %0, %cst {dimension_numbers = #tpu.dot_dimension_numbers<[1], [0], [0], [1], [0, 0, 1, 1], [], []>} : vector<288x12xf32>, vector<12x16xf32>, vector<288x16xf32> -> vector<288x16xf32>
    %c1 = arith.constant 1 : index
    %c0_4 = arith.constant 0 : index
    %c0_5 = arith.constant 0 : index
    %4 = vector.load %arg0[%c1, %c0_4, %c0_5] : memref<9x288x12xf32, #tpu.memory_space<vmem>>, vector<1x288x12xf32>
    %5 = vector.shape_cast %4 : vector<1x288x12xf32> to vector<288x12xf32>
    %cst_6 = arith.constant dense<0.000000e+00> : vector<288x16xf32>
    %6 = tpu.matmul %5, %0, %cst_6 {dimension_numbers = #tpu.dot_dimension_numbers<[1], [0], [0], [1], [0, 0, 1, 1], [], []>} : vector<288x12xf32>, vector<12x16xf32>, vector<288x16xf32> -> vector<288x16xf32>
    %7 = arith.maximumf %3, %6 : vector<288x16xf32>
    %c2 = arith.constant 2 : index
    %c0_7 = arith.constant 0 : index
    %c0_8 = arith.constant 0 : index
    %8 = vector.load %arg0[%c2, %c0_7, %c0_8] : memref<9x288x12xf32, #tpu.memory_space<vmem>>, vector<1x288x12xf32>
    %9 = vector.shape_cast %8 : vector<1x288x12xf32> to vector<288x12xf32>
    %cst_9 = arith.constant dense<0.000000e+00> : vector<288x16xf32>
    %10 = tpu.matmul %9, %0, %cst_9 {dimension_numbers = #tpu.dot_dimension_numbers<[1], [0], [0], [1], [0, 0, 1, 1], [], []>} : vector<288x12xf32>, vector<12x16xf32>, vector<288x16xf32> -> vector<288x16xf32>
    %11 = arith.maximumf %7, %10 : vector<288x16xf32>
    %c3 = arith.constant 3 : index
    %c0_10 = arith.constant 0 : index
    %c0_11 = arith.constant 0 : index
    %12 = vector.load %arg0[%c3, %c0_10, %c0_11] : memref<9x288x12xf32, #tpu.memory_space<vmem>>, vector<1x288x12xf32>
    %13 = vector.shape_cast %12 : vector<1x288x12xf32> to vector<288x12xf32>
    %cst_12 = arith.constant dense<0.000000e+00> : vector<288x16xf32>
    %14 = tpu.matmul %13, %0, %cst_12 {dimension_numbers = #tpu.dot_dimension_numbers<[1], [0], [0], [1], [0, 0, 1, 1], [], []>} : vector<288x12xf32>, vector<12x16xf32>, vector<288x16xf32> -> vector<288x16xf32>
    %15 = arith.maximumf %11, %14 : vector<288x16xf32>
    %c4 = arith.constant 4 : index
    %c0_13 = arith.constant 0 : index
    %c0_14 = arith.constant 0 : index
    %16 = vector.load %arg0[%c4, %c0_13, %c0_14] : memref<9x288x12xf32, #tpu.memory_space<vmem>>, vector<1x288x12xf32>
    %17 = vector.shape_cast %16 : vector<1x288x12xf32> to vector<288x12xf32>
    %cst_15 = arith.constant dense<0.000000e+00> : vector<288x16xf32>
    %18 = tpu.matmul %17, %0, %cst_15 {dimension_numbers = #tpu.dot_dimension_numbers<[1], [0], [0], [1], [0, 0, 1, 1], [], []>} : vector<288x12xf32>, vector<12x16xf32>, vector<288x16xf32> -> vector<288x16xf32>
    %19 = arith.maximumf %15, %18 : vector<288x16xf32>
    %c5 = arith.constant 5 : index
    %c0_16 = arith.constant 0 : index
    %c0_17 = arith.constant 0 : index
    %20 = vector.load %arg0[%c5, %c0_16, %c0_17] : memref<9x288x12xf32, #tpu.memory_space<vmem>>, vector<1x288x12xf32>
    %21 = vector.shape_cast %20 : vector<1x288x12xf32> to vector<288x12xf32>
    %cst_18 = arith.constant dense<0.000000e+00> : vector<288x16xf32>
    %22 = tpu.matmul %21, %0, %cst_18 {dimension_numbers = #tpu.dot_dimension_numbers<[1], [0], [0], [1], [0, 0, 1, 1], [], []>} : vector<288x12xf32>, vector<12x16xf32>, vector<288x16xf32> -> vector<288x16xf32>
    %23 = arith.maximumf %19, %22 : vector<288x16xf32>
    %c6 = arith.constant 6 : index
    %c0_19 = arith.constant 0 : index
    %c0_20 = arith.constant 0 : index
    %24 = vector.load %arg0[%c6, %c0_19, %c0_20] : memref<9x288x12xf32, #tpu.memory_space<vmem>>, vector<1x288x12xf32>
    %25 = vector.shape_cast %24 : vector<1x288x12xf32> to vector<288x12xf32>
    %cst_21 = arith.constant dense<0.000000e+00> : vector<288x16xf32>
    %26 = tpu.matmul %25, %0, %cst_21 {dimension_numbers = #tpu.dot_dimension_numbers<[1], [0], [0], [1], [0, 0, 1, 1], [], []>} : vector<288x12xf32>, vector<12x16xf32>, vector<288x16xf32> -> vector<288x16xf32>
    %27 = arith.maximumf %23, %26 : vector<288x16xf32>
    %c7 = arith.constant 7 : index
    %c0_22 = arith.constant 0 : index
    %c0_23 = arith.constant 0 : index
    %28 = vector.load %arg0[%c7, %c0_22, %c0_23] : memref<9x288x12xf32, #tpu.memory_space<vmem>>, vector<1x288x12xf32>
    %29 = vector.shape_cast %28 : vector<1x288x12xf32> to vector<288x12xf32>
    %cst_24 = arith.constant dense<0.000000e+00> : vector<288x16xf32>
    %30 = tpu.matmul %29, %0, %cst_24 {dimension_numbers = #tpu.dot_dimension_numbers<[1], [0], [0], [1], [0, 0, 1, 1], [], []>} : vector<288x12xf32>, vector<12x16xf32>, vector<288x16xf32> -> vector<288x16xf32>
    %31 = arith.maximumf %27, %30 : vector<288x16xf32>
    %c8 = arith.constant 8 : index
    %c0_25 = arith.constant 0 : index
    %c0_26 = arith.constant 0 : index
    %32 = vector.load %arg0[%c8, %c0_25, %c0_26] : memref<9x288x12xf32, #tpu.memory_space<vmem>>, vector<1x288x12xf32>
    %33 = vector.shape_cast %32 : vector<1x288x12xf32> to vector<288x12xf32>
    %cst_27 = arith.constant dense<0.000000e+00> : vector<288x16xf32>
    %34 = tpu.matmul %33, %0, %cst_27 {dimension_numbers = #tpu.dot_dimension_numbers<[1], [0], [0], [1], [0, 0, 1, 1], [], []>} : vector<288x12xf32>, vector<12x16xf32>, vector<288x16xf32> -> vector<288x16xf32>
    %35 = arith.maximumf %31, %34 : vector<288x16xf32>
    %c0_28 = arith.constant 0 : index
    %c0_29 = arith.constant 0 : index
    %36 = vector.load %arg2[%c0_28, %c0_29] : memref<1x16xf32, #tpu.memory_space<vmem>>, vector<1x16xf32>
    %37 = vector.broadcast %36 : vector<1x16xf32> to vector<288x16xf32>
    %38 = arith.addf %35, %37 : vector<288x16xf32>
    %cst_30 = arith.constant 0.000000e+00 : f32
    %39 = vector.broadcast %cst_30 : f32 to vector<288x16xf32>
    %40 = arith.maximumf %38, %39 : vector<288x16xf32>
    %c0_31 = arith.constant 0 : index
    %c0_32 = arith.constant 0 : index
    %41 = vector.load %arg3[%c0_31, %c0_32] : memref<288x16xf32, #tpu.memory_space<vmem>>, vector<288x16xf32>
    tpu.vector_store %arg3[%c0_31, %c0_32], %40 {strides = array<i32>} : memref<288x16xf32, #tpu.memory_space<vmem>>, vector<288x16xf32>,
    return
  }
}

module attributes {stable_mosaic.version = 11 : i64} {
  func.func @_conv_pool_relu_kernel(%arg0: memref<9x32x64xf32, #tpu.memory_space<vmem>>, %arg1: memref<64x32xf32, #tpu.memory_space<vmem>>, %arg2: memref<1x32xf32, #tpu.memory_space<vmem>>, %arg3: memref<32x32xf32, #tpu.memory_space<vmem>>) attributes {dimension_semantics = [], scalar_prefetch = 0 : i64, scratch_operands = 0 : i64, tpu.core_type = #tpu.core_type<tc>} {
    %c0 = arith.constant 0 : index
    %c0_0 = arith.constant 0 : index
    %0 = vector.load %arg1[%c0, %c0_0] : memref<64x32xf32, #tpu.memory_space<vmem>>, vector<64x32xf32>
    %c0_1 = arith.constant 0 : index
    %c0_2 = arith.constant 0 : index
    %c0_3 = arith.constant 0 : index
    %1 = vector.load %arg0[%c0_1, %c0_2, %c0_3] : memref<9x32x64xf32, #tpu.memory_space<vmem>>, vector<1x32x64xf32>
    %2 = vector.shape_cast %1 : vector<1x32x64xf32> to vector<32x64xf32>
    %cst = arith.constant dense<0.000000e+00> : vector<32x32xf32>
    %3 = tpu.matmul %2, %0, %cst {dimension_numbers = #tpu.dot_dimension_numbers<[1], [0], [0], [1], [0, 0, 1, 1], [], []>} : vector<32x64xf32>, vector<64x32xf32>, vector<32x32xf32> -> vector<32x32xf32>
    %c1 = arith.constant 1 : index
    %c0_4 = arith.constant 0 : index
    %c0_5 = arith.constant 0 : index
    %4 = vector.load %arg0[%c1, %c0_4, %c0_5] : memref<9x32x64xf32, #tpu.memory_space<vmem>>, vector<1x32x64xf32>
    %5 = vector.shape_cast %4 : vector<1x32x64xf32> to vector<32x64xf32>
    %cst_6 = arith.constant dense<0.000000e+00> : vector<32x32xf32>
    %6 = tpu.matmul %5, %0, %cst_6 {dimension_numbers = #tpu.dot_dimension_numbers<[1], [0], [0], [1], [0, 0, 1, 1], [], []>} : vector<32x64xf32>, vector<64x32xf32>, vector<32x32xf32> -> vector<32x32xf32>
    %7 = arith.maximumf %3, %6 : vector<32x32xf32>
    %c2 = arith.constant 2 : index
    %c0_7 = arith.constant 0 : index
    %c0_8 = arith.constant 0 : index
    %8 = vector.load %arg0[%c2, %c0_7, %c0_8] : memref<9x32x64xf32, #tpu.memory_space<vmem>>, vector<1x32x64xf32>
    %9 = vector.shape_cast %8 : vector<1x32x64xf32> to vector<32x64xf32>
    %cst_9 = arith.constant dense<0.000000e+00> : vector<32x32xf32>
    %10 = tpu.matmul %9, %0, %cst_9 {dimension_numbers = #tpu.dot_dimension_numbers<[1], [0], [0], [1], [0, 0, 1, 1], [], []>} : vector<32x64xf32>, vector<64x32xf32>, vector<32x32xf32> -> vector<32x32xf32>
    %11 = arith.maximumf %7, %10 : vector<32x32xf32>
    %c3 = arith.constant 3 : index
    %c0_10 = arith.constant 0 : index
    %c0_11 = arith.constant 0 : index
    %12 = vector.load %arg0[%c3, %c0_10, %c0_11] : memref<9x32x64xf32, #tpu.memory_space<vmem>>, vector<1x32x64xf32>
    %13 = vector.shape_cast %12 : vector<1x32x64xf32> to vector<32x64xf32>
    %cst_12 = arith.constant dense<0.000000e+00> : vector<32x32xf32>
    %14 = tpu.matmul %13, %0, %cst_12 {dimension_numbers = #tpu.dot_dimension_numbers<[1], [0], [0], [1], [0, 0, 1, 1], [], []>} : vector<32x64xf32>, vector<64x32xf32>, vector<32x32xf32> -> vector<32x32xf32>
    %15 = arith.maximumf %11, %14 : vector<32x32xf32>
    %c4 = arith.constant 4 : index
    %c0_13 = arith.constant 0 : index
    %c0_14 = arith.constant 0 : index
    %16 = vector.load %arg0[%c4, %c0_13, %c0_14] : memref<9x32x64xf32, #tpu.memory_space<vmem>>, vector<1x32x64xf32>
    %17 = vector.shape_cast %16 : vector<1x32x64xf32> to vector<32x64xf32>
    %cst_15 = arith.constant dense<0.000000e+00> : vector<32x32xf32>
    %18 = tpu.matmul %17, %0, %cst_15 {dimension_numbers = #tpu.dot_dimension_numbers<[1], [0], [0], [1], [0, 0, 1, 1], [], []>} : vector<32x64xf32>, vector<64x32xf32>, vector<32x32xf32> -> vector<32x32xf32>
    %19 = arith.maximumf %15, %18 : vector<32x32xf32>
    %c5 = arith.constant 5 : index
    %c0_16 = arith.constant 0 : index
    %c0_17 = arith.constant 0 : index
    %20 = vector.load %arg0[%c5, %c0_16, %c0_17] : memref<9x32x64xf32, #tpu.memory_space<vmem>>, vector<1x32x64xf32>
    %21 = vector.shape_cast %20 : vector<1x32x64xf32> to vector<32x64xf32>
    %cst_18 = arith.constant dense<0.000000e+00> : vector<32x32xf32>
    %22 = tpu.matmul %21, %0, %cst_18 {dimension_numbers = #tpu.dot_dimension_numbers<[1], [0], [0], [1], [0, 0, 1, 1], [], []>} : vector<32x64xf32>, vector<64x32xf32>, vector<32x32xf32> -> vector<32x32xf32>
    %23 = arith.maximumf %19, %22 : vector<32x32xf32>
    %c6 = arith.constant 6 : index
    %c0_19 = arith.constant 0 : index
    %c0_20 = arith.constant 0 : index
    %24 = vector.load %arg0[%c6, %c0_19, %c0_20] : memref<9x32x64xf32, #tpu.memory_space<vmem>>, vector<1x32x64xf32>
    %25 = vector.shape_cast %24 : vector<1x32x64xf32> to vector<32x64xf32>
    %cst_21 = arith.constant dense<0.000000e+00> : vector<32x32xf32>
    %26 = tpu.matmul %25, %0, %cst_21 {dimension_numbers = #tpu.dot_dimension_numbers<[1], [0], [0], [1], [0, 0, 1, 1], [], []>} : vector<32x64xf32>, vector<64x32xf32>, vector<32x32xf32> -> vector<32x32xf32>
    %27 = arith.maximumf %23, %26 : vector<32x32xf32>
    %c7 = arith.constant 7 : index
    %c0_22 = arith.constant 0 : index
    %c0_23 = arith.constant 0 : index
    %28 = vector.load %arg0[%c7, %c0_22, %c0_23] : memref<9x32x64xf32, #tpu.memory_space<vmem>>, vector<1x32x64xf32>
    %29 = vector.shape_cast %28 : vector<1x32x64xf32> to vector<32x64xf32>
    %cst_24 = arith.constant dense<0.000000e+00> : vector<32x32xf32>
    %30 = tpu.matmul %29, %0, %cst_24 {dimension_numbers = #tpu.dot_dimension_numbers<[1], [0], [0], [1], [0, 0, 1, 1], [], []>} : vector<32x64xf32>, vector<64x32xf32>, vector<32x32xf32> -> vector<32x32xf32>
    %31 = arith.maximumf %27, %30 : vector<32x32xf32>
    %c8 = arith.constant 8 : index
    %c0_25 = arith.constant 0 : index
    %c0_26 = arith.constant 0 : index
    %32 = vector.load %arg0[%c8, %c0_25, %c0_26] : memref<9x32x64xf32, #tpu.memory_space<vmem>>, vector<1x32x64xf32>
    %33 = vector.shape_cast %32 : vector<1x32x64xf32> to vector<32x64xf32>
    %cst_27 = arith.constant dense<0.000000e+00> : vector<32x32xf32>
    %34 = tpu.matmul %33, %0, %cst_27 {dimension_numbers = #tpu.dot_dimension_numbers<[1], [0], [0], [1], [0, 0, 1, 1], [], []>} : vector<32x64xf32>, vector<64x32xf32>, vector<32x32xf32> -> vector<32x32xf32>
    %35 = arith.maximumf %31, %34 : vector<32x32xf32>
    %c0_28 = arith.constant 0 : index
    %c0_29 = arith.constant 0 : index
    %36 = vector.load %arg2[%c0_28, %c0_29] : memref<1x32xf32, #tpu.memory_space<vmem>>, vector<1x32xf32>
    %37 = vector.broadcast %36 : vector<1x32xf32> to vector<32x32xf32>
    %38 = arith.addf %35, %37 : vector<32x32xf32>
    %cst_30 = arith.constant 0.000000e+00 : f32
    %39 = vector.broadcast %cst_30 : f32 to vector<32x32xf32>
    %40 = arith.maximumf %38, %39 : vector<32x32xf32>
    %c0_31 = arith.constant 0 : index
    %c0_32 = arith.constant 0 : index
    %41 = vector.load %arg3[%c0_31, %c0_32] : memref<32x32xf32, #tpu.memory_space<vmem>>, vector<32x32xf32>
    tpu.vector_store %arg3[%c0_31, %c0_32], %40 {strides = array<i32>} : memref<32x32xf32, #tpu.memory_space<vmem>>, vector<32x32xf32>,
    return
  }
}

module attributes {stable_mosaic.version = 11 : i64} {
  func.func @_conv_pool_relu_kernel(%arg0: memref<4x8x128xf32, #tpu.memory_space<vmem>>, %arg1: memref<128x64xf32, #tpu.memory_space<vmem>>, %arg2: memref<1x64xf32, #tpu.memory_space<vmem>>, %arg3: memref<8x64xf32, #tpu.memory_space<vmem>>) attributes {dimension_semantics = [], scalar_prefetch = 0 : i64, scratch_operands = 0 : i64, tpu.core_type = #tpu.core_type<tc>} {
    %c0 = arith.constant 0 : index
    %c0_0 = arith.constant 0 : index
    %0 = vector.load %arg1[%c0, %c0_0] : memref<128x64xf32, #tpu.memory_space<vmem>>, vector<128x64xf32>
    %c0_1 = arith.constant 0 : index
    %c0_2 = arith.constant 0 : index
    %c0_3 = arith.constant 0 : index
    %1 = vector.load %arg0[%c0_1, %c0_2, %c0_3] : memref<4x8x128xf32, #tpu.memory_space<vmem>>, vector<1x8x128xf32>
    %2 = vector.shape_cast %1 : vector<1x8x128xf32> to vector<8x128xf32>
    %cst = arith.constant dense<0.000000e+00> : vector<8x64xf32>
    %3 = tpu.matmul %2, %0, %cst {dimension_numbers = #tpu.dot_dimension_numbers<[1], [0], [0], [1], [0, 0, 1, 1], [], []>} : vector<8x128xf32>, vector<128x64xf32>, vector<8x64xf32> -> vector<8x64xf32>
    %c1 = arith.constant 1 : index
    %c0_4 = arith.constant 0 : index
    %c0_5 = arith.constant 0 : index
    %4 = vector.load %arg0[%c1, %c0_4, %c0_5] : memref<4x8x128xf32, #tpu.memory_space<vmem>>, vector<1x8x128xf32>
    %5 = vector.shape_cast %4 : vector<1x8x128xf32> to vector<8x128xf32>
    %cst_6 = arith.constant dense<0.000000e+00> : vector<8x64xf32>
    %6 = tpu.matmul %5, %0, %cst_6 {dimension_numbers = #tpu.dot_dimension_numbers<[1], [0], [0], [1], [0, 0, 1, 1], [], []>} : vector<8x128xf32>, vector<128x64xf32>, vector<8x64xf32> -> vector<8x64xf32>
    %7 = arith.maximumf %3, %6 : vector<8x64xf32>
    %c2 = arith.constant 2 : index
    %c0_7 = arith.constant 0 : index
    %c0_8 = arith.constant 0 : index
    %8 = vector.load %arg0[%c2, %c0_7, %c0_8] : memref<4x8x128xf32, #tpu.memory_space<vmem>>, vector<1x8x128xf32>
    %9 = vector.shape_cast %8 : vector<1x8x128xf32> to vector<8x128xf32>
    %cst_9 = arith.constant dense<0.000000e+00> : vector<8x64xf32>
    %10 = tpu.matmul %9, %0, %cst_9 {dimension_numbers = #tpu.dot_dimension_numbers<[1], [0], [0], [1], [0, 0, 1, 1], [], []>} : vector<8x128xf32>, vector<128x64xf32>, vector<8x64xf32> -> vector<8x64xf32>
    %11 = arith.maximumf %7, %10 : vector<8x64xf32>
    %c3 = arith.constant 3 : index
    %c0_10 = arith.constant 0 : index
    %c0_11 = arith.constant 0 : index
    %12 = vector.load %arg0[%c3, %c0_10, %c0_11] : memref<4x8x128xf32, #tpu.memory_space<vmem>>, vector<1x8x128xf32>
    %13 = vector.shape_cast %12 : vector<1x8x128xf32> to vector<8x128xf32>
    %cst_12 = arith.constant dense<0.000000e+00> : vector<8x64xf32>
    %14 = tpu.matmul %13, %0, %cst_12 {dimension_numbers = #tpu.dot_dimension_numbers<[1], [0], [0], [1], [0, 0, 1, 1], [], []>} : vector<8x128xf32>, vector<128x64xf32>, vector<8x64xf32> -> vector<8x64xf32>
    %15 = arith.maximumf %11, %14 : vector<8x64xf32>
    %c0_13 = arith.constant 0 : index
    %c0_14 = arith.constant 0 : index
    %16 = vector.load %arg2[%c0_13, %c0_14] : memref<1x64xf32, #tpu.memory_space<vmem>>, vector<1x64xf32>
    %17 = vector.broadcast %16 : vector<1x64xf32> to vector<8x64xf32>
    %18 = arith.addf %15, %17 : vector<8x64xf32>
    %cst_15 = arith.constant 0.000000e+00 : f32
    %19 = vector.broadcast %cst_15 : f32 to vector<8x64xf32>
    %20 = arith.maximumf %18, %19 : vector<8x64xf32>
    %c0_16 = arith.constant 0 : index
    %c0_17 = arith.constant 0 : index
    %21 = vector.load %arg3[%c0_16, %c0_17] : memref<8x64xf32, #tpu.memory_space<vmem>>, vector<8x64xf32>
    tpu.vector_store %arg3[%c0_16, %c0_17], %20 {strides = array<i32>} : memref<8x64xf32, #tpu.memory_space<vmem>>, vector<8x64xf32>,
    return
  }
}

module attributes {stable_mosaic.version = 11 : i64} {
  func.func @_fc_chain_kernel(%arg0: memref<2x300xf32, #tpu.memory_space<vmem>>, %arg1: memref<300x512xf32, #tpu.memory_space<vmem>>, %arg2: memref<1x512xf32, #tpu.memory_space<vmem>>, %arg3: memref<512x1024xf32, #tpu.memory_space<vmem>>, %arg4: memref<1x1024xf32, #tpu.memory_space<vmem>>, %arg5: memref<2x1024xf32, #tpu.memory_space<vmem>>) attributes {dimension_semantics = [], scalar_prefetch = 0 : i64, scratch_operands = 0 : i64, tpu.core_type = #tpu.core_type<tc>} {
    %c0 = arith.constant 0 : index
    %c0_0 = arith.constant 0 : index
    %0 = vector.load %arg0[%c0, %c0_0] : memref<2x300xf32, #tpu.memory_space<vmem>>, vector<2x300xf32>
    %c0_1 = arith.constant 0 : index
    %c0_2 = arith.constant 0 : index
    %1 = vector.load %arg1[%c0_1, %c0_2] : memref<300x512xf32, #tpu.memory_space<vmem>>, vector<300x512xf32>
    %cst = arith.constant dense<0.000000e+00> : vector<2x512xf32>
    %2 = tpu.matmul %0, %1, %cst {dimension_numbers = #tpu.dot_dimension_numbers<[1], [0], [0], [1], [0, 0, 1, 1], [], []>} : vector<2x300xf32>, vector<300x512xf32>, vector<2x512xf32> -> vector<2x512xf32>
    %c0_3 = arith.constant 0 : index
    %c0_4 = arith.constant 0 : index
    %3 = vector.load %arg2[%c0_3, %c0_4] : memref<1x512xf32, #tpu.memory_space<vmem>>, vector<1x512xf32>
    %4 = vector.broadcast %3 : vector<1x512xf32> to vector<2x512xf32>
    %5 = arith.addf %2, %4 : vector<2x512xf32>
    %cst_5 = arith.constant 0.000000e+00 : f32
    %6 = vector.broadcast %cst_5 : f32 to vector<2x512xf32>
    %7 = arith.maximumf %5, %6 : vector<2x512xf32>
    %c0_6 = arith.constant 0 : index
    %c0_7 = arith.constant 0 : index
    %8 = vector.load %arg3[%c0_6, %c0_7] : memref<512x1024xf32, #tpu.memory_space<vmem>>, vector<512x1024xf32>
    %cst_8 = arith.constant dense<0.000000e+00> : vector<2x1024xf32>
    %9 = tpu.matmul %7, %8, %cst_8 {dimension_numbers = #tpu.dot_dimension_numbers<[1], [0], [0], [1], [0, 0, 1, 1], [], []>} : vector<2x512xf32>, vector<512x1024xf32>, vector<2x1024xf32> -> vector<2x1024xf32>
    %c0_9 = arith.constant 0 : index
    %c0_10 = arith.constant 0 : index
    %10 = vector.load %arg4[%c0_9, %c0_10] : memref<1x1024xf32, #tpu.memory_space<vmem>>, vector<1x1024xf32>
    %11 = vector.broadcast %10 : vector<1x1024xf32> to vector<2x1024xf32>
    %12 = arith.addf %9, %11 : vector<2x1024xf32>
    %cst_11 = arith.constant 0.000000e+00 : f32
    %13 = vector.broadcast %cst_11 : f32 to vector<2x1024xf32>
    %14 = arith.maximumf %12, %13 : vector<2x1024xf32>
    %c0_12 = arith.constant 0 : index
    %c0_13 = arith.constant 0 : index
    %15 = vector.load %arg5[%c0_12, %c0_13] : memref<2x1024xf32, #tpu.memory_space<vmem>>, vector<2x1024xf32>
    tpu.vector_store %arg5[%c0_12, %c0_13], %14 {strides = array<i32>} : memref<2x1024xf32, #tpu.memory_space<vmem>>, vector<2x1024xf32>,
    return
  }
}

module attributes {stable_mosaic.version = 11 : i64} {
  func.func @_fusion_head_kernel(%arg0: memref<2x1024xf32, #tpu.memory_space<vmem>>, %arg1: memref<2x128xf32, #tpu.memory_space<vmem>>, %arg2: memref<1024x512xf32, #tpu.memory_space<vmem>>, %arg3: memref<128x512xf32, #tpu.memory_space<vmem>>, %arg4: memref<1x512xf32, #tpu.memory_space<vmem>>, %arg5: memref<512x1024xf32, #tpu.memory_space<vmem>>, %arg6: memref<1x1024xf32, #tpu.memory_space<vmem>>, %arg7: memref<1024x2xf32, #tpu.memory_space<vmem>>, %arg8: memref<1x2xf32, #tpu.memory_space<vmem>>, %arg9: memref<2x2xf32, #tpu.memory_space<vmem>>) attributes {dimension_semantics = [], scalar_prefetch = 0 : i64, scratch_operands = 0 : i64, tpu.core_type = #tpu.core_type<tc>} {
    %c0 = arith.constant 0 : index
    %c0_0 = arith.constant 0 : index
    %0 = vector.load %arg0[%c0, %c0_0] : memref<2x1024xf32, #tpu.memory_space<vmem>>, vector<2x1024xf32>
    %c0_1 = arith.constant 0 : index
    %c0_2 = arith.constant 0 : index
    %1 = vector.load %arg2[%c0_1, %c0_2] : memref<1024x512xf32, #tpu.memory_space<vmem>>, vector<1024x512xf32>
    %cst = arith.constant dense<0.000000e+00> : vector<2x512xf32>
    %2 = tpu.matmul %0, %1, %cst {dimension_numbers = #tpu.dot_dimension_numbers<[1], [0], [0], [1], [0, 0, 1, 1], [], []>} : vector<2x1024xf32>, vector<1024x512xf32>, vector<2x512xf32> -> vector<2x512xf32>
    %c0_3 = arith.constant 0 : index
    %c0_4 = arith.constant 0 : index
    %3 = vector.load %arg1[%c0_3, %c0_4] : memref<2x128xf32, #tpu.memory_space<vmem>>, vector<2x128xf32>
    %c0_5 = arith.constant 0 : index
    %c0_6 = arith.constant 0 : index
    %4 = vector.load %arg3[%c0_5, %c0_6] : memref<128x512xf32, #tpu.memory_space<vmem>>, vector<128x512xf32>
    %cst_7 = arith.constant dense<0.000000e+00> : vector<2x512xf32>
    %5 = tpu.matmul %3, %4, %cst_7 {dimension_numbers = #tpu.dot_dimension_numbers<[1], [0], [0], [1], [0, 0, 1, 1], [], []>} : vector<2x128xf32>, vector<128x512xf32>, vector<2x512xf32> -> vector<2x512xf32>
    %6 = arith.addf %2, %5 : vector<2x512xf32>
    %c0_8 = arith.constant 0 : index
    %c0_9 = arith.constant 0 : index
    %7 = vector.load %arg4[%c0_8, %c0_9] : memref<1x512xf32, #tpu.memory_space<vmem>>, vector<1x512xf32>
    %8 = vector.broadcast %7 : vector<1x512xf32> to vector<2x512xf32>
    %9 = arith.addf %6, %8 : vector<2x512xf32>
    %cst_10 = arith.constant 5.000000e-01 : f32
    %10 = vector.broadcast %cst_10 : f32 to vector<2x512xf32>
    %11 = arith.mulf %10, %9 : vector<2x512xf32>
    %cst_11 = arith.constant 0.707106769 : f32
    %12 = vector.broadcast %cst_11 : f32 to vector<2x512xf32>
    %13 = arith.mulf %9, %12 : vector<2x512xf32>
    %cst_12 = arith.constant 0.000000e+00 : f32
    %14 = vector.broadcast %cst_12 : f32 to vector<2x512xf32>
    %15 = arith.cmpf oge, %13, %14 : vector<2x512xf32>
    %cst_13 = arith.constant 1.000000e+00 : f32
    %cst_14 = arith.constant -1.000000e+00 : f32
    %16 = vector.broadcast %cst_13 : f32 to vector<2x512xf32>
    %17 = vector.broadcast %cst_14 : f32 to vector<2x512xf32>
    %18 = arith.select %15, %16, %17 : vector<2x512xi1>, vector<2x512xf32>
    %19 = math.absf %13 : vector<2x512xf32>
    %cst_15 = arith.constant 0.327591091 : f32
    %20 = vector.broadcast %cst_15 : f32 to vector<2x512xf32>
    %21 = arith.mulf %20, %19 : vector<2x512xf32>
    %cst_16 = arith.constant 1.000000e+00 : f32
    %22 = vector.broadcast %cst_16 : f32 to vector<2x512xf32>
    %23 = arith.addf %22, %21 : vector<2x512xf32>
    %cst_17 = arith.constant 1.000000e+00 : f32
    %24 = vector.broadcast %cst_17 : f32 to vector<2x512xf32>
    %25 = arith.divf %24, %23 : vector<2x512xf32>
    %cst_18 = arith.constant 1.06140542 : f32
    %26 = vector.broadcast %cst_18 : f32 to vector<2x512xf32>
    %27 = arith.mulf %26, %25 : vector<2x512xf32>
    %cst_19 = arith.constant -1.45315206 : f32
    %28 = vector.broadcast %cst_19 : f32 to vector<2x512xf32>
    %29 = arith.addf %27, %28 : vector<2x512xf32>
    %30 = arith.mulf %29, %25 : vector<2x512xf32>
    %cst_20 = arith.constant 1.42141378 : f32
    %31 = vector.broadcast %cst_20 : f32 to vector<2x512xf32>
    %32 = arith.addf %30, %31 : vector<2x512xf32>
    %33 = arith.mulf %32, %25 : vector<2x512xf32>
    %cst_21 = arith.constant -0.284496725 : f32
    %34 = vector.broadcast %cst_21 : f32 to vector<2x512xf32>
    %35 = arith.addf %33, %34 : vector<2x512xf32>
    %36 = arith.mulf %35, %25 : vector<2x512xf32>
    %cst_22 = arith.constant 0.254829586 : f32
    %37 = vector.broadcast %cst_22 : f32 to vector<2x512xf32>
    %38 = arith.addf %36, %37 : vector<2x512xf32>
    %39 = arith.mulf %38, %25 : vector<2x512xf32>
    %cst_23 = arith.constant 0.000000e+00 : f32
    %40 = vector.broadcast %cst_23 : f32 to vector<2x512xf32>
    %41 = arith.subf %40, %19 : vector<2x512xf32>
    %42 = arith.mulf %41, %19 : vector<2x512xf32>
    %43 = math.exp %42 : vector<2x512xf32>
    %44 = arith.mulf %39, %43 : vector<2x512xf32>
    %cst_24 = arith.constant 1.000000e+00 : f32
    %45 = vector.broadcast %cst_24 : f32 to vector<2x512xf32>
    %46 = arith.subf %45, %44 : vector<2x512xf32>
    %47 = arith.mulf %18, %46 : vector<2x512xf32>
    %cst_25 = arith.constant 1.000000e+00 : f32
    %48 = vector.broadcast %cst_25 : f32 to vector<2x512xf32>
    %49 = arith.addf %48, %47 : vector<2x512xf32>
    %50 = arith.mulf %11, %49 : vector<2x512xf32>
    %c0_26 = arith.constant 0 : index
    %c0_27 = arith.constant 0 : index
    %51 = vector.load %arg5[%c0_26, %c0_27] : memref<512x1024xf32, #tpu.memory_space<vmem>>, vector<512x1024xf32>
    %cst_28 = arith.constant dense<0.000000e+00> : vector<2x1024xf32>
    %52 = tpu.matmul %50, %51, %cst_28 {dimension_numbers = #tpu.dot_dimension_numbers<[1], [0], [0], [1], [0, 0, 1, 1], [], []>} : vector<2x512xf32>, vector<512x1024xf32>, vector<2x1024xf32> -> vector<2x1024xf32>
    %c0_29 = arith.constant 0 : index
    %c0_30 = arith.constant 0 : index
    %53 = vector.load %arg6[%c0_29, %c0_30] : memref<1x1024xf32, #tpu.memory_space<vmem>>, vector<1x1024xf32>
    %54 = vector.broadcast %53 : vector<1x1024xf32> to vector<2x1024xf32>
    %55 = arith.addf %52, %54 : vector<2x1024xf32>
    %cst_31 = arith.constant 5.000000e-01 : f32
    %56 = vector.broadcast %cst_31 : f32 to vector<2x1024xf32>
    %57 = arith.mulf %56, %55 : vector<2x1024xf32>
    %cst_32 = arith.constant 0.707106769 : f32
    %58 = vector.broadcast %cst_32 : f32 to vector<2x1024xf32>
    %59 = arith.mulf %55, %58 : vector<2x1024xf32>
    %cst_33 = arith.constant 0.000000e+00 : f32
    %60 = vector.broadcast %cst_33 : f32 to vector<2x1024xf32>
    %61 = arith.cmpf oge, %59, %60 : vector<2x1024xf32>
    %cst_34 = arith.constant 1.000000e+00 : f32
    %cst_35 = arith.constant -1.000000e+00 : f32
    %62 = vector.broadcast %cst_34 : f32 to vector<2x1024xf32>
    %63 = vector.broadcast %cst_35 : f32 to vector<2x1024xf32>
    %64 = arith.select %61, %62, %63 : vector<2x1024xi1>, vector<2x1024xf32>
    %65 = math.absf %59 : vector<2x1024xf32>
    %cst_36 = arith.constant 0.327591091 : f32
    %66 = vector.broadcast %cst_36 : f32 to vector<2x1024xf32>
    %67 = arith.mulf %66, %65 : vector<2x1024xf32>
    %cst_37 = arith.constant 1.000000e+00 : f32
    %68 = vector.broadcast %cst_37 : f32 to vector<2x1024xf32>
    %69 = arith.addf %68, %67 : vector<2x1024xf32>
    %cst_38 = arith.constant 1.000000e+00 : f32
    %70 = vector.broadcast %cst_38 : f32 to vector<2x1024xf32>
    %71 = arith.divf %70, %69 : vector<2x1024xf32>
    %cst_39 = arith.constant 1.06140542 : f32
    %72 = vector.broadcast %cst_39 : f32 to vector<2x1024xf32>
    %73 = arith.mulf %72, %71 : vector<2x1024xf32>
    %cst_40 = arith.constant -1.45315206 : f32
    %74 = vector.broadcast %cst_40 : f32 to vector<2x1024xf32>
    %75 = arith.addf %73, %74 : vector<2x1024xf32>
    %76 = arith.mulf %75, %71 : vector<2x1024xf32>
    %cst_41 = arith.constant 1.42141378 : f32
    %77 = vector.broadcast %cst_41 : f32 to vector<2x1024xf32>
    %78 = arith.addf %76, %77 : vector<2x1024xf32>
    %79 = arith.mulf %78, %71 : vector<2x1024xf32>
    %cst_42 = arith.constant -0.284496725 : f32
    %80 = vector.broadcast %cst_42 : f32 to vector<2x1024xf32>
    %81 = arith.addf %79, %80 : vector<2x1024xf32>
    %82 = arith.mulf %81, %71 : vector<2x1024xf32>
    %cst_43 = arith.constant 0.254829586 : f32
    %83 = vector.broadcast %cst_43 : f32 to vector<2x1024xf32>
    %84 = arith.addf %82, %83 : vector<2x1024xf32>
    %85 = arith.mulf %84, %71 : vector<2x1024xf32>
    %cst_44 = arith.constant 0.000000e+00 : f32
    %86 = vector.broadcast %cst_44 : f32 to vector<2x1024xf32>
    %87 = arith.subf %86, %65 : vector<2x1024xf32>
    %88 = arith.mulf %87, %65 : vector<2x1024xf32>
    %89 = math.exp %88 : vector<2x1024xf32>
    %90 = arith.mulf %85, %89 : vector<2x1024xf32>
    %cst_45 = arith.constant 1.000000e+00 : f32
    %91 = vector.broadcast %cst_45 : f32 to vector<2x1024xf32>
    %92 = arith.subf %91, %90 : vector<2x1024xf32>
    %93 = arith.mulf %64, %92 : vector<2x1024xf32>
    %cst_46 = arith.constant 1.000000e+00 : f32
    %94 = vector.broadcast %cst_46 : f32 to vector<2x1024xf32>
    %95 = arith.addf %94, %93 : vector<2x1024xf32>
    %96 = arith.mulf %57, %95 : vector<2x1024xf32>
    %c0_47 = arith.constant 0 : index
    %c0_48 = arith.constant 0 : index
    %97 = vector.load %arg7[%c0_47, %c0_48] : memref<1024x2xf32, #tpu.memory_space<vmem>>, vector<1024x2xf32>
    %cst_49 = arith.constant dense<0.000000e+00> : vector<2x2xf32>
    %98 = tpu.matmul %96, %97, %cst_49 {dimension_numbers = #tpu.dot_dimension_numbers<[1], [0], [0], [1], [0, 0, 1, 1], [], []>} : vector<2x1024xf32>, vector<1024x2xf32>, vector<2x2xf32> -> vector<2x2xf32>
    %c0_50 = arith.constant 0 : index
    %c0_51 = arith.constant 0 : index
    %99 = vector.load %arg8[%c0_50, %c0_51] : memref<1x2xf32, #tpu.memory_space<vmem>>, vector<1x2xf32>
    %100 = vector.broadcast %99 : vector<1x2xf32> to vector<2x2xf32>
    %101 = arith.addf %98, %100 : vector<2x2xf32>
    %cst_52 = arith.constant dense<0xFF800000> : vector<2xf32>
    %102 = vector.multi_reduction <maximumf>, %101, %cst_52 [1] : vector<2x2xf32> to vector<2xf32>
    %103 = vector.shape_cast %102 : vector<2xf32> to vector<2x1xf32>
    %104 = vector.broadcast %103 : vector<2x1xf32> to vector<2x2xf32>
    %105 = arith.subf %101, %104 : vector<2x2xf32>
    %106 = vector.broadcast %103 : vector<2x1xf32> to vector<2x2xf32>
    %107 = arith.subf %101, %106 : vector<2x2xf32>
    %108 = math.exp %107 : vector<2x2xf32>
    %cst_53 = arith.constant dense<0.000000e+00> : vector<2xf32>
    %109 = vector.multi_reduction <add>, %108, %cst_53 [1] : vector<2x2xf32> to vector<2xf32>
    %110 = vector.shape_cast %109 : vector<2xf32> to vector<2x1xf32>
    %111 = math.log %110 : vector<2x1xf32>
    %112 = vector.broadcast %111 : vector<2x1xf32> to vector<2x2xf32>
    %113 = arith.subf %105, %112 : vector<2x2xf32>
    %c0_54 = arith.constant 0 : index
    %c0_55 = arith.constant 0 : index
    %114 = vector.load %arg9[%c0_54, %c0_55] : memref<2x2xf32, #tpu.memory_space<vmem>>, vector<2x2xf32>
    tpu.vector_store %arg9[%c0_54, %c0_55], %113 {strides = array<i32>} : memref<2x2xf32, #tpu.memory_space<vmem>>, vector<2x2xf32>,
    return
  }
}

module attributes {stable_mosaic.version = 11 : i64} {
  func.func @_conv_pool_relu_kernel(%arg0: memref<4x2x256xf32, #tpu.memory_space<vmem>>, %arg1: memref<256x128xf32, #tpu.memory_space<vmem>>, %arg2: memref<1x128xf32, #tpu.memory_space<vmem>>, %arg3: memref<2x128xf32, #tpu.memory_space<vmem>>) attributes {dimension_semantics = [], scalar_prefetch = 0 : i64, scratch_operands = 0 : i64, tpu.core_type = #tpu.core_type<tc>} {
    %c0 = arith.constant 0 : index
    %c0_0 = arith.constant 0 : index
    %0 = vector.load %arg1[%c0, %c0_0] : memref<256x128xf32, #tpu.memory_space<vmem>>, vector<256x128xf32>
    %c0_1 = arith.constant 0 : index
    %c0_2 = arith.constant 0 : index
    %c0_3 = arith.constant 0 : index
    %1 = vector.load %arg0[%c0_1, %c0_2, %c0_3] : memref<4x2x256xf32, #tpu.memory_space<vmem>>, vector<1x2x256xf32>
    %2 = vector.shape_cast %1 : vector<1x2x256xf32> to vector<2x256xf32>
    %cst = arith.constant dense<0.000000e+00> : vector<2x128xf32>
    %3 = tpu.matmul %2, %0, %cst {dimension_numbers = #tpu.dot_dimension_numbers<[1], [0], [0], [1], [0, 0, 1, 1], [], []>} : vector<2x256xf32>, vector<256x128xf32>, vector<2x128xf32> -> vector<2x128xf32>
    %c1 = arith.constant 1 : index
    %c0_4 = arith.constant 0 : index
    %c0_5 = arith.constant 0 : index
    %4 = vector.load %arg0[%c1, %c0_4, %c0_5] : memref<4x2x256xf32, #tpu.memory_space<vmem>>, vector<1x2x256xf32>
    %5 = vector.shape_cast %4 : vector<1x2x256xf32> to vector<2x256xf32>
    %cst_6 = arith.constant dense<0.000000e+00> : vector<2x128xf32>
    %6 = tpu.matmul %5, %0, %cst_6 {dimension_numbers = #tpu.dot_dimension_numbers<[1], [0], [0], [1], [0, 0, 1, 1], [], []>} : vector<2x256xf32>, vector<256x128xf32>, vector<2x128xf32> -> vector<2x128xf32>
    %7 = arith.maximumf %3, %6 : vector<2x128xf32>
    %c2 = arith.constant 2 : index
    %c0_7 = arith.constant 0 : index
    %c0_8 = arith.constant 0 : index
    %8 = vector.load %arg0[%c2, %c0_7, %c0_8] : memref<4x2x256xf32, #tpu.memory_space<vmem>>, vector<1x2x256xf32>
    %9 = vector.shape_cast %8 : vector<1x2x256xf32> to vector<2x256xf32>
    %cst_9 = arith.constant dense<0.000000e+00> : vector<2x128xf32>
    %10 = tpu.matmul %9, %0, %cst_9 {dimension_numbers = #tpu.dot_dimension_numbers<[1], [0], [0], [1], [0, 0, 1, 1], [], []>} : vector<2x256xf32>, vector<256x128xf32>, vector<2x128xf32> -> vector<2x128xf32>
    %11 = arith.maximumf %7, %10 : vector<2x128xf32>
    %c3 = arith.constant 3 : index
    %c0_10 = arith.constant 0 : index
    %c0_11 = arith.constant 0 : index
    %12 = vector.load %arg0[%c3, %c0_10, %c0_11] : memref<4x2x256xf32, #tpu.memory_space<vmem>>, vector<1x2x256xf32>
    %13 = vector.shape_cast %12 : vector<1x2x256xf32> to vector<2x256xf32>
    %cst_12 = arith.constant dense<0.000000e+00> : vector<2x128xf32>
    %14 = tpu.matmul %13, %0, %cst_12 {dimension_numbers = #tpu.dot_dimension_numbers<[1], [0], [0], [1], [0, 0, 1, 1], [], []>} : vector<2x256xf32>, vector<256x128xf32>, vector<2x128xf32> -> vector<2x128xf32>
    %15 = arith.maximumf %11, %14 : vector<2x128xf32>
    %c0_13 = arith.constant 0 : index
    %c0_14 = arith.constant 0 : index
    %16 = vector.load %arg2[%c0_13, %c0_14] : memref<1x128xf32, #tpu.memory_space<vmem>>, vector<1x128xf32>
    %17 = vector.broadcast %16 : vector<1x128xf32> to vector<2x128xf32>
    %18 = arith.addf %15, %17 : vector<2x128xf32>
    %cst_15 = arith.constant 0.000000e+00 : f32
    %19 = vector.broadcast %cst_15 : f32 to vector<2x128xf32>
    %20 = arith.maximumf %18, %19 : vector<2x128xf32>
    %c0_16 = arith.constant 0 : index
    %c0_17 = arith.constant 0 : index
    %21 = vector.load %arg3[%c0_16, %c0_17] : memref<2x128xf32, #tpu.memory_space<vmem>>, vector<2x128xf32>
    tpu.vector_store %arg3[%c0_16, %c0_17], %20 {strides = array<i32>} : memref<2x128xf32, #tpu.memory_space<vmem>>, vector<2x128xf32>,
    return
  }
}

</mosaic_0001>

<llo_original>
// kernel: forward.9
$region0: #{forward.9}
  #allocation0 [shape = 'u32[]', space=smem, size = 0x4, offset = 0x4, fixed_abs, tag = 'smem constant byte address 0x4 - core index']
  #allocation1 [shape = 'u32[144,128]{1,0:T(1,128)}', space=vmem, size = 0x12000, scoped, tag = 'internal scratch']
  %s0 = inlined_call_operand.vmem [shape: f32[4,8,128], index: 0, kind: input, shape index: {}]
  %s1 = inlined_call_operand.vmem [shape: f32[128,64], index: 1, kind: input, shape index: {}]
  %s2 = inlined_call_operand.vmem [shape: f32[1,64], index: 2, kind: input, shape index: {}]
  %s3 = inlined_call_operand.vmem [shape: f32[8,64], index: 3, kind: output, shape index: {}]
  %s4 = sld [smem:[#allocation0]]
  $region22: #{forward.9} parent=0
    _
  %s6 = ssub.s32 1, %s4
  %s7 = scalar_select 0, %s6, %s4
  // Predicated region
  $region2: #{forward.9} parent=0 // pred_check
    _
  $region3: #{forward.9} parent=0 // pred_check_branch
    %9 = sbr.rel (0) target = $region5
  $region4: #{forward.9} parent=0 // pred_region
    _
  $region5: #{forward.9} parent=0 // pred_fallthru
    _
  // Predicated region
  $region6: #{forward.9} parent=0 // pred_check
    _
  $region7: #{forward.9} parent=0 // pred_check_branch
    %11 = sbr.rel (0) target = $region9
  $region8: #{forward.9} parent=0 // pred_region
    _
  $region9: #{forward.9} parent=0 // pred_fallthru
    _
  // Predicated region
  $region10: #{forward.9} parent=0 // pred_check
    _
  $region11: #{forward.9} parent=0 // pred_check_branch
    %13 = sbr.rel (0) target = $region13
  $region12: #{forward.9} parent=0 // pred_region
    _
  $region13: #{forward.9} parent=0 // pred_fallthru
    _
  %v14 = vld [vmem:[%s1] sm:$0xff]
  %v15 = vld [vmem:[%s1 + $0x8] sm:$0xff]
  %v16 = vld [vmem:[%s1 + $0x10] sm:$0xff]
  %v17 = vld [vmem:[%s1 + $0x18] sm:$0xff]
  %v18 = vld [vmem:[%s1 + $0x20] sm:$0xff]
  %v19 = vld [vmem:[%s1 + $0x28] sm:$0xff]
  %v20 = vld [vmem:[%s1 + $0x30] sm:$0xff]
  %v21 = vld [vmem:[%s1 + $0x38] sm:$0xff]
  %v22 = vld [vmem:[%s1 + $0x40] sm:$0xff]
  %v23 = vld [vmem:[%s1 + $0x48] sm:$0xff]
  %v24 = vld [vmem:[%s1 + $0x50] sm:$0xff]
  %v25 = vld [vmem:[%s1 + $0x58] sm:$0xff]
  %v26 = vld [vmem:[%s1 + $0x60] sm:$0xff]
  %v27 = vld [vmem:[%s1 + $0x68] sm:$0xff]
  %v28 = vld [vmem:[%s1 + $0x70] sm:$0xff]
  %v29 = vld [vmem:[%s1 + $0x78] sm:$0xff]
  %v30 = vld [vmem:[%s0] sm:$0xff]
  %31 = vmatprep.subr.mxu0 0.0
  %32 = vmatpush1.msra.mxu0 %v29
  %33 = vmatprep.subr.mxu0 0.0
  %34 = vmatpush1.msra.mxu0 %v28
  %35 = vmatprep.subr.mxu0 0.0
  %36 = vmatpush1.msra.mxu0 %v27
  %37 = vmatprep.subr.mxu0 0.0
  %38 = vmatpush1.msra.mxu0 %v26
  %39 = vmatprep.subr.mxu0 0.0
  %40 = vmatpush1.msra.mxu0 %v25
  %41 = vmatprep.subr.mxu0 0.0
  %42 = vmatpush1.msra.mxu0 %v24
  %43 = vmatprep.subr.mxu0 0.0
  %44 = vmatpush1.msra.mxu0 %v23
  %45 = vmatprep.subr.mxu0 0.0
  %46 = vmatpush1.msra.mxu0 %v22
  %47 = vmatprep.subr.mxu0 0.0
  %48 = vmatpush1.msra.mxu0 %v21
  %49 = vmatprep.subr.mxu0 0.0
  %50 = vmatpush1.msra.mxu0 %v20
  %51 = vmatprep.subr.mxu0 0.0
  %52 = vmatpush1.msra.mxu0 %v19
  %53 = vmatprep.subr.mxu0 0.0
  %54 = vmatpush1.msra.mxu0 %v18
  %55 = vmatprep.subr.mxu0 0.0
  %56 = vmatpush1.msra.mxu0 %v17
  %57 = vmatprep.subr.mxu0 0.0
  %58 = vmatpush1.msra.mxu0 %v16
  %59 = vmatprep.subr.mxu0 0.0
  %60 = vmatpush1.msra.mxu0 %v15
  %61 = vmatprep.subr.mxu0 0.0
  %62 = vmatpush1.msra.mxu0 %v14
  %63 = vmatprep.subr.mxu0 0.0
  %64 = vmatpush2.msra.mxu0 0.0
  %65 = vmatprep.subr.mxu0 0.0
  %66 = vmatpush2.msra.mxu0 0.0
  %67 = vmatprep.subr.mxu0 0.0
  %68 = vmatpush2.msra.mxu0 0.0
  %69 = vmatprep.subr.mxu0 0.0
  %70 = vmatpush2.msra.mxu0 0.0
  %71 = vmatprep.subr.mxu0 0.0
  %72 = vmatpush2.msra.mxu0 0.0
  %73 = vmatprep.subr.mxu0 0.0
  %74 = vmatpush2.msra.mxu0 0.0
  %75 = vmatprep.subr.mxu0 0.0
  %76 = vmatpush2.msra.mxu0 0.0
  %77 = vmatprep.subr.mxu0 0.0
  %78 = vmatpush2.msra.mxu0 0.0
  %79 = vmatprep.subr.mxu0 0.0
  %80 = vmatpush2.msra.mxu0 0.0
  %81 = vmatprep.subr.mxu0 0.0
  %82 = vmatpush2.msra.mxu0 0.0
  %83 = vmatprep.subr.mxu0 0.0
  %84 = vmatpush2.msra.mxu0 0.0
  %85 = vmatprep.subr.mxu0 0.0
  %86 = vmatpush2.msra.mxu0 0.0
  %87 = vmatprep.subr.mxu0 0.0
  %88 = vmatpush2.msra.mxu0 0.0
  %89 = vmatprep.subr.mxu0 0.0
  %90 = vmatpush2.msra.mxu0 0.0
  %91 = vmatprep.subr.mxu0 0.0
  %92 = vmatpush2.msra.mxu0 0.0
  %93 = vmatprep.subr.mxu0 0.0
  %94 = vmatpush2.msra.mxu0 0.0
  %95 = vmatprep.mubr.f32.mxu0 0.0
  %96 = vmatmul.mubr.f32.gmra.mxu0 %v30
  %v97 = vpop.f32.mrf.mxu0
  %v98 = vadd.f32 0.0, %v97
  %v99 = vpop.f32.mrf.mxu0
  %100 = vdwg.mxu0
  %s101 = scalar_lea.vmem %s0, 8
  %v102 = vld [vmem:[%s101] sm:$0xff]
  %103 = vmatprep.subr.mxu0 0.0
  %104 = vmatpush1.msra.mxu0 %v29
  %105 = vmatprep.subr.mxu0 0.0
  %106 = vmatpush1.msra.mxu0 %v28
  %107 = vmatprep.subr.mxu0 0.0
  %108 = vmatpush1.msra.mxu0 %v27
  %109 = vmatprep.subr.mxu0 0.0
  %110 = vmatpush1.msra.mxu0 %v26
  %111 = vmatprep.subr.mxu0 0.0
  %112 = vmatpush1.msra.mxu0 %v25
  %113 = vmatprep.subr.mxu0 0.0
  %114 = vmatpush1.msra.mxu0 %v24
  %115 = vmatprep.subr.mxu0 0.0
  %116 = vmatpush1.msra.mxu0 %v23
  %117 = vmatprep.subr.mxu0 0.0
  %118 = vmatpush1.msra.mxu0 %v22
  %119 = vmatprep.subr.mxu0 0.0
  %120 = vmatpush1.msra.mxu0 %v21
  %121 = vmatprep.subr.mxu0 0.0
  %122 = vmatpush1.msra.mxu0 %v20
  %123 = vmatprep.subr.mxu0 0.0
  %124 = vmatpush1.msra.mxu0 %v19
  %125 = vmatprep.subr.mxu0 0.0
  %126 = vmatpush1.msra.mxu0 %v18
  %127 = vmatprep.subr.mxu0 0.0
  %128 = vmatpush1.msra.mxu0 %v17
  %129 = vmatprep.subr.mxu0 0.0
  %130 = vmatpush1.msra.mxu0 %v16
  %131 = vmatprep.subr.mxu0 0.0
  %132 = vmatpush1.msra.mxu0 %v15
  %133 = vmatprep.subr.mxu0 0.0
  %134 = vmatpush1.msra.mxu0 %v14
  %135 = vmatprep.subr.mxu0 0.0
  %136 = vmatpush2.msra.mxu0 0.0
  %137 = vmatprep.subr.mxu0 0.0
  %138 = vmatpush2.msra.mxu0 0.0
  %139 = vmatprep.subr.mxu0 0.0
  %140 = vmatpush2.msra.mxu0 0.0
  %141 = vmatprep.subr.mxu0 0.0
  %142 = vmatpush2.msra.mxu0 0.0
  %143 = vmatprep.subr.mxu0 0.0
  %144 = vmatpush2.msra.mxu0 0.0
  %145 = vmatprep.subr.mxu0 0.0
  %146 = vmatpush2.msra.mxu0 0.0
  %147 = vmatprep.subr.mxu0 0.0
  %148 = vmatpush2.msra.mxu0 0.0
  %149 = vmatprep.subr.mxu0 0.0
  %150 = vmatpush2.msra.mxu0 0.0
  %151 = vmatprep.subr.mxu0 0.0
  %152 = vmatpush2.msra.mxu0 0.0
  %153 = vmatprep.subr.mxu0 0.0
  %154 = vmatpush2.msra.mxu0 0.0
  %155 = vmatprep.subr.mxu0 0.0
  %156 = vmatpush2.msra.mxu0 0.0
  %157 = vmatprep.subr.mxu0 0.0
  %158 = vmatpush2.msra.mxu0 0.0
  %159 = vmatprep.subr.mxu0 0.0
  %160 = vmatpush2.msra.mxu0 0.0
  %161 = vmatprep.subr.mxu0 0.0
  %162 = vmatpush2.msra.mxu0 0.0
  %163 = vmatprep.subr.mxu0 0.0
  %164 = vmatpush2.msra.mxu0 0.0
  %165 = vmatprep.subr.mxu0 0.0
  %166 = vmatpush2.msra.mxu0 0.0
  %167 = vmatprep.mubr.f32.mxu0 0.0
  %168 = vmatmul.mubr.f32.gmra.mxu0 %v102
  %v169 = vpop.f32.mrf.mxu0
  %v170 = vadd.f32 0.0, %v169
  %v171 = vpop.f32.mrf.mxu0
  %172 = vdwg.mxu0
  %v173 = vmax.f32 %v98, %v170
  %s174 = scalar_lea.vmem %s0, 16
  %v175 = vld [vmem:[%s174] sm:$0xff]
  %176 = vmatprep.subr.mxu0 0.0
  %177 = vmatpush1.msra.mxu0 %v29
  %178 = vmatprep.subr.mxu0 0.0
  %179 = vmatpush1.msra.mxu0 %v28
  %180 = vmatprep.subr.mxu0 0.0
  %181 = vmatpush1.msra.mxu0 %v27
  %182 = vmatprep.subr.mxu0 0.0
  %183 = vmatpush1.msra.mxu0 %v26
  %184 = vmatprep.subr.mxu0 0.0
  %185 = vmatpush1.msra.mxu0 %v25
  %186 = vmatprep.subr.mxu0 0.0
  %187 = vmatpush1.msra.mxu0 %v24
  %188 = vmatprep.subr.mxu0 0.0
  %189 = vmatpush1.msra.mxu0 %v23
  %190 = vmatprep.subr.mxu0 0.0
  %191 = vmatpush1.msra.mxu0 %v22
  %192 = vmatprep.subr.mxu0 0.0
  %193 = vmatpush1.msra.mxu0 %v21
  %194 = vmatprep.subr.mxu0 0.0
  %195 = vmatpush1.msra.mxu0 %v20
  %196 = vmatprep.subr.mxu0 0.0
  %197 = vmatpush1.msra.mxu0 %v19
  %198 = vmatprep.subr.mxu0 0.0
  %199 = vmatpush1.msra.mxu0 %v18
  %200 = vmatprep.subr.mxu0 0.0
  %201 = vmatpush1.msra.mxu0 %v17
  %202 = vmatprep.subr.mxu0 0.0
  %203 = vmatpush1.msra.mxu0 %v16
  %204 = vmatprep.subr.mxu0 0.0
  %205 = vmatpush1.msra.mxu0 %v15
  %206 = vmatprep.subr.mxu0 0.0
  %207 = vmatpush1.msra.mxu0 %v14
  %208 = vmatprep.subr.mxu0 0.0
  %209 = vmatpush2.msra.mxu0 0.0
  %210 = vmatprep.subr.mxu0 0.0
  %211 = vmatpush2.msra.mxu0 0.0
  %212 = vmatprep.subr.mxu0 0.0
  %213 = vmatpush2.msra.mxu0 0.0
  %214 = vmatprep.subr.mxu0 0.0
  %215 = vmatpush2.msra.mxu0 0.0
  %216 = vmatprep.subr.mxu0 0.0
  %217 = vmatpush2.msra.mxu0 0.0
  %218 = vmatprep.subr.mxu0 0.0
  %219 = vmatpush2.msra.mxu0 0.0
  %220 = vmatprep.subr.mxu0 0.0
  %221 = vmatpush2.msra.mxu0 0.0
  %222 = vmatprep.subr.mxu0 0.0
  %223 = vmatpush2.msra.mxu0 0.0
  %224 = vmatprep.subr.mxu0 0.0
  %225 = vmatpush2.msra.mxu0 0.0
  %226 = vmatprep.subr.mxu0 0.0
  %227 = vmatpush2.msra.mxu0 0.0
  %228 = vmatprep.subr.mxu0 0.0
  %229 = vmatpush2.msra.mxu0 0.0
  %230 = vmatprep.subr.mxu0 0.0
  %231 = vmatpush2.msra.mxu0 0.0
  %232 = vmatprep.subr.mxu0 0.0
  %233 = vmatpush2.msra.mxu0 0.0
  %234 = vmatprep.subr.mxu0 0.0
  %235 = vmatpush2.msra.mxu0 0.0
  %236 = vmatprep.subr.mxu0 0.0
  %237 = vmatpush2.msra.mxu0 0.0
  %238 = vmatprep.subr.mxu0 0.0
  %239 = vmatpush2.msra.mxu0 0.0
  %240 = vmatprep.mubr.f32.mxu0 0.0
  %241 = vmatmul.mubr.f32.gmra.mxu0 %v175
  %v242 = vpop.f32.mrf.mxu0
  %v243 = vadd.f32 0.0, %v242
  %v244 = vpop.f32.mrf.mxu0
  %245 = vdwg.mxu0
  %v246 = vmax.f32 %v173, %v243
  %s247 = scalar_lea.vmem %s0, 24
  %v248 = vld [vmem:[%s247] sm:$0xff]
  %249 = vmatprep.subr.mxu0 0.0
  %250 = vmatpush1.msra.mxu0 %v29
  %251 = vmatprep.subr.mxu0 0.0
  %252 = vmatpush1.msra.mxu0 %v28
  %253 = vmatprep.subr.mxu0 0.0
  %254 = vmatpush1.msra.mxu0 %v27
  %255 = vmatprep.subr.mxu0 0.0
  %256 = vmatpush1.msra.mxu0 %v26
  %257 = vmatprep.subr.mxu0 0.0
  %258 = vmatpush1.msra.mxu0 %v25
  %259 = vmatprep.subr.mxu0 0.0
  %260 = vmatpush1.msra.mxu0 %v24
  %261 = vmatprep.subr.mxu0 0.0
  %262 = vmatpush1.msra.mxu0 %v23
  %263 = vmatprep.subr.mxu0 0.0
  %264 = vmatpush1.msra.mxu0 %v22
  %265 = vmatprep.subr.mxu0 0.0
  %266 = vmatpush1.msra.mxu0 %v21
  %267 = vmatprep.subr.mxu0 0.0
  %268 = vmatpush1.msra.mxu0 %v20
  %269 = vmatprep.subr.mxu0 0.0
  %270 = vmatpush1.msra.mxu0 %v19
  %271 = vmatprep.subr.mxu0 0.0
  %272 = vmatpush1.msra.mxu0 %v18
  %273 = vmatprep.subr.mxu0 0.0
  %274 = vmatpush1.msra.mxu0 %v17
  %275 = vmatprep.subr.mxu0 0.0
  %276 = vmatpush1.msra.mxu0 %v16
  %277 = vmatprep.subr.mxu0 0.0
  %278 = vmatpush1.msra.mxu0 %v15
  %279 = vmatprep.subr.mxu0 0.0
  %280 = vmatpush1.msra.mxu0 %v14
  %281 = vmatprep.subr.mxu0 0.0
  %282 = vmatpush2.msra.mxu0 0.0
  %283 = vmatprep.subr.mxu0 0.0
  %284 = vmatpush2.msra.mxu0 0.0
  %285 = vmatprep.subr.mxu0 0.0
  %286 = vmatpush2.msra.mxu0 0.0
  %287 = vmatprep.subr.mxu0 0.0
  %288 = vmatpush2.msra.mxu0 0.0
  %289 = vmatprep.subr.mxu0 0.0
  %290 = vmatpush2.msra.mxu0 0.0
  %291 = vmatprep.subr.mxu0 0.0
  %292 = vmatpush2.msra.mxu0 0.0
  %293 = vmatprep.subr.mxu0 0.0
  %294 = vmatpush2.msra.mxu0 0.0
  %295 = vmatprep.subr.mxu0 0.0
  %296 = vmatpush2.msra.mxu0 0.0
  %297 = vmatprep.subr.mxu0 0.0
  %298 = vmatpush2.msra.mxu0 0.0
  %299 = vmatprep.subr.mxu0 0.0
  %300 = vmatpush2.msra.mxu0 0.0
  %301 = vmatprep.subr.mxu0 0.0
  %302 = vmatpush2.msra.mxu0 0.0
  %303 = vmatprep.subr.mxu0 0.0
  %304 = vmatpush2.msra.mxu0 0.0
  %305 = vmatprep.subr.mxu0 0.0
  %306 = vmatpush2.msra.mxu0 0.0
  %307 = vmatprep.subr.mxu0 0.0
  %308 = vmatpush2.msra.mxu0 0.0
  %309 = vmatprep.subr.mxu0 0.0
  %310 = vmatpush2.msra.mxu0 0.0
  %311 = vmatprep.subr.mxu0 0.0
  %312 = vmatpush2.msra.mxu0 0.0
  %313 = vmatprep.mubr.f32.mxu0 0.0
  %314 = vmatmul.mubr.f32.gmra.mxu0 %v248
  %v315 = vpop.f32.mrf.mxu0
  %v316 = vadd.f32 0.0, %v315
  %v317 = vpop.f32.mrf.mxu0
  %318 = vdwg.mxu0
  %v319 = vmax.f32 %v246, %v316
  %v320 = vld [vmem:[%s2] sm:$0x1]
  %v322 = vlaneseq
  %v323 = vshrl.u32 %v322, 7
  %v324 = vsub.s32 0, %v323
  %v325 = vrot.slane %v320, %v324
  %v327 = vadd.f32 %v319, %v325
  %v328 = vmax.f32 %v327, 0.0
  %vm329 = vcmask 523264
  %330 = vst.msk [vmem:[%s3] sm:$0xff] %vm329, %v328
  // Predicated region
  $region14: #{forward.9} parent=0 // pred_check
    _
  $region15: #{forward.9} parent=0 // pred_check_branch
    %332 = sbr.rel (0) target = $region17
  $region16: #{forward.9} parent=0 // pred_region
    _
  $region17: #{forward.9} parent=0 // pred_fallthru
    _
  // Predicated region
  $region18: #{forward.9} parent=0 // pred_check
    _
  $region19: #{forward.9} parent=0 // pred_check_branch
    %334 = sbr.rel (0) target = $region21
  $region20: #{forward.9} parent=0 // pred_region
    _
  $region21: #{forward.9} parent=0 // pred_fallthru
    _

// kernel: forward.8
$region0: #{forward.8}
  #allocation0 [shape = 'u32[]', space=smem, size = 0x4, offset = 0x4, fixed_abs, tag = 'smem constant byte address 0x4 - core index']
  #allocation1 [shape = 'u32[144,128]{1,0:T(1,128)}', space=vmem, size = 0x12000, scoped, tag = 'internal scratch']
  %s0 = inlined_call_operand.vmem [shape: f32[9,32,64], index: 0, kind: input, shape index: {}]
  %s1 = inlined_call_operand.vmem [shape: f32[64,32], index: 1, kind: input, shape index: {}]
  %s2 = inlined_call_operand.vmem [shape: f32[1,32], index: 2, kind: input, shape index: {}]
  %s3 = inlined_call_operand.vmem [shape: f32[32,32], index: 3, kind: output, shape index: {}]
  %s4 = sld [smem:[#allocation0]]
  $region22: #{forward.8} parent=0
    _
  %s6 = ssub.s32 1, %s4
  %s7 = scalar_select 0, %s6, %s4
  // Predicated region
  $region2: #{forward.8} parent=0 // pred_check
    _
  $region3: #{forward.8} parent=0 // pred_check_branch
    %9 = sbr.rel (0) target = $region5
  $region4: #{forward.8} parent=0 // pred_region
    _
  $region5: #{forward.8} parent=0 // pred_fallthru
    _
  // Predicated region
  $region6: #{forward.8} parent=0 // pred_check
    _
  $region7: #{forward.8} parent=0 // pred_check_branch
    %11 = sbr.rel (0) target = $region9
  $region8: #{forward.8} parent=0 // pred_region
    _
  $region9: #{forward.8} parent=0 // pred_fallthru
    _
  // Predicated region
  $region10: #{forward.8} parent=0 // pred_check
    _
  $region11: #{forward.8} parent=0 // pred_check_branch
    %13 = sbr.rel (0) target = $region13
  $region12: #{forward.8} parent=0 // pred_region
    _
  $region13: #{forward.8} parent=0 // pred_fallthru
    _
  %v14 = vld [vmem:[%s1] sm:$0xff]
  %v15 = vld [vmem:[%s1 + $0x8] sm:$0xff]
  %v16 = vld [vmem:[%s1 + $0x10] sm:$0xff]
  %v17 = vld [vmem:[%s1 + $0x18] sm:$0xff]
  %v18 = vld [vmem:[%s1 + $0x20] sm:$0xff]
  %v19 = vld [vmem:[%s1 + $0x28] sm:$0xff]
  %v20 = vld [vmem:[%s1 + $0x30] sm:$0xff]
  %v21 = vld [vmem:[%s1 + $0x38] sm:$0xff]
  %v22 = vld [vmem:[%s0] sm:$0xff]
  %v23 = vld [vmem:[%s0 + $0x8] sm:$0xff]
  %v24 = vld [vmem:[%s0 + $0x10] sm:$0xff]
  %v25 = vld [vmem:[%s0 + $0x18] sm:$0xff]
  %vm26 = vcmask 523264
  %v28 = vsel %vm26, %v22, 0
  %v31 = vsel %vm26, %v23, 0
  %v34 = vsel %vm26, %v24, 0
  %v37 = vsel %vm26, %v25, 0
  %39 = vmatprep.subr.mxu0 0.0
  %40 = vmatpush1.msra.mxu0 0.0
  %41 = vmatprep.subr.mxu0 0.0
  %42 = vmatpush1.msra.mxu0 0.0
  %43 = vmatprep.subr.mxu0 0.0
  %44 = vmatpush1.msra.mxu0 0.0
  %45 = vmatprep.subr.mxu0 0.0
  %46 = vmatpush1.msra.mxu0 0.0
  %47 = vmatprep.subr.mxu0 0.0
  %48 = vmatpush1.msra.mxu0 0.0
  %49 = vmatprep.subr.mxu0 0.0
  %50 = vmatpush1.msra.mxu0 0.0
  %51 = vmatprep.subr.mxu0 0.0
  %52 = vmatpush1.msra.mxu0 0.0
  %53 = vmatprep.subr.mxu0 0.0
  %54 = vmatpush1.msra.mxu0 0.0
  %55 = vmatprep.subr.mxu0 0.0
  %56 = vmatpush1.msra.mxu0 %v21
  %57 = vmatprep.subr.mxu0 0.0
  %58 = vmatpush1.msra.mxu0 %v20
  %59 = vmatprep.subr.mxu0 0.0
  %60 = vmatpush1.msra.mxu0 %v19
  %61 = vmatprep.subr.mxu0 0.0
  %62 = vmatpush1.msra.mxu0 %v18
  %63 = vmatprep.subr.mxu0 0.0
  %64 = vmatpush1.msra.mxu0 %v17
  %65 = vmatprep.subr.mxu0 0.0
  %66 = vmatpush1.msra.mxu0 %v16
  %67 = vmatprep.subr.mxu0 0.0
  %68 = vmatpush1.msra.mxu0 %v15
  %69 = vmatprep.subr.mxu0 0.0
  %70 = vmatpush1.msra.mxu0 %v14
  %71 = vmatprep.subr.mxu0 0.0
  %72 = vmatpush2.msra.mxu0 0.0
  %73 = vmatprep.subr.mxu0 0.0
  %74 = vmatpush2.msra.mxu0 0.0
  %75 = vmatprep.subr.mxu0 0.0
  %76 = vmatpush2.msra.mxu0 0.0
  %77 = vmatprep.subr.mxu0 0.0
  %78 = vmatpush2.msra.mxu0 0.0
  %79 = vmatprep.subr.mxu0 0.0
  %80 = vmatpush2.msra.mxu0 0.0
  %81 = vmatprep.subr.mxu0 0.0
  %82 = vmatpush2.msra.mxu0 0.0
  %83 = vmatprep.subr.mxu0 0.0
  %84 = vmatpush2.msra.mxu0 0.0
  %85 = vmatprep.subr.mxu0 0.0
  %86 = vmatpush2.msra.mxu0 0.0
  %87 = vmatprep.subr.mxu0 0.0
  %88 = vmatpush2.msra.mxu0 0.0
  %89 = vmatprep.subr.mxu0 0.0
  %90 = vmatpush2.msra.mxu0 0.0
  %91 = vmatprep.subr.mxu0 0.0
  %92 = vmatpush2.msra.mxu0 0.0
  %93 = vmatprep.subr.mxu0 0.0
  %94 = vmatpush2.msra.mxu0 0.0
  %95 = vmatprep.subr.mxu0 0.0
  %96 = vmatpush2.msra.mxu0 0.0
  %97 = vmatprep.subr.mxu0 0.0
  %98 = vmatpush2.msra.mxu0 0.0
  %99 = vmatprep.subr.mxu0 0.0
  %100 = vmatpush2.msra.mxu0 0.0
  %101 = vmatprep.subr.mxu0 0.0
  %102 = vmatpush2.msra.mxu0 0.0
  %103 = vmatprep.mubr.f32.mxu0 0.0
  %104 = vmatmul.mubr.f32.gmra.mxu0 %v28
  %v105 = vpop.f32.mrf.mxu0
  %v106 = vadd.f32 0.0, %v105
  %v107 = vpop.f32.mrf.mxu0
  %108 = vmatprep.mubr.f32.mxu0 0.0
  %109 = vmatmul.mubr.f32.gmra.mxu0 %v31
  %v110 = vpop.f32.mrf.mxu0
  %v111 = vadd.f32 0.0, %v110
  %v112 = vpop.f32.mrf.mxu0
  %113 = vmatprep.mubr.f32.mxu0 0.0
  %114 = vmatmul.mubr.f32.gmra.mxu0 %v34
  %v115 = vpop.f32.mrf.mxu0
  %v116 = vadd.f32 0.0, %v115
  %v117 = vpop.f32.mrf.mxu0
  %118 = vmatprep.mubr.f32.mxu0 0.0
  %119 = vmatmul.mubr.f32.gmra.mxu0 %v37
  %v120 = vpop.f32.mrf.mxu0
  %v121 = vadd.f32 0.0, %v120
  %v122 = vpop.f32.mrf.mxu0
  %123 = vdwg.mxu0
  %s124 = scalar_lea.vmem %s0, 32
  %v125 = vld [vmem:[%s124] sm:$0xff]
  %v126 = vld [vmem:[%s124 + $0x8] sm:$0xff]
  %v127 = vld [vmem:[%s124 + $0x10] sm:$0xff]
  %v128 = vld [vmem:[%s124 + $0x18] sm:$0xff]
  %v130 = vsel %vm26, %v125, 0
  %v133 = vsel %vm26, %v126, 0
  %v136 = vsel %vm26, %v127, 0
  %v139 = vsel %vm26, %v128, 0
  %141 = vmatprep.subr.mxu0 0.0
  %142 = vmatpush1.msra.mxu0 0.0
  %143 = vmatprep.subr.mxu0 0.0
  %144 = vmatpush1.msra.mxu0 0.0
  %145 = vmatprep.subr.mxu0 0.0
  %146 = vmatpush1.msra.mxu0 0.0
  %147 = vmatprep.subr.mxu0 0.0
  %148 = vmatpush1.msra.mxu0 0.0
  %149 = vmatprep.subr.mxu0 0.0
  %150 = vmatpush1.msra.mxu0 0.0
  %151 = vmatprep.subr.mxu0 0.0
  %152 = vmatpush1.msra.mxu0 0.0
  %153 = vmatprep.subr.mxu0 0.0
  %154 = vmatpush1.msra.mxu0 0.0
  %155 = vmatprep.subr.mxu0 0.0
  %156 = vmatpush1.msra.mxu0 0.0
  %157 = vmatprep.subr.mxu0 0.0
  %158 = vmatpush1.msra.mxu0 %v21
  %159 = vmatprep.subr.mxu0 0.0
  %160 = vmatpush1.msra.mxu0 %v20
  %161 = vmatprep.subr.mxu0 0.0
  %162 = vmatpush1.msra.mxu0 %v19
  %163 = vmatprep.subr.mxu0 0.0
  %164 = vmatpush1.msra.mxu0 %v18
  %165 = vmatprep.subr.mxu0 0.0
  %166 = vmatpush1.msra.mxu0 %v17
  %167 = vmatprep.subr.mxu0 0.0
  %168 = vmatpush1.msra.mxu0 %v16
  %169 = vmatprep.subr.mxu0 0.0
  %170 = vmatpush1.msra.mxu0 %v15
  %171 = vmatprep.subr.mxu0 0.0
  %172 = vmatpush1.msra.mxu0 %v14
  %173 = vmatprep.subr.mxu0 0.0
  %174 = vmatpush2.msra.mxu0 0.0
  %175 = vmatprep.subr.mxu0 0.0
  %176 = vmatpush2.msra.mxu0 0.0
  %177 = vmatprep.subr.mxu0 0.0
  %178 = vmatpush2.msra.mxu0 0.0
  %179 = vmatprep.subr.mxu0 0.0
  %180 = vmatpush2.msra.mxu0 0.0
  %181 = vmatprep.subr.mxu0 0.0
  %182 = vmatpush2.msra.mxu0 0.0
  %183 = vmatprep.subr.mxu0 0.0
  %184 = vmatpush2.msra.mxu0 0.0
  %185 = vmatprep.subr.mxu0 0.0
  %186 = vmatpush2.msra.mxu0 0.0
  %187 = vmatprep.subr.mxu0 0.0
  %188 = vmatpush2.msra.mxu0 0.0
  %189 = vmatprep.subr.mxu0 0.0
  %190 = vmatpush2.msra.mxu0 0.0
  %191 = vmatprep.subr.mxu0 0.0
  %192 = vmatpush2.msra.mxu0 0.0
  %193 = vmatprep.subr.mxu0 0.0
  %194 = vmatpush2.msra.mxu0 0.0
  %195 = vmatprep.subr.mxu0 0.0
  %196 = vmatpush2.msra.mxu0 0.0
  %197 = vmatprep.subr.mxu0 0.0
  %198 = vmatpush2.msra.mxu0 0.0
  %199 = vmatprep.subr.mxu0 0.0
  %200 = vmatpush2.msra.mxu0 0.0
  %201 = vmatprep.subr.mxu0 0.0
  %202 = vmatpush2.msra.mxu0 0.0
  %203 = vmatprep.subr.mxu0 0.0
  %204 = vmatpush2.msra.mxu0 0.0
  %205 = vmatprep.mubr.f32.mxu0 0.0
  %206 = vmatmul.mubr.f32.gmra.mxu0 %v130
  %v207 = vpop.f32.mrf.mxu0
  %v208 = vadd.f32 0.0, %v207
  %v209 = vpop.f32.mrf.mxu0
  %210 = vmatprep.mubr.f32.mxu0 0.0
  %211 = vmatmul.mubr.f32.gmra.mxu0 %v133
  %v212 = vpop.f32.mrf.mxu0
  %v213 = vadd.f32 0.0, %v212
  %v214 = vpop.f32.mrf.mxu0
  %215 = vmatprep.mubr.f32.mxu0 0.0
  %216 = vmatmul.mubr.f32.gmra.mxu0 %v136
  %v217 = vpop.f32.mrf.mxu0
  %v218 = vadd.f32 0.0, %v217
  %v219 = vpop.f32.mrf.mxu0
  %220 = vmatprep.mubr.f32.mxu0 0.0
  %221 = vmatmul.mubr.f32.gmra.mxu0 %v139
  %v222 = vpop.f32.mrf.mxu0
  %v223 = vadd.f32 0.0, %v222
  %v224 = vpop.f32.mrf.mxu0
  %225 = vdwg.mxu0
  %v226 = vmax.f32 %v106, %v208
  %v227 = vmax.f32 %v111, %v213
  %v228 = vmax.f32 %v116, %v218
  %v229 = vmax.f32 %v121, %v223
  %s230 = scalar_lea.vmem %s0, 64
  %v231 = vld [vmem:[%s230] sm:$0xff]
  %v232 = vld [vmem:[%s230 + $0x8] sm:$0xff]
  %v233 = vld [vmem:[%s230 + $0x10] sm:$0xff]
  %v234 = vld [vmem:[%s230 + $0x18] sm:$0xff]
  %v236 = vsel %vm26, %v231, 0
  %v239 = vsel %vm26, %v232, 0
  %v242 = vsel %vm26, %v233, 0
  %v245 = vsel %vm26, %v234, 0
  %247 = vmatprep.subr.mxu0 0.0
  %248 = vmatpush1.msra.mxu0 0.0
  %249 = vmatprep.subr.mxu0 0.0
  %250 = vmatpush1.msra.mxu0 0.0
  %251 = vmatprep.subr.mxu0 0.0
  %252 = vmatpush1.msra.mxu0 0.0
  %253 = vmatprep.subr.mxu0 0.0
  %254 = vmatpush1.msra.mxu0 0.0
  %255 = vmatprep.subr.mxu0 0.0
  %256 = vmatpush1.msra.mxu0 0.0
  %257 = vmatprep.subr.mxu0 0.0
  %258 = vmatpush1.msra.mxu0 0.0
  %259 = vmatprep.subr.mxu0 0.0
  %260 = vmatpush1.msra.mxu0 0.0
  %261 = vmatprep.subr.mxu0 0.0
  %262 = vmatpush1.msra.mxu0 0.0
  %263 = vmatprep.subr.mxu0 0.0
  %264 = vmatpush1.msra.mxu0 %v21
  %265 = vmatprep.subr.mxu0 0.0
  %266 = vmatpush1.msra.mxu0 %v20
  %267 = vmatprep.subr.mxu0 0.0
  %268 = vmatpush1.msra.mxu0 %v19
  %269 = vmatprep.subr.mxu0 0.0
  %270 = vmatpush1.msra.mxu0 %v18
  %271 = vmatprep.subr.mxu0 0.0
  %272 = vmatpush1.msra.mxu0 %v17
  %273 = vmatprep.subr.mxu0 0.0
  %274 = vmatpush1.msra.mxu0 %v16
  %275 = vmatprep.subr.mxu0 0.0
  %276 = vmatpush1.msra.mxu0 %v15
  %277 = vmatprep.subr.mxu0 0.0
  %278 = vmatpush1.msra.mxu0 %v14
  %279 = vmatprep.subr.mxu0 0.0
  %280 = vmatpush2.msra.mxu0 0.0
  %281 = vmatprep.subr.mxu0 0.0
  %282 = vmatpush2.msra.mxu0 0.0
  %283 = vmatprep.subr.mxu0 0.0
  %284 = vmatpush2.msra.mxu0 0.0
  %285 = vmatprep.subr.mxu0 0.0
  %286 = vmatpush2.msra.mxu0 0.0
  %287 = vmatprep.subr.mxu0 0.0
  %288 = vmatpush2.msra.mxu0 0.0
  %289 = vmatprep.subr.mxu0 0.0
  %290 = vmatpush2.msra.mxu0 0.0
  %291 = vmatprep.subr.mxu0 0.0
  %292 = vmatpush2.msra.mxu0 0.0
  %293 = vmatprep.subr.mxu0 0.0
  %294 = vmatpush2.msra.mxu0 0.0
  %295 = vmatprep.subr.mxu0 0.0
  %296 = vmatpush2.msra.mxu0 0.0
  %297 = vmatprep.subr.mxu0 0.0
  %298 = vmatpush2.msra.mxu0 0.0
  %299 = vmatprep.subr.mxu0 0.0
  %300 = vmatpush2.msra.mxu0 0.0
  %301 = vmatprep.subr.mxu0 0.0
  %302 = vmatpush2.msra.mxu0 0.0
  %303 = vmatprep.subr.mxu0 0.0
  %304 = vmatpush2.msra.mxu0 0.0
  %305 = vmatprep.subr.mxu0 0.0
  %306 = vmatpush2.msra.mxu0 0.0
  %307 = vmatprep.subr.mxu0 0.0
  %308 = vmatpush2.msra.mxu0 0.0
  %309 = vmatprep.subr.mxu0 0.0
  %310 = vmatpush2.msra.mxu0 0.0
  %311 = vmatprep.mubr.f32.mxu0 0.0
  %312 = vmatmul.mubr.f32.gmra.mxu0 %v236
  %v313 = vpop.f32.mrf.mxu0
  %v314 = vadd.f32 0.0, %v313
  %v315 = vpop.f32.mrf.mxu0
  %316 = vmatprep.mubr.f32.mxu0 0.0
  %317 = vmatmul.mubr.f32.gmra.mxu0 %v239
  %v318 = vpop.f32.mrf.mxu0
  %v319 = vadd.f32 0.0, %v318
  %v320 = vpop.f32.mrf.mxu0
  %321 = vmatprep.mubr.f32.mxu0 0.0
  %322 = vmatmul.mubr.f32.gmra.mxu0 %v242
  %v323 = vpop.f32.mrf.mxu0
  %v324 = vadd.f32 0.0, %v323
  %v325 = vpop.f32.mrf.mxu0
  %326 = vmatprep.mubr.f32.mxu0 0.0
  %327 = vmatmul.mubr.f32.gmra.mxu0 %v245
  %v328 = vpop.f32.mrf.mxu0
  %v329 = vadd.f32 0.0, %v328
  %v330 = vpop.f32.mrf.mxu0
  %331 = vdwg.mxu0
  %v332 = vmax.f32 %v226, %v314
  %v333 = vmax.f32 %v227, %v319
  %v334 = vmax.f32 %v228, %v324
  %v335 = vmax.f32 %v229, %v329
  %s336 = scalar_lea.vmem %s0, 96
  %v337 = vld [vmem:[%s336] sm:$0xff]
  %v338 = vld [vmem:[%s336 + $0x8] sm:$0xff]
  %v339 = vld [vmem:[%s336 + $0x10] sm:$0xff]
  %v340 = vld [vmem:[%s336 + $0x18] sm:$0xff]
  %v342 = vsel %vm26, %v337, 0
  %v345 = vsel %vm26, %v338, 0
  %v348 = vsel %vm26, %v339, 0
  %v351 = vsel %vm26, %v340, 0
  %353 = vmatprep.subr.mxu0 0.0
  %354 = vmatpush1.msra.mxu0 0.0
  %355 = vmatprep.subr.mxu0 0.0
  %356 = vmatpush1.msra.mxu0 0.0
  %357 = vmatprep.subr.mxu0 0.0
  %358 = vmatpush1.msra.mxu0 0.0
  %359 = vmatprep.subr.mxu0 0.0
  %360 = vmatpush1.msra.mxu0 0.0
  %361 = vmatprep.subr.mxu0 0.0
  %362 = vmatpush1.msra.mxu0 0.0
  %363 = vmatprep.subr.mxu0 0.0
  %364 = vmatpush1.msra.mxu0 0.0
  %365 = vmatprep.subr.mxu0 0.0
  %366 = vmatpush1.msra.mxu0 0.0
  %367 = vmatprep.subr.mxu0 0.0
  %368 = vmatpush1.msra.mxu0 0.0
  %369 = vmatprep.subr.mxu0 0.0
  %370 = vmatpush1.msra.mxu0 %v21
  %371 = vmatprep.subr.mxu0 0.0
  %372 = vmatpush1.msra.mxu0 %v20
  %373 = vmatprep.subr.mxu0 0.0
  %374 = vmatpush1.msra.mxu0 %v19
  %375 = vmatprep.subr.mxu0 0.0
  %376 = vmatpush1.msra.mxu0 %v18
  %377 = vmatprep.subr.mxu0 0.0
  %378 = vmatpush1.msra.mxu0 %v17
  %379 = vmatprep.subr.mxu0 0.0
  %380 = vmatpush1.msra.mxu0 %v16
  %381 = vmatprep.subr.mxu0 0.0
  %382 = vmatpush1.msra.mxu0 %v15
  %383 = vmatprep.subr.mxu0 0.0
  %384 = vmatpush1.msra.mxu0 %v14
  %385 = vmatprep.subr.mxu0 0.0
  %386 = vmatpush2.msra.mxu0 0.0
  %387 = vmatprep.subr.mxu0 0.0
  %388 = vmatpush2.msra.mxu0 0.0
  %389 = vmatprep.subr.mxu0 0.0
  %390 = vmatpush2.msra.mxu0 0.0
  %391 = vmatprep.subr.mxu0 0.0
  %392 = vmatpush2.msra.mxu0 0.0
  %393 = vmatprep.subr.mxu0 0.0
  %394 = vmatpush2.msra.mxu0 0.0
  %395 = vmatprep.subr.mxu0 0.0
  %396 = vmatpush2.msra.mxu0 0.0
  %397 = vmatprep.subr.mxu0 0.0
  %398 = vmatpush2.msra.mxu0 0.0
  %399 = vmatprep.subr.mxu0 0.0
  %400 = vmatpush2.msra.mxu0 0.0
  %401 = vmatprep.subr.mxu0 0.0
  %402 = vmatpush2.msra.mxu0 0.0
  %403 = vmatprep.subr.mxu0 0.0
  %404 = vmatpush2.msra.mxu0 0.0
  %405 = vmatprep.subr.mxu0 0.0
  %406 = vmatpush2.msra.mxu0 0.0
  %407 = vmatprep.subr.mxu0 0.0
  %408 = vmatpush2.msra.mxu0 0.0
  %409 = vmatprep.subr.mxu0 0.0
  %410 = vmatpush2.msra.mxu0 0.0
  %411 = vmatprep.subr.mxu0 0.0
  %412 = vmatpush2.msra.mxu0 0.0
  %413 = vmatprep.subr.mxu0 0.0
  %414 = vmatpush2.msra.mxu0 0.0
  %415 = vmatprep.subr.mxu0 0.0
  %416 = vmatpush2.msra.mxu0 0.0
  %417 = vmatprep.mubr.f32.mxu0 0.0
  %418 = vmatmul.mubr.f32.gmra.mxu0 %v342
  %v419 = vpop.f32.mrf.mxu0
  %v420 = vadd.f32 0.0, %v419
  %v421 = vpop.f32.mrf.mxu0
  %422 = vmatprep.mubr.f32.mxu0 0.0
  %423 = vmatmul.mubr.f32.gmra.mxu0 %v345
  %v424 = vpop.f32.mrf.mxu0
  %v425 = vadd.f32 0.0, %v424
  %v426 = vpop.f32.mrf.mxu0
  %427 = vmatprep.mubr.f32.mxu0 0.0
  %428 = vmatmul.mubr.f32.gmra.mxu0 %v348
  %v429 = vpop.f32.mrf.mxu0
  %v430 = vadd.f32 0.0, %v429
  %v431 = vpop.f32.mrf.mxu0
  %432 = vmatprep.mubr.f32.mxu0 0.0
  %433 = vmatmul.mubr.f32.gmra.mxu0 %v351
  %v434 = vpop.f32.mrf.mxu0
  %v435 = vadd.f32 0.0, %v434
  %v436 = vpop.f32.mrf.mxu0
  %437 = vdwg.mxu0
  %v438 = vmax.f32 %v332, %v420
  %v439 = vmax.f32 %v333, %v425
  %v440 = vmax.f32 %v334, %v430
  %v441 = vmax.f32 %v335, %v435
  %s442 = scalar_lea.vmem %s0, 128
  %v443 = vld [vmem:[%s442] sm:$0xff]
  %v444 = vld [vmem:[%s442 + $0x8] sm:$0xff]
  %v445 = vld [vmem:[%s442 + $0x10] sm:$0xff]
  %v446 = vld [vmem:[%s442 + $0x18] sm:$0xff]
  %v448 = vsel %vm26, %v443, 0
  %v451 = vsel %vm26, %v444, 0
  %v454 = vsel %vm26, %v445, 0
  %v457 = vsel %vm26, %v446, 0
  %459 = vmatprep.subr.mxu0 0.0
  %460 = vmatpush1.msra.mxu0 0.0
  %461 = vmatprep.subr.mxu0 0.0
  %462 = vmatpush1.msra.mxu0 0.0
  %463 = vmatprep.subr.mxu0 0.0
  %464 = vmatpush1.msra.mxu0 0.0
  %465 = vmatprep.subr.mxu0 0.0
  %466 = vmatpush1.msra.mxu0 0.0
  %467 = vmatprep.subr.mxu0 0.0
  %468 = vmatpush1.msra.mxu0 0.0
  %469 = vmatprep.subr.mxu0 0.0
  %470 = vmatpush1.msra.mxu0 0.0
  %471 = vmatprep.subr.mxu0 0.0
  %472 = vmatpush1.msra.mxu0 0.0
  %473 = vmatprep.subr.mxu0 0.0
  %474 = vmatpush1.msra.mxu0 0.0
  %475 = vmatprep.subr.mxu0 0.0
  %476 = vmatpush1.msra.mxu0 %v21
  %477 = vmatprep.subr.mxu0 0.0
  %478 = vmatpush1.msra.mxu0 %v20
  %479 = vmatprep.subr.mxu0 0.0
  %480 = vmatpush1.msra.mxu0 %v19
  %481 = vmatprep.subr.mxu0 0.0
  %482 = vmatpush1.msra.mxu0 %v18
  %483 = vmatprep.subr.mxu0 0.0
  %484 = vmatpush1.msra.mxu0 %v17
  %485 = vmatprep.subr.mxu0 0.0
  %486 = vmatpush1.msra.mxu0 %v16
  %487 = vmatprep.subr.mxu0 0.0
  %488 = vmatpush1.msra.mxu0 %v15
  %489 = vmatprep.subr.mxu0 0.0
  %490 = vmatpush1.msra.mxu0 %v14
  %491 = vmatprep.subr.mxu0 0.0
  %492 = vmatpush2.msra.mxu0 0.0
  %493 = vmatprep.subr.mxu0 0.0
  %494 = vmatpush2.msra.mxu0 0.0
  %495 = vmatprep.subr.mxu0 0.0
  %496 = vmatpush2.msra.mxu0 0.0
  %497 = vmatprep.subr.mxu0 0.0
  %498 = vmatpush2.msra.mxu0 0.0
  %499 = vmatprep.subr.mxu0 0.0
  %500 = vmatpush2.msra.mxu0 0.0
  %501 = vmatprep.subr.mxu0 0.0
  %502 = vmatpush2.msra.mxu0 0.0
  %503 = vmatprep.subr.mxu0 0.0
  %504 = vmatpush2.msra.mxu0 0.0
  %505 = vmatprep.subr.mxu0 0.0
  %506 = vmatpush2.msra.mxu0 0.0
  %507 = vmatprep.subr.mxu0 0.0
  %508 = vmatpush2.msra.mxu0 0.0
  %509 = vmatprep.subr.mxu0 0.0
  %510 = vmatpush2.msra.mxu0 0.0
  %511 = vmatprep.subr.mxu0 0.0
  %512 = vmatpush2.msra.mxu0 0.0
  %513 = vmatprep.subr.mxu0 0.0
  %514 = vmatpush2.msra.mxu0 0.0
  %515 = vmatprep.subr.mxu0 0.0
  %516 = vmatpush2.msra.mxu0 0.0
  %517 = vmatprep.subr.mxu0 0.0
  %518 = vmatpush2.msra.mxu0 0.0
  %519 = vmatprep.subr.mxu0 0.0
  %520 = vmatpush2.msra.mxu0 0.0
  %521 = vmatprep.subr.mxu0 0.0
  %522 = vmatpush2.msra.mxu0 0.0
  %523 = vmatprep.mubr.f32.mxu0 0.0
  %524 = vmatmul.mubr.f32.gmra.mxu0 %v448
  %v525 = vpop.f32.mrf.mxu0
  %v526 = vadd.f32 0.0, %v525
  %v527 = vpop.f32.mrf.mxu0
  %528 = vmatprep.mubr.f32.mxu0 0.0
  %529 = vmatmul.mubr.f32.gmra.mxu0 %v451
  %v530 = vpop.f32.mrf.mxu0
  %v531 = vadd.f32 0.0, %v530
  %v532 = vpop.f32.mrf.mxu0
  %533 = vmatprep.mubr.f32.mxu0 0.0
  %534 = vmatmul.mubr.f32.gmra.mxu0 %v454
  %v535 = vpop.f32.mrf.mxu0
  %v536 = vadd.f32 0.0, %v535
  %v537 = vpop.f32.mrf.mxu0
  %538 = vmatprep.mubr.f32.mxu0 0.0
  %539 = vmatmul.mubr.f32.gmra.mxu0 %v457
  %v540 = vpop.f32.mrf.mxu0
  %v541 = vadd.f32 0.0, %v540
  %v542 = vpop.f32.mrf.mxu0
  %543 = vdwg.mxu0
  %v544 = vmax.f32 %v438, %v526
  %v545 = vmax.f32 %v439, %v531
  %v546 = vmax.f32 %v440, %v536
  %v547 = vmax.f32 %v441, %v541
  %s548 = scalar_lea.vmem %s0, 160
  %v549 = vld [vmem:[%s548] sm:$0xff]
  %v550 = vld [vmem:[%s548 + $0x8] sm:$0xff]
  %v551 = vld [vmem:[%s548 + $0x10] sm:$0xff]
  %v552 = vld [vmem:[%s548 + $0x18] sm:$0xff]
  %v554 = vsel %vm26, %v549, 0
  %v557 = vsel %vm26, %v550, 0
  %v560 = vsel %vm26, %v551, 0
  %v563 = vsel %vm26, %v552, 0
  %565 = vmatprep.subr.mxu0 0.0
  %566 = vmatpush1.msra.mxu0 0.0
  %567 = vmatprep.subr.mxu0 0.0
  %568 = vmatpush1.msra.mxu0 0.0
  %569 = vmatprep.subr.mxu0 0.0
  %570 = vmatpush1.msra.mxu0 0.0
  %571 = vmatprep.subr.mxu0 0.0
  %572 = vmatpush1.msra.mxu0 0.0
  %573 = vmatprep.subr.mxu0 0.0
  %574 = vmatpush1.msra.mxu0 0.0
  %575 = vmatprep.subr.mxu0 0.0
  %576 = vmatpush1.msra.mxu0 0.0
  %577 = vmatprep.subr.mxu0 0.0
  %578 = vmatpush1.msra.mxu0 0.0
  %579 = vmatprep.subr.mxu0 0.0
  %580 = vmatpush1.msra.mxu0 0.0
  %581 = vmatprep.subr.mxu0 0.0
  %582 = vmatpush1.msra.mxu0 %v21
  %583 = vmatprep.subr.mxu0 0.0
  %584 = vmatpush1.msra.mxu0 %v20
  %585 = vmatprep.subr.mxu0 0.0
  %586 = vmatpush1.msra.mxu0 %v19
  %587 = vmatprep.subr.mxu0 0.0
  %588 = vmatpush1.msra.mxu0 %v18
  %589 = vmatprep.subr.mxu0 0.0
  %590 = vmatpush1.msra.mxu0 %v17
  %591 = vmatprep.subr.mxu0 0.0
  %592 = vmatpush1.msra.mxu0 %v16
  %593 = vmatprep.subr.mxu0 0.0
  %594 = vmatpush1.msra.mxu0 %v15
  %595 = vmatprep.subr.mxu0 0.0
  %596 = vmatpush1.msra.mxu0 %v14
  %597 = vmatprep.subr.mxu0 0.0
  %598 = vmatpush2.msra.mxu0 0.0
  %599 = vmatprep.subr.mxu0 0.0
  %600 = vmatpush2.msra.mxu0 0.0
  %601 = vmatprep.subr.mxu0 0.0
  %602 = vmatpush2.msra.mxu0 0.0
  %603 = vmatprep.subr.mxu0 0.0
  %604 = vmatpush2.msra.mxu0 0.0
  %605 = vmatprep.subr.mxu0 0.0
  %606 = vmatpush2.msra.mxu0 0.0
  %607 = vmatprep.subr.mxu0 0.0
  %608 = vmatpush2.msra.mxu0 0.0
  %609 = vmatprep.subr.mxu0 0.0
  %610 = vmatpush2.msra.mxu0 0.0
  %611 = vmatprep.subr.mxu0 0.0
  %612 = vmatpush2.msra.mxu0 0.0
  %613 = vmatprep.subr.mxu0 0.0
  %614 = vmatpush2.msra.mxu0 0.0
  %615 = vmatprep.subr.mxu0 0.0
  %616 = vmatpush2.msra.mxu0 0.0
  %617 = vmatprep.subr.mxu0 0.0
  %618 = vmatpush2.msra.mxu0 0.0
  %619 = vmatprep.subr.mxu0 0.0
  %620 = vmatpush2.msra.mxu0 0.0
  %621 = vmatprep.subr.mxu0 0.0
  %622 = vmatpush2.msra.mxu0 0.0
  %623 = vmatprep.subr.mxu0 0.0
  %624 = vmatpush2.msra.mxu0 0.0
  %625 = vmatprep.subr.mxu0 0.0
  %626 = vmatpush2.msra.mxu0 0.0
  %627 = vmatprep.subr.mxu0 0.0
  %628 = vmatpush2.msra.mxu0 0.0
  %629 = vmatprep.mubr.f32.mxu0 0.0
  %630 = vmatmul.mubr.f32.gmra.mxu0 %v554
  %v631 = vpop.f32.mrf.mxu0
  %v632 = vadd.f32 0.0, %v631
  %v633 = vpop.f32.mrf.mxu0
  %634 = vmatprep.mubr.f32.mxu0 0.0
  %635 = vmatmul.mubr.f32.gmra.mxu0 %v557
  %v636 = vpop.f32.mrf.mxu0
  %v637 = vadd.f32 0.0, %v636
  %v638 = vpop.f32.mrf.mxu0
  %639 = vmatprep.mubr.f32.mxu0 0.0
  %640 = vmatmul.mubr.f32.gmra.mxu0 %v560
  %v641 = vpop.f32.mrf.mxu0
  %v642 = vadd.f32 0.0, %v641
  %v643 = vpop.f32.mrf.mxu0
  %644 = vmatprep.mubr.f32.mxu0 0.0
  %645 = vmatmul.mubr.f32.gmra.mxu0 %v563
  %v646 = vpop.f32.mrf.mxu0
  %v647 = vadd.f32 0.0, %v646
  %v648 = vpop.f32.mrf.mxu0
  %649 = vdwg.mxu0
  %v650 = vmax.f32 %v544, %v632
  %v651 = vmax.f32 %v545, %v637
  %v652 = vmax.f32 %v546, %v642
  %v653 = vmax.f32 %v547, %v647
  %s654 = scalar_lea.vmem %s0, 192
  %v655 = vld [vmem:[%s654] sm:$0xff]
  %v656 = vld [vmem:[%s654 + $0x8] sm:$0xff]
  %v657 = vld [vmem:[%s654 + $0x10] sm:$0xff]
  %v658 = vld [vmem:[%s654 + $0x18] sm:$0xff]
  %v660 = vsel %vm26, %v655, 0
  %v663 = vsel %vm26, %v656, 0
  %v666 = vsel %vm26, %v657, 0
  %v669 = vsel %vm26, %v658, 0
  %671 = vmatprep.subr.mxu0 0.0
  %672 = vmatpush1.msra.mxu0 0.0
  %673 = vmatprep.subr.mxu0 0.0
  %674 = vmatpush1.msra.mxu0 0.0
  %675 = vmatprep.subr.mxu0 0.0
  %676 = vmatpush1.msra.mxu0 0.0
  %677 = vmatprep.subr.mxu0 0.0
  %678 = vmatpush1.msra.mxu0 0.0
  %679 = vmatprep.subr.mxu0 0.0
  %680 = vmatpush1.msra.mxu0 0.0
  %681 = vmatprep.subr.mxu0 0.0
  %682 = vmatpush1.msra.mxu0 0.0
  %683 = vmatprep.subr.mxu0 0.0
  %684 = vmatpush1.msra.mxu0 0.0
  %685 = vmatprep.subr.mxu0 0.0
  %686 = vmatpush1.msra.mxu0 0.0
  %687 = vmatprep.subr.mxu0 0.0
  %688 = vmatpush1.msra.mxu0 %v21
  %689 = vmatprep.subr.mxu0 0.0
  %690 = vmatpush1.msra.mxu0 %v20
  %691 = vmatprep.subr.mxu0 0.0
  %692 = vmatpush1.msra.mxu0 %v19
  %693 = vmatprep.subr.mxu0 0.0
  %694 = vmatpush1.msra.mxu0 %v18
  %695 = vmatprep.subr.mxu0 0.0
  %696 = vmatpush1.msra.mxu0 %v17
  %697 = vmatprep.subr.mxu0 0.0
  %698 = vmatpush1.msra.mxu0 %v16
  %699 = vmatprep.subr.mxu0 0.0
  %700 = vmatpush1.msra.mxu0 %v15
  %701 = vmatprep.subr.mxu0 0.0
  %702 = vmatpush1.msra.mxu0 %v14
  %703 = vmatprep.subr.mxu0 0.0
  %704 = vmatpush2.msra.mxu0 0.0
  %705 = vmatprep.subr.mxu0 0.0
  %706 = vmatpush2.msra.mxu0 0.0
  %707 = vmatprep.subr.mxu0 0.0
  %708 = vmatpush2.msra.mxu0 0.0
  %709 = vmatprep.subr.mxu0 0.0
  %710 = vmatpush2.msra.mxu0 0.0
  %711 = vmatprep.subr.mxu0 0.0
  %712 = vmatpush2.msra.mxu0 0.0
  %713 = vmatprep.subr.mxu0 0.0
  %714 = vmatpush2.msra.mxu0 0.0
  %715 = vmatprep.subr.mxu0 0.0
  %716 = vmatpush2.msra.mxu0 0.0
  %717 = vmatprep.subr.mxu0 0.0
  %718 = vmatpush2.msra.mxu0 0.0
  %719 = vmatprep.subr.mxu0 0.0
  %720 = vmatpush2.msra.mxu0 0.0
  %721 = vmatprep.subr.mxu0 0.0
  %722 = vmatpush2.msra.mxu0 0.0
  %723 = vmatprep.subr.mxu0 0.0
  %724 = vmatpush2.msra.mxu0 0.0
  %725 = vmatprep.subr.mxu0 0.0
  %726 = vmatpush2.msra.mxu0 0.0
  %727 = vmatprep.subr.mxu0 0.0
  %728 = vmatpush2.msra.mxu0 0.0
  %729 = vmatprep.subr.mxu0 0.0
  %730 = vmatpush2.msra.mxu0 0.0
  %731 = vmatprep.subr.mxu0 0.0
  %732 = vmatpush2.msra.mxu0 0.0
  %733 = vmatprep.subr.mxu0 0.0
  %734 = vmatpush2.msra.mxu0 0.0
  %735 = vmatprep.mubr.f32.mxu0 0.0
  %736 = vmatmul.mubr.f32.gmra.mxu0 %v660
  %v737 = vpop.f32.mrf.mxu0
  %v738 = vadd.f32 0.0, %v737
  %v739 = vpop.f32.mrf.mxu0
  %740 = vmatprep.mubr.f32.mxu0 0.0
  %741 = vmatmul.mubr.f32.gmra.mxu0 %v663
  %v742 = vpop.f32.mrf.mxu0
  %v743 = vadd.f32 0.0, %v742
  %v744 = vpop.f32.mrf.mxu0
  %745 = vmatprep.mubr.f32.mxu0 0.0
  %746 = vmatmul.mubr.f32.gmra.mxu0 %v666
  %v747 = vpop.f32.mrf.mxu0
  %v748 = vadd.f32 0.0, %v747
  %v749 = vpop.f32.mrf.mxu0
  %750 = vmatprep.mubr.f32.mxu0 0.0
  %751 = vmatmul.mubr.f32.gmra.mxu0 %v669
  %v752 = vpop.f32.mrf.mxu0
  %v753 = vadd.f32 0.0, %v752
  %v754 = vpop.f32.mrf.mxu0
  %755 = vdwg.mxu0
  %v756 = vmax.f32 %v650, %v738
  %v757 = vmax.f32 %v651, %v743
  %v758 = vmax.f32 %v652, %v748
  %v759 = vmax.f32 %v653, %v753
  %s760 = scalar_lea.vmem %s0, 224
  %v761 = vld [vmem:[%s760] sm:$0xff]
  %v762 = vld [vmem:[%s760 + $0x8] sm:$0xff]
  %v763 = vld [vmem:[%s760 + $0x10] sm:$0xff]
  %v764 = vld [vmem:[%s760 + $0x18] sm:$0xff]
  %v766 = vsel %vm26, %v761, 0
  %v769 = vsel %vm26, %v762, 0
  %v772 = vsel %vm26, %v763, 0
  %v775 = vsel %vm26, %v764, 0
  %777 = vmatprep.subr.mxu0 0.0
  %778 = vmatpush1.msra.mxu0 0.0
  %779 = vmatprep.subr.mxu0 0.0
  %780 = vmatpush1.msra.mxu0 0.0
  %781 = vmatprep.subr.mxu0 0.0
  %782 = vmatpush1.msra.mxu0 0.0
  %783 = vmatprep.subr.mxu0 0.0
  %784 = vmatpush1.msra.mxu0 0.0
  %785 = vmatprep.subr.mxu0 0.0
  %786 = vmatpush1.msra.mxu0 0.0
  %787 = vmatprep.subr.mxu0 0.0
  %788 = vmatpush1.msra.mxu0 0.0
  %789 = vmatprep.subr.mxu0 0.0
  %790 = vmatpush1.msra.mxu0 0.0
  %791 = vmatprep.subr.mxu0 0.0
  %792 = vmatpush1.msra.mxu0 0.0
  %793 = vmatprep.subr.mxu0 0.0
  %794 = vmatpush1.msra.mxu0 %v21
  %795 = vmatprep.subr.mxu0 0.0
  %796 = vmatpush1.msra.mxu0 %v20
  %797 = vmatprep.subr.mxu0 0.0
  %798 = vmatpush1.msra.mxu0 %v19
  %799 = vmatprep.subr.mxu0 0.0
  %800 = vmatpush1.msra.mxu0 %v18
  %801 = vmatprep.subr.mxu0 0.0
  %802 = vmatpush1.msra.mxu0 %v17
  %803 = vmatprep.subr.mxu0 0.0
  %804 = vmatpush1.msra.mxu0 %v16
  %805 = vmatprep.subr.mxu0 0.0
  %806 = vmatpush1.msra.mxu0 %v15
  %807 = vmatprep.subr.mxu0 0.0
  %808 = vmatpush1.msra.mxu0 %v14
  %809 = vmatprep.subr.mxu0 0.0
  %810 = vmatpush2.msra.mxu0 0.0
  %811 = vmatprep.subr.mxu0 0.0
  %812 = vmatpush2.msra.mxu0 0.0
  %813 = vmatprep.subr.mxu0 0.0
  %814 = vmatpush2.msra.mxu0 0.0
  %815 = vmatprep.subr.mxu0 0.0
  %816 = vmatpush2.msra.mxu0 0.0
  %817 = vmatprep.subr.mxu0 0.0
  %818 = vmatpush2.msra.mxu0 0.0
  %819 = vmatprep.subr.mxu0 0.0
  %820 = vmatpush2.msra.mxu0 0.0
  %821 = vmatprep.subr.mxu0 0.0
  %822 = vmatpush2.msra.mxu0 0.0
  %823 = vmatprep.subr.mxu0 0.0
  %824 = vmatpush2.msra.mxu0 0.0
  %825 = vmatprep.subr.mxu0 0.0
  %826 = vmatpush2.msra.mxu0 0.0
  %827 = vmatprep.subr.mxu0 0.0
  %828 = vmatpush2.msra.mxu0 0.0
  %829 = vmatprep.subr.mxu0 0.0
  %830 = vmatpush2.msra.mxu0 0.0
  %831 = vmatprep.subr.mxu0 0.0
  %832 = vmatpush2.msra.mxu0 0.0
  %833 = vmatprep.subr.mxu0 0.0
  %834 = vmatpush2.msra.mxu0 0.0
  %835 = vmatprep.subr.mxu0 0.0
  %836 = vmatpush2.msra.mxu0 0.0
  %837 = vmatprep.subr.mxu0 0.0
  %838 = vmatpush2.msra.mxu0 0.0
  %839 = vmatprep.subr.mxu0 0.0
  %840 = vmatpush2.msra.mxu0 0.0
  %841 = vmatprep.mubr.f32.mxu0 0.0
  %842 = vmatmul.mubr.f32.gmra.mxu0 %v766
  %v843 = vpop.f32.mrf.mxu0
  %v844 = vadd.f32 0.0, %v843
  %v845 = vpop.f32.mrf.mxu0
  %846 = vmatprep.mubr.f32.mxu0 0.0
  %847 = vmatmul.mubr.f32.gmra.mxu0 %v769
  %v848 = vpop.f32.mrf.mxu0
  %v849 = vadd.f32 0.0, %v848
  %v850 = vpop.f32.mrf.mxu0
  %851 = vmatprep.mubr.f32.mxu0 0.0
  %852 = vmatmul.mubr.f32.gmra.mxu0 %v772
  %v853 = vpop.f32.mrf.mxu0
  %v854 = vadd.f32 0.0, %v853
  %v855 = vpop.f32.mrf.mxu0
  %856 = vmatprep.mubr.f32.mxu0 0.0
  %857 = vmatmul.mubr.f32.gmra.mxu0 %v775
  %v858 = vpop.f32.mrf.mxu0
  %v859 = vadd.f32 0.0, %v858
  %v860 = vpop.f32.mrf.mxu0
  %861 = vdwg.mxu0
  %v862 = vmax.f32 %v756, %v844
  %v863 = vmax.f32 %v757, %v849
  %v864 = vmax.f32 %v758, %v854
  %v865 = vmax.f32 %v759, %v859
  %s866 = scalar_lea.vmem %s0, 256
  %v867 = vld [vmem:[%s866] sm:$0xff]
  %v868 = vld [vmem:[%s866 + $0x8] sm:$0xff]
  %v869 = vld [vmem:[%s866 + $0x10] sm:$0xff]
  %v870 = vld [vmem:[%s866 + $0x18] sm:$0xff]
  %v872 = vsel %vm26, %v867, 0
  %v875 = vsel %vm26, %v868, 0
  %v878 = vsel %vm26, %v869, 0
  %v881 = vsel %vm26, %v870, 0
  %883 = vmatprep.subr.mxu0 0.0
  %884 = vmatpush1.msra.mxu0 0.0
  %885 = vmatprep.subr.mxu0 0.0
  %886 = vmatpush1.msra.mxu0 0.0
  %887 = vmatprep.subr.mxu0 0.0
  %888 = vmatpush1.msra.mxu0 0.0
  %889 = vmatprep.subr.mxu0 0.0
  %890 = vmatpush1.msra.mxu0 0.0
  %891 = vmatprep.subr.mxu0 0.0
  %892 = vmatpush1.msra.mxu0 0.0
  %893 = vmatprep.subr.mxu0 0.0
  %894 = vmatpush1.msra.mxu0 0.0
  %895 = vmatprep.subr.mxu0 0.0
  %896 = vmatpush1.msra.mxu0 0.0
  %897 = vmatprep.subr.mxu0 0.0
  %898 = vmatpush1.msra.mxu0 0.0
  %899 = vmatprep.subr.mxu0 0.0
  %900 = vmatpush1.msra.mxu0 %v21
  %901 = vmatprep.subr.mxu0 0.0
  %902 = vmatpush1.msra.mxu0 %v20
  %903 = vmatprep.subr.mxu0 0.0
  %904 = vmatpush1.msra.mxu0 %v19
  %905 = vmatprep.subr.mxu0 0.0
  %906 = vmatpush1.msra.mxu0 %v18
  %907 = vmatprep.subr.mxu0 0.0
  %908 = vmatpush1.msra.mxu0 %v17
  %909 = vmatprep.subr.mxu0 0.0
  %910 = vmatpush1.msra.mxu0 %v16
  %911 = vmatprep.subr.mxu0 0.0
  %912 = vmatpush1.msra.mxu0 %v15
  %913 = vmatprep.subr.mxu0 0.0
  %914 = vmatpush1.msra.mxu0 %v14
  %915 = vmatprep.subr.mxu0 0.0
  %916 = vmatpush2.msra.mxu0 0.0
  %917 = vmatprep.subr.mxu0 0.0
  %918 = vmatpush2.msra.mxu0 0.0
  %919 = vmatprep.subr.mxu0 0.0
  %920 = vmatpush2.msra.mxu0 0.0
  %921 = vmatprep.subr.mxu0 0.0
  %922 = vmatpush2.msra.mxu0 0.0
  %923 = vmatprep.subr.mxu0 0.0
  %924 = vmatpush2.msra.mxu0 0.0
  %925 = vmatprep.subr.mxu0 0.0
  %926 = vmatpush2.msra.mxu0 0.0
  %927 = vmatprep.subr.mxu0 0.0
  %928 = vmatpush2.msra.mxu0 0.0
  %929 = vmatprep.subr.mxu0 0.0
  %930 = vmatpush2.msra.mxu0 0.0
  %931 = vmatprep.subr.mxu0 0.0
  %932 = vmatpush2.msra.mxu0 0.0
  %933 = vmatprep.subr.mxu0 0.0
  %934 = vmatpush2.msra.mxu0 0.0
  %935 = vmatprep.subr.mxu0 0.0
  %936 = vmatpush2.msra.mxu0 0.0
  %937 = vmatprep.subr.mxu0 0.0
  %938 = vmatpush2.msra.mxu0 0.0
  %939 = vmatprep.subr.mxu0 0.0
  %940 = vmatpush2.msra.mxu0 0.0
  %941 = vmatprep.subr.mxu0 0.0
  %942 = vmatpush2.msra.mxu0 0.0
  %943 = vmatprep.subr.mxu0 0.0
  %944 = vmatpush2.msra.mxu0 0.0
  %945 = vmatprep.subr.mxu0 0.0
  %946 = vmatpush2.msra.mxu0 0.0
  %947 = vmatprep.mubr.f32.mxu0 0.0
  %948 = vmatmul.mubr.f32.gmra.mxu0 %v872
  %v949 = vpop.f32.mrf.mxu0
  %v950 = vadd.f32 0.0, %v949
  %v951 = vpop.f32.mrf.mxu0
  %952 = vmatprep.mubr.f32.mxu0 0.0
  %953 = vmatmul.mubr.f32.gmra.mxu0 %v875
  %v954 = vpop.f32.mrf.mxu0
  %v955 = vadd.f32 0.0, %v954
  %v956 = vpop.f32.mrf.mxu0
  %957 = vmatprep.mubr.f32.mxu0 0.0
  %958 = vmatmul.mubr.f32.gmra.mxu0 %v878
  %v959 = vpop.f32.mrf.mxu0
  %v960 = vadd.f32 0.0, %v959
  %v961 = vpop.f32.mrf.mxu0
  %962 = vmatprep.mubr.f32.mxu0 0.0
  %963 = vmatmul.mubr.f32.gmra.mxu0 %v881
  %v964 = vpop.f32.mrf.mxu0
  %v965 = vadd.f32 0.0, %v964
  %v966 = vpop.f32.mrf.mxu0
  %967 = vdwg.mxu0
  %v968 = vmax.f32 %v862, %v950
  %v969 = vmax.f32 %v863, %v955
  %v970 = vmax.f32 %v864, %v960
  %v971 = vmax.f32 %v865, %v965
  %v972 = vld [vmem:[%s2] sm:$0x1]
  %v974 = vlaneseq
  %v975 = vshrl.u32 %v974, 7
  %v976 = vsub.s32 0, %v975
  %v977 = vrot.slane %v972, %v976
  %v979 = vadd.f32 %v968, %v977
  %v980 = vadd.f32 %v969, %v977
  %v981 = vadd.f32 %v970, %v977
  %v982 = vadd.f32 %v971, %v977
  %v983 = vmax.f32 %v979, 0.0
  %v984 = vmax.f32 %v980, 0.0
  %v985 = vmax.f32 %v981, 0.0
  %v986 = vmax.f32 %v982, 0.0
  %vm987 = vcmask 261120
  %988 = vst.msk [vmem:[%s3] sm:$0xff] %vm987, %v983
  %989 = vst.msk [vmem:[%s3 + $0x8] sm:$0xff] %vm987, %v984
  %990 = vst.msk [vmem:[%s3 + $0x10] sm:$0xff] %vm987, %v985
  %991 = vst.msk [vmem:[%s3 + $0x18] sm:$0xff] %vm987, %v986
  // Predicated region
  $region14: #{forward.8} parent=0 // pred_check
    _
  $region15: #{forward.8} parent=0 // pred_check_branch
    %993 = sbr.rel (0) target = $region17
  $region16: #{forward.8} parent=0 // pred_region
    _
  $region17: #{forward.8} parent=0 // pred_fallthru
    _
  // Predicated region
  $region18: #{forward.8} parent=0 // pred_check
    _
  $region19: #{forward.8} parent=0 // pred_check_branch
    %995 = sbr.rel (0) target = $region21
  $region20: #{forward.8} parent=0 // pred_region
    _
  $region21: #{forward.8} parent=0 // pred_fallthru
    _

// kernel: forward.7
$region0: #{forward.7}
  #allocation0 [shape = 'u32[]', space=smem, size = 0x4, offset = 0x4, fixed_abs, tag = 'smem constant byte address 0x4 - core index']
  #allocation1 [shape = 'u32[144,128]{1,0:T(1,128)}', space=vmem, size = 0x12000, scoped, tag = 'internal scratch']
  %s0 = inlined_call_operand.vmem [shape: f32[9,288,12], index: 0, kind: input, shape index: {}]
  %s1 = inlined_call_operand.vmem [shape: f32[12,16], index: 1, kind: input, shape index: {}]
  %s2 = inlined_call_operand.vmem [shape: f32[1,16], index: 2, kind: input, shape index: {}]
  %s3 = inlined_call_operand.vmem [shape: f32[288,16], index: 3, kind: output, shape index: {}]
  %s4 = sld [smem:[#allocation0]]
  $region22: #{forward.7} parent=0
    _
  %s6 = ssub.s32 1, %s4
  %s7 = scalar_select 0, %s6, %s4
  // Predicated region
  $region2: #{forward.7} parent=0 // pred_check
    _
  $region3: #{forward.7} parent=0 // pred_check_branch
    %9 = sbr.rel (0) target = $region5
  $region4: #{forward.7} parent=0 // pred_region
    _
  $region5: #{forward.7} parent=0 // pred_fallthru
    _
  // Predicated region
  $region6: #{forward.7} parent=0 // pred_check
    _
  $region7: #{forward.7} parent=0 // pred_check_branch
    %11 = sbr.rel (0) target = $region9
  $region8: #{forward.7} parent=0 // pred_region
    _
  $region9: #{forward.7} parent=0 // pred_fallthru
    _
  // Predicated region
  $region10: #{forward.7} parent=0 // pred_check
    _
  $region11: #{forward.7} parent=0 // pred_check_branch
    %13 = sbr.rel (0) target = $region13
  $region12: #{forward.7} parent=0 // pred_region
    _
  $region13: #{forward.7} parent=0 // pred_fallthru
    _
  %v14 = vld [vmem:[%s1] sm:$0xff]
  %v15 = vld [vmem:[%s1 + $0x8] sm:$0xf]
  %v16 = vld [vmem:[%s0] sm:$0xff]
  %v17 = vld [vmem:[%s0 + $0x8] sm:$0xff]
  %v18 = vld [vmem:[%s0 + $0x10] sm:$0xff]
  %v19 = vld [vmem:[%s0 + $0x18] sm:$0xff]
  %v20 = vld [vmem:[%s0 + $0x20] sm:$0xff]
  %v21 = vld [vmem:[%s0 + $0x28] sm:$0xff]
  %v22 = vld [vmem:[%s0 + $0x30] sm:$0xff]
  %v23 = vld [vmem:[%s0 + $0x38] sm:$0xff]
  %v24 = vld [vmem:[%s0 + $0x40] sm:$0xff]
  %v25 = vld [vmem:[%s0 + $0x48] sm:$0xff]
  %v26 = vld [vmem:[%s0 + $0x50] sm:$0xff]
  %v27 = vld [vmem:[%s0 + $0x58] sm:$0xff]
  %v28 = vld [vmem:[%s0 + $0x60] sm:$0xff]
  %v29 = vld [vmem:[%s0 + $0x68] sm:$0xff]
  %v30 = vld [vmem:[%s0 + $0x70] sm:$0xff]
  %v31 = vld [vmem:[%s0 + $0x78] sm:$0xff]
  %v32 = vld [vmem:[%s0 + $0x80] sm:$0xff]
  %v33 = vld [vmem:[%s0 + $0x88] sm:$0xff]
  %v34 = vld [vmem:[%s0 + $0x90] sm:$0xff]
  %v35 = vld [vmem:[%s0 + $0x98] sm:$0xff]
  %v36 = vld [vmem:[%s0 + $0xa0] sm:$0xff]
  %v37 = vld [vmem:[%s0 + $0xa8] sm:$0xff]
  %v38 = vld [vmem:[%s0 + $0xb0] sm:$0xff]
  %v39 = vld [vmem:[%s0 + $0xb8] sm:$0xff]
  %v40 = vld [vmem:[%s0 + $0xc0] sm:$0xff]
  %v41 = vld [vmem:[%s0 + $0xc8] sm:$0xff]
  %v42 = vld [vmem:[%s0 + $0xd0] sm:$0xff]
  %v43 = vld [vmem:[%s0 + $0xd8] sm:$0xff]
  %v44 = vld [vmem:[%s0 + $0xe0] sm:$0xff]
  %v45 = vld [vmem:[%s0 + $0xe8] sm:$0xff]
  %v46 = vld [vmem:[%s0 + $0xf0] sm:$0xff]
  %v47 = vld [vmem:[%s0 + $0xf8] sm:$0xff]
  %v48 = vld [vmem:[%s0 + $0x100] sm:$0xff]
  %v49 = vld [vmem:[%s0 + $0x108] sm:$0xff]
  %v50 = vld [vmem:[%s0 + $0x110] sm:$0xff]
  %v51 = vld [vmem:[%s0 + $0x118] sm:$0xff]
  %vm52 = vcmask 97280
  %v54 = vsel %vm52, %v16, 0
  %v57 = vsel %vm52, %v17, 0
  %v60 = vsel %vm52, %v18, 0
  %v63 = vsel %vm52, %v19, 0
  %v66 = vsel %vm52, %v20, 0
  %v69 = vsel %vm52, %v21, 0
  %v72 = vsel %vm52, %v22, 0
  %v75 = vsel %vm52, %v23, 0
  %v78 = vsel %vm52, %v24, 0
  %v81 = vsel %vm52, %v25, 0
  %v84 = vsel %vm52, %v26, 0
  %v87 = vsel %vm52, %v27, 0
  %v90 = vsel %vm52, %v28, 0
  %v93 = vsel %vm52, %v29, 0
  %v96 = vsel %vm52, %v30, 0
  %v99 = vsel %vm52, %v31, 0
  %v102 = vsel %vm52, %v32, 0
  %v105 = vsel %vm52, %v33, 0
  %v108 = vsel %vm52, %v34, 0
  %v111 = vsel %vm52, %v35, 0
  %v114 = vsel %vm52, %v36, 0
  %v117 = vsel %vm52, %v37, 0
  %v120 = vsel %vm52, %v38, 0
  %v123 = vsel %vm52, %v39, 0
  %v126 = vsel %vm52, %v40, 0
  %v129 = vsel %vm52, %v41, 0
  %v132 = vsel %vm52, %v42, 0
  %v135 = vsel %vm52, %v43, 0
  %v138 = vsel %vm52, %v44, 0
  %v141 = vsel %vm52, %v45, 0
  %v144 = vsel %vm52, %v46, 0
  %v147 = vsel %vm52, %v47, 0
  %v150 = vsel %vm52, %v48, 0
  %v153 = vsel %vm52, %v49, 0
  %v156 = vsel %vm52, %v50, 0
  %v159 = vsel %vm52, %v51, 0
  %vm161 = vcmask 1043456
  %v163 = vsel %vm161, %v15, 0
  %165 = vmatprep.subr.mxu0 0.0
  %166 = vmatpush1.msra.mxu0 0.0
  %167 = vmatprep.subr.mxu0 0.0
  %168 = vmatpush1.msra.mxu0 0.0
  %169 = vmatprep.subr.mxu0 0.0
  %170 = vmatpush1.msra.mxu0 0.0
  %171 = vmatprep.subr.mxu0 0.0
  %172 = vmatpush1.msra.mxu0 0.0
  %173 = vmatprep.subr.mxu0 0.0
  %174 = vmatpush1.msra.mxu0 0.0
  %175 = vmatprep.subr.mxu0 0.0
  %176 = vmatpush1.msra.mxu0 0.0
  %177 = vmatprep.subr.mxu0 0.0
  %178 = vmatpush1.msra.mxu0 0.0
  %179 = vmatprep.subr.mxu0 0.0
  %180 = vmatpush1.msra.mxu0 0.0
  %181 = vmatprep.subr.mxu0 0.0
  %182 = vmatpush1.msra.mxu0 0.0
  %183 = vmatprep.subr.mxu0 0.0
  %184 = vmatpush1.msra.mxu0 0.0
  %185 = vmatprep.subr.mxu0 0.0
  %186 = vmatpush1.msra.mxu0 0.0
  %187 = vmatprep.subr.mxu0 0.0
  %188 = vmatpush1.msra.mxu0 0.0
  %189 = vmatprep.subr.mxu0 0.0
  %190 = vmatpush1.msra.mxu0 0.0
  %191 = vmatprep.subr.mxu0 0.0
  %192 = vmatpush1.msra.mxu0 0.0
  %193 = vmatprep.subr.mxu0 0.0
  %194 = vmatpush1.msra.mxu0 %v163
  %195 = vmatprep.subr.mxu0 0.0
  %196 = vmatpush1.msra.mxu0 %v14
  %197 = vmatprep.subr.mxu0 0.0
  %198 = vmatpush2.msra.mxu0 0.0
  %199 = vmatprep.subr.mxu0 0.0
  %200 = vmatpush2.msra.mxu0 0.0
  %201 = vmatprep.subr.mxu0 0.0
  %202 = vmatpush2.msra.mxu0 0.0
  %203 = vmatprep.subr.mxu0 0.0
  %204 = vmatpush2.msra.mxu0 0.0
  %205 = vmatprep.subr.mxu0 0.0
  %206 = vmatpush2.msra.mxu0 0.0
  %207 = vmatprep.subr.mxu0 0.0
  %208 = vmatpush2.msra.mxu0 0.0
  %209 = vmatprep.subr.mxu0 0.0
  %210 = vmatpush2.msra.mxu0 0.0
  %211 = vmatprep.subr.mxu0 0.0
  %212 = vmatpush2.msra.mxu0 0.0
  %213 = vmatprep.subr.mxu0 0.0
  %214 = vmatpush2.msra.mxu0 0.0
  %215 = vmatprep.subr.mxu0 0.0
  %216 = vmatpush2.msra.mxu0 0.0
  %217 = vmatprep.subr.mxu0 0.0
  %218 = vmatpush2.msra.mxu0 0.0
  %219 = vmatprep.subr.mxu0 0.0
  %220 = vmatpush2.msra.mxu0 0.0
  %221 = vmatprep.subr.mxu0 0.0
  %222 = vmatpush2.msra.mxu0 0.0
  %223 = vmatprep.subr.mxu0 0.0
  %224 = vmatpush2.msra.mxu0 0.0
  %225 = vmatprep.subr.mxu0 0.0
  %226 = vmatpush2.msra.mxu0 0.0
  %227 = vmatprep.subr.mxu0 0.0
  %228 = vmatpush2.msra.mxu0 0.0
  %229 = vmatprep.mubr.f32.mxu0 0.0
  %230 = vmatmul.mubr.f32.gmra.mxu0 %v54
  %v231 = vpop.f32.mrf.mxu0
  %v232 = vadd.f32 0.0, %v231
  %v233 = vpop.f32.mrf.mxu0
  %234 = vmatprep.mubr.f32.mxu0 0.0
  %235 = vmatmul.mubr.f32.gmra.mxu0 %v57
  %v236 = vpop.f32.mrf.mxu0
  %v237 = vadd.f32 0.0, %v236
  %v238 = vpop.f32.mrf.mxu0
  %239 = vmatprep.mubr.f32.mxu0 0.0
  %240 = vmatmul.mubr.f32.gmra.mxu0 %v60
  %v241 = vpop.f32.mrf.mxu0
  %v242 = vadd.f32 0.0, %v241
  %v243 = vpop.f32.mrf.mxu0
  %244 = vmatprep.mubr.f32.mxu0 0.0
  %245 = vmatmul.mubr.f32.gmra.mxu0 %v63
  %v246 = vpop.f32.mrf.mxu0
  %v247 = vadd.f32 0.0, %v246
  %v248 = vpop.f32.mrf.mxu0
  %249 = vmatprep.mubr.f32.mxu0 0.0
  %250 = vmatmul.mubr.f32.gmra.mxu0 %v66
  %v251 = vpop.f32.mrf.mxu0
  %v252 = vadd.f32 0.0, %v251
  %v253 = vpop.f32.mrf.mxu0
  %254 = vmatprep.mubr.f32.mxu0 0.0
  %255 = vmatmul.mubr.f32.gmra.mxu0 %v69
  %v256 = vpop.f32.mrf.mxu0
  %v257 = vadd.f32 0.0, %v256
  %v258 = vpop.f32.mrf.mxu0
  %259 = vmatprep.mubr.f32.mxu0 0.0
  %260 = vmatmul.mubr.f32.gmra.mxu0 %v72
  %v261 = vpop.f32.mrf.mxu0
  %v262 = vadd.f32 0.0, %v261
  %v263 = vpop.f32.mrf.mxu0
  %264 = vmatprep.mubr.f32.mxu0 0.0
  %265 = vmatmul.mubr.f32.gmra.mxu0 %v75
  %v266 = vpop.f32.mrf.mxu0
  %v267 = vadd.f32 0.0, %v266
  %v268 = vpop.f32.mrf.mxu0
  %269 = vmatprep.mubr.f32.mxu0 0.0
  %270 = vmatmul.mubr.f32.gmra.mxu0 %v78
  %v271 = vpop.f32.mrf.mxu0
  %v272 = vadd.f32 0.0, %v271
  %v273 = vpop.f32.mrf.mxu0
  %274 = vmatprep.mubr.f32.mxu0 0.0
  %275 = vmatmul.mubr.f32.gmra.mxu0 %v81
  %v276 = vpop.f32.mrf.mxu0
  %v277 = vadd.f32 0.0, %v276
  %v278 = vpop.f32.mrf.mxu0
  %279 = vmatprep.mubr.f32.mxu0 0.0
  %280 = vmatmul.mubr.f32.gmra.mxu0 %v84
  %v281 = vpop.f32.mrf.mxu0
  %v282 = vadd.f32 0.0, %v281
  %v283 = vpop.f32.mrf.mxu0
  %284 = vmatprep.mubr.f32.mxu0 0.0
  %285 = vmatmul.mubr.f32.gmra.mxu0 %v87
  %v286 = vpop.f32.mrf.mxu0
  %v287 = vadd.f32 0.0, %v286
  %v288 = vpop.f32.mrf.mxu0
  %289 = vmatprep.mubr.f32.mxu0 0.0
  %290 = vmatmul.mubr.f32.gmra.mxu0 %v90
  %v291 = vpop.f32.mrf.mxu0
  %v292 = vadd.f32 0.0, %v291
  %v293 = vpop.f32.mrf.mxu0
  %294 = vmatprep.mubr.f32.mxu0 0.0
  %295 = vmatmul.mubr.f32.gmra.mxu0 %v93
  %v296 = vpop.f32.mrf.mxu0
  %v297 = vadd.f32 0.0, %v296
  %v298 = vpop.f32.mrf.mxu0
  %299 = vmatprep.mubr.f32.mxu0 0.0
  %300 = vmatmul.mubr.f32.gmra.mxu0 %v96
  %v301 = vpop.f32.mrf.mxu0
  %v302 = vadd.f32 0.0, %v301
  %v303 = vpop.f32.mrf.mxu0
  %304 = vmatprep.mubr.f32.mxu0 0.0
  %305 = vmatmul.mubr.f32.gmra.mxu0 %v99
  %v306 = vpop.f32.mrf.mxu0
  %v307 = vadd.f32 0.0, %v306
  %v308 = vpop.f32.mrf.mxu0
  %309 = vmatprep.mubr.f32.mxu0 0.0
  %310 = vmatmul.mubr.f32.gmra.mxu0 %v102
  %v311 = vpop.f32.mrf.mxu0
  %v312 = vadd.f32 0.0, %v311
  %v313 = vpop.f32.mrf.mxu0
  %314 = vmatprep.mubr.f32.mxu0 0.0
  %315 = vmatmul.mubr.f32.gmra.mxu0 %v105
  %v316 = vpop.f32.mrf.mxu0
  %v317 = vadd.f32 0.0, %v316
  %v318 = vpop.f32.mrf.mxu0
  %319 = vmatprep.mubr.f32.mxu0 0.0
  %320 = vmatmul.mubr.f32.gmra.mxu0 %v108
  %v321 = vpop.f32.mrf.mxu0
  %v322 = vadd.f32 0.0, %v321
  %v323 = vpop.f32.mrf.mxu0
  %324 = vmatprep.mubr.f32.mxu0 0.0
  %325 = vmatmul.mubr.f32.gmra.mxu0 %v111
  %v326 = vpop.f32.mrf.mxu0
  %v327 = vadd.f32 0.0, %v326
  %v328 = vpop.f32.mrf.mxu0
  %329 = vmatprep.mubr.f32.mxu0 0.0
  %330 = vmatmul.mubr.f32.gmra.mxu0 %v114
  %v331 = vpop.f32.mrf.mxu0
  %v332 = vadd.f32 0.0, %v331
  %v333 = vpop.f32.mrf.mxu0
  %334 = vmatprep.mubr.f32.mxu0 0.0
  %335 = vmatmul.mubr.f32.gmra.mxu0 %v117
  %v336 = vpop.f32.mrf.mxu0
  %v337 = vadd.f32 0.0, %v336
  %v338 = vpop.f32.mrf.mxu0
  %339 = vmatprep.mubr.f32.mxu0 0.0
  %340 = vmatmul.mubr.f32.gmra.mxu0 %v120
  %v341 = vpop.f32.mrf.mxu0
  %v342 = vadd.f32 0.0, %v341
  %v343 = vpop.f32.mrf.mxu0
  %344 = vmatprep.mubr.f32.mxu0 0.0
  %345 = vmatmul.mubr.f32.gmra.mxu0 %v123
  %v346 = vpop.f32.mrf.mxu0
  %v347 = vadd.f32 0.0, %v346
  %v348 = vpop.f32.mrf.mxu0
  %349 = vmatprep.mubr.f32.mxu0 0.0
  %350 = vmatmul.mubr.f32.gmra.mxu0 %v126
  %v351 = vpop.f32.mrf.mxu0
  %v352 = vadd.f32 0.0, %v351
  %v353 = vpop.f32.mrf.mxu0
  %354 = vmatprep.mubr.f32.mxu0 0.0
  %355 = vmatmul.mubr.f32.gmra.mxu0 %v129
  %v356 = vpop.f32.mrf.mxu0
  %v357 = vadd.f32 0.0, %v356
  %v358 = vpop.f32.mrf.mxu0
  %359 = vmatprep.mubr.f32.mxu0 0.0
  %360 = vmatmul.mubr.f32.gmra.mxu0 %v132
  %v361 = vpop.f32.mrf.mxu0
  %v362 = vadd.f32 0.0, %v361
  %v363 = vpop.f32.mrf.mxu0
  %364 = vmatprep.mubr.f32.mxu0 0.0
  %365 = vmatmul.mubr.f32.gmra.mxu0 %v135
  %v366 = vpop.f32.mrf.mxu0
  %v367 = vadd.f32 0.0, %v366
  %v368 = vpop.f32.mrf.mxu0
  %369 = vmatprep.mubr.f32.mxu0 0.0
  %370 = vmatmul.mubr.f32.gmra.mxu0 %v138
  %v371 = vpop.f32.mrf.mxu0
  %v372 = vadd.f32 0.0, %v371
  %v373 = vpop.f32.mrf.mxu0
  %374 = vmatprep.mubr.f32.mxu0 0.0
  %375 = vmatmul.mubr.f32.gmra.mxu0 %v141
  %v376 = vpop.f32.mrf.mxu0
  %v377 = vadd.f32 0.0, %v376
  %v378 = vpop.f32.mrf.mxu0
  %379 = vmatprep.mubr.f32.mxu0 0.0
  %380 = vmatmul.mubr.f32.gmra.mxu0 %v144
  %v381 = vpop.f32.mrf.mxu0
  %v382 = vadd.f32 0.0, %v381
  %v383 = vpop.f32.mrf.mxu0
  %384 = vmatprep.mubr.f32.mxu0 0.0
  %385 = vmatmul.mubr.f32.gmra.mxu0 %v147
  %v386 = vpop.f32.mrf.mxu0
  %v387 = vadd.f32 0.0, %v386
  %v388 = vpop.f32.mrf.mxu0
  %389 = vmatprep.mubr.f32.mxu0 0.0
  %390 = vmatmul.mubr.f32.gmra.mxu0 %v150
  %v391 = vpop.f32.mrf.mxu0
  %v392 = vadd.f32 0.0, %v391
  %v393 = vpop.f32.mrf.mxu0
  %394 = vmatprep.mubr.f32.mxu0 0.0
  %395 = vmatmul.mubr.f32.gmra.mxu0 %v153
  %v396 = vpop.f32.mrf.mxu0
  %v397 = vadd.f32 0.0, %v396
  %v398 = vpop.f32.mrf.mxu0
  %399 = vmatprep.mubr.f32.mxu0 0.0
  %400 = vmatmul.mubr.f32.gmra.mxu0 %v156
  %v401 = vpop.f32.mrf.mxu0
  %v402 = vadd.f32 0.0, %v401
  %v403 = vpop.f32.mrf.mxu0
  %404 = vmatprep.mubr.f32.mxu0 0.0
  %405 = vmatmul.mubr.f32.gmra.mxu0 %v159
  %v406 = vpop.f32.mrf.mxu0
  %v407 = vadd.f32 0.0, %v406
  %v408 = vpop.f32.mrf.mxu0
  %409 = vdwg.mxu0
  %s410 = scalar_lea.vmem %s0, 288
  %v411 = vld [vmem:[%s410] sm:$0xff]
  %v412 = vld [vmem:[%s410 + $0x8] sm:$0xff]
  %v413 = vld [vmem:[%s410 + $0x10] sm:$0xff]
  %v414 = vld [vmem:[%s410 + $0x18] sm:$0xff]
  %v415 = vld [vmem:[%s410 + $0x20] sm:$0xff]
  %v416 = vld [vmem:[%s410 + $0x28] sm:$0xff]
  %v417 = vld [vmem:[%s410 + $0x30] sm:$0xff]
  %v418 = vld [vmem:[%s410 + $0x38] sm:$0xff]
  %v419 = vld [vmem:[%s410 + $0x40] sm:$0xff]
  %v420 = vld [vmem:[%s410 + $0x48] sm:$0xff]
  %v421 = vld [vmem:[%s410 + $0x50] sm:$0xff]
  %v422 = vld [vmem:[%s410 + $0x58] sm:$0xff]
  %v423 = vld [vmem:[%s410 + $0x60] sm:$0xff]
  %v424 = vld [vmem:[%s410 + $0x68] sm:$0xff]
  %v425 = vld [vmem:[%s410 + $0x70] sm:$0xff]
  %v426 = vld [vmem:[%s410 + $0x78] sm:$0xff]
  %v427 = vld [vmem:[%s410 + $0x80] sm:$0xff]
  %v428 = vld [vmem:[%s410 + $0x88] sm:$0xff]
  %v429 = vld [vmem:[%s410 + $0x90] sm:$0xff]
  %v430 = vld [vmem:[%s410 + $0x98] sm:$0xff]
  %v431 = vld [vmem:[%s410 + $0xa0] sm:$0xff]
  %v432 = vld [vmem:[%s410 + $0xa8] sm:$0xff]
  %v433 = vld [vmem:[%s410 + $0xb0] sm:$0xff]
  %v434 = vld [vmem:[%s410 + $0xb8] sm:$0xff]
  %v435 = vld [vmem:[%s410 + $0xc0] sm:$0xff]
  %v436 = vld [vmem:[%s410 + $0xc8] sm:$0xff]
  %v437 = vld [vmem:[%s410 + $0xd0] sm:$0xff]
  %v438 = vld [vmem:[%s410 + $0xd8] sm:$0xff]
  %v439 = vld [vmem:[%s410 + $0xe0] sm:$0xff]
  %v440 = vld [vmem:[%s410 + $0xe8] sm:$0xff]
  %v441 = vld [vmem:[%s410 + $0xf0] sm:$0xff]
  %v442 = vld [vmem:[%s410 + $0xf8] sm:$0xff]
  %v443 = vld [vmem:[%s410 + $0x100] sm:$0xff]
  %v444 = vld [vmem:[%s410 + $0x108] sm:$0xff]
  %v445 = vld [vmem:[%s410 + $0x110] sm:$0xff]
  %v446 = vld [vmem:[%s410 + $0x118] sm:$0xff]
  %v448 = vsel %vm52, %v411, 0
  %v451 = vsel %vm52, %v412, 0
  %v454 = vsel %vm52, %v413, 0
  %v457 = vsel %vm52, %v414, 0
  %v460 = vsel %vm52, %v415, 0
  %v463 = vsel %vm52, %v416, 0
  %v466 = vsel %vm52, %v417, 0
  %v469 = vsel %vm52, %v418, 0
  %v472 = vsel %vm52, %v419, 0
  %v475 = vsel %vm52, %v420, 0
  %v478 = vsel %vm52, %v421, 0
  %v481 = vsel %vm52, %v422, 0
  %v484 = vsel %vm52, %v423, 0
  %v487 = vsel %vm52, %v424, 0
  %v490 = vsel %vm52, %v425, 0
  %v493 = vsel %vm52, %v426, 0
  %v496 = vsel %vm52, %v427, 0
  %v499 = vsel %vm52, %v428, 0
  %v502 = vsel %vm52, %v429, 0
  %v505 = vsel %vm52, %v430, 0
  %v508 = vsel %vm52, %v431, 0
  %v511 = vsel %vm52, %v432, 0
  %v514 = vsel %vm52, %v433, 0
  %v517 = vsel %vm52, %v434, 0
  %v520 = vsel %vm52, %v435, 0
  %v523 = vsel %vm52, %v436, 0
  %v526 = vsel %vm52, %v437, 0
  %v529 = vsel %vm52, %v438, 0
  %v532 = vsel %vm52, %v439, 0
  %v535 = vsel %vm52, %v440, 0
  %v538 = vsel %vm52, %v441, 0
  %v541 = vsel %vm52, %v442, 0
  %v544 = vsel %vm52, %v443, 0
  %v547 = vsel %vm52, %v444, 0
  %v550 = vsel %vm52, %v445, 0
  %v553 = vsel %vm52, %v446, 0
  %555 = vmatprep.subr.mxu0 0.0
  %556 = vmatpush1.msra.mxu0 0.0
  %557 = vmatprep.subr.mxu0 0.0
  %558 = vmatpush1.msra.mxu0 0.0
  %559 = vmatprep.subr.mxu0 0.0
  %560 = vmatpush1.msra.mxu0 0.0
  %561 = vmatprep.subr.mxu0 0.0
  %562 = vmatpush1.msra.mxu0 0.0
  %563 = vmatprep.subr.mxu0 0.0
  %564 = vmatpush1.msra.mxu0 0.0
  %565 = vmatprep.subr.mxu0 0.0
  %566 = vmatpush1.msra.mxu0 0.0
  %567 = vmatprep.subr.mxu0 0.0
  %568 = vmatpush1.msra.mxu0 0.0
  %569 = vmatprep.subr.mxu0 0.0
  %570 = vmatpush1.msra.mxu0 0.0
  %571 = vmatprep.subr.mxu0 0.0
  %572 = vmatpush1.msra.mxu0 0.0
  %573 = vmatprep.subr.mxu0 0.0
  %574 = vmatpush1.msra.mxu0 0.0
  %575 = vmatprep.subr.mxu0 0.0
  %576 = vmatpush1.msra.mxu0 0.0
  %577 = vmatprep.subr.mxu0 0.0
  %578 = vmatpush1.msra.mxu0 0.0
  %579 = vmatprep.subr.mxu0 0.0
  %580 = vmatpush1.msra.mxu0 0.0
  %581 = vmatprep.subr.mxu0 0.0
  %582 = vmatpush1.msra.mxu0 0.0
  %583 = vmatprep.subr.mxu0 0.0
  %584 = vmatpush1.msra.mxu0 %v163
  %585 = vmatprep.subr.mxu0 0.0
  %586 = vmatpush1.msra.mxu0 %v14
  %587 = vmatprep.subr.mxu0 0.0
  %588 = vmatpush2.msra.mxu0 0.0
  %589 = vmatprep.subr.mxu0 0.0
  %590 = vmatpush2.msra.mxu0 0.0
  %591 = vmatprep.subr.mxu0 0.0
  %592 = vmatpush2.msra.mxu0 0.0
  %593 = vmatprep.subr.mxu0 0.0
  %594 = vmatpush2.msra.mxu0 0.0
  %595 = vmatprep.subr.mxu0 0.0
  %596 = vmatpush2.msra.mxu0 0.0
  %597 = vmatprep.subr.mxu0 0.0
  %598 = vmatpush2.msra.mxu0 0.0
  %599 = vmatprep.subr.mxu0 0.0
  %600 = vmatpush2.msra.mxu0 0.0
  %601 = vmatprep.subr.mxu0 0.0
  %602 = vmatpush2.msra.mxu0 0.0
  %603 = vmatprep.subr.mxu0 0.0
  %604 = vmatpush2.msra.mxu0 0.0
  %605 = vmatprep.subr.mxu0 0.0
  %606 = vmatpush2.msra.mxu0 0.0
  %607 = vmatprep.subr.mxu0 0.0
  %608 = vmatpush2.msra.mxu0 0.0
  %609 = vmatprep.subr.mxu0 0.0
  %610 = vmatpush2.msra.mxu0 0.0
  %611 = vmatprep.subr.mxu0 0.0
  %612 = vmatpush2.msra.mxu0 0.0
  %613 = vmatprep.subr.mxu0 0.0
  %614 = vmatpush2.msra.mxu0 0.0
  %615 = vmatprep.subr.mxu0 0.0
  %616 = vmatpush2.msra.mxu0 0.0
  %617 = vmatprep.subr.mxu0 0.0
  %618 = vmatpush2.msra.mxu0 0.0
  %619 = vmatprep.mubr.f32.mxu0 0.0
  %620 = vmatmul.mubr.f32.gmra.mxu0 %v448
  %v621 = vpop.f32.mrf.mxu0
  %v622 = vadd.f32 0.0, %v621
  %v623 = vpop.f32.mrf.mxu0
  %624 = vmatprep.mubr.f32.mxu0 0.0
  %625 = vmatmul.mubr.f32.gmra.mxu0 %v451
  %v626 = vpop.f32.mrf.mxu0
  %v627 = vadd.f32 0.0, %v626
  %v628 = vpop.f32.mrf.mxu0
  %629 = vmatprep.mubr.f32.mxu0 0.0
  %630 = vmatmul.mubr.f32.gmra.mxu0 %v454
  %v631 = vpop.f32.mrf.mxu0
  %v632 = vadd.f32 0.0, %v631
  %v633 = vpop.f32.mrf.mxu0
  %634 = vmatprep.mubr.f32.mxu0 0.0
  %635 = vmatmul.mubr.f32.gmra.mxu0 %v457
  %v636 = vpop.f32.mrf.mxu0
  %v637 = vadd.f32 0.0, %v636
  %v638 = vpop.f32.mrf.mxu0
  %639 = vmatprep.mubr.f32.mxu0 0.0
  %640 = vmatmul.mubr.f32.gmra.mxu0 %v460
  %v641 = vpop.f32.mrf.mxu0
  %v642 = vadd.f32 0.0, %v641
  %v643 = vpop.f32.mrf.mxu0
  %644 = vmatprep.mubr.f32.mxu0 0.0
  %645 = vmatmul.mubr.f32.gmra.mxu0 %v463
  %v646 = vpop.f32.mrf.mxu0
  %v647 = vadd.f32 0.0, %v646
  %v648 = vpop.f32.mrf.mxu0
  %649 = vmatprep.mubr.f32.mxu0 0.0
  %650 = vmatmul.mubr.f32.gmra.mxu0 %v466
  %v651 = vpop.f32.mrf.mxu0
  %v652 = vadd.f32 0.0, %v651
  %v653 = vpop.f32.mrf.mxu0
  %654 = vmatprep.mubr.f32.mxu0 0.0
  %655 = vmatmul.mubr.f32.gmra.mxu0 %v469
  %v656 = vpop.f32.mrf.mxu0
  %v657 = vadd.f32 0.0, %v656
  %v658 = vpop.f32.mrf.mxu0
  %659 = vmatprep.mubr.f32.mxu0 0.0
  %660 = vmatmul.mubr.f32.gmra.mxu0 %v472
  %v661 = vpop.f32.mrf.mxu0
  %v662 = vadd.f32 0.0, %v661
  %v663 = vpop.f32.mrf.mxu0
  %664 = vmatprep.mubr.f32.mxu0 0.0
  %665 = vmatmul.mubr.f32.gmra.mxu0 %v475
  %v666 = vpop.f32.mrf.mxu0
  %v667 = vadd.f32 0.0, %v666
  %v668 = vpop.f32.mrf.mxu0
  %669 = vmatprep.mubr.f32.mxu0 0.0
  %670 = vmatmul.mubr.f32.gmra.mxu0 %v478
  %v671 = vpop.f32.mrf.mxu0
  %v672 = vadd.f32 0.0, %v671
  %v673 = vpop.f32.mrf.mxu0
  %674 = vmatprep.mubr.f32.mxu0 0.0
  %675 = vmatmul.mubr.f32.gmra.mxu0 %v481
  %v676 = vpop.f32.mrf.mxu0
  %v677 = vadd.f32 0.0, %v676
  %v678 = vpop.f32.mrf.mxu0
  %679 = vmatprep.mubr.f32.mxu0 0.0
  %680 = vmatmul.mubr.f32.gmra.mxu0 %v484
  %v681 = vpop.f32.mrf.mxu0
  %v682 = vadd.f32 0.0, %v681
  %v683 = vpop.f32.mrf.mxu0
  %684 = vmatprep.mubr.f32.mxu0 0.0
  %685 = vmatmul.mubr.f32.gmra.mxu0 %v487
  %v686 = vpop.f32.mrf.mxu0
  %v687 = vadd.f32 0.0, %v686
  %v688 = vpop.f32.mrf.mxu0
  %689 = vmatprep.mubr.f32.mxu0 0.0
  %690 = vmatmul.mubr.f32.gmra.mxu0 %v490
  %v691 = vpop.f32.mrf.mxu0
  %v692 = vadd.f32 0.0, %v691
  %v693 = vpop.f32.mrf.mxu0
  %694 = vmatprep.mubr.f32.mxu0 0.0
  %695 = vmatmul.mubr.f32.gmra.mxu0 %v493
  %v696 = vpop.f32.mrf.mxu0
  %v697 = vadd.f32 0.0, %v696
  %v698 = vpop.f32.mrf.mxu0
  %699 = vmatprep.mubr.f32.mxu0 0.0
  %700 = vmatmul.mubr.f32.gmra.mxu0 %v496
  %v701 = vpop.f32.mrf.mxu0
  %v702 = vadd.f32 0.0, %v701
  %v703 = vpop.f32.mrf.mxu0
  %704 = vmatprep.mubr.f32.mxu0 0.0
  %705 = vmatmul.mubr.f32.gmra.mxu0 %v499
  %v706 = vpop.f32.mrf.mxu0
  %v707 = vadd.f32 0.0, %v706
  %v708 = vpop.f32.mrf.mxu0
  %709 = vmatprep.mubr.f32.mxu0 0.0
  %710 = vmatmul.mubr.f32.gmra.mxu0 %v502
  %v711 = vpop.f32.mrf.mxu0
  %v712 = vadd.f32 0.0, %v711
  %v713 = vpop.f32.mrf.mxu0
  %714 = vmatprep.mubr.f32.mxu0 0.0
  %715 = vmatmul.mubr.f32.gmra.mxu0 %v505
  %v716 = vpop.f32.mrf.mxu0
  %v717 = vadd.f32 0.0, %v716
  %v718 = vpop.f32.mrf.mxu0
  %719 = vmatprep.mubr.f32.mxu0 0.0
  %720 = vmatmul.mubr.f32.gmra.mxu0 %v508
  %v721 = vpop.f32.mrf.mxu0
  %v722 = vadd.f32 0.0, %v721
  %v723 = vpop.f32.mrf.mxu0
  %724 = vmatprep.mubr.f32.mxu0 0.0
  %725 = vmatmul.mubr.f32.gmra.mxu0 %v511
  %v726 = vpop.f32.mrf.mxu0
  %v727 = vadd.f32 0.0, %v726
  %v728 = vpop.f32.mrf.mxu0
  %729 = vmatprep.mubr.f32.mxu0 0.0
  %730 = vmatmul.mubr.f32.gmra.mxu0 %v514
  %v731 = vpop.f32.mrf.mxu0
  %v732 = vadd.f32 0.0, %v731
  %v733 = vpop.f32.mrf.mxu0
  %734 = vmatprep.mubr.f32.mxu0 0.0
  %735 = vmatmul.mubr.f32.gmra.mxu0 %v517
  %v736 = vpop.f32.mrf.mxu0
  %v737 = vadd.f32 0.0, %v736
  %v738 = vpop.f32.mrf.mxu0
  %739 = vmatprep.mubr.f32.mxu0 0.0
  %740 = vmatmul.mubr.f32.gmra.mxu0 %v520
  %v741 = vpop.f32.mrf.mxu0
  %v742 = vadd.f32 0.0, %v741
  %v743 = vpop.f32.mrf.mxu0
  %744 = vmatprep.mubr.f32.mxu0 0.0
  %745 = vmatmul.mubr.f32.gmra.mxu0 %v523
  %v746 = vpop.f32.mrf.mxu0
  %v747 = vadd.f32 0.0, %v746
  %v748 = vpop.f32.mrf.mxu0
  %749 = vmatprep.mubr.f32.mxu0 0.0
  %750 = vmatmul.mubr.f32.gmra.mxu0 %v526
  %v751 = vpop.f32.mrf.mxu0
  %v752 = vadd.f32 0.0, %v751
  %v753 = vpop.f32.mrf.mxu0
  %754 = vmatprep.mubr.f32.mxu0 0.0
  %755 = vmatmul.mubr.f32.gmra.mxu0 %v529
  %v756 = vpop.f32.mrf.mxu0
  %v757 = vadd.f32 0.0, %v756
  %v758 = vpop.f32.mrf.mxu0
  %759 = vmatprep.mubr.f32.mxu0 0.0
  %760 = vmatmul.mubr.f32.gmra.mxu0 %v532
  %v761 = vpop.f32.mrf.mxu0
  %v762 = vadd.f32 0.0, %v761
  %v763 = vpop.f32.mrf.mxu0
  %764 = vmatprep.mubr.f32.mxu0 0.0
  %765 = vmatmul.mubr.f32.gmra.mxu0 %v535
  %v766 = vpop.f32.mrf.mxu0
  %v767 = vadd.f32 0.0, %v766
  %v768 = vpop.f32.mrf.mxu0
  %769 = vmatprep.mubr.f32.mxu0 0.0
  %770 = vmatmul.mubr.f32.gmra.mxu0 %v538
  %v771 = vpop.f32.mrf.mxu0
  %v772 = vadd.f32 0.0, %v771
  %v773 = vpop.f32.mrf.mxu0
  %774 = vmatprep.mubr.f32.mxu0 0.0
  %775 = vmatmul.mubr.f32.gmra.mxu0 %v541
  %v776 = vpop.f32.mrf.mxu0
  %v777 = vadd.f32 0.0, %v776
  %v778 = vpop.f32.mrf.mxu0
  %779 = vmatprep.mubr.f32.mxu0 0.0
  %780 = vmatmul.mubr.f32.gmra.mxu0 %v544
  %v781 = vpop.f32.mrf.mxu0
  %v782 = vadd.f32 0.0, %v781
  %v783 = vpop.f32.mrf.mxu0
  %784 = vmatprep.mubr.f32.mxu0 0.0
  %785 = vmatmul.mubr.f32.gmra.mxu0 %v547
  %v786 = vpop.f32.mrf.mxu0
  %v787 = vadd.f32 0.0, %v786
  %v788 = vpop.f32.mrf.mxu0
  %789 = vmatprep.mubr.f32.mxu0 0.0
  %790 = vmatmul.mubr.f32.gmra.mxu0 %v550
  %v791 = vpop.f32.mrf.mxu0
  %v792 = vadd.f32 0.0, %v791
  %v793 = vpop.f32.mrf.mxu0
  %794 = vmatprep.mubr.f32.mxu0 0.0
  %795 = vmatmul.mubr.f32.gmra.mxu0 %v553
  %v796 = vpop.f32.mrf.mxu0
  %v797 = vadd.f32 0.0, %v796
  %v798 = vpop.f32.mrf.mxu0
  %799 = vdwg.mxu0
  %v800 = vmax.f32 %v232, %v622
  %v801 = vmax.f32 %v237, %v627
  %v802 = vmax.f32 %v242, %v632
  %v803 = vmax.f32 %v247, %v637
  %v804 = vmax.f32 %v252, %v642
  %v805 = vmax.f32 %v257, %v647
  %v806 = vmax.f32 %v262, %v652
  %v807 = vmax.f32 %v267, %v657
  %v808 = vmax.f32 %v272, %v662
  %v809 = vmax.f32 %v277, %v667
  %v810 = vmax.f32 %v282, %v672
  %v811 = vmax.f32 %v287, %v677
  %v812 = vmax.f32 %v292, %v682
  %v813 = vmax.f32 %v297, %v687
  %v814 = vmax.f32 %v302, %v692
  %v815 = vmax.f32 %v307, %v697
  %v816 = vmax.f32 %v312, %v702
  %v817 = vmax.f32 %v317, %v707
  %v818 = vmax.f32 %v322, %v712
  %v819 = vmax.f32 %v327, %v717
  %v820 = vmax.f32 %v332, %v722
  %v821 = vmax.f32 %v337, %v727
  %v822 = vmax.f32 %v342, %v732
  %v823 = vmax.f32 %v347, %v737
  %v824 = vmax.f32 %v352, %v742
  %v825 = vmax.f32 %v357, %v747
  %v826 = vmax.f32 %v362, %v752
  %v827 = vmax.f32 %v367, %v757
  %v828 = vmax.f32 %v372, %v762
  %v829 = vmax.f32 %v377, %v767
  %v830 = vmax.f32 %v382, %v772
  %v831 = vmax.f32 %v387, %v777
  %v832 = vmax.f32 %v392, %v782
  %v833 = vmax.f32 %v397, %v787
  %v834 = vmax.f32 %v402, %v792
  %v835 = vmax.f32 %v407, %v797
  %s836 = scalar_lea.vmem %s0, 576
  %v837 = vld [vmem:[%s836] sm:$0xff]
  %v838 = vld [vmem:[%s836 + $0x8] sm:$0xff]
  %v839 = vld [vmem:[%s836 + $0x10] sm:$0xff]
  %v840 = vld [vmem:[%s836 + $0x18] sm:$0xff]
  %v841 = vld [vmem:[%s836 + $0x20] sm:$0xff]
  %v842 = vld [vmem:[%s836 + $0x28] sm:$0xff]
  %v843 = vld [vmem:[%s836 + $0x30] sm:$0xff]
  %v844 = vld [vmem:[%s836 + $0x38] sm:$0xff]
  %v845 = vld [vmem:[%s836 + $0x40] sm:$0xff]
  %v846 = vld [vmem:[%s836 + $0x48] sm:$0xff]
  %v847 = vld [vmem:[%s836 + $0x50] sm:$0xff]
  %v848 = vld [vmem:[%s836 + $0x58] sm:$0xff]
  %v849 = vld [vmem:[%s836 + $0x60] sm:$0xff]
  %v850 = vld [vmem:[%s836 + $0x68] sm:$0xff]
  %v851 = vld [vmem:[%s836 + $0x70] sm:$0xff]
  %v852 = vld [vmem:[%s836 + $0x78] sm:$0xff]
  %v853 = vld [vmem:[%s836 + $0x80] sm:$0xff]
  %v854 = vld [vmem:[%s836 + $0x88] sm:$0xff]
  %v855 = vld [vmem:[%s836 + $0x90] sm:$0xff]
  %v856 = vld [vmem:[%s836 + $0x98] sm:$0xff]
  %v857 = vld [vmem:[%s836 + $0xa0] sm:$0xff]
  %v858 = vld [vmem:[%s836 + $0xa8] sm:$0xff]
  %v859 = vld [vmem:[%s836 + $0xb0] sm:$0xff]
  %v860 = vld [vmem:[%s836 + $0xb8] sm:$0xff]
  %v861 = vld [vmem:[%s836 + $0xc0] sm:$0xff]
  %v862 = vld [vmem:[%s836 + $0xc8] sm:$0xff]
  %v863 = vld [vmem:[%s836 + $0xd0] sm:$0xff]
  %v864 = vld [vmem:[%s836 + $0xd8] sm:$0xff]
  %v865 = vld [vmem:[%s836 + $0xe0] sm:$0xff]
  %v866 = vld [vmem:[%s836 + $0xe8] sm:$0xff]
  %v867 = vld [vmem:[%s836 + $0xf0] sm:$0xff]
  %v868 = vld [vmem:[%s836 + $0xf8] sm:$0xff]
  %v869 = vld [vmem:[%s836 + $0x100] sm:$0xff]
  %v870 = vld [vmem:[%s836 + $0x108] sm:$0xff]
  %v871 = vld [vmem:[%s836 + $0x110] sm:$0xff]
  %v872 = vld [vmem:[%s836 + $0x118] sm:$0xff]
  %v874 = vsel %vm52, %v837, 0
  %v877 = vsel %vm52, %v838, 0
  %v880 = vsel %vm52, %v839, 0
  %v883 = vsel %vm52, %v840, 0
  %v886 = vsel %vm52, %v841, 0
  %v889 = vsel %vm52, %v842, 0
  %v892 = vsel %vm52, %v843, 0
  %v895 = vsel %vm52, %v844, 0
  %v898 = vsel %vm52, %v845, 0
  %v901 = vsel %vm52, %v846, 0
  %v904 = vsel %vm52, %v847, 0
  %v907 = vsel %vm52, %v848, 0
  %v910 = vsel %vm52, %v849, 0
  %v913 = vsel %vm52, %v850, 0
  %v916 = vsel %vm52, %v851, 0
  %v919 = vsel %vm52, %v852, 0
  %v922 = vsel %vm52, %v853, 0
  %v925 = vsel %vm52, %v854, 0
  %v928 = vsel %vm52, %v855, 0
  %v931 = vsel %vm52, %v856, 0
  %v934 = vsel %vm52, %v857, 0
  %v937 = vsel %vm52, %v858, 0
  %v940 = vsel %vm52, %v859, 0
  %v943 = vsel %vm52, %v860, 0
  %v946 = vsel %vm52, %v861, 0
  %v949 = vsel %vm52, %v862, 0
  %v952 = vsel %vm52, %v863, 0
  %v955 = vsel %vm52, %v864, 0
  %v958 = vsel %vm52, %v865, 0
  %v961 = vsel %vm52, %v866, 0
  %v964 = vsel %vm52, %v867, 0
  %v967 = vsel %vm52, %v868, 0
  %v970 = vsel %vm52, %v869, 0
  %v973 = vsel %vm52, %v870, 0
  %v976 = vsel %vm52, %v871, 0
  %v979 = vsel %vm52, %v872, 0
  %981 = vmatprep.subr.mxu0 0.0
  %982 = vmatpush1.msra.mxu0 0.0
  %983 = vmatprep.subr.mxu0 0.0
  %984 = vmatpush1.msra.mxu0 0.0
  %985 = vmatprep.subr.mxu0 0.0
  %986 = vmatpush1.msra.mxu0 0.0
  %987 = vmatprep.subr.mxu0 0.0
  %988 = vmatpush1.msra.mxu0 0.0
  %989 = vmatprep.subr.mxu0 0.0
  %990 = vmatpush1.msra.mxu0 0.0
  %991 = vmatprep.subr.mxu0 0.0
  %992 = vmatpush1.msra.mxu0 0.0
  %993 = vmatprep.subr.mxu0 0.0
  %994 = vmatpush1.msra.mxu0 0.0
  %995 = vmatprep.subr.mxu0 0.0
  %996 = vmatpush1.msra.mxu0 0.0
  %997 = vmatprep.subr.mxu0 0.0
  %998 = vmatpush1.msra.mxu0 0.0
  %999 = vmatprep.subr.mxu0 0.0
  %1000 = vmatpush1.msra.mxu0 0.0
  %1001 = vmatprep.subr.mxu0 0.0
  %1002 = vmatpush1.msra.mxu0 0.0
  %1003 = vmatprep.subr.mxu0 0.0
  %1004 = vmatpush1.msra.mxu0 0.0
  %1005 = vmatprep.subr.mxu0 0.0
  %1006 = vmatpush1.msra.mxu0 0.0
  %1007 = vmatprep.subr.mxu0 0.0
  %1008 = vmatpush1.msra.mxu0 0.0
  %1009 = vmatprep.subr.mxu0 0.0
  %1010 = vmatpush1.msra.mxu0 %v163
  %1011 = vmatprep.subr.mxu0 0.0
  %1012 = vmatpush1.msra.mxu0 %v14
  %1013 = vmatprep.subr.mxu0 0.0
  %1014 = vmatpush2.msra.mxu0 0.0
  %1015 = vmatprep.subr.mxu0 0.0
  %1016 = vmatpush2.msra.mxu0 0.0
  %1017 = vmatprep.subr.mxu0 0.0
  %1018 = vmatpush2.msra.mxu0 0.0
  %1019 = vmatprep.subr.mxu0 0.0
  %1020 = vmatpush2.msra.mxu0 0.0
  %1021 = vmatprep.subr.mxu0 0.0
  %1022 = vmatpush2.msra.mxu0 0.0
  %1023 = vmatprep.subr.mxu0 0.0
  %1024 = vmatpush2.msra.mxu0 0.0
  %1025 = vmatprep.subr.mxu0 0.0
  %1026 = vmatpush2.msra.mxu0 0.0
  %1027 = vmatprep.subr.mxu0 0.0
  %1028 = vmatpush2.msra.mxu0 0.0
  %1029 = vmatprep.subr.mxu0 0.0
  %1030 = vmatpush2.msra.mxu0 0.0
  %1031 = vmatprep.subr.mxu0 0.0
  %1032 = vmatpush2.msra.mxu0 0.0
  %1033 = vmatprep.subr.mxu0 0.0
  %1034 = vmatpush2.msra.mxu0 0.0
  %1035 = vmatprep.subr.mxu0 0.0
  %1036 = vmatpush2.msra.mxu0 0.0
  %1037 = vmatprep.subr.mxu0 0.0
  %1038 = vmatpush2.msra.mxu0 0.0
  %1039 = vmatprep.subr.mxu0 0.0
  %1040 = vmatpush2.msra.mxu0 0.0
  %1041 = vmatprep.subr.mxu0 0.0
  %1042 = vmatpush2.msra.mxu0 0.0
  %1043 = vmatprep.subr.mxu0 0.0
  %1044 = vmatpush2.msra.mxu0 0.0
  %1045 = vmatprep.mubr.f32.mxu0 0.0
  %1046 = vmatmul.mubr.f32.gmra.mxu0 %v874
  %v1047 = vpop.f32.mrf.mxu0
  %v1048 = vadd.f32 0.0, %v1047
  %v1049 = vpop.f32.mrf.mxu0
  %1050 = vmatprep.mubr.f32.mxu0 0.0
  %1051 = vmatmul.mubr.f32.gmra.mxu0 %v877
  %v1052 = vpop.f32.mrf.mxu0
  %v1053 = vadd.f32 0.0, %v1052
  %v1054 = vpop.f32.mrf.mxu0
  %1055 = vmatprep.mubr.f32.mxu0 0.0
  %1056 = vmatmul.mubr.f32.gmra.mxu0 %v880
  %v1057 = vpop.f32.mrf.mxu0
  %v1058 = vadd.f32 0.0, %v1057
  %v1059 = vpop.f32.mrf.mxu0
  %1060 = vmatprep.mubr.f32.mxu0 0.0
  %1061 = vmatmul.mubr.f32.gmra.mxu0 %v883
  %v1062 = vpop.f32.mrf.mxu0
  %v1063 = vadd.f32 0.0, %v1062
  %v1064 = vpop.f32.mrf.mxu0
  %1065 = vmatprep.mubr.f32.mxu0 0.0
  %1066 = vmatmul.mubr.f32.gmra.mxu0 %v886
  %v1067 = vpop.f32.mrf.mxu0
  %v1068 = vadd.f32 0.0, %v1067
  %v1069 = vpop.f32.mrf.mxu0
  %1070 = vmatprep.mubr.f32.mxu0 0.0
  %1071 = vmatmul.mubr.f32.gmra.mxu0 %v889
  %v1072 = vpop.f32.mrf.mxu0
  %v1073 = vadd.f32 0.0, %v1072
  %v1074 = vpop.f32.mrf.mxu0
  %1075 = vmatprep.mubr.f32.mxu0 0.0
  %1076 = vmatmul.mubr.f32.gmra.mxu0 %v892
  %v1077 = vpop.f32.mrf.mxu0
  %v1078 = vadd.f32 0.0, %v1077
  %v1079 = vpop.f32.mrf.mxu0
  %1080 = vmatprep.mubr.f32.mxu0 0.0
  %1081 = vmatmul.mubr.f32.gmra.mxu0 %v895
  %v1082 = vpop.f32.mrf.mxu0
  %v1083 = vadd.f32 0.0, %v1082
  %v1084 = vpop.f32.mrf.mxu0
  %1085 = vmatprep.mubr.f32.mxu0 0.0
  %1086 = vmatmul.mubr.f32.gmra.mxu0 %v898
  %v1087 = vpop.f32.mrf.mxu0
  %v1088 = vadd.f32 0.0, %v1087
  %v1089 = vpop.f32.mrf.mxu0
  %1090 = vmatprep.mubr.f32.mxu0 0.0
  %1091 = vmatmul.mubr.f32.gmra.mxu0 %v901
  %v1092 = vpop.f32.mrf.mxu0
  %v1093 = vadd.f32 0.0, %v1092
  %v1094 = vpop.f32.mrf.mxu0
  %1095 = vmatprep.mubr.f32.mxu0 0.0
  %1096 = vmatmul.mubr.f32.gmra.mxu0 %v904
  %v1097 = vpop.f32.mrf.mxu0
  %v1098 = vadd.f32 0.0, %v1097
  %v1099 = vpop.f32.mrf.mxu0
  %1100 = vmatprep.mubr.f32.mxu0 0.0
  %1101 = vmatmul.mubr.f32.gmra.mxu0 %v907
  %v1102 = vpop.f32.mrf.mxu0
  %v1103 = vadd.f32 0.0, %v1102
  %v1104 = vpop.f32.mrf.mxu0
  %1105 = vmatprep.mubr.f32.mxu0 0.0
  %1106 = vmatmul.mubr.f32.gmra.mxu0 %v910
  %v1107 = vpop.f32.mrf.mxu0
  %v1108 = vadd.f32 0.0, %v1107
  %v1109 = vpop.f32.mrf.mxu0
  %1110 = vmatprep.mubr.f32.mxu0 0.0
  %1111 = vmatmul.mubr.f32.gmra.mxu0 %v913
  %v1112 = vpop.f32.mrf.mxu0
  %v1113 = vadd.f32 0.0, %v1112
  %v1114 = vpop.f32.mrf.mxu0
  %1115 = vmatprep.mubr.f32.mxu0 0.0
  %1116 = vmatmul.mubr.f32.gmra.mxu0 %v916
  %v1117 = vpop.f32.mrf.mxu0
  %v1118 = vadd.f32 0.0, %v1117
  %v1119 = vpop.f32.mrf.mxu0
  %1120 = vmatprep.mubr.f32.mxu0 0.0
  %1121 = vmatmul.mubr.f32.gmra.mxu0 %v919
  %v1122 = vpop.f32.mrf.mxu0
  %v1123 = vadd.f32 0.0, %v1122
  %v1124 = vpop.f32.mrf.mxu0
  %1125 = vmatprep.mubr.f32.mxu0 0.0
  %1126 = vmatmul.mubr.f32.gmra.mxu0 %v922
  %v1127 = vpop.f32.mrf.mxu0
  %v1128 = vadd.f32 0.0, %v1127
  %v1129 = vpop.f32.mrf.mxu0
  %1130 = vmatprep.mubr.f32.mxu0 0.0
  %1131 = vmatmul.mubr.f32.gmra.mxu0 %v925
  %v1132 = vpop.f32.mrf.mxu0
  %v1133 = vadd.f32 0.0, %v1132
  %v1134 = vpop.f32.mrf.mxu0
  %1135 = vmatprep.mubr.f32.mxu0 0.0
  %1136 = vmatmul.mubr.f32.gmra.mxu0 %v928
  %v1137 = vpop.f32.mrf.mxu0
  %v1138 = vadd.f32 0.0, %v1137
  %v1139 = vpop.f32.mrf.mxu0
  %1140 = vmatprep.mubr.f32.mxu0 0.0
  %1141 = vmatmul.mubr.f32.gmra.mxu0 %v931
  %v1142 = vpop.f32.mrf.mxu0
  %v1143 = vadd.f32 0.0, %v1142
  %v1144 = vpop.f32.mrf.mxu0
  %1145 = vmatprep.mubr.f32.mxu0 0.0
  %1146 = vmatmul.mubr.f32.gmra.mxu0 %v934
  %v1147 = vpop.f32.mrf.mxu0
  %v1148 = vadd.f32 0.0, %v1147
  %v1149 = vpop.f32.mrf.mxu0
  %1150 = vmatprep.mubr.f32.mxu0 0.0
  %1151 = vmatmul.mubr.f32.gmra.mxu0 %v937
  %v1152 = vpop.f32.mrf.mxu0
  %v1153 = vadd.f32 0.0, %v1152
  %v1154 = vpop.f32.mrf.mxu0
  %1155 = vmatprep.mubr.f32.mxu0 0.0
  %1156 = vmatmul.mubr.f32.gmra.mxu0 %v940
  %v1157 = vpop.f32.mrf.mxu0
  %v1158 = vadd.f32 0.0, %v1157
  %v1159 = vpop.f32.mrf.mxu0
  %1160 = vmatprep.mubr.f32.mxu0 0.0
  %1161 = vmatmul.mubr.f32.gmra.mxu0 %v943
  %v1162 = vpop.f32.mrf.mxu0
  %v1163 = vadd.f32 0.0, %v1162
  %v1164 = vpop.f32.mrf.mxu0
  %1165 = vmatprep.mubr.f32.mxu0 0.0
  %1166 = vmatmul.mubr.f32.gmra.mxu0 %v946
  %v1167 = vpop.f32.mrf.mxu0
  %v1168 = vadd.f32 0.0, %v1167
  %v1169 = vpop.f32.mrf.mxu0
  %1170 = vmatprep.mubr.f32.mxu0 0.0
  %1171 = vmatmul.mubr.f32.gmra.mxu0 %v949
  %v1172 = vpop.f32.mrf.mxu0
  %v1173 = vadd.f32 0.0, %v1172
  %v1174 = vpop.f32.mrf.mxu0
  %1175 = vmatprep.mubr.f32.mxu0 0.0
  %1176 = vmatmul.mubr.f32.gmra.mxu0 %v952
  %v1177 = vpop.f32.mrf.mxu0
  %v1178 = vadd.f32 0.0, %v1177
  %v1179 = vpop.f32.mrf.mxu0
  %1180 = vmatprep.mubr.f32.mxu0 0.0
  %1181 = vmatmul.mubr.f32.gmra.mxu0 %v955
  %v1182 = vpop.f32.mrf.mxu0
  %v1183 = vadd.f32 0.0, %v1182
  %v1184 = vpop.f32.mrf.mxu0
  %1185 = vmatprep.mubr.f32.mxu0 0.0
  %1186 = vmatmul.mubr.f32.gmra.mxu0 %v958
  %v1187 = vpop.f32.mrf.mxu0
  %v1188 = vadd.f32 0.0, %v1187
  %v1189 = vpop.f32.mrf.mxu0
  %1190 = vmatprep.mubr.f32.mxu0 0.0
  %1191 = vmatmul.mubr.f32.gmra.mxu0 %v961
  %v1192 = vpop.f32.mrf.mxu0
  %v1193 = vadd.f32 0.0, %v1192
  %v1194 = vpop.f32.mrf.mxu0
  %1195 = vmatprep.mubr.f32.mxu0 0.0
  %1196 = vmatmul.mubr.f32.gmra.mxu0 %v964
  %v1197 = vpop.f32.mrf.mxu0
  %v1198 = vadd.f32 0.0, %v1197
  %v1199 = vpop.f32.mrf.mxu0
  %1200 = vmatprep.mubr.f32.mxu0 0.0
  %1201 = vmatmul.mubr.f32.gmra.mxu0 %v967
  %v1202 = vpop.f32.mrf.mxu0
  %v1203 = vadd.f32 0.0, %v1202
  %v1204 = vpop.f32.mrf.mxu0
  %1205 = vmatprep.mubr.f32.mxu0 0.0
  %1206 = vmatmul.mubr.f32.gmra.mxu0 %v970
  %v1207 = vpop.f32.mrf.mxu0
  %v1208 = vadd.f32 0.0, %v1207
  %v1209 = vpop.f32.mrf.mxu0
  %1210 = vmatprep.mubr.f32.mxu0 0.0
  %1211 = vmatmul.mubr.f32.gmra.mxu0 %v973
  %v1212 = vpop.f32.mrf.mxu0
  %v1213 = vadd.f32 0.0, %v1212
  %v1214 = vpop.f32.mrf.mxu0
  %1215 = vmatprep.mubr.f32.mxu0 0.0
  %1216 = vmatmul.mubr.f32.gmra.mxu0 %v976
  %v1217 = vpop.f32.mrf.mxu0
  %v1218 = vadd.f32 0.0, %v1217
  %v1219 = vpop.f32.mrf.mxu0
  %1220 = vmatprep.mubr.f32.mxu0 0.0
  %1221 = vmatmul.mubr.f32.gmra.mxu0 %v979
  %v1222 = vpop.f32.mrf.mxu0
  %v1223 = vadd.f32 0.0, %v1222
  %v1224 = vpop.f32.mrf.mxu0
  %1225 = vdwg.mxu0
  %v1226 = vmax.f32 %v800, %v1048
  %v1227 = vmax.f32 %v801, %v1053
  %v1228 = vmax.f32 %v802, %v1058
  %v1229 = vmax.f32 %v803, %v1063
  %v1230 = vmax.f32 %v804, %v1068
  %v1231 = vmax.f32 %v805, %v1073
  %v1232 = vmax.f32 %v806, %v1078
  %v1233 = vmax.f32 %v807, %v1083
  %v1234 = vmax.f32 %v808, %v1088
  %v1235 = vmax.f32 %v809, %v1093
  %v1236 = vmax.f32 %v810, %v1098
  %v1237 = vmax.f32 %v811, %v1103
  %v1238 = vmax.f32 %v812, %v1108
  %v1239 = vmax.f32 %v813, %v1113
  %v1240 = vmax.f32 %v814, %v1118
  %v1241 = vmax.f32 %v815, %v1123
  %v1242 = vmax.f32 %v816, %v1128
  %v1243 = vmax.f32 %v817, %v1133
  %v1244 = vmax.f32 %v818, %v1138
  %v1245 = vmax.f32 %v819, %v1143
  %v1246 = vmax.f32 %v820, %v1148
  %v1247 = vmax.f32 %v821, %v1153
  %v1248 = vmax.f32 %v822, %v1158
  %v1249 = vmax.f32 %v823, %v1163
  %v1250 = vmax.f32 %v824, %v1168
  %v1251 = vmax.f32 %v825, %v1173
  %v1252 = vmax.f32 %v826, %v1178
  %v1253 = vmax.f32 %v827, %v1183
  %v1254 = vmax.f32 %v828, %v1188
  %v1255 = vmax.f32 %v829, %v1193
  %v1256 = vmax.f32 %v830, %v1198
  %v1257 = vmax.f32 %v831, %v1203
  %v1258 = vmax.f32 %v832, %v1208
  %v1259 = vmax.f32 %v833, %v1213
  %v1260 = vmax.f32 %v834, %v1218
  %v1261 = vmax.f32 %v835, %v1223
  %s1262 = scalar_lea.vmem %s0, 864
  %v1263 = vld [vmem:[%s1262] sm:$0xff]
  %v1264 = vld [vmem:[%s1262 + $0x8] sm:$0xff]
  %v1265 = vld [vmem:[%s1262 + $0x10] sm:$0xff]
  %v1266 = vld [vmem:[%s1262 + $0x18] sm:$0xff]
  %v1267 = vld [vmem:[%s1262 + $0x20] sm:$0xff]
  %v1268 = vld [vmem:[%s1262 + $0x28] sm:$0xff]
  %v1269 = vld [vmem:[%s1262 + $0x30] sm:$0xff]
  %v1270 = vld [vmem:[%s1262 + $0x38] sm:$0xff]
  %v1271 = vld [vmem:[%s1262 + $0x40] sm:$0xff]
  %v1272 = vld [vmem:[%s1262 + $0x48] sm:$0xff]
  %v1273 = vld [vmem:[%s1262 + $0x50] sm:$0xff]
  %v1274 = vld [vmem:[%s1262 + $0x58] sm:$0xff]
  %v1275 = vld [vmem:[%s1262 + $0x60] sm:$0xff]
  %v1276 = vld [vmem:[%s1262 + $0x68] sm:$0xff]
  %v1277 = vld [vmem:[%s1262 + $0x70] sm:$0xff]
  %v1278 = vld [vmem:[%s1262 + $0x78] sm:$0xff]
  %v1279 = vld [vmem:[%s1262 + $0x80] sm:$0xff]
  %v1280 = vld [vmem:[%s1262 + $0x88] sm:$0xff]
  %v1281 = vld [vmem:[%s1262 + $0x90] sm:$0xff]
  %v1282 = vld [vmem:[%s1262 + $0x98] sm:$0xff]
  %v1283 = vld [vmem:[%s1262 + $0xa0] sm:$0xff]
  %v1284 = vld [vmem:[%s1262 + $0xa8] sm:$0xff]
  %v1285 = vld [vmem:[%s1262 + $0xb0] sm:$0xff]
  %v1286 = vld [vmem:[%s1262 + $0xb8] sm:$0xff]
  %v1287 = vld [vmem:[%s1262 + $0xc0] sm:$0xff]
  %v1288 = vld [vmem:[%s1262 + $0xc8] sm:$0xff]
  %v1289 = vld [vmem:[%s1262 + $0xd0] sm:$0xff]
  %v1290 = vld [vmem:[%s1262 + $0xd8] sm:$0xff]
  %v1291 = vld [vmem:[%s1262 + $0xe0] sm:$0xff]
  %v1292 = vld [vmem:[%s1262 + $0xe8] sm:$0xff]
  %v1293 = vld [vmem:[%s1262 + $0xf0] sm:$0xff]
  %v1294 = vld [vmem:[%s1262 + $0xf8] sm:$0xff]
  %v1295 = vld [vmem:[%s1262 + $0x100] sm:$0xff]
  %v1296 = vld [vmem:[%s1262 + $0x108] sm:$0xff]
  %v1297 = vld [vmem:[%s1262 + $0x110] sm:$0xff]
  %v1298 = vld [vmem:[%s1262 + $0x118] sm:$0xff]
  %v1300 = vsel %vm52, %v1263, 0
  %v1303 = vsel %vm52, %v1264, 0
  %v1306 = vsel %vm52, %v1265, 0
  %v1309 = vsel %vm52, %v1266, 0
  %v1312 = vsel %vm52, %v1267, 0
  %v1315 = vsel %vm52, %v1268, 0
  %v1318 = vsel %vm52, %v1269, 0
  %v1321 = vsel %vm52, %v1270, 0
  %v1324 = vsel %vm52, %v1271, 0
  %v1327 = vsel %vm52, %v1272, 0
  %v1330 = vsel %vm52, %v1273, 0
  %v1333 = vsel %vm52, %v1274, 0
  %v1336 = vsel %vm52, %v1275, 0
  %v1339 = vsel %vm52, %v1276, 0
  %v1342 = vsel %vm52, %v1277, 0
  %v1345 = vsel %vm52, %v1278, 0
  %v1348 = vsel %vm52, %v1279, 0
  %v1351 = vsel %vm52, %v1280, 0
  %v1354 = vsel %vm52, %v1281, 0
  %v1357 = vsel %vm52, %v1282, 0
  %v1360 = vsel %vm52, %v1283, 0
  %v1363 = vsel %vm52, %v1284, 0
  %v1366 = vsel %vm52, %v1285, 0
  %v1369 = vsel %vm52, %v1286, 0
  %v1372 = vsel %vm52, %v1287, 0
  %v1375 = vsel %vm52, %v1288, 0
  %v1378 = vsel %vm52, %v1289, 0
  %v1381 = vsel %vm52, %v1290, 0
  %v1384 = vsel %vm52, %v1291, 0
  %v1387 = vsel %vm52, %v1292, 0
  %v1390 = vsel %vm52, %v1293, 0
  %v1393 = vsel %vm52, %v1294, 0
  %v1396 = vsel %vm52, %v1295, 0
  %v1399 = vsel %vm52, %v1296, 0
  %v1402 = vsel %vm52, %v1297, 0
  %v1405 = vsel %vm52, %v1298, 0
  %1407 = vmatprep.subr.mxu0 0.0
  %1408 = vmatpush1.msra.mxu0 0.0
  %1409 = vmatprep.subr.mxu0 0.0
  %1410 = vmatpush1.msra.mxu0 0.0
  %1411 = vmatprep.subr.mxu0 0.0
  %1412 = vmatpush1.msra.mxu0 0.0
  %1413 = vmatprep.subr.mxu0 0.0
  %1414 = vmatpush1.msra.mxu0 0.0
  %1415 = vmatprep.subr.mxu0 0.0
  %1416 = vmatpush1.msra.mxu0 0.0
  %1417 = vmatprep.subr.mxu0 0.0
  %1418 = vmatpush1.msra.mxu0 0.0
  %1419 = vmatprep.subr.mxu0 0.0
  %1420 = vmatpush1.msra.mxu0 0.0
  %1421 = vmatprep.subr.mxu0 0.0
  %1422 = vmatpush1.msra.mxu0 0.0
  %1423 = vmatprep.subr.mxu0 0.0
  %1424 = vmatpush1.msra.mxu0 0.0
  %1425 = vmatprep.subr.mxu0 0.0
  %1426 = vmatpush1.msra.mxu0 0.0
  %1427 = vmatprep.subr.mxu0 0.0
  %1428 = vmatpush1.msra.mxu0 0.0
  %1429 = vmatprep.subr.mxu0 0.0
  %1430 = vmatpush1.msra.mxu0 0.0
  %1431 = vmatprep.subr.mxu0 0.0
  %1432 = vmatpush1.msra.mxu0 0.0
  %1433 = vmatprep.subr.mxu0 0.0
  %1434 = vmatpush1.msra.mxu0 0.0
  %1435 = vmatprep.subr.mxu0 0.0
  %1436 = vmatpush1.msra.mxu0 %v163
  %1437 = vmatprep.subr.mxu0 0.0
  %1438 = vmatpush1.msra.mxu0 %v14
  %1439 = vmatprep.subr.mxu0 0.0
  %1440 = vmatpush2.msra.mxu0 0.0
  %1441 = vmatprep.subr.mxu0 0.0
  %1442 = vmatpush2.msra.mxu0 0.0
  %1443 = vmatprep.subr.mxu0 0.0
  %1444 = vmatpush2.msra.mxu0 0.0
  %1445 = vmatprep.subr.mxu0 0.0
  %1446 = vmatpush2.msra.mxu0 0.0
  %1447 = vmatprep.subr.mxu0 0.0
  %1448 = vmatpush2.msra.mxu0 0.0
  %1449 = vmatprep.subr.mxu0 0.0
  %1450 = vmatpush2.msra.mxu0 0.0
  %1451 = vmatprep.subr.mxu0 0.0
  %1452 = vmatpush2.msra.mxu0 0.0
  %1453 = vmatprep.subr.mxu0 0.0
  %1454 = vmatpush2.msra.mxu0 0.0
  %1455 = vmatprep.subr.mxu0 0.0
  %1456 = vmatpush2.msra.mxu0 0.0
  %1457 = vmatprep.subr.mxu0 0.0
  %1458 = vmatpush2.msra.mxu0 0.0
  %1459 = vmatprep.subr.mxu0 0.0
  %1460 = vmatpush2.msra.mxu0 0.0
  %1461 = vmatprep.subr.mxu0 0.0
  %1462 = vmatpush2.msra.mxu0 0.0
  %1463 = vmatprep.subr.mxu0 0.0
  %1464 = vmatpush2.msra.mxu0 0.0
  %1465 = vmatprep.subr.mxu0 0.0
  %1466 = vmatpush2.msra.mxu0 0.0
  %1467 = vmatprep.subr.mxu0 0.0
  %1468 = vmatpush2.msra.mxu0 0.0
  %1469 = vmatprep.subr.mxu0 0.0
  %1470 = vmatpush2.msra.mxu0 0.0
  %1471 = vmatprep.mubr.f32.mxu0 0.0
  %1472 = vmatmul.mubr.f32.gmra.mxu0 %v1300
  %v1473 = vpop.f32.mrf.mxu0
  %v1474 = vadd.f32 0.0, %v1473
  %v1475 = vpop.f32.mrf.mxu0
  %1476 = vmatprep.mubr.f32.mxu0 0.0
  %1477 = vmatmul.mubr.f32.gmra.mxu0 %v1303
  %v1478 = vpop.f32.mrf.mxu0
  %v1479 = vadd.f32 0.0, %v1478
  %v1480 = vpop.f32.mrf.mxu0
  %1481 = vmatprep.mubr.f32.mxu0 0.0
  %1482 = vmatmul.mubr.f32.gmra.mxu0 %v1306
  %v1483 = vpop.f32.mrf.mxu0
  %v1484 = vadd.f32 0.0, %v1483
  %v1485 = vpop.f32.mrf.mxu0
  %1486 = vmatprep.mubr.f32.mxu0 0.0
  %1487 = vmatmul.mubr.f32.gmra.mxu0 %v1309
  %v1488 = vpop.f32.mrf.mxu0
  %v1489 = vadd.f32 0.0, %v1488
  %v1490 = vpop.f32.mrf.mxu0
  %1491 = vmatprep.mubr.f32.mxu0 0.0
  %1492 = vmatmul.mubr.f32.gmra.mxu0 %v1312
  %v1493 = vpop.f32.mrf.mxu0
  %v1494 = vadd.f32 0.0, %v1493
  %v1495 = vpop.f32.mrf.mxu0
  %1496 = vmatprep.mubr.f32.mxu0 0.0
  %1497 = vmatmul.mubr.f32.gmra.mxu0 %v1315
  %v1498 = vpop.f32.mrf.mxu0
  %v1499 = vadd.f32 0.0, %v1498
  %v1500 = vpop.f32.mrf.mxu0
  %1501 = vmatprep.mubr.f32.mxu0 0.0
  %1502 = vmatmul.mubr.f32.gmra.mxu0 %v1318
  %v1503 = vpop.f32.mrf.mxu0
  %v1504 = vadd.f32 0.0, %v1503
  %v1505 = vpop.f32.mrf.mxu0
  %1506 = vmatprep.mubr.f32.mxu0 0.0
  %1507 = vmatmul.mubr.f32.gmra.mxu0 %v1321
  %v1508 = vpop.f32.mrf.mxu0
  %v1509 = vadd.f32 0.0, %v1508
  %v1510 = vpop.f32.mrf.mxu0
  %1511 = vmatprep.mubr.f32.mxu0 0.0
  %1512 = vmatmul.mubr.f32.gmra.mxu0 %v1324
  %v1513 = vpop.f32.mrf.mxu0
  %v1514 = vadd.f32 0.0, %v1513
  %v1515 = vpop.f32.mrf.mxu0
  %1516 = vmatprep.mubr.f32.mxu0 0.0
  %1517 = vmatmul.mubr.f32.gmra.mxu0 %v1327
  %v1518 = vpop.f32.mrf.mxu0
  %v1519 = vadd.f32 0.0, %v1518
  %v1520 = vpop.f32.mrf.mxu0
  %1521 = vmatprep.mubr.f32.mxu0 0.0
  %1522 = vmatmul.mubr.f32.gmra.mxu0 %v1330
  %v1523 = vpop.f32.mrf.mxu0
  %v1524 = vadd.f32 0.0, %v1523
  %v1525 = vpop.f32.mrf.mxu0
  %1526 = vmatprep.mubr.f32.mxu0 0.0
  %1527 = vmatmul.mubr.f32.gmra.mxu0 %v1333
  %v1528 = vpop.f32.mrf.mxu0
  %v1529 = vadd.f32 0.0, %v1528
  %v1530 = vpop.f32.mrf.mxu0
  %1531 = vmatprep.mubr.f32.mxu0 0.0
  %1532 = vmatmul.mubr.f32.gmra.mxu0 %v1336
  %v1533 = vpop.f32.mrf.mxu0
  %v1534 = vadd.f32 0.0, %v1533
  %v1535 = vpop.f32.mrf.mxu0
  %1536 = vmatprep.mubr.f32.mxu0 0.0
  %1537 = vmatmul.mubr.f32.gmra.mxu0 %v1339
  %v1538 = vpop.f32.mrf.mxu0
  %v1539 = vadd.f32 0.0, %v1538
  %v1540 = vpop.f32.mrf.mxu0
  %1541 = vmatprep.mubr.f32.mxu0 0.0
  %1542 = vmatmul.mubr.f32.gmra.mxu0 %v1342
  %v1543 = vpop.f32.mrf.mxu0
  %v1544 = vadd.f32 0.0, %v1543
  %v1545 = vpop.f32.mrf.mxu0
  %1546 = vmatprep.mubr.f32.mxu0 0.0
  %1547 = vmatmul.mubr.f32.gmra.mxu0 %v1345
  %v1548 = vpop.f32.mrf.mxu0
  %v1549 = vadd.f32 0.0, %v1548
  %v1550 = vpop.f32.mrf.mxu0
  %1551 = vmatprep.mubr.f32.mxu0 0.0
  %1552 = vmatmul.mubr.f32.gmra.mxu0 %v1348
  %v1553 = vpop.f32.mrf.mxu0
  %v1554 = vadd.f32 0.0, %v1553
  %v1555 = vpop.f32.mrf.mxu0
  %1556 = vmatprep.mubr.f32.mxu0 0.0
  %1557 = vmatmul.mubr.f32.gmra.mxu0 %v1351
  %v1558 = vpop.f32.mrf.mxu0
  %v1559 = vadd.f32 0.0, %v1558
  %v1560 = vpop.f32.mrf.mxu0
  %1561 = vmatprep.mubr.f32.mxu0 0.0
  %1562 = vmatmul.mubr.f32.gmra.mxu0 %v1354
  %v1563 = vpop.f32.mrf.mxu0
  %v1564 = vadd.f32 0.0, %v1563
  %v1565 = vpop.f32.mrf.mxu0
  %1566 = vmatprep.mubr.f32.mxu0 0.0
  %1567 = vmatmul.mubr.f32.gmra.mxu0 %v1357
  %v1568 = vpop.f32.mrf.mxu0
  %v1569 = vadd.f32 0.0, %v1568
  %v1570 = vpop.f32.mrf.mxu0
  %1571 = vmatprep.mubr.f32.mxu0 0.0
  %1572 = vmatmul.mubr.f32.gmra.mxu0 %v1360
  %v1573 = vpop.f32.mrf.mxu0
  %v1574 = vadd.f32 0.0, %v1573
  %v1575 = vpop.f32.mrf.mxu0
  %1576 = vmatprep.mubr.f32.mxu0 0.0
  %1577 = vmatmul.mubr.f32.gmra.mxu0 %v1363
  %v1578 = vpop.f32.mrf.mxu0
  %v1579 = vadd.f32 0.0, %v1578
  %v1580 = vpop.f32.mrf.mxu0
  %1581 = vmatprep.mubr.f32.mxu0 0.0
  %1582 = vmatmul.mubr.f32.gmra.mxu0 %v1366
  %v1583 = vpop.f32.mrf.mxu0
  %v1584 = vadd.f32 0.0, %v1583
  %v1585 = vpop.f32.mrf.mxu0
  %1586 = vmatprep.mubr.f32.mxu0 0.0
  %1587 = vmatmul.mubr.f32.gmra.mxu0 %v1369
  %v1588 = vpop.f32.mrf.mxu0
  %v1589 = vadd.f32 0.0, %v1588
  %v1590 = vpop.f32.mrf.mxu0
  %1591 = vmatprep.mubr.f32.mxu0 0.0
  %1592 = vmatmul.mubr.f32.gmra.mxu0 %v1372
  %v1593 = vpop.f32.mrf.mxu0
  %v1594 = vadd.f32 0.0, %v1593
  %v1595 = vpop.f32.mrf.mxu0
  %1596 = vmatprep.mubr.f32.mxu0 0.0
  %1597 = vmatmul.mubr.f32.gmra.mxu0 %v1375
  %v1598 = vpop.f32.mrf.mxu0
  %v1599 = vadd.f32 0.0, %v1598
  %v1600 = vpop.f32.mrf.mxu0
  %1601 = vmatprep.mubr.f32.mxu0 0.0
  %1602 = vmatmul.mubr.f32.gmra.mxu0 %v1378
  %v1603 = vpop.f32.mrf.mxu0
  %v1604 = vadd.f32 0.0, %v1603
  %v1605 = vpop.f32.mrf.mxu0
  %1606 = vmatprep.mubr.f32.mxu0 0.0
  %1607 = vmatmul.mubr.f32.gmra.mxu0 %v1381
  %v1608 = vpop.f32.mrf.mxu0
  %v1609 = vadd.f32 0.0, %v1608
  %v1610 = vpop.f32.mrf.mxu0
  %1611 = vmatprep.mubr.f32.mxu0 0.0
  %1612 = vmatmul.mubr.f32.gmra.mxu0 %v1384
  %v1613 = vpop.f32.mrf.mxu0
  %v1614 = vadd.f32 0.0, %v1613
  %v1615 = vpop.f32.mrf.mxu0
  %1616 = vmatprep.mubr.f32.mxu0 0.0
  %1617 = vmatmul.mubr.f32.gmra.mxu0 %v1387
  %v1618 = vpop.f32.mrf.mxu0
  %v1619 = vadd.f32 0.0, %v1618
  %v1620 = vpop.f32.mrf.mxu0
  %1621 = vmatprep.mubr.f32.mxu0 0.0
  %1622 = vmatmul.mubr.f32.gmra.mxu0 %v1390
  %v1623 = vpop.f32.mrf.mxu0
  %v1624 = vadd.f32 0.0, %v1623
  %v1625 = vpop.f32.mrf.mxu0
  %1626 = vmatprep.mubr.f32.mxu0 0.0
  %1627 = vmatmul.mubr.f32.gmra.mxu0 %v1393
  %v1628 = vpop.f32.mrf.mxu0
  %v1629 = vadd.f32 0.0, %v1628
  %v1630 = vpop.f32.mrf.mxu0
  %1631 = vmatprep.mubr.f32.mxu0 0.0
  %1632 = vmatmul.mubr.f32.gmra.mxu0 %v1396
  %v1633 = vpop.f32.mrf.mxu0
  %v1634 = vadd.f32 0.0, %v1633
  %v1635 = vpop.f32.mrf.mxu0
  %1636 = vmatprep.mubr.f32.mxu0 0.0
  %1637 = vmatmul.mubr.f32.gmra.mxu0 %v1399
  %v1638 = vpop.f32.mrf.mxu0
  %v1639 = vadd.f32 0.0, %v1638
  %v1640 = vpop.f32.mrf.mxu0
  %1641 = vmatprep.mubr.f32.mxu0 0.0
  %1642 = vmatmul.mubr.f32.gmra.mxu0 %v1402
  %v1643 = vpop.f32.mrf.mxu0
  %v1644 = vadd.f32 0.0, %v1643
  %v1645 = vpop.f32.mrf.mxu0
  %1646 = vmatprep.mubr.f32.mxu0 0.0
  %1647 = vmatmul.mubr.f32.gmra.mxu0 %v1405
  %v1648 = vpop.f32.mrf.mxu0
  %v1649 = vadd.f32 0.0, %v1648
  %v1650 = vpop.f32.mrf.mxu0
  %1651 = vdwg.mxu0
  %v1652 = vmax.f32 %v1226, %v1474
  %v1653 = vmax.f32 %v1227, %v1479
  %v1654 = vmax.f32 %v1228, %v1484
  %v1655 = vmax.f32 %v1229, %v1489
  %v1656 = vmax.f32 %v1230, %v1494
  %v1657 = vmax.f32 %v1231, %v1499
  %v1658 = vmax.f32 %v1232, %v1504
  %v1659 = vmax.f32 %v1233, %v1509
  %v1660 = vmax.f32 %v1234, %v1514
  %v1661 = vmax.f32 %v1235, %v1519
  %v1662 = vmax.f32 %v1236, %v1524
  %v1663 = vmax.f32 %v1237, %v1529
  %v1664 = vmax.f32 %v1238, %v1534
  %v1665 = vmax.f32 %v1239, %v1539
  %v1666 = vmax.f32 %v1240, %v1544
  %v1667 = vmax.f32 %v1241, %v1549
  %v1668 = vmax.f32 %v1242, %v1554
  %v1669 = vmax.f32 %v1243, %v1559
  %v1670 = vmax.f32 %v1244, %v1564
  %v1671 = vmax.f32 %v1245, %v1569
  %v1672 = vmax.f32 %v1246, %v1574
  %v1673 = vmax.f32 %v1247, %v1579
  %v1674 = vmax.f32 %v1248, %v1584
  %v1675 = vmax.f32 %v1249, %v1589
  %v1676 = vmax.f32 %v1250, %v1594
  %v1677 = vmax.f32 %v1251, %v1599
  %v1678 = vmax.f32 %v1252, %v1604
  %v1679 = vmax.f32 %v1253, %v1609
  %v1680 = vmax.f32 %v1254, %v1614
  %v1681 = vmax.f32 %v1255, %v1619
  %v1682 = vmax.f32 %v1256, %v1624
  %v1683 = vmax.f32 %v1257, %v1629
  %v1684 = vmax.f32 %v1258, %v1634
  %v1685 = vmax.f32 %v1259, %v1639
  %v1686 = vmax.f32 %v1260, %v1644
  %v1687 = vmax.f32 %v1261, %v1649
  %s1688 = scalar_lea.vmem %s0, 1152
  %v1689 = vld [vmem:[%s1688] sm:$0xff]
  %v1690 = vld [vmem:[%s1688 + $0x8] sm:$0xff]
  %v1691 = vld [vmem:[%s1688 + $0x10] sm:$0xff]
  %v1692 = vld [vmem:[%s1688 + $0x18] sm:$0xff]
  %v1693 = vld [vmem:[%s1688 + $0x20] sm:$0xff]
  %v1694 = vld [vmem:[%s1688 + $0x28] sm:$0xff]
  %v1695 = vld [vmem:[%s1688 + $0x30] sm:$0xff]
  %v1696 = vld [vmem:[%s1688 + $0x38] sm:$0xff]
  %v1697 = vld [vmem:[%s1688 + $0x40] sm:$0xff]
  %v1698 = vld [vmem:[%s1688 + $0x48] sm:$0xff]
  %v1699 = vld [vmem:[%s1688 + $0x50] sm:$0xff]
  %v1700 = vld [vmem:[%s1688 + $0x58] sm:$0xff]
  %v1701 = vld [vmem:[%s1688 + $0x60] sm:$0xff]
  %v1702 = vld [vmem:[%s1688 + $0x68] sm:$0xff]
  %v1703 = vld [vmem:[%s1688 + $0x70] sm:$0xff]
  %v1704 = vld [vmem:[%s1688 + $0x78] sm:$0xff]
  %v1705 = vld [vmem:[%s1688 + $0x80] sm:$0xff]
  %v1706 = vld [vmem:[%s1688 + $0x88] sm:$0xff]
  %v1707 = vld [vmem:[%s1688 + $0x90] sm:$0xff]
  %v1708 = vld [vmem:[%s1688 + $0x98] sm:$0xff]
  %v1709 = vld [vmem:[%s1688 + $0xa0] sm:$0xff]
  %v1710 = vld [vmem:[%s1688 + $0xa8] sm:$0xff]
  %v1711 = vld [vmem:[%s1688 + $0xb0] sm:$0xff]
  %v1712 = vld [vmem:[%s1688 + $0xb8] sm:$0xff]
  %v1713 = vld [vmem:[%s1688 + $0xc0] sm:$0xff]
  %v1714 = vld [vmem:[%s1688 + $0xc8] sm:$0xff]
  %v1715 = vld [vmem:[%s1688 + $0xd0] sm:$0xff]
  %v1716 = vld [vmem:[%s1688 + $0xd8] sm:$0xff]
  %v1717 = vld [vmem:[%s1688 + $0xe0] sm:$0xff]
  %v1718 = vld [vmem:[%s1688 + $0xe8] sm:$0xff]
  %v1719 = vld [vmem:[%s1688 + $0xf0] sm:$0xff]
  %v1720 = vld [vmem:[%s1688 + $0xf8] sm:$0xff]
  %v1721 = vld [vmem:[%s1688 + $0x100] sm:$0xff]
  %v1722 = vld [vmem:[%s1688 + $0x108] sm:$0xff]
  %v1723 = vld [vmem:[%s1688 + $0x110] sm:$0xff]
  %v1724 = vld [vmem:[%s1688 + $0x118] sm:$0xff]
  %v1726 = vsel %vm52, %v1689, 0
  %v1729 = vsel %vm52, %v1690, 0
  %v1732 = vsel %vm52, %v1691, 0
  %v1735 = vsel %vm52, %v1692, 0
  %v1738 = vsel %vm52, %v1693, 0
  %v1741 = vsel %vm52, %v1694, 0
  %v1744 = vsel %vm52, %v1695, 0
  %v1747 = vsel %vm52, %v1696, 0
  %v1750 = vsel %vm52, %v1697, 0
  %v1753 = vsel %vm52, %v1698, 0
  %v1756 = vsel %vm52, %v1699, 0
  %v1759 = vsel %vm52, %v1700, 0
  %v1762 = vsel %vm52, %v1701, 0
  %v1765 = vsel %vm52, %v1702, 0
  %v1768 = vsel %vm52, %v1703, 0
  %v1771 = vsel %vm52, %v1704, 0
  %v1774 = vsel %vm52, %v1705, 0
  %v1777 = vsel %vm52, %v1706, 0
  %v1780 = vsel %vm52, %v1707, 0
  %v1783 = vsel %vm52, %v1708, 0
  %v1786 = vsel %vm52, %v1709, 0
  %v1789 = vsel %vm52, %v1710, 0
  %v1792 = vsel %vm52, %v1711, 0
  %v1795 = vsel %vm52, %v1712, 0
  %v1798 = vsel %vm52, %v1713, 0
  %v1801 = vsel %vm52, %v1714, 0
  %v1804 = vsel %vm52, %v1715, 0
  %v1807 = vsel %vm52, %v1716, 0
  %v1810 = vsel %vm52, %v1717, 0
  %v1813 = vsel %vm52, %v1718, 0
  %v1816 = vsel %vm52, %v1719, 0
  %v1819 = vsel %vm52, %v1720, 0
  %v1822 = vsel %vm52, %v1721, 0
  %v1825 = vsel %vm52, %v1722, 0
  %v1828 = vsel %vm52, %v1723, 0
  %v1831 = vsel %vm52, %v1724, 0
  %1833 = vmatprep.subr.mxu0 0.0
  %1834 = vmatpush1.msra.mxu0 0.0
  %1835 = vmatprep.subr.mxu0 0.0
  %1836 = vmatpush1.msra.mxu0 0.0
  %1837 = vmatprep.subr.mxu0 0.0
  %1838 = vmatpush1.msra.mxu0 0.0
  %1839 = vmatprep.subr.mxu0 0.0
  %1840 = vmatpush1.msra.mxu0 0.0
  %1841 = vmatprep.subr.mxu0 0.0
  %1842 = vmatpush1.msra.mxu0 0.0
  %1843 = vmatprep.subr.mxu0 0.0
  %1844 = vmatpush1.msra.mxu0 0.0
  %1845 = vmatprep.subr.mxu0 0.0
  %1846 = vmatpush1.msra.mxu0 0.0
  %1847 = vmatprep.subr.mxu0 0.0
  %1848 = vmatpush1.msra.mxu0 0.0
  %1849 = vmatprep.subr.mxu0 0.0
  %1850 = vmatpush1.msra.mxu0 0.0
  %1851 = vmatprep.subr.mxu0 0.0
  %1852 = vmatpush1.msra.mxu0 0.0
  %1853 = vmatprep.subr.mxu0 0.0
  %1854 = vmatpush1.msra.mxu0 0.0
  %1855 = vmatprep.subr.mxu0 0.0
  %1856 = vmatpush1.msra.mxu0 0.0
  %1857 = vmatprep.subr.mxu0 0.0
  %1858 = vmatpush1.msra.mxu0 0.0
  %1859 = vmatprep.subr.mxu0 0.0
  %1860 = vmatpush1.msra.mxu0 0.0
  %1861 = vmatprep.subr.mxu0 0.0
  %1862 = vmatpush1.msra.mxu0 %v163
  %1863 = vmatprep.subr.mxu0 0.0
  %1864 = vmatpush1.msra.mxu0 %v14
  %1865 = vmatprep.subr.mxu0 0.0
  %1866 = vmatpush2.msra.mxu0 0.0
  %1867 = vmatprep.subr.mxu0 0.0
  %1868 = vmatpush2.msra.mxu0 0.0
  %1869 = vmatprep.subr.mxu0 0.0
  %1870 = vmatpush2.msra.mxu0 0.0
  %1871 = vmatprep.subr.mxu0 0.0
  %1872 = vmatpush2.msra.mxu0 0.0
  %1873 = vmatprep.subr.mxu0 0.0
  %1874 = vmatpush2.msra.mxu0 0.0
  %1875 = vmatprep.subr.mxu0 0.0
  %1876 = vmatpush2.msra.mxu0 0.0
  %1877 = vmatprep.subr.mxu0 0.0
  %1878 = vmatpush2.msra.mxu0 0.0
  %1879 = vmatprep.subr.mxu0 0.0
  %1880 = vmatpush2.msra.mxu0 0.0
  %1881 = vmatprep.subr.mxu0 0.0
  %1882 = vmatpush2.msra.mxu0 0.0
  %1883 = vmatprep.subr.mxu0 0.0
  %1884 = vmatpush2.msra.mxu0 0.0
  %1885 = vmatprep.subr.mxu0 0.0
  %1886 = vmatpush2.msra.mxu0 0.0
  %1887 = vmatprep.subr.mxu0 0.0
  %1888 = vmatpush2.msra.mxu0 0.0
  %1889 = vmatprep.subr.mxu0 0.0
  %1890 = vmatpush2.msra.mxu0 0.0
  %1891 = vmatprep.subr.mxu0 0.0
  %1892 = vmatpush2.msra.mxu0 0.0
  %1893 = vmatprep.subr.mxu0 0.0
  %1894 = vmatpush2.msra.mxu0 0.0
  %1895 = vmatprep.subr.mxu0 0.0
  %1896 = vmatpush2.msra.mxu0 0.0
  %1897 = vmatprep.mubr.f32.mxu0 0.0
  %1898 = vmatmul.mubr.f32.gmra.mxu0 %v1726
  %v1899 = vpop.f32.mrf.mxu0
  %v1900 = vadd.f32 0.0, %v1899
  %v1901 = vpop.f32.mrf.mxu0
  %1902 = vmatprep.mubr.f32.mxu0 0.0
  %1903 = vmatmul.mubr.f32.gmra.mxu0 %v1729
  %v1904 = vpop.f32.mrf.mxu0
  %v1905 = vadd.f32 0.0, %v1904
  %v1906 = vpop.f32.mrf.mxu0
  %1907 = vmatprep.mubr.f32.mxu0 0.0
  %1908 = vmatmul.mubr.f32.gmra.mxu0 %v1732
  %v1909 = vpop.f32.mrf.mxu0
  %v1910 = vadd.f32 0.0, %v1909
  %v1911 = vpop.f32.mrf.mxu0
  %1912 = vmatprep.mubr.f32.mxu0 0.0
  %1913 = vmatmul.mubr.f32.gmra.mxu0 %v1735
  %v1914 = vpop.f32.mrf.mxu0
  %v1915 = vadd.f32 0.0, %v1914
  %v1916 = vpop.f32.mrf.mxu0
  %1917 = vmatprep.mubr.f32.mxu0 0.0
  %1918 = vmatmul.mubr.f32.gmra.mxu0 %v1738
  %v1919 = vpop.f32.mrf.mxu0
  %v1920 = vadd.f32 0.0, %v1919
  %v1921 = vpop.f32.mrf.mxu0
  %1922 = vmatprep.mubr.f32.mxu0 0.0
  %1923 = vmatmul.mubr.f32.gmra.mxu0 %v1741
  %v1924 = vpop.f32.mrf.mxu0
  %v1925 = vadd.f32 0.0, %v1924
  %v1926 = vpop.f32.mrf.mxu0
  %1927 = vmatprep.mubr.f32.mxu0 0.0
  %1928 = vmatmul.mubr.f32.gmra.mxu0 %v1744
  %v1929 = vpop.f32.mrf.mxu0
  %v1930 = vadd.f32 0.0, %v1929
  %v1931 = vpop.f32.mrf.mxu0
  %1932 = vmatprep.mubr.f32.mxu0 0.0
  %1933 = vmatmul.mubr.f32.gmra.mxu0 %v1747
  %v1934 = vpop.f32.mrf.mxu0
  %v1935 = vadd.f32 0.0, %v1934
  %v1936 = vpop.f32.mrf.mxu0
  %1937 = vmatprep.mubr.f32.mxu0 0.0
  %1938 = vmatmul.mubr.f32.gmra.mxu0 %v1750
  %v1939 = vpop.f32.mrf.mxu0
  %v1940 = vadd.f32 0.0, %v1939
  %v1941 = vpop.f32.mrf.mxu0
  %1942 = vmatprep.mubr.f32.mxu0 0.0
  %1943 = vmatmul.mubr.f32.gmra.mxu0 %v1753
  %v1944 = vpop.f32.mrf.mxu0
  %v1945 = vadd.f32 0.0, %v1944
  %v1946 = vpop.f32.mrf.mxu0
  %1947 = vmatprep.mubr.f32.mxu0 0.0
  %1948 = vmatmul.mubr.f32.gmra.mxu0 %v1756
  %v1949 = vpop.f32.mrf.mxu0
  %v1950 = vadd.f32 0.0, %v1949
  %v1951 = vpop.f32.mrf.mxu0
  %1952 = vmatprep.mubr.f32.mxu0 0.0
  %1953 = vmatmul.mubr.f32.gmra.mxu0 %v1759
  %v1954 = vpop.f32.mrf.mxu0
  %v1955 = vadd.f32 0.0, %v1954
  %v1956 = vpop.f32.mrf.mxu0
  %1957 = vmatprep.mubr.f32.mxu0 0.0
  %1958 = vmatmul.mubr.f32.gmra.mxu0 %v1762
  %v1959 = vpop.f32.mrf.mxu0
  %v1960 = vadd.f32 0.0, %v1959
  %v1961 = vpop.f32.mrf.mxu0
  %1962 = vmatprep.mubr.f32.mxu0 0.0
  %1963 = vmatmul.mubr.f32.gmra.mxu0 %v1765
  %v1964 = vpop.f32.mrf.mxu0
  %v1965 = vadd.f32 0.0, %v1964
  %v1966 = vpop.f32.mrf.mxu0
  %1967 = vmatprep.mubr.f32.mxu0 0.0
  %1968 = vmatmul.mubr.f32.gmra.mxu0 %v1768
  %v1969 = vpop.f32.mrf.mxu0
  %v1970 = vadd.f32 0.0, %v1969
  %v1971 = vpop.f32.mrf.mxu0
  %1972 = vmatprep.mubr.f32.mxu0 0.0
  %1973 = vmatmul.mubr.f32.gmra.mxu0 %v1771
  %v1974 = vpop.f32.mrf.mxu0
  %v1975 = vadd.f32 0.0, %v1974
  %v1976 = vpop.f32.mrf.mxu0
  %1977 = vmatprep.mubr.f32.mxu0 0.0
  %1978 = vmatmul.mubr.f32.gmra.mxu0 %v1774
  %v1979 = vpop.f32.mrf.mxu0
  %v1980 = vadd.f32 0.0, %v1979
  %v1981 = vpop.f32.mrf.mxu0
  %1982 = vmatprep.mubr.f32.mxu0 0.0
  %1983 = vmatmul.mubr.f32.gmra.mxu0 %v1777
  %v1984 = vpop.f32.mrf.mxu0
  %v1985 = vadd.f32 0.0, %v1984
  %v1986 = vpop.f32.mrf.mxu0
  %1987 = vmatprep.mubr.f32.mxu0 0.0
  %1988 = vmatmul.mubr.f32.gmra.mxu0 %v1780
  %v1989 = vpop.f32.mrf.mxu0
  %v1990 = vadd.f32 0.0, %v1989
  %v1991 = vpop.f32.mrf.mxu0
  %1992 = vmatprep.mubr.f32.mxu0 0.0
  %1993 = vmatmul.mubr.f32.gmra.mxu0 %v1783
  %v1994 = vpop.f32.mrf.mxu0
  %v1995 = vadd.f32 0.0, %v1994
  %v1996 = vpop.f32.mrf.mxu0
  %1997 = vmatprep.mubr.f32.mxu0 0.0
  %1998 = vmatmul.mubr.f32.gmra.mxu0 %v1786
  %v1999 = vpop.f32.mrf.mxu0
  %v2000 = vadd.f32 0.0, %v1999
  %v2001 = vpop.f32.mrf.mxu0
  %2002 = vmatprep.mubr.f32.mxu0 0.0
  %2003 = vmatmul.mubr.f32.gmra.mxu0 %v1789
  %v2004 = vpop.f32.mrf.mxu0
  %v2005 = vadd.f32 0.0, %v2004
  %v2006 = vpop.f32.mrf.mxu0
  %2007 = vmatprep.mubr.f32.mxu0 0.0
  %2008 = vmatmul.mubr.f32.gmra.mxu0 %v1792
  %v2009 = vpop.f32.mrf.mxu0
  %v2010 = vadd.f32 0.0, %v2009
  %v2011 = vpop.f32.mrf.mxu0
  %2012 = vmatprep.mubr.f32.mxu0 0.0
  %2013 = vmatmul.mubr.f32.gmra.mxu0 %v1795
  %v2014 = vpop.f32.mrf.mxu0
  %v2015 = vadd.f32 0.0, %v2014
  %v2016 = vpop.f32.mrf.mxu0
  %2017 = vmatprep.mubr.f32.mxu0 0.0
  %2018 = vmatmul.mubr.f32.gmra.mxu0 %v1798
  %v2019 = vpop.f32.mrf.mxu0
  %v2020 = vadd.f32 0.0, %v2019
  %v2021 = vpop.f32.mrf.mxu0
  %2022 = vmatprep.mubr.f32.mxu0 0.0
  %2023 = vmatmul.mubr.f32.gmra.mxu0 %v1801
  %v2024 = vpop.f32.mrf.mxu0
  %v2025 = vadd.f32 0.0, %v2024
  %v2026 = vpop.f32.mrf.mxu0
  %2027 = vmatprep.mubr.f32.mxu0 0.0
  %2028 = vmatmul.mubr.f32.gmra.mxu0 %v1804
  %v2029 = vpop.f32.mrf.mxu0
  %v2030 = vadd.f32 0.0, %v2029
  %v2031 = vpop.f32.mrf.mxu0
  %2032 = vmatprep.mubr.f32.mxu0 0.0
  %2033 = vmatmul.mubr.f32.gmra.mxu0 %v1807
  %v2034 = vpop.f32.mrf.mxu0
  %v2035 = vadd.f32 0.0, %v2034
  %v2036 = vpop.f32.mrf.mxu0
  %2037 = vmatprep.mubr.f32.mxu0 0.0
  %2038 = vmatmul.mubr.f32.gmra.mxu0 %v1810
  %v2039 = vpop.f32.mrf.mxu0
  %v2040 = vadd.f32 0.0, %v2039
  %v2041 = vpop.f32.mrf.mxu0
  %2042 = vmatprep.mubr.f32.mxu0 0.0
  %2043 = vmatmul.mubr.f32.gmra.mxu0 %v1813
  %v2044 = vpop.f32.mrf.mxu0
  %v2045 = vadd.f32 0.0, %v2044
  %v2046 = vpop.f32.mrf.mxu0
  %2047 = vmatprep.mubr.f32.mxu0 0.0
  %2048 = vmatmul.mubr.f32.gmra.mxu0 %v1816
  %v2049 = vpop.f32.mrf.mxu0
  %v2050 = vadd.f32 0.0, %v2049
  %v2051 = vpop.f32.mrf.mxu0
  %2052 = vmatprep.mubr.f32.mxu0 0.0
  %2053 = vmatmul.mubr.f32.gmra.mxu0 %v1819
  %v2054 = vpop.f32.mrf.mxu0
  %v2055 = vadd.f32 0.0, %v2054
  %v2056 = vpop.f32.mrf.mxu0
  %2057 = vmatprep.mubr.f32.mxu0 0.0
  %2058 = vmatmul.mubr.f32.gmra.mxu0 %v1822
  %v2059 = vpop.f32.mrf.mxu0
  %v2060 = vadd.f32 0.0, %v2059
  %v2061 = vpop.f32.mrf.mxu0
  %2062 = vmatprep.mubr.f32.mxu0 0.0
  %2063 = vmatmul.mubr.f32.gmra.mxu0 %v1825
  %v2064 = vpop.f32.mrf.mxu0
  %v2065 = vadd.f32 0.0, %v2064
  %v2066 = vpop.f32.mrf.mxu0
  %2067 = vmatprep.mubr.f32.mxu0 0.0
  %2068 = vmatmul.mubr.f32.gmra.mxu0 %v1828
  %v2069 = vpop.f32.mrf.mxu0
  %v2070 = vadd.f32 0.0, %v2069
  %v2071 = vpop.f32.mrf.mxu0
  %2072 = vmatprep.mubr.f32.mxu0 0.0
  %2073 = vmatmul.mubr.f32.gmra.mxu0 %v1831
  %v2074 = vpop.f32.mrf.mxu0
  %v2075 = vadd.f32 0.0, %v2074
  %v2076 = vpop.f32.mrf.mxu0
  %2077 = vdwg.mxu0
  %v2078 = vmax.f32 %v1652, %v1900
  %v2079 = vmax.f32 %v1653, %v1905
  %v2080 = vmax.f32 %v1654, %v1910
  %v2081 = vmax.f32 %v1655, %v1915
  %v2082 = vmax.f32 %v1656, %v1920
  %v2083 = vmax.f32 %v1657, %v1925
  %v2084 = vmax.f32 %v1658, %v1930
  %v2085 = vmax.f32 %v1659, %v1935
  %v2086 = vmax.f32 %v1660, %v1940
  %v2087 = vmax.f32 %v1661, %v1945
  %v2088 = vmax.f32 %v1662, %v1950
  %v2089 = vmax.f32 %v1663, %v1955
  %v2090 = vmax.f32 %v1664, %v1960
  %v2091 = vmax.f32 %v1665, %v1965
  %v2092 = vmax.f32 %v1666, %v1970
  %v2093 = vmax.f32 %v1667, %v1975
  %v2094 = vmax.f32 %v1668, %v1980
  %v2095 = vmax.f32 %v1669, %v1985
  %v2096 = vmax.f32 %v1670, %v1990
  %v2097 = vmax.f32 %v1671, %v1995
  %v2098 = vmax.f32 %v1672, %v2000
  %v2099 = vmax.f32 %v1673, %v2005
  %v2100 = vmax.f32 %v1674, %v2010
  %v2101 = vmax.f32 %v1675, %v2015
  %v2102 = vmax.f32 %v1676, %v2020
  %v2103 = vmax.f32 %v1677, %v2025
  %v2104 = vmax.f32 %v1678, %v2030
  %v2105 = vmax.f32 %v1679, %v2035
  %v2106 = vmax.f32 %v1680, %v2040
  %v2107 = vmax.f32 %v1681, %v2045
  %v2108 = vmax.f32 %v1682, %v2050
  %v2109 = vmax.f32 %v1683, %v2055
  %v2110 = vmax.f32 %v1684, %v2060
  %v2111 = vmax.f32 %v1685, %v2065
  %v2112 = vmax.f32 %v1686, %v2070
  %v2113 = vmax.f32 %v1687, %v2075
  %s2114 = scalar_lea.vmem %s0, 1440
  %v2115 = vld [vmem:[%s2114] sm:$0xff]
  %v2116 = vld [vmem:[%s2114 + $0x8] sm:$0xff]
  %v2117 = vld [vmem:[%s2114 + $0x10] sm:$0xff]
  %v2118 = vld [vmem:[%s2114 + $0x18] sm:$0xff]
  %v2119 = vld [vmem:[%s2114 + $0x20] sm:$0xff]
  %v2120 = vld [vmem:[%s2114 + $0x28] sm:$0xff]
  %v2121 = vld [vmem:[%s2114 + $0x30] sm:$0xff]
  %v2122 = vld [vmem:[%s2114 + $0x38] sm:$0xff]
  %v2123 = vld [vmem:[%s2114 + $0x40] sm:$0xff]
  %v2124 = vld [vmem:[%s2114 + $0x48] sm:$0xff]
  %v2125 = vld [vmem:[%s2114 + $0x50] sm:$0xff]
  %v2126 = vld [vmem:[%s2114 + $0x58] sm:$0xff]
  %v2127 = vld [vmem:[%s2114 + $0x60] sm:$0xff]
  %v2128 = vld [vmem:[%s2114 + $0x68] sm:$0xff]
  %v2129 = vld [vmem:[%s2114 + $0x70] sm:$0xff]
  %v2130 = vld [vmem:[%s2114 + $0x78] sm:$0xff]
  %v2131 = vld [vmem:[%s2114 + $0x80] sm:$0xff]
  %v2132 = vld [vmem:[%s2114 + $0x88] sm:$0xff]
  %v2133 = vld [vmem:[%s2114 + $0x90] sm:$0xff]
  %v2134 = vld [vmem:[%s2114 + $0x98] sm:$0xff]
  %v2135 = vld [vmem:[%s2114 + $0xa0] sm:$0xff]
  %v2136 = vld [vmem:[%s2114 + $0xa8] sm:$0xff]
  %v2137 = vld [vmem:[%s2114 + $0xb0] sm:$0xff]
  %v2138 = vld [vmem:[%s2114 + $0xb8] sm:$0xff]
  %v2139 = vld [vmem:[%s2114 + $0xc0] sm:$0xff]
  %v2140 = vld [vmem:[%s2114 + $0xc8] sm:$0xff]
  %v2141 = vld [vmem:[%s2114 + $0xd0] sm:$0xff]
  %v2142 = vld [vmem:[%s2114 + $0xd8] sm:$0xff]
  %v2143 = vld [vmem:[%s2114 + $0xe0] sm:$0xff]
  %v2144 = vld [vmem:[%s2114 + $0xe8] sm:$0xff]
  %v2145 = vld [vmem:[%s2114 + $0xf0] sm:$0xff]
  %v2146 = vld [vmem:[%s2114 + $0xf8] sm:$0xff]
  %v2147 = vld [vmem:[%s2114 + $0x100] sm:$0xff]
  %v2148 = vld [vmem:[%s2114 + $0x108] sm:$0xff]
  %v2149 = vld [vmem:[%s2114 + $0x110] sm:$0xff]
  %v2150 = vld [vmem:[%s2114 + $0x118] sm:$0xff]
  %v2152 = vsel %vm52, %v2115, 0
  %v2155 = vsel %vm52, %v2116, 0
  %v2158 = vsel %vm52, %v2117, 0
  %v2161 = vsel %vm52, %v2118, 0
  %v2164 = vsel %vm52, %v2119, 0
  %v2167 = vsel %vm52, %v2120, 0
  %v2170 = vsel %vm52, %v2121, 0
  %v2173 = vsel %vm52, %v2122, 0
  %v2176 = vsel %vm52, %v2123, 0
  %v2179 = vsel %vm52, %v2124, 0
  %v2182 = vsel %vm52, %v2125, 0
  %v2185 = vsel %vm52, %v2126, 0
  %v2188 = vsel %vm52, %v2127, 0
  %v2191 = vsel %vm52, %v2128, 0
  %v2194 = vsel %vm52, %v2129, 0
  %v2197 = vsel %vm52, %v2130, 0
  %v2200 = vsel %vm52, %v2131, 0
  %v2203 = vsel %vm52, %v2132, 0
  %v2206 = vsel %vm52, %v2133, 0
  %v2209 = vsel %vm52, %v2134, 0
  %v2212 = vsel %vm52, %v2135, 0
  %v2215 = vsel %vm52, %v2136, 0
  %v2218 = vsel %vm52, %v2137, 0
  %v2221 = vsel %vm52, %v2138, 0
  %v2224 = vsel %vm52, %v2139, 0
  %v2227 = vsel %vm52, %v2140, 0
  %v2230 = vsel %vm52, %v2141, 0
  %v2233 = vsel %vm52, %v2142, 0
  %v2236 = vsel %vm52, %v2143, 0
  %v2239 = vsel %vm52, %v2144, 0
  %v2242 = vsel %vm52, %v2145, 0
  %v2245 = vsel %vm52, %v2146, 0
  %v2248 = vsel %vm52, %v2147, 0
  %v2251 = vsel %vm52, %v2148, 0
  %v2254 = vsel %vm52, %v2149, 0
  %v2257 = vsel %vm52, %v2150, 0
  %2259 = vmatprep.subr.mxu0 0.0
  %2260 = vmatpush1.msra.mxu0 0.0
  %2261 = vmatprep.subr.mxu0 0.0
  %2262 = vmatpush1.msra.mxu0 0.0
  %2263 = vmatprep.subr.mxu0 0.0
  %2264 = vmatpush1.msra.mxu0 0.0
  %2265 = vmatprep.subr.mxu0 0.0
  %2266 = vmatpush1.msra.mxu0 0.0
  %2267 = vmatprep.subr.mxu0 0.0
  %2268 = vmatpush1.msra.mxu0 0.0
  %2269 = vmatprep.subr.mxu0 0.0
  %2270 = vmatpush1.msra.mxu0 0.0
  %2271 = vmatprep.subr.mxu0 0.0
  %2272 = vmatpush1.msra.mxu0 0.0
  %2273 = vmatprep.subr.mxu0 0.0
  %2274 = vmatpush1.msra.mxu0 0.0
  %2275 = vmatprep.subr.mxu0 0.0
  %2276 = vmatpush1.msra.mxu0 0.0
  %2277 = vmatprep.subr.mxu0 0.0
  %2278 = vmatpush1.msra.mxu0 0.0
  %2279 = vmatprep.subr.mxu0 0.0
  %2280 = vmatpush1.msra.mxu0 0.0
  %2281 = vmatprep.subr.mxu0 0.0
  %2282 = vmatpush1.msra.mxu0 0.0
  %2283 = vmatprep.subr.mxu0 0.0
  %2284 = vmatpush1.msra.mxu0 0.0
  %2285 = vmatprep.subr.mxu0 0.0
  %2286 = vmatpush1.msra.mxu0 0.0
  %2287 = vmatprep.subr.mxu0 0.0
  %2288 = vmatpush1.msra.mxu0 %v163
  %2289 = vmatprep.subr.mxu0 0.0
  %2290 = vmatpush1.msra.mxu0 %v14
  %2291 = vmatprep.subr.mxu0 0.0
  %2292 = vmatpush2.msra.mxu0 0.0
  %2293 = vmatprep.subr.mxu0 0.0
  %2294 = vmatpush2.msra.mxu0 0.0
  %2295 = vmatprep.subr.mxu0 0.0
  %2296 = vmatpush2.msra.mxu0 0.0
  %2297 = vmatprep.subr.mxu0 0.0
  %2298 = vmatpush2.msra.mxu0 0.0
  %2299 = vmatprep.subr.mxu0 0.0
  %2300 = vmatpush2.msra.mxu0 0.0
  %2301 = vmatprep.subr.mxu0 0.0
  %2302 = vmatpush2.msra.mxu0 0.0
  %2303 = vmatprep.subr.mxu0 0.0
  %2304 = vmatpush2.msra.mxu0 0.0
  %2305 = vmatprep.subr.mxu0 0.0
  %2306 = vmatpush2.msra.mxu0 0.0
  %2307 = vmatprep.subr.mxu0 0.0
  %2308 = vmatpush2.msra.mxu0 0.0
  %2309 = vmatprep.subr.mxu0 0.0
  %2310 = vmatpush2.msra.mxu0 0.0
  %2311 = vmatprep.subr.mxu0 0.0
  %2312 = vmatpush2.msra.mxu0 0.0
  %2313 = vmatprep.subr.mxu0 0.0
  %2314 = vmatpush2.msra.mxu0 0.0
  %2315 = vmatprep.subr.mxu0 0.0
  %2316 = vmatpush2.msra.mxu0 0.0
  %2317 = vmatprep.subr.mxu0 0.0
  %2318 = vmatpush2.msra.mxu0 0.0
  %2319 = vmatprep.subr.mxu0 0.0
  %2320 = vmatpush2.msra.mxu0 0.0
  %2321 = vmatprep.subr.mxu0 0.0
  %2322 = vmatpush2.msra.mxu0 0.0
  %2323 = vmatprep.mubr.f32.mxu0 0.0
  %2324 = vmatmul.mubr.f32.gmra.mxu0 %v2152
  %v2325 = vpop.f32.mrf.mxu0
  %v2326 = vadd.f32 0.0, %v2325
  %v2327 = vpop.f32.mrf.mxu0
  %2328 = vmatprep.mubr.f32.mxu0 0.0
  %2329 = vmatmul.mubr.f32.gmra.mxu0 %v2155
  %v2330 = vpop.f32.mrf.mxu0
  %v2331 = vadd.f32 0.0, %v2330
  %v2332 = vpop.f32.mrf.mxu0
  %2333 = vmatprep.mubr.f32.mxu0 0.0
  %2334 = vmatmul.mubr.f32.gmra.mxu0 %v2158
  %v2335 = vpop.f32.mrf.mxu0
  %v2336 = vadd.f32 0.0, %v2335
  %v2337 = vpop.f32.mrf.mxu0
  %2338 = vmatprep.mubr.f32.mxu0 0.0
  %2339 = vmatmul.mubr.f32.gmra.mxu0 %v2161
  %v2340 = vpop.f32.mrf.mxu0
  %v2341 = vadd.f32 0.0, %v2340
  %v2342 = vpop.f32.mrf.mxu0
  %2343 = vmatprep.mubr.f32.mxu0 0.0
  %2344 = vmatmul.mubr.f32.gmra.mxu0 %v2164
  %v2345 = vpop.f32.mrf.mxu0
  %v2346 = vadd.f32 0.0, %v2345
  %v2347 = vpop.f32.mrf.mxu0
  %2348 = vmatprep.mubr.f32.mxu0 0.0
  %2349 = vmatmul.mubr.f32.gmra.mxu0 %v2167
  %v2350 = vpop.f32.mrf.mxu0
  %v2351 = vadd.f32 0.0, %v2350
  %v2352 = vpop.f32.mrf.mxu0
  %2353 = vmatprep.mubr.f32.mxu0 0.0
  %2354 = vmatmul.mubr.f32.gmra.mxu0 %v2170
  %v2355 = vpop.f32.mrf.mxu0
  %v2356 = vadd.f32 0.0, %v2355
  %v2357 = vpop.f32.mrf.mxu0
  %2358 = vmatprep.mubr.f32.mxu0 0.0
  %2359 = vmatmul.mubr.f32.gmra.mxu0 %v2173
  %v2360 = vpop.f32.mrf.mxu0
  %v2361 = vadd.f32 0.0, %v2360
  %v2362 = vpop.f32.mrf.mxu0
  %2363 = vmatprep.mubr.f32.mxu0 0.0
  %2364 = vmatmul.mubr.f32.gmra.mxu0 %v2176
  %v2365 = vpop.f32.mrf.mxu0
  %v2366 = vadd.f32 0.0, %v2365
  %v2367 = vpop.f32.mrf.mxu0
  %2368 = vmatprep.mubr.f32.mxu0 0.0
  %2369 = vmatmul.mubr.f32.gmra.mxu0 %v2179
  %v2370 = vpop.f32.mrf.mxu0
  %v2371 = vadd.f32 0.0, %v2370
  %v2372 = vpop.f32.mrf.mxu0
  %2373 = vmatprep.mubr.f32.mxu0 0.0
  %2374 = vmatmul.mubr.f32.gmra.mxu0 %v2182
  %v2375 = vpop.f32.mrf.mxu0
  %v2376 = vadd.f32 0.0, %v2375
  %v2377 = vpop.f32.mrf.mxu0
  %2378 = vmatprep.mubr.f32.mxu0 0.0
  %2379 = vmatmul.mubr.f32.gmra.mxu0 %v2185
  %v2380 = vpop.f32.mrf.mxu0
  %v2381 = vadd.f32 0.0, %v2380
  %v2382 = vpop.f32.mrf.mxu0
  %2383 = vmatprep.mubr.f32.mxu0 0.0
  %2384 = vmatmul.mubr.f32.gmra.mxu0 %v2188
  %v2385 = vpop.f32.mrf.mxu0
  %v2386 = vadd.f32 0.0, %v2385
  %v2387 = vpop.f32.mrf.mxu0
  %2388 = vmatprep.mubr.f32.mxu0 0.0
  %2389 = vmatmul.mubr.f32.gmra.mxu0 %v2191
  %v2390 = vpop.f32.mrf.mxu0
  %v2391 = vadd.f32 0.0, %v2390
  %v2392 = vpop.f32.mrf.mxu0
  %2393 = vmatprep.mubr.f32.mxu0 0.0
  %2394 = vmatmul.mubr.f32.gmra.mxu0 %v2194
  %v2395 = vpop.f32.mrf.mxu0
  %v2396 = vadd.f32 0.0, %v2395
  %v2397 = vpop.f32.mrf.mxu0
  %2398 = vmatprep.mubr.f32.mxu0 0.0
  %2399 = vmatmul.mubr.f32.gmra.mxu0 %v2197
  %v2400 = vpop.f32.mrf.mxu0
  %v2401 = vadd.f32 0.0, %v2400
  %v2402 = vpop.f32.mrf.mxu0
  %2403 = vmatprep.mubr.f32.mxu0 0.0
  %2404 = vmatmul.mubr.f32.gmra.mxu0 %v2200
  %v2405 = vpop.f32.mrf.mxu0
  %v2406 = vadd.f32 0.0, %v2405
  %v2407 = vpop.f32.mrf.mxu0
  %2408 = vmatprep.mubr.f32.mxu0 0.0
  %2409 = vmatmul.mubr.f32.gmra.mxu0 %v2203
  %v2410 = vpop.f32.mrf.mxu0
  %v2411 = vadd.f32 0.0, %v2410
  %v2412 = vpop.f32.mrf.mxu0
  %2413 = vmatprep.mubr.f32.mxu0 0.0
  %2414 = vmatmul.mubr.f32.gmra.mxu0 %v2206
  %v2415 = vpop.f32.mrf.mxu0
  %v2416 = vadd.f32 0.0, %v2415
  %v2417 = vpop.f32.mrf.mxu0
  %2418 = vmatprep.mubr.f32.mxu0 0.0
  %2419 = vmatmul.mubr.f32.gmra.mxu0 %v2209
  %v2420 = vpop.f32.mrf.mxu0
  %v2421 = vadd.f32 0.0, %v2420
  %v2422 = vpop.f32.mrf.mxu0
  %2423 = vmatprep.mubr.f32.mxu0 0.0
  %2424 = vmatmul.mubr.f32.gmra.mxu0 %v2212
  %v2425 = vpop.f32.mrf.mxu0
  %v2426 = vadd.f32 0.0, %v2425
  %v2427 = vpop.f32.mrf.mxu0
  %2428 = vmatprep.mubr.f32.mxu0 0.0
  %2429 = vmatmul.mubr.f32.gmra.mxu0 %v2215
  %v2430 = vpop.f32.mrf.mxu0
  %v2431 = vadd.f32 0.0, %v2430
  %v2432 = vpop.f32.mrf.mxu0
  %2433 = vmatprep.mubr.f32.mxu0 0.0
  %2434 = vmatmul.mubr.f32.gmra.mxu0 %v2218
  %v2435 = vpop.f32.mrf.mxu0
  %v2436 = vadd.f32 0.0, %v2435
  %v2437 = vpop.f32.mrf.mxu0
  %2438 = vmatprep.mubr.f32.mxu0 0.0
  %2439 = vmatmul.mubr.f32.gmra.mxu0 %v2221
  %v2440 = vpop.f32.mrf.mxu0
  %v2441 = vadd.f32 0.0, %v2440
  %v2442 = vpop.f32.mrf.mxu0
  %2443 = vmatprep.mubr.f32.mxu0 0.0
  %2444 = vmatmul.mubr.f32.gmra.mxu0 %v2224
  %v2445 = vpop.f32.mrf.mxu0
  %v2446 = vadd.f32 0.0, %v2445
  %v2447 = vpop.f32.mrf.mxu0
  %2448 = vmatprep.mubr.f32.mxu0 0.0
  %2449 = vmatmul.mubr.f32.gmra.mxu0 %v2227
  %v2450 = vpop.f32.mrf.mxu0
  %v2451 = vadd.f32 0.0, %v2450
  %v2452 = vpop.f32.mrf.mxu0
  %2453 = vmatprep.mubr.f32.mxu0 0.0
  %2454 = vmatmul.mubr.f32.gmra.mxu0 %v2230
  %v2455 = vpop.f32.mrf.mxu0
  %v2456 = vadd.f32 0.0, %v2455
  %v2457 = vpop.f32.mrf.mxu0
  %2458 = vmatprep.mubr.f32.mxu0 0.0
  %2459 = vmatmul.mubr.f32.gmra.mxu0 %v2233
  %v2460 = vpop.f32.mrf.mxu0
  %v2461 = vadd.f32 0.0, %v2460
  %v2462 = vpop.f32.mrf.mxu0
  %2463 = vmatprep.mubr.f32.mxu0 0.0
  %2464 = vmatmul.mubr.f32.gmra.mxu0 %v2236
  %v2465 = vpop.f32.mrf.mxu0
  %v2466 = vadd.f32 0.0, %v2465
  %v2467 = vpop.f32.mrf.mxu0
  %2468 = vmatprep.mubr.f32.mxu0 0.0
  %2469 = vmatmul.mubr.f32.gmra.mxu0 %v2239
  %v2470 = vpop.f32.mrf.mxu0
  %v2471 = vadd.f32 0.0, %v2470
  %v2472 = vpop.f32.mrf.mxu0
  %2473 = vmatprep.mubr.f32.mxu0 0.0
  %2474 = vmatmul.mubr.f32.gmra.mxu0 %v2242
  %v2475 = vpop.f32.mrf.mxu0
  %v2476 = vadd.f32 0.0, %v2475
  %v2477 = vpop.f32.mrf.mxu0
  %2478 = vmatprep.mubr.f32.mxu0 0.0
  %2479 = vmatmul.mubr.f32.gmra.mxu0 %v2245
  %v2480 = vpop.f32.mrf.mxu0
  %v2481 = vadd.f32 0.0, %v2480
  %v2482 = vpop.f32.mrf.mxu0
  %2483 = vmatprep.mubr.f32.mxu0 0.0
  %2484 = vmatmul.mubr.f32.gmra.mxu0 %v2248
  %v2485 = vpop.f32.mrf.mxu0
  %v2486 = vadd.f32 0.0, %v2485
  %v2487 = vpop.f32.mrf.mxu0
  %2488 = vmatprep.mubr.f32.mxu0 0.0
  %2489 = vmatmul.mubr.f32.gmra.mxu0 %v2251
  %v2490 = vpop.f32.mrf.mxu0
  %v2491 = vadd.f32 0.0, %v2490
  %v2492 = vpop.f32.mrf.mxu0
  %2493 = vmatprep.mubr.f32.mxu0 0.0
  %2494 = vmatmul.mubr.f32.gmra.mxu0 %v2254
  %v2495 = vpop.f32.mrf.mxu0
  %v2496 = vadd.f32 0.0, %v2495
  %v2497 = vpop.f32.mrf.mxu0
  %2498 = vmatprep.mubr.f32.mxu0 0.0
  %2499 = vmatmul.mubr.f32.gmra.mxu0 %v2257
  %v2500 = vpop.f32.mrf.mxu0
  %v2501 = vadd.f32 0.0, %v2500
  %v2502 = vpop.f32.mrf.mxu0
  %2503 = vdwg.mxu0
  %v2504 = vmax.f32 %v2078, %v2326
  %v2505 = vmax.f32 %v2079, %v2331
  %v2506 = vmax.f32 %v2080, %v2336
  %v2507 = vmax.f32 %v2081, %v2341
  %v2508 = vmax.f32 %v2082, %v2346
  %v2509 = vmax.f32 %v2083, %v2351
  %v2510 = vmax.f32 %v2084, %v2356
  %v2511 = vmax.f32 %v2085, %v2361
  %v2512 = vmax.f32 %v2086, %v2366
  %v2513 = vmax.f32 %v2087, %v2371
  %v2514 = vmax.f32 %v2088, %v2376
  %v2515 = vmax.f32 %v2089, %v2381
  %v2516 = vmax.f32 %v2090, %v2386
  %v2517 = vmax.f32 %v2091, %v2391
  %v2518 = vmax.f32 %v2092, %v2396
  %v2519 = vmax.f32 %v2093, %v2401
  %v2520 = vmax.f32 %v2094, %v2406
  %v2521 = vmax.f32 %v2095, %v2411
  %v2522 = vmax.f32 %v2096, %v2416
  %v2523 = vmax.f32 %v2097, %v2421
  %v2524 = vmax.f32 %v2098, %v2426
  %v2525 = vmax.f32 %v2099, %v2431
  %v2526 = vmax.f32 %v2100, %v2436
  %v2527 = vmax.f32 %v2101, %v2441
  %v2528 = vmax.f32 %v2102, %v2446
  %v2529 = vmax.f32 %v2103, %v2451
  %v2530 = vmax.f32 %v2104, %v2456
  %v2531 = vmax.f32 %v2105, %v2461
  %v2532 = vmax.f32 %v2106, %v2466
  %v2533 = vmax.f32 %v2107, %v2471
  %v2534 = vmax.f32 %v2108, %v2476
  %v2535 = vmax.f32 %v2109, %v2481
  %v2536 = vmax.f32 %v2110, %v2486
  %v2537 = vmax.f32 %v2111, %v2491
  %v2538 = vmax.f32 %v2112, %v2496
  %v2539 = vmax.f32 %v2113, %v2501
  %s2540 = scalar_lea.vmem %s0, 1728
  %v2541 = vld [vmem:[%s2540] sm:$0xff]
  %v2542 = vld [vmem:[%s2540 + $0x8] sm:$0xff]
  %v2543 = vld [vmem:[%s2540 + $0x10] sm:$0xff]
  %v2544 = vld [vmem:[%s2540 + $0x18] sm:$0xff]
  %v2545 = vld [vmem:[%s2540 + $0x20] sm:$0xff]
  %v2546 = vld [vmem:[%s2540 + $0x28] sm:$0xff]
  %v2547 = vld [vmem:[%s2540 + $0x30] sm:$0xff]
  %v2548 = vld [vmem:[%s2540 + $0x38] sm:$0xff]
  %v2549 = vld [vmem:[%s2540 + $0x40] sm:$0xff]
  %v2550 = vld [vmem:[%s2540 + $0x48] sm:$0xff]
  %v2551 = vld [vmem:[%s2540 + $0x50] sm:$0xff]
  %v2552 = vld [vmem:[%s2540 + $0x58] sm:$0xff]
  %v2553 = vld [vmem:[%s2540 + $0x60] sm:$0xff]
  %v2554 = vld [vmem:[%s2540 + $0x68] sm:$0xff]
  %v2555 = vld [vmem:[%s2540 + $0x70] sm:$0xff]
  %v2556 = vld [vmem:[%s2540 + $0x78] sm:$0xff]
  %v2557 = vld [vmem:[%s2540 + $0x80] sm:$0xff]
  %v2558 = vld [vmem:[%s2540 + $0x88] sm:$0xff]
  %v2559 = vld [vmem:[%s2540 + $0x90] sm:$0xff]
  %v2560 = vld [vmem:[%s2540 + $0x98] sm:$0xff]
  %v2561 = vld [vmem:[%s2540 + $0xa0] sm:$0xff]
  %v2562 = vld [vmem:[%s2540 + $0xa8] sm:$0xff]
  %v2563 = vld [vmem:[%s2540 + $0xb0] sm:$0xff]
  %v2564 = vld [vmem:[%s2540 + $0xb8] sm:$0xff]
  %v2565 = vld [vmem:[%s2540 + $0xc0] sm:$0xff]
  %v2566 = vld [vmem:[%s2540 + $0xc8] sm:$0xff]
  %v2567 = vld [vmem:[%s2540 + $0xd0] sm:$0xff]
  %v2568 = vld [vmem:[%s2540 + $0xd8] sm:$0xff]
  %v2569 = vld [vmem:[%s2540 + $0xe0] sm:$0xff]
  %v2570 = vld [vmem:[%s2540 + $0xe8] sm:$0xff]
  %v2571 = vld [vmem:[%s2540 + $0xf0] sm:$0xff]
  %v2572 = vld [vmem:[%s2540 + $0xf8] sm:$0xff]
  %v2573 = vld [vmem:[%s2540 + $0x100] sm:$0xff]
  %v2574 = vld [vmem:[%s2540 + $0x108] sm:$0xff]
  %v2575 = vld [vmem:[%s2540 + $0x110] sm:$0xff]
  %v2576 = vld [vmem:[%s2540 + $0x118] sm:$0xff]
  %v2578 = vsel %vm52, %v2541, 0
  %v2581 = vsel %vm52, %v2542, 0
  %v2584 = vsel %vm52, %v2543, 0
  %v2587 = vsel %vm52, %v2544, 0
  %v2590 = vsel %vm52, %v2545, 0
  %v2593 = vsel %vm52, %v2546, 0
  %v2596 = vsel %vm52, %v2547, 0
  %v2599 = vsel %vm52, %v2548, 0
  %v2602 = vsel %vm52, %v2549, 0
  %v2605 = vsel %vm52, %v2550, 0
  %v2608 = vsel %vm52, %v2551, 0
  %v2611 = vsel %vm52, %v2552, 0
  %v2614 = vsel %vm52, %v2553, 0
  %v2617 = vsel %vm52, %v2554, 0
  %v2620 = vsel %vm52, %v2555, 0
  %v2623 = vsel %vm52, %v2556, 0
  %v2626 = vsel %vm52, %v2557, 0
  %v2629 = vsel %vm52, %v2558, 0
  %v2632 = vsel %vm52, %v2559, 0
  %v2635 = vsel %vm52, %v2560, 0
  %v2638 = vsel %vm52, %v2561, 0
  %v2641 = vsel %vm52, %v2562, 0
  %v2644 = vsel %vm52, %v2563, 0
  %v2647 = vsel %vm52, %v2564, 0
  %v2650 = vsel %vm52, %v2565, 0
  %v2653 = vsel %vm52, %v2566, 0
  %v2656 = vsel %vm52, %v2567, 0
  %v2659 = vsel %vm52, %v2568, 0
  %v2662 = vsel %vm52, %v2569, 0
  %v2665 = vsel %vm52, %v2570, 0
  %v2668 = vsel %vm52, %v2571, 0
  %v2671 = vsel %vm52, %v2572, 0
  %v2674 = vsel %vm52, %v2573, 0
  %v2677 = vsel %vm52, %v2574, 0
  %v2680 = vsel %vm52, %v2575, 0
  %v2683 = vsel %vm52, %v2576, 0
  %2685 = vmatprep.subr.mxu0 0.0
  %2686 = vmatpush1.msra.mxu0 0.0
  %2687 = vmatprep.subr.mxu0 0.0
  %2688 = vmatpush1.msra.mxu0 0.0
  %2689 = vmatprep.subr.mxu0 0.0
  %2690 = vmatpush1.msra.mxu0 0.0
  %2691 = vmatprep.subr.mxu0 0.0
  %2692 = vmatpush1.msra.mxu0 0.0
  %2693 = vmatprep.subr.mxu0 0.0
  %2694 = vmatpush1.msra.mxu0 0.0
  %2695 = vmatprep.subr.mxu0 0.0
  %2696 = vmatpush1.msra.mxu0 0.0
  %2697 = vmatprep.subr.mxu0 0.0
  %2698 = vmatpush1.msra.mxu0 0.0
  %2699 = vmatprep.subr.mxu0 0.0
  %2700 = vmatpush1.msra.mxu0 0.0
  %2701 = vmatprep.subr.mxu0 0.0
  %2702 = vmatpush1.msra.mxu0 0.0
  %2703 = vmatprep.subr.mxu0 0.0
  %2704 = vmatpush1.msra.mxu0 0.0
  %2705 = vmatprep.subr.mxu0 0.0
  %2706 = vmatpush1.msra.mxu0 0.0
  %2707 = vmatprep.subr.mxu0 0.0
  %2708 = vmatpush1.msra.mxu0 0.0
  %2709 = vmatprep.subr.mxu0 0.0
  %2710 = vmatpush1.msra.mxu0 0.0
  %2711 = vmatprep.subr.mxu0 0.0
  %2712 = vmatpush1.msra.mxu0 0.0
  %2713 = vmatprep.subr.mxu0 0.0
  %2714 = vmatpush1.msra.mxu0 %v163
  %2715 = vmatprep.subr.mxu0 0.0
  %2716 = vmatpush1.msra.mxu0 %v14
  %2717 = vmatprep.subr.mxu0 0.0
  %2718 = vmatpush2.msra.mxu0 0.0
  %2719 = vmatprep.subr.mxu0 0.0
  %2720 = vmatpush2.msra.mxu0 0.0
  %2721 = vmatprep.subr.mxu0 0.0
  %2722 = vmatpush2.msra.mxu0 0.0
  %2723 = vmatprep.subr.mxu0 0.0
  %2724 = vmatpush2.msra.mxu0 0.0
  %2725 = vmatprep.subr.mxu0 0.0
  %2726 = vmatpush2.msra.mxu0 0.0
  %2727 = vmatprep.subr.mxu0 0.0
  %2728 = vmatpush2.msra.mxu0 0.0
  %2729 = vmatprep.subr.mxu0 0.0
  %2730 = vmatpush2.msra.mxu0 0.0
  %2731 = vmatprep.subr.mxu0 0.0
  %2732 = vmatpush2.msra.mxu0 0.0
  %2733 = vmatprep.subr.mxu0 0.0
  %2734 = vmatpush2.msra.mxu0 0.0
  %2735 = vmatprep.subr.mxu0 0.0
  %2736 = vmatpush2.msra.mxu0 0.0
  %2737 = vmatprep.subr.mxu0 0.0
  %2738 = vmatpush2.msra.mxu0 0.0
  %2739 = vmatprep.subr.mxu0 0.0
  %2740 = vmatpush2.msra.mxu0 0.0
  %2741 = vmatprep.subr.mxu0 0.0
  %2742 = vmatpush2.msra.mxu0 0.0
  %2743 = vmatprep.subr.mxu0 0.0
  %2744 = vmatpush2.msra.mxu0 0.0
  %2745 = vmatprep.subr.mxu0 0.0
  %2746 = vmatpush2.msra.mxu0 0.0
  %2747 = vmatprep.subr.mxu0 0.0
  %2748 = vmatpush2.msra.mxu0 0.0
  %2749 = vmatprep.mubr.f32.mxu0 0.0
  %2750 = vmatmul.mubr.f32.gmra.mxu0 %v2578
  %v2751 = vpop.f32.mrf.mxu0
  %v2752 = vadd.f32 0.0, %v2751
  %v2753 = vpop.f32.mrf.mxu0
  %2754 = vmatprep.mubr.f32.mxu0 0.0
  %2755 = vmatmul.mubr.f32.gmra.mxu0 %v2581
  %v2756 = vpop.f32.mrf.mxu0
  %v2757 = vadd.f32 0.0, %v2756
  %v2758 = vpop.f32.mrf.mxu0
  %2759 = vmatprep.mubr.f32.mxu0 0.0
  %2760 = vmatmul.mubr.f32.gmra.mxu0 %v2584
  %v2761 = vpop.f32.mrf.mxu0
  %v2762 = vadd.f32 0.0, %v2761
  %v2763 = vpop.f32.mrf.mxu0
  %2764 = vmatprep.mubr.f32.mxu0 0.0
  %2765 = vmatmul.mubr.f32.gmra.mxu0 %v2587
  %v2766 = vpop.f32.mrf.mxu0
  %v2767 = vadd.f32 0.0, %v2766
  %v2768 = vpop.f32.mrf.mxu0
  %2769 = vmatprep.mubr.f32.mxu0 0.0
  %2770 = vmatmul.mubr.f32.gmra.mxu0 %v2590
  %v2771 = vpop.f32.mrf.mxu0
  %v2772 = vadd.f32 0.0, %v2771
  %v2773 = vpop.f32.mrf.mxu0
  %2774 = vmatprep.mubr.f32.mxu0 0.0
  %2775 = vmatmul.mubr.f32.gmra.mxu0 %v2593
  %v2776 = vpop.f32.mrf.mxu0
  %v2777 = vadd.f32 0.0, %v2776
  %v2778 = vpop.f32.mrf.mxu0
  %2779 = vmatprep.mubr.f32.mxu0 0.0
  %2780 = vmatmul.mubr.f32.gmra.mxu0 %v2596
  %v2781 = vpop.f32.mrf.mxu0
  %v2782 = vadd.f32 0.0, %v2781
  %v2783 = vpop.f32.mrf.mxu0
  %2784 = vmatprep.mubr.f32.mxu0 0.0
  %2785 = vmatmul.mubr.f32.gmra.mxu0 %v2599
  %v2786 = vpop.f32.mrf.mxu0
  %v2787 = vadd.f32 0.0, %v2786
  %v2788 = vpop.f32.mrf.mxu0
  %2789 = vmatprep.mubr.f32.mxu0 0.0
  %2790 = vmatmul.mubr.f32.gmra.mxu0 %v2602
  %v2791 = vpop.f32.mrf.mxu0
  %v2792 = vadd.f32 0.0, %v2791
  %v2793 = vpop.f32.mrf.mxu0
  %2794 = vmatprep.mubr.f32.mxu0 0.0
  %2795 = vmatmul.mubr.f32.gmra.mxu0 %v2605
  %v2796 = vpop.f32.mrf.mxu0
  %v2797 = vadd.f32 0.0, %v2796
  %v2798 = vpop.f32.mrf.mxu0
  %2799 = vmatprep.mubr.f32.mxu0 0.0
  %2800 = vmatmul.mubr.f32.gmra.mxu0 %v2608
  %v2801 = vpop.f32.mrf.mxu0
  %v2802 = vadd.f32 0.0, %v2801
  %v2803 = vpop.f32.mrf.mxu0
  %2804 = vmatprep.mubr.f32.mxu0 0.0
  %2805 = vmatmul.mubr.f32.gmra.mxu0 %v2611
  %v2806 = vpop.f32.mrf.mxu0
  %v2807 = vadd.f32 0.0, %v2806
  %v2808 = vpop.f32.mrf.mxu0
  %2809 = vmatprep.mubr.f32.mxu0 0.0
  %2810 = vmatmul.mubr.f32.gmra.mxu0 %v2614
  %v2811 = vpop.f32.mrf.mxu0
  %v2812 = vadd.f32 0.0, %v2811
  %v2813 = vpop.f32.mrf.mxu0
  %2814 = vmatprep.mubr.f32.mxu0 0.0
  %2815 = vmatmul.mubr.f32.gmra.mxu0 %v2617
  %v2816 = vpop.f32.mrf.mxu0
  %v2817 = vadd.f32 0.0, %v2816
  %v2818 = vpop.f32.mrf.mxu0
  %2819 = vmatprep.mubr.f32.mxu0 0.0
  %2820 = vmatmul.mubr.f32.gmra.mxu0 %v2620
  %v2821 = vpop.f32.mrf.mxu0
  %v2822 = vadd.f32 0.0, %v2821
  %v2823 = vpop.f32.mrf.mxu0
  %2824 = vmatprep.mubr.f32.mxu0 0.0
  %2825 = vmatmul.mubr.f32.gmra.mxu0 %v2623
  %v2826 = vpop.f32.mrf.mxu0
  %v2827 = vadd.f32 0.0, %v2826
  %v2828 = vpop.f32.mrf.mxu0
  %2829 = vmatprep.mubr.f32.mxu0 0.0
  %2830 = vmatmul.mubr.f32.gmra.mxu0 %v2626
  %v2831 = vpop.f32.mrf.mxu0
  %v2832 = vadd.f32 0.0, %v2831
  %v2833 = vpop.f32.mrf.mxu0
  %2834 = vmatprep.mubr.f32.mxu0 0.0
  %2835 = vmatmul.mubr.f32.gmra.mxu0 %v2629
  %v2836 = vpop.f32.mrf.mxu0
  %v2837 = vadd.f32 0.0, %v2836
  %v2838 = vpop.f32.mrf.mxu0
  %2839 = vmatprep.mubr.f32.mxu0 0.0
  %2840 = vmatmul.mubr.f32.gmra.mxu0 %v2632
  %v2841 = vpop.f32.mrf.mxu0
  %v2842 = vadd.f32 0.0, %v2841
  %v2843 = vpop.f32.mrf.mxu0
  %2844 = vmatprep.mubr.f32.mxu0 0.0
  %2845 = vmatmul.mubr.f32.gmra.mxu0 %v2635
  %v2846 = vpop.f32.mrf.mxu0
  %v2847 = vadd.f32 0.0, %v2846
  %v2848 = vpop.f32.mrf.mxu0
  %2849 = vmatprep.mubr.f32.mxu0 0.0
  %2850 = vmatmul.mubr.f32.gmra.mxu0 %v2638
  %v2851 = vpop.f32.mrf.mxu0
  %v2852 = vadd.f32 0.0, %v2851
  %v2853 = vpop.f32.mrf.mxu0
  %2854 = vmatprep.mubr.f32.mxu0 0.0
  %2855 = vmatmul.mubr.f32.gmra.mxu0 %v2641
  %v2856 = vpop.f32.mrf.mxu0
  %v2857 = vadd.f32 0.0, %v2856
  %v2858 = vpop.f32.mrf.mxu0
  %2859 = vmatprep.mubr.f32.mxu0 0.0
  %2860 = vmatmul.mubr.f32.gmra.mxu0 %v2644
  %v2861 = vpop.f32.mrf.mxu0
  %v2862 = vadd.f32 0.0, %v2861
  %v2863 = vpop.f32.mrf.mxu0
  %2864 = vmatprep.mubr.f32.mxu0 0.0
  %2865 = vmatmul.mubr.f32.gmra.mxu0 %v2647
  %v2866 = vpop.f32.mrf.mxu0
  %v2867 = vadd.f32 0.0, %v2866
  %v2868 = vpop.f32.mrf.mxu0
  %2869 = vmatprep.mubr.f32.mxu0 0.0
  %2870 = vmatmul.mubr.f32.gmra.mxu0 %v2650
  %v2871 = vpop.f32.mrf.mxu0
  %v2872 = vadd.f32 0.0, %v2871
  %v2873 = vpop.f32.mrf.mxu0
  %2874 = vmatprep.mubr.f32.mxu0 0.0
  %2875 = vmatmul.mubr.f32.gmra.mxu0 %v2653
  %v2876 = vpop.f32.mrf.mxu0
  %v2877 = vadd.f32 0.0, %v2876
  %v2878 = vpop.f32.mrf.mxu0
  %2879 = vmatprep.mubr.f32.mxu0 0.0
  %2880 = vmatmul.mubr.f32.gmra.mxu0 %v2656
  %v2881 = vpop.f32.mrf.mxu0
  %v2882 = vadd.f32 0.0, %v2881
  %v2883 = vpop.f32.mrf.mxu0
  %2884 = vmatprep.mubr.f32.mxu0 0.0
  %2885 = vmatmul.mubr.f32.gmra.mxu0 %v2659
  %v2886 = vpop.f32.mrf.mxu0
  %v2887 = vadd.f32 0.0, %v2886
  %v2888 = vpop.f32.mrf.mxu0
  %2889 = vmatprep.mubr.f32.mxu0 0.0
  %2890 = vmatmul.mubr.f32.gmra.mxu0 %v2662
  %v2891 = vpop.f32.mrf.mxu0
  %v2892 = vadd.f32 0.0, %v2891
  %v2893 = vpop.f32.mrf.mxu0
  %2894 = vmatprep.mubr.f32.mxu0 0.0
  %2895 = vmatmul.mubr.f32.gmra.mxu0 %v2665
  %v2896 = vpop.f32.mrf.mxu0
  %v2897 = vadd.f32 0.0, %v2896
  %v2898 = vpop.f32.mrf.mxu0
  %2899 = vmatprep.mubr.f32.mxu0 0.0
  %2900 = vmatmul.mubr.f32.gmra.mxu0 %v2668
  %v2901 = vpop.f32.mrf.mxu0
  %v2902 = vadd.f32 0.0, %v2901
  %v2903 = vpop.f32.mrf.mxu0
  %2904 = vmatprep.mubr.f32.mxu0 0.0
  %2905 = vmatmul.mubr.f32.gmra.mxu0 %v2671
  %v2906 = vpop.f32.mrf.mxu0
  %v2907 = vadd.f32 0.0, %v2906
  %v2908 = vpop.f32.mrf.mxu0
  %2909 = vmatprep.mubr.f32.mxu0 0.0
  %2910 = vmatmul.mubr.f32.gmra.mxu0 %v2674
  %v2911 = vpop.f32.mrf.mxu0
  %v2912 = vadd.f32 0.0, %v2911
  %v2913 = vpop.f32.mrf.mxu0
  %2914 = vmatprep.mubr.f32.mxu0 0.0
  %2915 = vmatmul.mubr.f32.gmra.mxu0 %v2677
  %v2916 = vpop.f32.mrf.mxu0
  %v2917 = vadd.f32 0.0, %v2916
  %v2918 = vpop.f32.mrf.mxu0
  %2919 = vmatprep.mubr.f32.mxu0 0.0
  %2920 = vmatmul.mubr.f32.gmra.mxu0 %v2680
  %v2921 = vpop.f32.mrf.mxu0
  %v2922 = vadd.f32 0.0, %v2921
  %v2923 = vpop.f32.mrf.mxu0
  %2924 = vmatprep.mubr.f32.mxu0 0.0
  %2925 = vmatmul.mubr.f32.gmra.mxu0 %v2683
  %v2926 = vpop.f32.mrf.mxu0
  %v2927 = vadd.f32 0.0, %v2926
  %v2928 = vpop.f32.mrf.mxu0
  %2929 = vdwg.mxu0
  %v2930 = vmax.f32 %v2504, %v2752
  %v2931 = vmax.f32 %v2505, %v2757
  %v2932 = vmax.f32 %v2506, %v2762
  %v2933 = vmax.f32 %v2507, %v2767
  %v2934 = vmax.f32 %v2508, %v2772
  %v2935 = vmax.f32 %v2509, %v2777
  %v2936 = vmax.f32 %v2510, %v2782
  %v2937 = vmax.f32 %v2511, %v2787
  %v2938 = vmax.f32 %v2512, %v2792
  %v2939 = vmax.f32 %v2513, %v2797
  %v2940 = vmax.f32 %v2514, %v2802
  %v2941 = vmax.f32 %v2515, %v2807
  %v2942 = vmax.f32 %v2516, %v2812
  %v2943 = vmax.f32 %v2517, %v2817
  %v2944 = vmax.f32 %v2518, %v2822
  %v2945 = vmax.f32 %v2519, %v2827
  %v2946 = vmax.f32 %v2520, %v2832
  %v2947 = vmax.f32 %v2521, %v2837
  %v2948 = vmax.f32 %v2522, %v2842
  %v2949 = vmax.f32 %v2523, %v2847
  %v2950 = vmax.f32 %v2524, %v2852
  %v2951 = vmax.f32 %v2525, %v2857
  %v2952 = vmax.f32 %v2526, %v2862
  %v2953 = vmax.f32 %v2527, %v2867
  %v2954 = vmax.f32 %v2528, %v2872
  %v2955 = vmax.f32 %v2529, %v2877
  %v2956 = vmax.f32 %v2530, %v2882
  %v2957 = vmax.f32 %v2531, %v2887
  %v2958 = vmax.f32 %v2532, %v2892
  %v2959 = vmax.f32 %v2533, %v2897
  %v2960 = vmax.f32 %v2534, %v2902
  %v2961 = vmax.f32 %v2535, %v2907
  %v2962 = vmax.f32 %v2536, %v2912
  %v2963 = vmax.f32 %v2537, %v2917
  %v2964 = vmax.f32 %v2538, %v2922
  %v2965 = vmax.f32 %v2539, %v2927
  %s2966 = scalar_lea.vmem %s0, 2016
  %v2967 = vld [vmem:[%s2966] sm:$0xff]
  %v2968 = vld [vmem:[%s2966 + $0x8] sm:$0xff]
  %v2969 = vld [vmem:[%s2966 + $0x10] sm:$0xff]
  %v2970 = vld [vmem:[%s2966 + $0x18] sm:$0xff]
  %v2971 = vld [vmem:[%s2966 + $0x20] sm:$0xff]
  %v2972 = vld [vmem:[%s2966 + $0x28] sm:$0xff]
  %v2973 = vld [vmem:[%s2966 + $0x30] sm:$0xff]
  %v2974 = vld [vmem:[%s2966 + $0x38] sm:$0xff]
  %v2975 = vld [vmem:[%s2966 + $0x40] sm:$0xff]
  %v2976 = vld [vmem:[%s2966 + $0x48] sm:$0xff]
  %v2977 = vld [vmem:[%s2966 + $0x50] sm:$0xff]
  %v2978 = vld [vmem:[%s2966 + $0x58] sm:$0xff]
  %v2979 = vld [vmem:[%s2966 + $0x60] sm:$0xff]
  %v2980 = vld [vmem:[%s2966 + $0x68] sm:$0xff]
  %v2981 = vld [vmem:[%s2966 + $0x70] sm:$0xff]
  %v2982 = vld [vmem:[%s2966 + $0x78] sm:$0xff]
  %v2983 = vld [vmem:[%s2966 + $0x80] sm:$0xff]
  %v2984 = vld [vmem:[%s2966 + $0x88] sm:$0xff]
  %v2985 = vld [vmem:[%s2966 + $0x90] sm:$0xff]
  %v2986 = vld [vmem:[%s2966 + $0x98] sm:$0xff]
  %v2987 = vld [vmem:[%s2966 + $0xa0] sm:$0xff]
  %v2988 = vld [vmem:[%s2966 + $0xa8] sm:$0xff]
  %v2989 = vld [vmem:[%s2966 + $0xb0] sm:$0xff]
  %v2990 = vld [vmem:[%s2966 + $0xb8] sm:$0xff]
  %v2991 = vld [vmem:[%s2966 + $0xc0] sm:$0xff]
  %v2992 = vld [vmem:[%s2966 + $0xc8] sm:$0xff]
  %v2993 = vld [vmem:[%s2966 + $0xd0] sm:$0xff]
  %v2994 = vld [vmem:[%s2966 + $0xd8] sm:$0xff]
  %v2995 = vld [vmem:[%s2966 + $0xe0] sm:$0xff]
  %v2996 = vld [vmem:[%s2966 + $0xe8] sm:$0xff]
  %v2997 = vld [vmem:[%s2966 + $0xf0] sm:$0xff]
  %v2998 = vld [vmem:[%s2966 + $0xf8] sm:$0xff]
  %v2999 = vld [vmem:[%s2966 + $0x100] sm:$0xff]
  %v3000 = vld [vmem:[%s2966 + $0x108] sm:$0xff]
  %v3001 = vld [vmem:[%s2966 + $0x110] sm:$0xff]
  %v3002 = vld [vmem:[%s2966 + $0x118] sm:$0xff]
  %v3004 = vsel %vm52, %v2967, 0
  %v3007 = vsel %vm52, %v2968, 0
  %v3010 = vsel %vm52, %v2969, 0
  %v3013 = vsel %vm52, %v2970, 0
  %v3016 = vsel %vm52, %v2971, 0
  %v3019 = vsel %vm52, %v2972, 0
  %v3022 = vsel %vm52, %v2973, 0
  %v3025 = vsel %vm52, %v2974, 0
  %v3028 = vsel %vm52, %v2975, 0
  %v3031 = vsel %vm52, %v2976, 0
  %v3034 = vsel %vm52, %v2977, 0
  %v3037 = vsel %vm52, %v2978, 0
  %v3040 = vsel %vm52, %v2979, 0
  %v3043 = vsel %vm52, %v2980, 0
  %v3046 = vsel %vm52, %v2981, 0
  %v3049 = vsel %vm52, %v2982, 0
  %v3052 = vsel %vm52, %v2983, 0
  %v3055 = vsel %vm52, %v2984, 0
  %v3058 = vsel %vm52, %v2985, 0
  %v3061 = vsel %vm52, %v2986, 0
  %v3064 = vsel %vm52, %v2987, 0
  %v3067 = vsel %vm52, %v2988, 0
  %v3070 = vsel %vm52, %v2989, 0
  %v3073 = vsel %vm52, %v2990, 0
  %v3076 = vsel %vm52, %v2991, 0
  %v3079 = vsel %vm52, %v2992, 0
  %v3082 = vsel %vm52, %v2993, 0
  %v3085 = vsel %vm52, %v2994, 0
  %v3088 = vsel %vm52, %v2995, 0
  %v3091 = vsel %vm52, %v2996, 0
  %v3094 = vsel %vm52, %v2997, 0
  %v3097 = vsel %vm52, %v2998, 0
  %v3100 = vsel %vm52, %v2999, 0
  %v3103 = vsel %vm52, %v3000, 0
  %v3106 = vsel %vm52, %v3001, 0
  %v3109 = vsel %vm52, %v3002, 0
  %3111 = vmatprep.subr.mxu0 0.0
  %3112 = vmatpush1.msra.mxu0 0.0
  %3113 = vmatprep.subr.mxu0 0.0
  %3114 = vmatpush1.msra.mxu0 0.0
  %3115 = vmatprep.subr.mxu0 0.0
  %3116 = vmatpush1.msra.mxu0 0.0
  %3117 = vmatprep.subr.mxu0 0.0
  %3118 = vmatpush1.msra.mxu0 0.0
  %3119 = vmatprep.subr.mxu0 0.0
  %3120 = vmatpush1.msra.mxu0 0.0
  %3121 = vmatprep.subr.mxu0 0.0
  %3122 = vmatpush1.msra.mxu0 0.0
  %3123 = vmatprep.subr.mxu0 0.0
  %3124 = vmatpush1.msra.mxu0 0.0
  %3125 = vmatprep.subr.mxu0 0.0
  %3126 = vmatpush1.msra.mxu0 0.0
  %3127 = vmatprep.subr.mxu0 0.0
  %3128 = vmatpush1.msra.mxu0 0.0
  %3129 = vmatprep.subr.mxu0 0.0
  %3130 = vmatpush1.msra.mxu0 0.0
  %3131 = vmatprep.subr.mxu0 0.0
  %3132 = vmatpush1.msra.mxu0 0.0
  %3133 = vmatprep.subr.mxu0 0.0
  %3134 = vmatpush1.msra.mxu0 0.0
  %3135 = vmatprep.subr.mxu0 0.0
  %3136 = vmatpush1.msra.mxu0 0.0
  %3137 = vmatprep.subr.mxu0 0.0
  %3138 = vmatpush1.msra.mxu0 0.0
  %3139 = vmatprep.subr.mxu0 0.0
  %3140 = vmatpush1.msra.mxu0 %v163
  %3141 = vmatprep.subr.mxu0 0.0
  %3142 = vmatpush1.msra.mxu0 %v14
  %3143 = vmatprep.subr.mxu0 0.0
  %3144 = vmatpush2.msra.mxu0 0.0
  %3145 = vmatprep.subr.mxu0 0.0
  %3146 = vmatpush2.msra.mxu0 0.0
  %3147 = vmatprep.subr.mxu0 0.0
  %3148 = vmatpush2.msra.mxu0 0.0
  %3149 = vmatprep.subr.mxu0 0.0
  %3150 = vmatpush2.msra.mxu0 0.0
  %3151 = vmatprep.subr.mxu0 0.0
  %3152 = vmatpush2.msra.mxu0 0.0
  %3153 = vmatprep.subr.mxu0 0.0
  %3154 = vmatpush2.msra.mxu0 0.0
  %3155 = vmatprep.subr.mxu0 0.0
  %3156 = vmatpush2.msra.mxu0 0.0
  %3157 = vmatprep.subr.mxu0 0.0
  %3158 = vmatpush2.msra.mxu0 0.0
  %3159 = vmatprep.subr.mxu0 0.0
  %3160 = vmatpush2.msra.mxu0 0.0
  %3161 = vmatprep.subr.mxu0 0.0
  %3162 = vmatpush2.msra.mxu0 0.0
  %3163 = vmatprep.subr.mxu0 0.0
  %3164 = vmatpush2.msra.mxu0 0.0
  %3165 = vmatprep.subr.mxu0 0.0
  %3166 = vmatpush2.msra.mxu0 0.0
  %3167 = vmatprep.subr.mxu0 0.0
  %3168 = vmatpush2.msra.mxu0 0.0
  %3169 = vmatprep.subr.mxu0 0.0
  %3170 = vmatpush2.msra.mxu0 0.0
  %3171 = vmatprep.subr.mxu0 0.0
  %3172 = vmatpush2.msra.mxu0 0.0
  %3173 = vmatprep.subr.mxu0 0.0
  %3174 = vmatpush2.msra.mxu0 0.0
  %3175 = vmatprep.mubr.f32.mxu0 0.0
  %3176 = vmatmul.mubr.f32.gmra.mxu0 %v3004
  %v3177 = vpop.f32.mrf.mxu0
  %v3178 = vadd.f32 0.0, %v3177
  %v3179 = vpop.f32.mrf.mxu0
  %3180 = vmatprep.mubr.f32.mxu0 0.0
  %3181 = vmatmul.mubr.f32.gmra.mxu0 %v3007
  %v3182 = vpop.f32.mrf.mxu0
  %v3183 = vadd.f32 0.0, %v3182
  %v3184 = vpop.f32.mrf.mxu0
  %3185 = vmatprep.mubr.f32.mxu0 0.0
  %3186 = vmatmul.mubr.f32.gmra.mxu0 %v3010
  %v3187 = vpop.f32.mrf.mxu0
  %v3188 = vadd.f32 0.0, %v3187
  %v3189 = vpop.f32.mrf.mxu0
  %3190 = vmatprep.mubr.f32.mxu0 0.0
  %3191 = vmatmul.mubr.f32.gmra.mxu0 %v3013
  %v3192 = vpop.f32.mrf.mxu0
  %v3193 = vadd.f32 0.0, %v3192
  %v3194 = vpop.f32.mrf.mxu0
  %3195 = vmatprep.mubr.f32.mxu0 0.0
  %3196 = vmatmul.mubr.f32.gmra.mxu0 %v3016
  %v3197 = vpop.f32.mrf.mxu0
  %v3198 = vadd.f32 0.0, %v3197
  %v3199 = vpop.f32.mrf.mxu0
  %3200 = vmatprep.mubr.f32.mxu0 0.0
  %3201 = vmatmul.mubr.f32.gmra.mxu0 %v3019
  %v3202 = vpop.f32.mrf.mxu0
  %v3203 = vadd.f32 0.0, %v3202
  %v3204 = vpop.f32.mrf.mxu0
  %3205 = vmatprep.mubr.f32.mxu0 0.0
  %3206 = vmatmul.mubr.f32.gmra.mxu0 %v3022
  %v3207 = vpop.f32.mrf.mxu0
  %v3208 = vadd.f32 0.0, %v3207
  %v3209 = vpop.f32.mrf.mxu0
  %3210 = vmatprep.mubr.f32.mxu0 0.0
  %3211 = vmatmul.mubr.f32.gmra.mxu0 %v3025
  %v3212 = vpop.f32.mrf.mxu0
  %v3213 = vadd.f32 0.0, %v3212
  %v3214 = vpop.f32.mrf.mxu0
  %3215 = vmatprep.mubr.f32.mxu0 0.0
  %3216 = vmatmul.mubr.f32.gmra.mxu0 %v3028
  %v3217 = vpop.f32.mrf.mxu0
  %v3218 = vadd.f32 0.0, %v3217
  %v3219 = vpop.f32.mrf.mxu0
  %3220 = vmatprep.mubr.f32.mxu0 0.0
  %3221 = vmatmul.mubr.f32.gmra.mxu0 %v3031
  %v3222 = vpop.f32.mrf.mxu0
  %v3223 = vadd.f32 0.0, %v3222
  %v3224 = vpop.f32.mrf.mxu0
  %3225 = vmatprep.mubr.f32.mxu0 0.0
  %3226 = vmatmul.mubr.f32.gmra.mxu0 %v3034
  %v3227 = vpop.f32.mrf.mxu0
  %v3228 = vadd.f32 0.0, %v3227
  %v3229 = vpop.f32.mrf.mxu0
  %3230 = vmatprep.mubr.f32.mxu0 0.0
  %3231 = vmatmul.mubr.f32.gmra.mxu0 %v3037
  %v3232 = vpop.f32.mrf.mxu0
  %v3233 = vadd.f32 0.0, %v3232
  %v3234 = vpop.f32.mrf.mxu0
  %3235 = vmatprep.mubr.f32.mxu0 0.0
  %3236 = vmatmul.mubr.f32.gmra.mxu0 %v3040
  %v3237 = vpop.f32.mrf.mxu0
  %v3238 = vadd.f32 0.0, %v3237
  %v3239 = vpop.f32.mrf.mxu0
  %3240 = vmatprep.mubr.f32.mxu0 0.0
  %3241 = vmatmul.mubr.f32.gmra.mxu0 %v3043
  %v3242 = vpop.f32.mrf.mxu0
  %v3243 = vadd.f32 0.0, %v3242
  %v3244 = vpop.f32.mrf.mxu0
  %3245 = vmatprep.mubr.f32.mxu0 0.0
  %3246 = vmatmul.mubr.f32.gmra.mxu0 %v3046
  %v3247 = vpop.f32.mrf.mxu0
  %v3248 = vadd.f32 0.0, %v3247
  %v3249 = vpop.f32.mrf.mxu0
  %3250 = vmatprep.mubr.f32.mxu0 0.0
  %3251 = vmatmul.mubr.f32.gmra.mxu0 %v3049
  %v3252 = vpop.f32.mrf.mxu0
  %v3253 = vadd.f32 0.0, %v3252
  %v3254 = vpop.f32.mrf.mxu0
  %3255 = vmatprep.mubr.f32.mxu0 0.0
  %3256 = vmatmul.mubr.f32.gmra.mxu0 %v3052
  %v3257 = vpop.f32.mrf.mxu0
  %v3258 = vadd.f32 0.0, %v3257
  %v3259 = vpop.f32.mrf.mxu0
  %3260 = vmatprep.mubr.f32.mxu0 0.0
  %3261 = vmatmul.mubr.f32.gmra.mxu0 %v3055
  %v3262 = vpop.f32.mrf.mxu0
  %v3263 = vadd.f32 0.0, %v3262
  %v3264 = vpop.f32.mrf.mxu0
  %3265 = vmatprep.mubr.f32.mxu0 0.0
  %3266 = vmatmul.mubr.f32.gmra.mxu0 %v3058
  %v3267 = vpop.f32.mrf.mxu0
  %v3268 = vadd.f32 0.0, %v3267
  %v3269 = vpop.f32.mrf.mxu0
  %3270 = vmatprep.mubr.f32.mxu0 0.0
  %3271 = vmatmul.mubr.f32.gmra.mxu0 %v3061
  %v3272 = vpop.f32.mrf.mxu0
  %v3273 = vadd.f32 0.0, %v3272
  %v3274 = vpop.f32.mrf.mxu0
  %3275 = vmatprep.mubr.f32.mxu0 0.0
  %3276 = vmatmul.mubr.f32.gmra.mxu0 %v3064
  %v3277 = vpop.f32.mrf.mxu0
  %v3278 = vadd.f32 0.0, %v3277
  %v3279 = vpop.f32.mrf.mxu0
  %3280 = vmatprep.mubr.f32.mxu0 0.0
  %3281 = vmatmul.mubr.f32.gmra.mxu0 %v3067
  %v3282 = vpop.f32.mrf.mxu0
  %v3283 = vadd.f32 0.0, %v3282
  %v3284 = vpop.f32.mrf.mxu0
  %3285 = vmatprep.mubr.f32.mxu0 0.0
  %3286 = vmatmul.mubr.f32.gmra.mxu0 %v3070
  %v3287 = vpop.f32.mrf.mxu0
  %v3288 = vadd.f32 0.0, %v3287
  %v3289 = vpop.f32.mrf.mxu0
  %3290 = vmatprep.mubr.f32.mxu0 0.0
  %3291 = vmatmul.mubr.f32.gmra.mxu0 %v3073
  %v3292 = vpop.f32.mrf.mxu0
  %v3293 = vadd.f32 0.0, %v3292
  %v3294 = vpop.f32.mrf.mxu0
  %3295 = vmatprep.mubr.f32.mxu0 0.0
  %3296 = vmatmul.mubr.f32.gmra.mxu0 %v3076
  %v3297 = vpop.f32.mrf.mxu0
  %v3298 = vadd.f32 0.0, %v3297
  %v3299 = vpop.f32.mrf.mxu0
  %3300 = vmatprep.mubr.f32.mxu0 0.0
  %3301 = vmatmul.mubr.f32.gmra.mxu0 %v3079
  %v3302 = vpop.f32.mrf.mxu0
  %v3303 = vadd.f32 0.0, %v3302
  %v3304 = vpop.f32.mrf.mxu0
  %3305 = vmatprep.mubr.f32.mxu0 0.0
  %3306 = vmatmul.mubr.f32.gmra.mxu0 %v3082
  %v3307 = vpop.f32.mrf.mxu0
  %v3308 = vadd.f32 0.0, %v3307
  %v3309 = vpop.f32.mrf.mxu0
  %3310 = vmatprep.mubr.f32.mxu0 0.0
  %3311 = vmatmul.mubr.f32.gmra.mxu0 %v3085
  %v3312 = vpop.f32.mrf.mxu0
  %v3313 = vadd.f32 0.0, %v3312
  %v3314 = vpop.f32.mrf.mxu0
  %3315 = vmatprep.mubr.f32.mxu0 0.0
  %3316 = vmatmul.mubr.f32.gmra.mxu0 %v3088
  %v3317 = vpop.f32.mrf.mxu0
  %v3318 = vadd.f32 0.0, %v3317
  %v3319 = vpop.f32.mrf.mxu0
  %3320 = vmatprep.mubr.f32.mxu0 0.0
  %3321 = vmatmul.mubr.f32.gmra.mxu0 %v3091
  %v3322 = vpop.f32.mrf.mxu0
  %v3323 = vadd.f32 0.0, %v3322
  %v3324 = vpop.f32.mrf.mxu0
  %3325 = vmatprep.mubr.f32.mxu0 0.0
  %3326 = vmatmul.mubr.f32.gmra.mxu0 %v3094
  %v3327 = vpop.f32.mrf.mxu0
  %v3328 = vadd.f32 0.0, %v3327
  %v3329 = vpop.f32.mrf.mxu0
  %3330 = vmatprep.mubr.f32.mxu0 0.0
  %3331 = vmatmul.mubr.f32.gmra.mxu0 %v3097
  %v3332 = vpop.f32.mrf.mxu0
  %v3333 = vadd.f32 0.0, %v3332
  %v3334 = vpop.f32.mrf.mxu0
  %3335 = vmatprep.mubr.f32.mxu0 0.0
  %3336 = vmatmul.mubr.f32.gmra.mxu0 %v3100
  %v3337 = vpop.f32.mrf.mxu0
  %v3338 = vadd.f32 0.0, %v3337
  %v3339 = vpop.f32.mrf.mxu0
  %3340 = vmatprep.mubr.f32.mxu0 0.0
  %3341 = vmatmul.mubr.f32.gmra.mxu0 %v3103
  %v3342 = vpop.f32.mrf.mxu0
  %v3343 = vadd.f32 0.0, %v3342
  %v3344 = vpop.f32.mrf.mxu0
  %3345 = vmatprep.mubr.f32.mxu0 0.0
  %3346 = vmatmul.mubr.f32.gmra.mxu0 %v3106
  %v3347 = vpop.f32.mrf.mxu0
  %v3348 = vadd.f32 0.0, %v3347
  %v3349 = vpop.f32.mrf.mxu0
  %3350 = vmatprep.mubr.f32.mxu0 0.0
  %3351 = vmatmul.mubr.f32.gmra.mxu0 %v3109
  %v3352 = vpop.f32.mrf.mxu0
  %v3353 = vadd.f32 0.0, %v3352
  %v3354 = vpop.f32.mrf.mxu0
  %3355 = vdwg.mxu0
  %v3356 = vmax.f32 %v2930, %v3178
  %v3357 = vmax.f32 %v2931, %v3183
  %v3358 = vmax.f32 %v2932, %v3188
  %v3359 = vmax.f32 %v2933, %v3193
  %v3360 = vmax.f32 %v2934, %v3198
  %v3361 = vmax.f32 %v2935, %v3203
  %v3362 = vmax.f32 %v2936, %v3208
  %v3363 = vmax.f32 %v2937, %v3213
  %v3364 = vmax.f32 %v2938, %v3218
  %v3365 = vmax.f32 %v2939, %v3223
  %v3366 = vmax.f32 %v2940, %v3228
  %v3367 = vmax.f32 %v2941, %v3233
  %v3368 = vmax.f32 %v2942, %v3238
  %v3369 = vmax.f32 %v2943, %v3243
  %v3370 = vmax.f32 %v2944, %v3248
  %v3371 = vmax.f32 %v2945, %v3253
  %v3372 = vmax.f32 %v2946, %v3258
  %v3373 = vmax.f32 %v2947, %v3263
  %v3374 = vmax.f32 %v2948, %v3268
  %v3375 = vmax.f32 %v2949, %v3273
  %v3376 = vmax.f32 %v2950, %v3278
  %v3377 = vmax.f32 %v2951, %v3283
  %v3378 = vmax.f32 %v2952, %v3288
  %v3379 = vmax.f32 %v2953, %v3293
  %v3380 = vmax.f32 %v2954, %v3298
  %v3381 = vmax.f32 %v2955, %v3303
  %v3382 = vmax.f32 %v2956, %v3308
  %v3383 = vmax.f32 %v2957, %v3313
  %v3384 = vmax.f32 %v2958, %v3318
  %v3385 = vmax.f32 %v2959, %v3323
  %v3386 = vmax.f32 %v2960, %v3328
  %v3387 = vmax.f32 %v2961, %v3333
  %v3388 = vmax.f32 %v2962, %v3338
  %v3389 = vmax.f32 %v2963, %v3343
  %v3390 = vmax.f32 %v2964, %v3348
  %v3391 = vmax.f32 %v2965, %v3353
  %s3392 = scalar_lea.vmem %s0, 2304
  %v3393 = vld [vmem:[%s3392] sm:$0xff]
  %v3394 = vld [vmem:[%s3392 + $0x8] sm:$0xff]
  %v3395 = vld [vmem:[%s3392 + $0x10] sm:$0xff]
  %v3396 = vld [vmem:[%s3392 + $0x18] sm:$0xff]
  %v3397 = vld [vmem:[%s3392 + $0x20] sm:$0xff]
  %v3398 = vld [vmem:[%s3392 + $0x28] sm:$0xff]
  %v3399 = vld [vmem:[%s3392 + $0x30] sm:$0xff]
  %v3400 = vld [vmem:[%s3392 + $0x38] sm:$0xff]
  %v3401 = vld [vmem:[%s3392 + $0x40] sm:$0xff]
  %v3402 = vld [vmem:[%s3392 + $0x48] sm:$0xff]
  %v3403 = vld [vmem:[%s3392 + $0x50] sm:$0xff]
  %v3404 = vld [vmem:[%s3392 + $0x58] sm:$0xff]
  %v3405 = vld [vmem:[%s3392 + $0x60] sm:$0xff]
  %v3406 = vld [vmem:[%s3392 + $0x68] sm:$0xff]
  %v3407 = vld [vmem:[%s3392 + $0x70] sm:$0xff]
  %v3408 = vld [vmem:[%s3392 + $0x78] sm:$0xff]
  %v3409 = vld [vmem:[%s3392 + $0x80] sm:$0xff]
  %v3410 = vld [vmem:[%s3392 + $0x88] sm:$0xff]
  %v3411 = vld [vmem:[%s3392 + $0x90] sm:$0xff]
  %v3412 = vld [vmem:[%s3392 + $0x98] sm:$0xff]
  %v3413 = vld [vmem:[%s3392 + $0xa0] sm:$0xff]
  %v3414 = vld [vmem:[%s3392 + $0xa8] sm:$0xff]
  %v3415 = vld [vmem:[%s3392 + $0xb0] sm:$0xff]
  %v3416 = vld [vmem:[%s3392 + $0xb8] sm:$0xff]
  %v3417 = vld [vmem:[%s3392 + $0xc0] sm:$0xff]
  %v3418 = vld [vmem:[%s3392 + $0xc8] sm:$0xff]
  %v3419 = vld [vmem:[%s3392 + $0xd0] sm:$0xff]
  %v3420 = vld [vmem:[%s3392 + $0xd8] sm:$0xff]
  %v3421 = vld [vmem:[%s3392 + $0xe0] sm:$0xff]
  %v3422 = vld [vmem:[%s3392 + $0xe8] sm:$0xff]
  %v3423 = vld [vmem:[%s3392 + $0xf0] sm:$0xff]
  %v3424 = vld [vmem:[%s3392 + $0xf8] sm:$0xff]
  %v3425 = vld [vmem:[%s3392 + $0x100] sm:$0xff]
  %v3426 = vld [vmem:[%s3392 + $0x108] sm:$0xff]
  %v3427 = vld [vmem:[%s3392 + $0x110] sm:$0xff]
  %v3428 = vld [vmem:[%s3392 + $0x118] sm:$0xff]
  %v3430 = vsel %vm52, %v3393, 0
  %v3433 = vsel %vm52, %v3394, 0
  %v3436 = vsel %vm52, %v3395, 0
  %v3439 = vsel %vm52, %v3396, 0
  %v3442 = vsel %vm52, %v3397, 0
  %v3445 = vsel %vm52, %v3398, 0
  %v3448 = vsel %vm52, %v3399, 0
  %v3451 = vsel %vm52, %v3400, 0
  %v3454 = vsel %vm52, %v3401, 0
  %v3457 = vsel %vm52, %v3402, 0
  %v3460 = vsel %vm52, %v3403, 0
  %v3463 = vsel %vm52, %v3404, 0
  %v3466 = vsel %vm52, %v3405, 0
  %v3469 = vsel %vm52, %v3406, 0
  %v3472 = vsel %vm52, %v3407, 0
  %v3475 = vsel %vm52, %v3408, 0
  %v3478 = vsel %vm52, %v3409, 0
  %v3481 = vsel %vm52, %v3410, 0
  %v3484 = vsel %vm52, %v3411, 0
  %v3487 = vsel %vm52, %v3412, 0
  %v3490 = vsel %vm52, %v3413, 0
  %v3493 = vsel %vm52, %v3414, 0
  %v3496 = vsel %vm52, %v3415, 0
  %v3499 = vsel %vm52, %v3416, 0
  %v3502 = vsel %vm52, %v3417, 0
  %v3505 = vsel %vm52, %v3418, 0
  %v3508 = vsel %vm52, %v3419, 0
  %v3511 = vsel %vm52, %v3420, 0
  %v3514 = vsel %vm52, %v3421, 0
  %v3517 = vsel %vm52, %v3422, 0
  %v3520 = vsel %vm52, %v3423, 0
  %v3523 = vsel %vm52, %v3424, 0
  %v3526 = vsel %vm52, %v3425, 0
  %v3529 = vsel %vm52, %v3426, 0
  %v3532 = vsel %vm52, %v3427, 0
  %v3535 = vsel %vm52, %v3428, 0
  %3537 = vmatprep.subr.mxu0 0.0
  %3538 = vmatpush1.msra.mxu0 0.0
  %3539 = vmatprep.subr.mxu0 0.0
  %3540 = vmatpush1.msra.mxu0 0.0
  %3541 = vmatprep.subr.mxu0 0.0
  %3542 = vmatpush1.msra.mxu0 0.0
  %3543 = vmatprep.subr.mxu0 0.0
  %3544 = vmatpush1.msra.mxu0 0.0
  %3545 = vmatprep.subr.mxu0 0.0
  %3546 = vmatpush1.msra.mxu0 0.0
  %3547 = vmatprep.subr.mxu0 0.0
  %3548 = vmatpush1.msra.mxu0 0.0
  %3549 = vmatprep.subr.mxu0 0.0
  %3550 = vmatpush1.msra.mxu0 0.0
  %3551 = vmatprep.subr.mxu0 0.0
  %3552 = vmatpush1.msra.mxu0 0.0
  %3553 = vmatprep.subr.mxu0 0.0
  %3554 = vmatpush1.msra.mxu0 0.0
  %3555 = vmatprep.subr.mxu0 0.0
  %3556 = vmatpush1.msra.mxu0 0.0
  %3557 = vmatprep.subr.mxu0 0.0
  %3558 = vmatpush1.msra.mxu0 0.0
  %3559 = vmatprep.subr.mxu0 0.0
  %3560 = vmatpush1.msra.mxu0 0.0
  %3561 = vmatprep.subr.mxu0 0.0
  %3562 = vmatpush1.msra.mxu0 0.0
  %3563 = vmatprep.subr.mxu0 0.0
  %3564 = vmatpush1.msra.mxu0 0.0
  %3565 = vmatprep.subr.mxu0 0.0
  %3566 = vmatpush1.msra.mxu0 %v163
  %3567 = vmatprep.subr.mxu0 0.0
  %3568 = vmatpush1.msra.mxu0 %v14
  %3569 = vmatprep.subr.mxu0 0.0
  %3570 = vmatpush2.msra.mxu0 0.0
  %3571 = vmatprep.subr.mxu0 0.0
  %3572 = vmatpush2.msra.mxu0 0.0
  %3573 = vmatprep.subr.mxu0 0.0
  %3574 = vmatpush2.msra.mxu0 0.0
  %3575 = vmatprep.subr.mxu0 0.0
  %3576 = vmatpush2.msra.mxu0 0.0
  %3577 = vmatprep.subr.mxu0 0.0
  %3578 = vmatpush2.msra.mxu0 0.0
  %3579 = vmatprep.subr.mxu0 0.0
  %3580 = vmatpush2.msra.mxu0 0.0
  %3581 = vmatprep.subr.mxu0 0.0
  %3582 = vmatpush2.msra.mxu0 0.0
  %3583 = vmatprep.subr.mxu0 0.0
  %3584 = vmatpush2.msra.mxu0 0.0
  %3585 = vmatprep.subr.mxu0 0.0
  %3586 = vmatpush2.msra.mxu0 0.0
  %3587 = vmatprep.subr.mxu0 0.0
  %3588 = vmatpush2.msra.mxu0 0.0
  %3589 = vmatprep.subr.mxu0 0.0
  %3590 = vmatpush2.msra.mxu0 0.0
  %3591 = vmatprep.subr.mxu0 0.0
  %3592 = vmatpush2.msra.mxu0 0.0
  %3593 = vmatprep.subr.mxu0 0.0
  %3594 = vmatpush2.msra.mxu0 0.0
  %3595 = vmatprep.subr.mxu0 0.0
  %3596 = vmatpush2.msra.mxu0 0.0
  %3597 = vmatprep.subr.mxu0 0.0
  %3598 = vmatpush2.msra.mxu0 0.0
  %3599 = vmatprep.subr.mxu0 0.0
  %3600 = vmatpush2.msra.mxu0 0.0
  %3601 = vmatprep.mubr.f32.mxu0 0.0
  %3602 = vmatmul.mubr.f32.gmra.mxu0 %v3430
  %v3603 = vpop.f32.mrf.mxu0
  %v3604 = vadd.f32 0.0, %v3603
  %v3605 = vpop.f32.mrf.mxu0
  %3606 = vmatprep.mubr.f32.mxu0 0.0
  %3607 = vmatmul.mubr.f32.gmra.mxu0 %v3433
  %v3608 = vpop.f32.mrf.mxu0
  %v3609 = vadd.f32 0.0, %v3608
  %v3610 = vpop.f32.mrf.mxu0
  %3611 = vmatprep.mubr.f32.mxu0 0.0
  %3612 = vmatmul.mubr.f32.gmra.mxu0 %v3436
  %v3613 = vpop.f32.mrf.mxu0
  %v3614 = vadd.f32 0.0, %v3613
  %v3615 = vpop.f32.mrf.mxu0
  %3616 = vmatprep.mubr.f32.mxu0 0.0
  %3617 = vmatmul.mubr.f32.gmra.mxu0 %v3439
  %v3618 = vpop.f32.mrf.mxu0
  %v3619 = vadd.f32 0.0, %v3618
  %v3620 = vpop.f32.mrf.mxu0
  %3621 = vmatprep.mubr.f32.mxu0 0.0
  %3622 = vmatmul.mubr.f32.gmra.mxu0 %v3442
  %v3623 = vpop.f32.mrf.mxu0
  %v3624 = vadd.f32 0.0, %v3623
  %v3625 = vpop.f32.mrf.mxu0
  %3626 = vmatprep.mubr.f32.mxu0 0.0
  %3627 = vmatmul.mubr.f32.gmra.mxu0 %v3445
  %v3628 = vpop.f32.mrf.mxu0
  %v3629 = vadd.f32 0.0, %v3628
  %v3630 = vpop.f32.mrf.mxu0
  %3631 = vmatprep.mubr.f32.mxu0 0.0
  %3632 = vmatmul.mubr.f32.gmra.mxu0 %v3448
  %v3633 = vpop.f32.mrf.mxu0
  %v3634 = vadd.f32 0.0, %v3633
  %v3635 = vpop.f32.mrf.mxu0
  %3636 = vmatprep.mubr.f32.mxu0 0.0
  %3637 = vmatmul.mubr.f32.gmra.mxu0 %v3451
  %v3638 = vpop.f32.mrf.mxu0
  %v3639 = vadd.f32 0.0, %v3638
  %v3640 = vpop.f32.mrf.mxu0
  %3641 = vmatprep.mubr.f32.mxu0 0.0
  %3642 = vmatmul.mubr.f32.gmra.mxu0 %v3454
  %v3643 = vpop.f32.mrf.mxu0
  %v3644 = vadd.f32 0.0, %v3643
  %v3645 = vpop.f32.mrf.mxu0
  %3646 = vmatprep.mubr.f32.mxu0 0.0
  %3647 = vmatmul.mubr.f32.gmra.mxu0 %v3457
  %v3648 = vpop.f32.mrf.mxu0
  %v3649 = vadd.f32 0.0, %v3648
  %v3650 = vpop.f32.mrf.mxu0
  %3651 = vmatprep.mubr.f32.mxu0 0.0
  %3652 = vmatmul.mubr.f32.gmra.mxu0 %v3460
  %v3653 = vpop.f32.mrf.mxu0
  %v3654 = vadd.f32 0.0, %v3653
  %v3655 = vpop.f32.mrf.mxu0
  %3656 = vmatprep.mubr.f32.mxu0 0.0
  %3657 = vmatmul.mubr.f32.gmra.mxu0 %v3463
  %v3658 = vpop.f32.mrf.mxu0
  %v3659 = vadd.f32 0.0, %v3658
  %v3660 = vpop.f32.mrf.mxu0
  %3661 = vmatprep.mubr.f32.mxu0 0.0
  %3662 = vmatmul.mubr.f32.gmra.mxu0 %v3466
  %v3663 = vpop.f32.mrf.mxu0
  %v3664 = vadd.f32 0.0, %v3663
  %v3665 = vpop.f32.mrf.mxu0
  %3666 = vmatprep.mubr.f32.mxu0 0.0
  %3667 = vmatmul.mubr.f32.gmra.mxu0 %v3469
  %v3668 = vpop.f32.mrf.mxu0
  %v3669 = vadd.f32 0.0, %v3668
  %v3670 = vpop.f32.mrf.mxu0
  %3671 = vmatprep.mubr.f32.mxu0 0.0
  %3672 = vmatmul.mubr.f32.gmra.mxu0 %v3472
  %v3673 = vpop.f32.mrf.mxu0
  %v3674 = vadd.f32 0.0, %v3673
  %v3675 = vpop.f32.mrf.mxu0
  %3676 = vmatprep.mubr.f32.mxu0 0.0
  %3677 = vmatmul.mubr.f32.gmra.mxu0 %v3475
  %v3678 = vpop.f32.mrf.mxu0
  %v3679 = vadd.f32 0.0, %v3678
  %v3680 = vpop.f32.mrf.mxu0
  %3681 = vmatprep.mubr.f32.mxu0 0.0
  %3682 = vmatmul.mubr.f32.gmra.mxu0 %v3478
  %v3683 = vpop.f32.mrf.mxu0
  %v3684 = vadd.f32 0.0, %v3683
  %v3685 = vpop.f32.mrf.mxu0
  %3686 = vmatprep.mubr.f32.mxu0 0.0
  %3687 = vmatmul.mubr.f32.gmra.mxu0 %v3481
  %v3688 = vpop.f32.mrf.mxu0
  %v3689 = vadd.f32 0.0, %v3688
  %v3690 = vpop.f32.mrf.mxu0
  %3691 = vmatprep.mubr.f32.mxu0 0.0
  %3692 = vmatmul.mubr.f32.gmra.mxu0 %v3484
  %v3693 = vpop.f32.mrf.mxu0
  %v3694 = vadd.f32 0.0, %v3693
  %v3695 = vpop.f32.mrf.mxu0
  %3696 = vmatprep.mubr.f32.mxu0 0.0
  %3697 = vmatmul.mubr.f32.gmra.mxu0 %v3487
  %v3698 = vpop.f32.mrf.mxu0
  %v3699 = vadd.f32 0.0, %v3698
  %v3700 = vpop.f32.mrf.mxu0
  %3701 = vmatprep.mubr.f32.mxu0 0.0
  %3702 = vmatmul.mubr.f32.gmra.mxu0 %v3490
  %v3703 = vpop.f32.mrf.mxu0
  %v3704 = vadd.f32 0.0, %v3703
  %v3705 = vpop.f32.mrf.mxu0
  %3706 = vmatprep.mubr.f32.mxu0 0.0
  %3707 = vmatmul.mubr.f32.gmra.mxu0 %v3493
  %v3708 = vpop.f32.mrf.mxu0
  %v3709 = vadd.f32 0.0, %v3708
  %v3710 = vpop.f32.mrf.mxu0
  %3711 = vmatprep.mubr.f32.mxu0 0.0
  %3712 = vmatmul.mubr.f32.gmra.mxu0 %v3496
  %v3713 = vpop.f32.mrf.mxu0
  %v3714 = vadd.f32 0.0, %v3713
  %v3715 = vpop.f32.mrf.mxu0
  %3716 = vmatprep.mubr.f32.mxu0 0.0
  %3717 = vmatmul.mubr.f32.gmra.mxu0 %v3499
  %v3718 = vpop.f32.mrf.mxu0
  %v3719 = vadd.f32 0.0, %v3718
  %v3720 = vpop.f32.mrf.mxu0
  %3721 = vmatprep.mubr.f32.mxu0 0.0
  %3722 = vmatmul.mubr.f32.gmra.mxu0 %v3502
  %v3723 = vpop.f32.mrf.mxu0
  %v3724 = vadd.f32 0.0, %v3723
  %v3725 = vpop.f32.mrf.mxu0
  %3726 = vmatprep.mubr.f32.mxu0 0.0
  %3727 = vmatmul.mubr.f32.gmra.mxu0 %v3505
  %v3728 = vpop.f32.mrf.mxu0
  %v3729 = vadd.f32 0.0, %v3728
  %v3730 = vpop.f32.mrf.mxu0
  %3731 = vmatprep.mubr.f32.mxu0 0.0
  %3732 = vmatmul.mubr.f32.gmra.mxu0 %v3508
  %v3733 = vpop.f32.mrf.mxu0
  %v3734 = vadd.f32 0.0, %v3733
  %v3735 = vpop.f32.mrf.mxu0
  %3736 = vmatprep.mubr.f32.mxu0 0.0
  %3737 = vmatmul.mubr.f32.gmra.mxu0 %v3511
  %v3738 = vpop.f32.mrf.mxu0
  %v3739 = vadd.f32 0.0, %v3738
  %v3740 = vpop.f32.mrf.mxu0
  %3741 = vmatprep.mubr.f32.mxu0 0.0
  %3742 = vmatmul.mubr.f32.gmra.mxu0 %v3514
  %v3743 = vpop.f32.mrf.mxu0
  %v3744 = vadd.f32 0.0, %v3743
  %v3745 = vpop.f32.mrf.mxu0
  %3746 = vmatprep.mubr.f32.mxu0 0.0
  %3747 = vmatmul.mubr.f32.gmra.mxu0 %v3517
  %v3748 = vpop.f32.mrf.mxu0
  %v3749 = vadd.f32 0.0, %v3748
  %v3750 = vpop.f32.mrf.mxu0
  %3751 = vmatprep.mubr.f32.mxu0 0.0
  %3752 = vmatmul.mubr.f32.gmra.mxu0 %v3520
  %v3753 = vpop.f32.mrf.mxu0
  %v3754 = vadd.f32 0.0, %v3753
  %v3755 = vpop.f32.mrf.mxu0
  %3756 = vmatprep.mubr.f32.mxu0 0.0
  %3757 = vmatmul.mubr.f32.gmra.mxu0 %v3523
  %v3758 = vpop.f32.mrf.mxu0
  %v3759 = vadd.f32 0.0, %v3758
  %v3760 = vpop.f32.mrf.mxu0
  %3761 = vmatprep.mubr.f32.mxu0 0.0
  %3762 = vmatmul.mubr.f32.gmra.mxu0 %v3526
  %v3763 = vpop.f32.mrf.mxu0
  %v3764 = vadd.f32 0.0, %v3763
  %v3765 = vpop.f32.mrf.mxu0
  %3766 = vmatprep.mubr.f32.mxu0 0.0
  %3767 = vmatmul.mubr.f32.gmra.mxu0 %v3529
  %v3768 = vpop.f32.mrf.mxu0
  %v3769 = vadd.f32 0.0, %v3768
  %v3770 = vpop.f32.mrf.mxu0
  %3771 = vmatprep.mubr.f32.mxu0 0.0
  %3772 = vmatmul.mubr.f32.gmra.mxu0 %v3532
  %v3773 = vpop.f32.mrf.mxu0
  %v3774 = vadd.f32 0.0, %v3773
  %v3775 = vpop.f32.mrf.mxu0
  %3776 = vmatprep.mubr.f32.mxu0 0.0
  %3777 = vmatmul.mubr.f32.gmra.mxu0 %v3535
  %v3778 = vpop.f32.mrf.mxu0
  %v3779 = vadd.f32 0.0, %v3778
  %v3780 = vpop.f32.mrf.mxu0
  %3781 = vdwg.mxu0
  %v3782 = vmax.f32 %v3356, %v3604
  %v3783 = vmax.f32 %v3357, %v3609
  %v3784 = vmax.f32 %v3358, %v3614
  %v3785 = vmax.f32 %v3359, %v3619
  %v3786 = vmax.f32 %v3360, %v3624
  %v3787 = vmax.f32 %v3361, %v3629
  %v3788 = vmax.f32 %v3362, %v3634
  %v3789 = vmax.f32 %v3363, %v3639
  %v3790 = vmax.f32 %v3364, %v3644
  %v3791 = vmax.f32 %v3365, %v3649
  %v3792 = vmax.f32 %v3366, %v3654
  %v3793 = vmax.f32 %v3367, %v3659
  %v3794 = vmax.f32 %v3368, %v3664
  %v3795 = vmax.f32 %v3369, %v3669
  %v3796 = vmax.f32 %v3370, %v3674
  %v3797 = vmax.f32 %v3371, %v3679
  %v3798 = vmax.f32 %v3372, %v3684
  %v3799 = vmax.f32 %v3373, %v3689
  %v3800 = vmax.f32 %v3374, %v3694
  %v3801 = vmax.f32 %v3375, %v3699
  %v3802 = vmax.f32 %v3376, %v3704
  %v3803 = vmax.f32 %v3377, %v3709
  %v3804 = vmax.f32 %v3378, %v3714
  %v3805 = vmax.f32 %v3379, %v3719
  %v3806 = vmax.f32 %v3380, %v3724
  %v3807 = vmax.f32 %v3381, %v3729
  %v3808 = vmax.f32 %v3382, %v3734
  %v3809 = vmax.f32 %v3383, %v3739
  %v3810 = vmax.f32 %v3384, %v3744
  %v3811 = vmax.f32 %v3385, %v3749
  %v3812 = vmax.f32 %v3386, %v3754
  %v3813 = vmax.f32 %v3387, %v3759
  %v3814 = vmax.f32 %v3388, %v3764
  %v3815 = vmax.f32 %v3389, %v3769
  %v3816 = vmax.f32 %v3390, %v3774
  %v3817 = vmax.f32 %v3391, %v3779
  %v3818 = vld [vmem:[%s2] sm:$0x1]
  %v3820 = vlaneseq
  %v3821 = vshrl.u32 %v3820, 7
  %v3822 = vsub.s32 0, %v3821
  %v3823 = vrot.slane %v3818, %v3822
  %v3825 = vadd.f32 %v3782, %v3823
  %v3826 = vadd.f32 %v3783, %v3823
  %v3827 = vadd.f32 %v3784, %v3823
  %v3828 = vadd.f32 %v3785, %v3823
  %v3829 = vadd.f32 %v3786, %v3823
  %v3830 = vadd.f32 %v3787, %v3823
  %v3831 = vadd.f32 %v3788, %v3823
  %v3832 = vadd.f32 %v3789, %v3823
  %v3833 = vadd.f32 %v3790, %v3823
  %v3834 = vadd.f32 %v3791, %v3823
  %v3835 = vadd.f32 %v3792, %v3823
  %v3836 = vadd.f32 %v3793, %v3823
  %v3837 = vadd.f32 %v3794, %v3823
  %v3838 = vadd.f32 %v3795, %v3823
  %v3839 = vadd.f32 %v3796, %v3823
  %v3840 = vadd.f32 %v3797, %v3823
  %v3841 = vadd.f32 %v3798, %v3823
  %v3842 = vadd.f32 %v3799, %v3823
  %v3843 = vadd.f32 %v3800, %v3823
  %v3844 = vadd.f32 %v3801, %v3823
  %v3845 = vadd.f32 %v3802, %v3823
  %v3846 = vadd.f32 %v3803, %v3823
  %v3847 = vadd.f32 %v3804, %v3823
  %v3848 = vadd.f32 %v3805, %v3823
  %v3849 = vadd.f32 %v3806, %v3823
  %v3850 = vadd.f32 %v3807, %v3823
  %v3851 = vadd.f32 %v3808, %v3823
  %v3852 = vadd.f32 %v3809, %v3823
  %v3853 = vadd.f32 %v3810, %v3823
  %v3854 = vadd.f32 %v3811, %v3823
  %v3855 = vadd.f32 %v3812, %v3823
  %v3856 = vadd.f32 %v3813, %v3823
  %v3857 = vadd.f32 %v3814, %v3823
  %v3858 = vadd.f32 %v3815, %v3823
  %v3859 = vadd.f32 %v3816, %v3823
  %v3860 = vadd.f32 %v3817, %v3823
  %v3861 = vmax.f32 %v3825, 0.0
  %v3862 = vmax.f32 %v3826, 0.0
  %v3863 = vmax.f32 %v3827, 0.0
  %v3864 = vmax.f32 %v3828, 0.0
  %v3865 = vmax.f32 %v3829, 0.0
  %v3866 = vmax.f32 %v3830, 0.0
  %v3867 = vmax.f32 %v3831, 0.0
  %v3868 = vmax.f32 %v3832, 0.0
  %v3869 = vmax.f32 %v3833, 0.0
  %v3870 = vmax.f32 %v3834, 0.0
  %v3871 = vmax.f32 %v3835, 0.0
  %v3872 = vmax.f32 %v3836, 0.0
  %v3873 = vmax.f32 %v3837, 0.0
  %v3874 = vmax.f32 %v3838, 0.0
  %v3875 = vmax.f32 %v3839, 0.0
  %v3876 = vmax.f32 %v3840, 0.0
  %v3877 = vmax.f32 %v3841, 0.0
  %v3878 = vmax.f32 %v3842, 0.0
  %v3879 = vmax.f32 %v3843, 0.0
  %v3880 = vmax.f32 %v3844, 0.0
  %v3881 = vmax.f32 %v3845, 0.0
  %v3882 = vmax.f32 %v3846, 0.0
  %v3883 = vmax.f32 %v3847, 0.0
  %v3884 = vmax.f32 %v3848, 0.0
  %v3885 = vmax.f32 %v3849, 0.0
  %v3886 = vmax.f32 %v3850, 0.0
  %v3887 = vmax.f32 %v3851, 0.0
  %v3888 = vmax.f32 %v3852, 0.0
  %v3889 = vmax.f32 %v3853, 0.0
  %v3890 = vmax.f32 %v3854, 0.0
  %v3891 = vmax.f32 %v3855, 0.0
  %v3892 = vmax.f32 %v3856, 0.0
  %v3893 = vmax.f32 %v3857, 0.0
  %v3894 = vmax.f32 %v3858, 0.0
  %v3895 = vmax.f32 %v3859, 0.0
  %v3896 = vmax.f32 %v3860, 0.0
  %vm3897 = vcmask 130048
  %3898 = vst.msk [vmem:[%s3] sm:$0xff] %vm3897, %v3861
  %3899 = vst.msk [vmem:[%s3 + $0x8] sm:$0xff] %vm3897, %v3862
  %3900 = vst.msk [vmem:[%s3 + $0x10] sm:$0xff] %vm3897, %v3863
  %3901 = vst.msk [vmem:[%s3 + $0x18] sm:$0xff] %vm3897, %v3864
  %3902 = vst.msk [vmem:[%s3 + $0x20] sm:$0xff] %vm3897, %v3865
  %3903 = vst.msk [vmem:[%s3 + $0x28] sm:$0xff] %vm3897, %v3866
  %3904 = vst.msk [vmem:[%s3 + $0x30] sm:$0xff] %vm3897, %v3867
  %3905 = vst.msk [vmem:[%s3 + $0x38] sm:$0xff] %vm3897, %v3868
  %3906 = vst.msk [vmem:[%s3 + $0x40] sm:$0xff] %vm3897, %v3869
  %3907 = vst.msk [vmem:[%s3 + $0x48] sm:$0xff] %vm3897, %v3870
  %3908 = vst.msk [vmem:[%s3 + $0x50] sm:$0xff] %vm3897, %v3871
  %3909 = vst.msk [vmem:[%s3 + $0x58] sm:$0xff] %vm3897, %v3872
  %3910 = vst.msk [vmem:[%s3 + $0x60] sm:$0xff] %vm3897, %v3873
  %3911 = vst.msk [vmem:[%s3 + $0x68] sm:$0xff] %vm3897, %v3874
  %3912 = vst.msk [vmem:[%s3 + $0x70] sm:$0xff] %vm3897, %v3875
  %3913 = vst.msk [vmem:[%s3 + $0x78] sm:$0xff] %vm3897, %v3876
  %3914 = vst.msk [vmem:[%s3 + $0x80] sm:$0xff] %vm3897, %v3877
  %3915 = vst.msk [vmem:[%s3 + $0x88] sm:$0xff] %vm3897, %v3878
  %3916 = vst.msk [vmem:[%s3 + $0x90] sm:$0xff] %vm3897, %v3879
  %3917 = vst.msk [vmem:[%s3 + $0x98] sm:$0xff] %vm3897, %v3880
  %3918 = vst.msk [vmem:[%s3 + $0xa0] sm:$0xff] %vm3897, %v3881
  %3919 = vst.msk [vmem:[%s3 + $0xa8] sm:$0xff] %vm3897, %v3882
  %3920 = vst.msk [vmem:[%s3 + $0xb0] sm:$0xff] %vm3897, %v3883
  %3921 = vst.msk [vmem:[%s3 + $0xb8] sm:$0xff] %vm3897, %v3884
  %3922 = vst.msk [vmem:[%s3 + $0xc0] sm:$0xff] %vm3897, %v3885
  %3923 = vst.msk [vmem:[%s3 + $0xc8] sm:$0xff] %vm3897, %v3886
  %3924 = vst.msk [vmem:[%s3 + $0xd0] sm:$0xff] %vm3897, %v3887
  %3925 = vst.msk [vmem:[%s3 + $0xd8] sm:$0xff] %vm3897, %v3888
  %3926 = vst.msk [vmem:[%s3 + $0xe0] sm:$0xff] %vm3897, %v3889
  %3927 = vst.msk [vmem:[%s3 + $0xe8] sm:$0xff] %vm3897, %v3890
  %3928 = vst.msk [vmem:[%s3 + $0xf0] sm:$0xff] %vm3897, %v3891
  %3929 = vst.msk [vmem:[%s3 + $0xf8] sm:$0xff] %vm3897, %v3892
  %3930 = vst.msk [vmem:[%s3 + $0x100] sm:$0xff] %vm3897, %v3893
  %3931 = vst.msk [vmem:[%s3 + $0x108] sm:$0xff] %vm3897, %v3894
  %3932 = vst.msk [vmem:[%s3 + $0x110] sm:$0xff] %vm3897, %v3895
  %3933 = vst.msk [vmem:[%s3 + $0x118] sm:$0xff] %vm3897, %v3896
  // Predicated region
  $region14: #{forward.7} parent=0 // pred_check
    _
  $region15: #{forward.7} parent=0 // pred_check_branch
    %3935 = sbr.rel (0) target = $region17
  $region16: #{forward.7} parent=0 // pred_region
    _
  $region17: #{forward.7} parent=0 // pred_fallthru
    _
  // Predicated region
  $region18: #{forward.7} parent=0 // pred_check
    _
  $region19: #{forward.7} parent=0 // pred_check_branch
    %3937 = sbr.rel (0) target = $region21
  $region20: #{forward.7} parent=0 // pred_region
    _
  $region21: #{forward.7} parent=0 // pred_fallthru
    _

// kernel: forward.10
$region0: #{forward.10}
  #allocation0 [shape = 'u32[]', space=smem, size = 0x4, offset = 0x4, fixed_abs, tag = 'smem constant byte address 0x4 - core index']
  #allocation1 [shape = 'u32[144,128]{1,0:T(1,128)}', space=vmem, size = 0x12000, scoped, tag = 'internal scratch']
  %s0 = inlined_call_operand.vmem [shape: f32[4,2,256], index: 0, kind: input, shape index: {}]
  %s1 = inlined_call_operand.vmem [shape: f32[256,128], index: 1, kind: input, shape index: {}]
  %s2 = inlined_call_operand.vmem [shape: f32[1,128], index: 2, kind: input, shape index: {}]
  %s3 = inlined_call_operand.vmem [shape: f32[2,128], index: 3, kind: output, shape index: {}]
  %s4 = sld [smem:[#allocation0]]
  $region22: #{forward.10} parent=0
    _
  %s6 = ssub.s32 1, %s4
  %s7 = scalar_select 0, %s6, %s4
  // Predicated region
  $region2: #{forward.10} parent=0 // pred_check
    _
  $region3: #{forward.10} parent=0 // pred_check_branch
    %9 = sbr.rel (0) target = $region5
  $region4: #{forward.10} parent=0 // pred_region
    _
  $region5: #{forward.10} parent=0 // pred_fallthru
    _
  // Predicated region
  $region6: #{forward.10} parent=0 // pred_check
    _
  $region7: #{forward.10} parent=0 // pred_check_branch
    %11 = sbr.rel (0) target = $region9
  $region8: #{forward.10} parent=0 // pred_region
    _
  $region9: #{forward.10} parent=0 // pred_fallthru
    _
  // Predicated region
  $region10: #{forward.10} parent=0 // pred_check
    _
  $region11: #{forward.10} parent=0 // pred_check_branch
    %13 = sbr.rel (0) target = $region13
  $region12: #{forward.10} parent=0 // pred_region
    _
  $region13: #{forward.10} parent=0 // pred_fallthru
    _
  %v14 = vld [vmem:[%s1] sm:$0xff]
  %v15 = vld [vmem:[%s1 + $0x8] sm:$0xff]
  %v16 = vld [vmem:[%s1 + $0x10] sm:$0xff]
  %v17 = vld [vmem:[%s1 + $0x18] sm:$0xff]
  %v18 = vld [vmem:[%s1 + $0x20] sm:$0xff]
  %v19 = vld [vmem:[%s1 + $0x28] sm:$0xff]
  %v20 = vld [vmem:[%s1 + $0x30] sm:$0xff]
  %v21 = vld [vmem:[%s1 + $0x38] sm:$0xff]
  %v22 = vld [vmem:[%s1 + $0x40] sm:$0xff]
  %v23 = vld [vmem:[%s1 + $0x48] sm:$0xff]
  %v24 = vld [vmem:[%s1 + $0x50] sm:$0xff]
  %v25 = vld [vmem:[%s1 + $0x58] sm:$0xff]
  %v26 = vld [vmem:[%s1 + $0x60] sm:$0xff]
  %v27 = vld [vmem:[%s1 + $0x68] sm:$0xff]
  %v28 = vld [vmem:[%s1 + $0x70] sm:$0xff]
  %v29 = vld [vmem:[%s1 + $0x78] sm:$0xff]
  %v30 = vld [vmem:[%s1 + $0x80] sm:$0xff]
  %v31 = vld [vmem:[%s1 + $0x88] sm:$0xff]
  %v32 = vld [vmem:[%s1 + $0x90] sm:$0xff]
  %v33 = vld [vmem:[%s1 + $0x98] sm:$0xff]
  %v34 = vld [vmem:[%s1 + $0xa0] sm:$0xff]
  %v35 = vld [vmem:[%s1 + $0xa8] sm:$0xff]
  %v36 = vld [vmem:[%s1 + $0xb0] sm:$0xff]
  %v37 = vld [vmem:[%s1 + $0xb8] sm:$0xff]
  %v38 = vld [vmem:[%s1 + $0xc0] sm:$0xff]
  %v39 = vld [vmem:[%s1 + $0xc8] sm:$0xff]
  %v40 = vld [vmem:[%s1 + $0xd0] sm:$0xff]
  %v41 = vld [vmem:[%s1 + $0xd8] sm:$0xff]
  %v42 = vld [vmem:[%s1 + $0xe0] sm:$0xff]
  %v43 = vld [vmem:[%s1 + $0xe8] sm:$0xff]
  %v44 = vld [vmem:[%s1 + $0xf0] sm:$0xff]
  %v45 = vld [vmem:[%s1 + $0xf8] sm:$0xff]
  %v46 = vld [vmem:[%s0] sm:$0xf]
  %v49 = vunpack.c.l.s4 1983009808
  %v50 = vunpack.c.0.s8 %v49
  %v51 = vlaneseq
  %v52 = vshrl.u32 %v51, 7
  %v53 = vsub.s32 %v50, %v52
  %v54 = vrot.slane %v46, %v53
  %v55 = vcombine.high %v54, %v54
  %58 = vmatprep.subr.mxu0 0.0
  %59 = vmatpush1.msra.mxu0 %v29
  %60 = vmatprep.subr.mxu0 0.0
  %61 = vmatpush1.msra.mxu0 %v28
  %62 = vmatprep.subr.mxu0 0.0
  %63 = vmatpush1.msra.mxu0 %v27
  %64 = vmatprep.subr.mxu0 0.0
  %65 = vmatpush1.msra.mxu0 %v26
  %66 = vmatprep.subr.mxu0 0.0
  %67 = vmatpush1.msra.mxu0 %v25
  %68 = vmatprep.subr.mxu0 0.0
  %69 = vmatpush1.msra.mxu0 %v24
  %70 = vmatprep.subr.mxu0 0.0
  %71 = vmatpush1.msra.mxu0 %v23
  %72 = vmatprep.subr.mxu0 0.0
  %73 = vmatpush1.msra.mxu0 %v22
  %74 = vmatprep.subr.mxu0 0.0
  %75 = vmatpush1.msra.mxu0 %v21
  %76 = vmatprep.subr.mxu0 0.0
  %77 = vmatpush1.msra.mxu0 %v20
  %78 = vmatprep.subr.mxu0 0.0
  %79 = vmatpush1.msra.mxu0 %v19
  %80 = vmatprep.subr.mxu0 0.0
  %81 = vmatpush1.msra.mxu0 %v18
  %82 = vmatprep.subr.mxu0 0.0
  %83 = vmatpush1.msra.mxu0 %v17
  %84 = vmatprep.subr.mxu0 0.0
  %85 = vmatpush1.msra.mxu0 %v16
  %86 = vmatprep.subr.mxu0 0.0
  %87 = vmatpush1.msra.mxu0 %v15
  %88 = vmatprep.subr.mxu0 0.0
  %89 = vmatpush1.msra.mxu0 %v14
  %90 = vmatprep.subr.mxu0 0.0
  %91 = vmatpush2.msra.mxu0 %v45
  %92 = vmatprep.subr.mxu0 0.0
  %93 = vmatpush2.msra.mxu0 %v44
  %94 = vmatprep.subr.mxu0 0.0
  %95 = vmatpush2.msra.mxu0 %v43
  %96 = vmatprep.subr.mxu0 0.0
  %97 = vmatpush2.msra.mxu0 %v42
  %98 = vmatprep.subr.mxu0 0.0
  %99 = vmatpush2.msra.mxu0 %v41
  %100 = vmatprep.subr.mxu0 0.0
  %101 = vmatpush2.msra.mxu0 %v40
  %102 = vmatprep.subr.mxu0 0.0
  %103 = vmatpush2.msra.mxu0 %v39
  %104 = vmatprep.subr.mxu0 0.0
  %105 = vmatpush2.msra.mxu0 %v38
  %106 = vmatprep.subr.mxu0 0.0
  %107 = vmatpush2.msra.mxu0 %v37
  %108 = vmatprep.subr.mxu0 0.0
  %109 = vmatpush2.msra.mxu0 %v36
  %110 = vmatprep.subr.mxu0 0.0
  %111 = vmatpush2.msra.mxu0 %v35
  %112 = vmatprep.subr.mxu0 0.0
  %113 = vmatpush2.msra.mxu0 %v34
  %114 = vmatprep.subr.mxu0 0.0
  %115 = vmatpush2.msra.mxu0 %v33
  %116 = vmatprep.subr.mxu0 0.0
  %117 = vmatpush2.msra.mxu0 %v32
  %118 = vmatprep.subr.mxu0 0.0
  %119 = vmatpush2.msra.mxu0 %v31
  %120 = vmatprep.subr.mxu0 0.0
  %121 = vmatpush2.msra.mxu0 %v30
  %122 = vmatprep.mubr.f32.mxu0 %v55
  %123 = vmatmul.mubr.f32.gmra.mxu0 %v54
  %v124 = vpop.f32.mrf.mxu0
  %v125 = vadd.f32 0.0, %v124
  %v126 = vpop.f32.mrf.mxu0
  %127 = vdwg.mxu0
  %s128 = scalar_lea.vmem %s0, 4
  %v129 = vld [vmem:[%s128] sm:$0xf]
  %v132 = vunpack.c.l.s4 1983009808
  %v133 = vunpack.c.0.s8 %v132
  %v134 = vlaneseq
  %v135 = vshrl.u32 %v134, 7
  %v136 = vsub.s32 %v133, %v135
  %v137 = vrot.slane %v129, %v136
  %v138 = vcombine.high %v137, %v137
  %141 = vmatprep.subr.mxu0 0.0
  %142 = vmatpush1.msra.mxu0 %v29
  %143 = vmatprep.subr.mxu0 0.0
  %144 = vmatpush1.msra.mxu0 %v28
  %145 = vmatprep.subr.mxu0 0.0
  %146 = vmatpush1.msra.mxu0 %v27
  %147 = vmatprep.subr.mxu0 0.0
  %148 = vmatpush1.msra.mxu0 %v26
  %149 = vmatprep.subr.mxu0 0.0
  %150 = vmatpush1.msra.mxu0 %v25
  %151 = vmatprep.subr.mxu0 0.0
  %152 = vmatpush1.msra.mxu0 %v24
  %153 = vmatprep.subr.mxu0 0.0
  %154 = vmatpush1.msra.mxu0 %v23
  %155 = vmatprep.subr.mxu0 0.0
  %156 = vmatpush1.msra.mxu0 %v22
  %157 = vmatprep.subr.mxu0 0.0
  %158 = vmatpush1.msra.mxu0 %v21
  %159 = vmatprep.subr.mxu0 0.0
  %160 = vmatpush1.msra.mxu0 %v20
  %161 = vmatprep.subr.mxu0 0.0
  %162 = vmatpush1.msra.mxu0 %v19
  %163 = vmatprep.subr.mxu0 0.0
  %164 = vmatpush1.msra.mxu0 %v18
  %165 = vmatprep.subr.mxu0 0.0
  %166 = vmatpush1.msra.mxu0 %v17
  %167 = vmatprep.subr.mxu0 0.0
  %168 = vmatpush1.msra.mxu0 %v16
  %169 = vmatprep.subr.mxu0 0.0
  %170 = vmatpush1.msra.mxu0 %v15
  %171 = vmatprep.subr.mxu0 0.0
  %172 = vmatpush1.msra.mxu0 %v14
  %173 = vmatprep.subr.mxu0 0.0
  %174 = vmatpush2.msra.mxu0 %v45
  %175 = vmatprep.subr.mxu0 0.0
  %176 = vmatpush2.msra.mxu0 %v44
  %177 = vmatprep.subr.mxu0 0.0
  %178 = vmatpush2.msra.mxu0 %v43
  %179 = vmatprep.subr.mxu0 0.0
  %180 = vmatpush2.msra.mxu0 %v42
  %181 = vmatprep.subr.mxu0 0.0
  %182 = vmatpush2.msra.mxu0 %v41
  %183 = vmatprep.subr.mxu0 0.0
  %184 = vmatpush2.msra.mxu0 %v40
  %185 = vmatprep.subr.mxu0 0.0
  %186 = vmatpush2.msra.mxu0 %v39
  %187 = vmatprep.subr.mxu0 0.0
  %188 = vmatpush2.msra.mxu0 %v38
  %189 = vmatprep.subr.mxu0 0.0
  %190 = vmatpush2.msra.mxu0 %v37
  %191 = vmatprep.subr.mxu0 0.0
  %192 = vmatpush2.msra.mxu0 %v36
  %193 = vmatprep.subr.mxu0 0.0
  %194 = vmatpush2.msra.mxu0 %v35
  %195 = vmatprep.subr.mxu0 0.0
  %196 = vmatpush2.msra.mxu0 %v34
  %197 = vmatprep.subr.mxu0 0.0
  %198 = vmatpush2.msra.mxu0 %v33
  %199 = vmatprep.subr.mxu0 0.0
  %200 = vmatpush2.msra.mxu0 %v32
  %201 = vmatprep.subr.mxu0 0.0
  %202 = vmatpush2.msra.mxu0 %v31
  %203 = vmatprep.subr.mxu0 0.0
  %204 = vmatpush2.msra.mxu0 %v30
  %205 = vmatprep.mubr.f32.mxu0 %v138
  %206 = vmatmul.mubr.f32.gmra.mxu0 %v137
  %v207 = vpop.f32.mrf.mxu0
  %v208 = vadd.f32 0.0, %v207
  %v209 = vpop.f32.mrf.mxu0
  %210 = vdwg.mxu0
  %v211 = vmax.f32 %v125, %v208
  %s212 = scalar_lea.vmem %s0, 8
  %v213 = vld [vmem:[%s212] sm:$0xf]
  %v216 = vunpack.c.l.s4 1983009808
  %v217 = vunpack.c.0.s8 %v216
  %v218 = vlaneseq
  %v219 = vshrl.u32 %v218, 7
  %v220 = vsub.s32 %v217, %v219
  %v221 = vrot.slane %v213, %v220
  %v222 = vcombine.high %v221, %v221
  %225 = vmatprep.subr.mxu0 0.0
  %226 = vmatpush1.msra.mxu0 %v29
  %227 = vmatprep.subr.mxu0 0.0
  %228 = vmatpush1.msra.mxu0 %v28
  %229 = vmatprep.subr.mxu0 0.0
  %230 = vmatpush1.msra.mxu0 %v27
  %231 = vmatprep.subr.mxu0 0.0
  %232 = vmatpush1.msra.mxu0 %v26
  %233 = vmatprep.subr.mxu0 0.0
  %234 = vmatpush1.msra.mxu0 %v25
  %235 = vmatprep.subr.mxu0 0.0
  %236 = vmatpush1.msra.mxu0 %v24
  %237 = vmatprep.subr.mxu0 0.0
  %238 = vmatpush1.msra.mxu0 %v23
  %239 = vmatprep.subr.mxu0 0.0
  %240 = vmatpush1.msra.mxu0 %v22
  %241 = vmatprep.subr.mxu0 0.0
  %242 = vmatpush1.msra.mxu0 %v21
  %243 = vmatprep.subr.mxu0 0.0
  %244 = vmatpush1.msra.mxu0 %v20
  %245 = vmatprep.subr.mxu0 0.0
  %246 = vmatpush1.msra.mxu0 %v19
  %247 = vmatprep.subr.mxu0 0.0
  %248 = vmatpush1.msra.mxu0 %v18
  %249 = vmatprep.subr.mxu0 0.0
  %250 = vmatpush1.msra.mxu0 %v17
  %251 = vmatprep.subr.mxu0 0.0
  %252 = vmatpush1.msra.mxu0 %v16
  %253 = vmatprep.subr.mxu0 0.0
  %254 = vmatpush1.msra.mxu0 %v15
  %255 = vmatprep.subr.mxu0 0.0
  %256 = vmatpush1.msra.mxu0 %v14
  %257 = vmatprep.subr.mxu0 0.0
  %258 = vmatpush2.msra.mxu0 %v45
  %259 = vmatprep.subr.mxu0 0.0
  %260 = vmatpush2.msra.mxu0 %v44
  %261 = vmatprep.subr.mxu0 0.0
  %262 = vmatpush2.msra.mxu0 %v43
  %263 = vmatprep.subr.mxu0 0.0
  %264 = vmatpush2.msra.mxu0 %v42
  %265 = vmatprep.subr.mxu0 0.0
  %266 = vmatpush2.msra.mxu0 %v41
  %267 = vmatprep.subr.mxu0 0.0
  %268 = vmatpush2.msra.mxu0 %v40
  %269 = vmatprep.subr.mxu0 0.0
  %270 = vmatpush2.msra.mxu0 %v39
  %271 = vmatprep.subr.mxu0 0.0
  %272 = vmatpush2.msra.mxu0 %v38
  %273 = vmatprep.subr.mxu0 0.0
  %274 = vmatpush2.msra.mxu0 %v37
  %275 = vmatprep.subr.mxu0 0.0
  %276 = vmatpush2.msra.mxu0 %v36
  %277 = vmatprep.subr.mxu0 0.0
  %278 = vmatpush2.msra.mxu0 %v35
  %279 = vmatprep.subr.mxu0 0.0
  %280 = vmatpush2.msra.mxu0 %v34
  %281 = vmatprep.subr.mxu0 0.0
  %282 = vmatpush2.msra.mxu0 %v33
  %283 = vmatprep.subr.mxu0 0.0
  %284 = vmatpush2.msra.mxu0 %v32
  %285 = vmatprep.subr.mxu0 0.0
  %286 = vmatpush2.msra.mxu0 %v31
  %287 = vmatprep.subr.mxu0 0.0
  %288 = vmatpush2.msra.mxu0 %v30
  %289 = vmatprep.mubr.f32.mxu0 %v222
  %290 = vmatmul.mubr.f32.gmra.mxu0 %v221
  %v291 = vpop.f32.mrf.mxu0
  %v292 = vadd.f32 0.0, %v291
  %v293 = vpop.f32.mrf.mxu0
  %294 = vdwg.mxu0
  %v295 = vmax.f32 %v211, %v292
  %s296 = scalar_lea.vmem %s0, 12
  %v297 = vld [vmem:[%s296] sm:$0xf]
  %v300 = vunpack.c.l.s4 1983009808
  %v301 = vunpack.c.0.s8 %v300
  %v302 = vlaneseq
  %v303 = vshrl.u32 %v302, 7
  %v304 = vsub.s32 %v301, %v303
  %v305 = vrot.slane %v297, %v304
  %v306 = vcombine.high %v305, %v305
  %309 = vmatprep.subr.mxu0 0.0
  %310 = vmatpush1.msra.mxu0 %v29
  %311 = vmatprep.subr.mxu0 0.0
  %312 = vmatpush1.msra.mxu0 %v28
  %313 = vmatprep.subr.mxu0 0.0
  %314 = vmatpush1.msra.mxu0 %v27
  %315 = vmatprep.subr.mxu0 0.0
  %316 = vmatpush1.msra.mxu0 %v26
  %317 = vmatprep.subr.mxu0 0.0
  %318 = vmatpush1.msra.mxu0 %v25
  %319 = vmatprep.subr.mxu0 0.0
  %320 = vmatpush1.msra.mxu0 %v24
  %321 = vmatprep.subr.mxu0 0.0
  %322 = vmatpush1.msra.mxu0 %v23
  %323 = vmatprep.subr.mxu0 0.0
  %324 = vmatpush1.msra.mxu0 %v22
  %325 = vmatprep.subr.mxu0 0.0
  %326 = vmatpush1.msra.mxu0 %v21
  %327 = vmatprep.subr.mxu0 0.0
  %328 = vmatpush1.msra.mxu0 %v20
  %329 = vmatprep.subr.mxu0 0.0
  %330 = vmatpush1.msra.mxu0 %v19
  %331 = vmatprep.subr.mxu0 0.0
  %332 = vmatpush1.msra.mxu0 %v18
  %333 = vmatprep.subr.mxu0 0.0
  %334 = vmatpush1.msra.mxu0 %v17
  %335 = vmatprep.subr.mxu0 0.0
  %336 = vmatpush1.msra.mxu0 %v16
  %337 = vmatprep.subr.mxu0 0.0
  %338 = vmatpush1.msra.mxu0 %v15
  %339 = vmatprep.subr.mxu0 0.0
  %340 = vmatpush1.msra.mxu0 %v14
  %341 = vmatprep.subr.mxu0 0.0
  %342 = vmatpush2.msra.mxu0 %v45
  %343 = vmatprep.subr.mxu0 0.0
  %344 = vmatpush2.msra.mxu0 %v44
  %345 = vmatprep.subr.mxu0 0.0
  %346 = vmatpush2.msra.mxu0 %v43
  %347 = vmatprep.subr.mxu0 0.0
  %348 = vmatpush2.msra.mxu0 %v42
  %349 = vmatprep.subr.mxu0 0.0
  %350 = vmatpush2.msra.mxu0 %v41
  %351 = vmatprep.subr.mxu0 0.0
  %352 = vmatpush2.msra.mxu0 %v40
  %353 = vmatprep.subr.mxu0 0.0
  %354 = vmatpush2.msra.mxu0 %v39
  %355 = vmatprep.subr.mxu0 0.0
  %356 = vmatpush2.msra.mxu0 %v38
  %357 = vmatprep.subr.mxu0 0.0
  %358 = vmatpush2.msra.mxu0 %v37
  %359 = vmatprep.subr.mxu0 0.0
  %360 = vmatpush2.msra.mxu0 %v36
  %361 = vmatprep.subr.mxu0 0.0
  %362 = vmatpush2.msra.mxu0 %v35
  %363 = vmatprep.subr.mxu0 0.0
  %364 = vmatpush2.msra.mxu0 %v34
  %365 = vmatprep.subr.mxu0 0.0
  %366 = vmatpush2.msra.mxu0 %v33
  %367 = vmatprep.subr.mxu0 0.0
  %368 = vmatpush2.msra.mxu0 %v32
  %369 = vmatprep.subr.mxu0 0.0
  %370 = vmatpush2.msra.mxu0 %v31
  %371 = vmatprep.subr.mxu0 0.0
  %372 = vmatpush2.msra.mxu0 %v30
  %373 = vmatprep.mubr.f32.mxu0 %v306
  %374 = vmatmul.mubr.f32.gmra.mxu0 %v305
  %v375 = vpop.f32.mrf.mxu0
  %v376 = vadd.f32 0.0, %v375
  %v377 = vpop.f32.mrf.mxu0
  %378 = vdwg.mxu0
  %v379 = vmax.f32 %v295, %v376
  %v380 = vld [vmem:[%s2] sm:$0x1]
  %v382 = vlaneseq
  %v383 = vshrl.u32 %v382, 7
  %v384 = vsub.s32 0, %v383
  %v385 = vrot.slane %v380, %v384
  %v387 = vadd.f32 %v379, %v385
  %v388 = vmax.f32 %v387, 0.0
  %389 = vst [vmem:[%s3] sm:$0x3] %v388
  // Predicated region
  $region14: #{forward.10} parent=0 // pred_check
    _
  $region15: #{forward.10} parent=0 // pred_check_branch
    %391 = sbr.rel (0) target = $region17
  $region16: #{forward.10} parent=0 // pred_region
    _
  $region17: #{forward.10} parent=0 // pred_fallthru
    _
  // Predicated region
  $region18: #{forward.10} parent=0 // pred_check
    _
  $region19: #{forward.10} parent=0 // pred_check_branch
    %393 = sbr.rel (0) target = $region21
  $region20: #{forward.10} parent=0 // pred_region
    _
  $region21: #{forward.10} parent=0 // pred_fallthru
    _

// kernel: forward.6
$region0: #{forward.6}
  #allocation0 [shape = 'u32[]', space=smem, size = 0x4, offset = 0x4, fixed_abs, tag = 'smem constant byte address 0x4 - core index']
  #allocation1 [shape = 'u32[144,128]{1,0:T(1,128)}', space=vmem, size = 0x12000, scoped, tag = 'internal scratch']
  %s0 = inlined_call_operand.vmem [shape: f32[2,300], index: 0, kind: input, shape index: {}]
  %s1 = inlined_call_operand.vmem [shape: f32[300,512], index: 1, kind: input, shape index: {}]
  %s2 = inlined_call_operand.vmem [shape: f32[1,512], index: 2, kind: input, shape index: {}]
  %s3 = inlined_call_operand.vmem [shape: f32[512,1024], index: 3, kind: input, shape index: {}]
  %s4 = inlined_call_operand.vmem [shape: f32[1,1024], index: 4, kind: input, shape index: {}]
  %s5 = inlined_call_operand.vmem [shape: f32[2,1024], index: 5, kind: output, shape index: {}]
  %s6 = sld [smem:[#allocation0]]
  $region30: #{forward.6} parent=0
    _
  %s8 = ssub.s32 1, %s6
  %s9 = scalar_select 0, %s8, %s6
  // Predicated region
  $region2: #{forward.6} parent=0 // pred_check
    _
  $region3: #{forward.6} parent=0 // pred_check_branch
    %11 = sbr.rel (0) target = $region5
  $region4: #{forward.6} parent=0 // pred_region
    _
  $region5: #{forward.6} parent=0 // pred_fallthru
    _
  // Predicated region
  $region6: #{forward.6} parent=0 // pred_check
    _
  $region7: #{forward.6} parent=0 // pred_check_branch
    %13 = sbr.rel (0) target = $region9
  $region8: #{forward.6} parent=0 // pred_region
    _
  $region9: #{forward.6} parent=0 // pred_fallthru
    _
  // Predicated region
  $region10: #{forward.6} parent=0 // pred_check
    _
  $region11: #{forward.6} parent=0 // pred_check_branch
    %15 = sbr.rel (0) target = $region13
  $region12: #{forward.6} parent=0 // pred_region
    _
  $region13: #{forward.6} parent=0 // pred_fallthru
    _
  // Predicated region
  $region14: #{forward.6} parent=0 // pred_check
    _
  $region15: #{forward.6} parent=0 // pred_check_branch
    %17 = sbr.rel (0) target = $region17
  $region16: #{forward.6} parent=0 // pred_region
    _
  $region17: #{forward.6} parent=0 // pred_fallthru
    _
  // Predicated region
  $region18: #{forward.6} parent=0 // pred_check
    _
  $region19: #{forward.6} parent=0 // pred_check_branch
    %19 = sbr.rel (0) target = $region21
  $region20: #{forward.6} parent=0 // pred_region
    _
  $region21: #{forward.6} parent=0 // pred_fallthru
    _
  %v20 = vld [vmem:[%s0] sm:$0x3f]
  %v21 = vld [vmem:[%s1] sm:$0xff]
  %v22 = vld [vmem:[%s1 + $0x8] sm:$0xff]
  %v23 = vld [vmem:[%s1 + $0x10] sm:$0xff]
  %v24 = vld [vmem:[%s1 + $0x18] sm:$0xff]
  %v25 = vld [vmem:[%s1 + $0x20] sm:$0xff]
  %v26 = vld [vmem:[%s1 + $0x28] sm:$0xff]
  %v27 = vld [vmem:[%s1 + $0x30] sm:$0xff]
  %v28 = vld [vmem:[%s1 + $0x38] sm:$0xff]
  %v29 = vld [vmem:[%s1 + $0x40] sm:$0xff]
  %v30 = vld [vmem:[%s1 + $0x48] sm:$0xff]
  %v31 = vld [vmem:[%s1 + $0x50] sm:$0xff]
  %v32 = vld [vmem:[%s1 + $0x58] sm:$0xff]
  %v33 = vld [vmem:[%s1 + $0x60] sm:$0xff]
  %v34 = vld [vmem:[%s1 + $0x68] sm:$0xff]
  %v35 = vld [vmem:[%s1 + $0x70] sm:$0xff]
  %v36 = vld [vmem:[%s1 + $0x78] sm:$0xff]
  %v37 = vld [vmem:[%s1 + $0x80] sm:$0xff]
  %v38 = vld [vmem:[%s1 + $0x88] sm:$0xff]
  %v39 = vld [vmem:[%s1 + $0x90] sm:$0xff]
  %v40 = vld [vmem:[%s1 + $0x98] sm:$0xff]
  %v41 = vld [vmem:[%s1 + $0xa0] sm:$0xff]
  %v42 = vld [vmem:[%s1 + $0xa8] sm:$0xff]
  %v43 = vld [vmem:[%s1 + $0xb0] sm:$0xff]
  %v44 = vld [vmem:[%s1 + $0xb8] sm:$0xff]
  %v45 = vld [vmem:[%s1 + $0xc0] sm:$0xff]
  %v46 = vld [vmem:[%s1 + $0xc8] sm:$0xff]
  %v47 = vld [vmem:[%s1 + $0xd0] sm:$0xff]
  %v48 = vld [vmem:[%s1 + $0xd8] sm:$0xff]
  %v49 = vld [vmem:[%s1 + $0xe0] sm:$0xff]
  %v50 = vld [vmem:[%s1 + $0xe8] sm:$0xff]
  %v51 = vld [vmem:[%s1 + $0xf0] sm:$0xff]
  %v52 = vld [vmem:[%s1 + $0xf8] sm:$0xff]
  %v53 = vld [vmem:[%s1 + $0x100] sm:$0xff]
  %v54 = vld [vmem:[%s1 + $0x108] sm:$0xff]
  %v55 = vld [vmem:[%s1 + $0x110] sm:$0xff]
  %v56 = vld [vmem:[%s1 + $0x118] sm:$0xff]
  %v57 = vld [vmem:[%s1 + $0x120] sm:$0xff]
  %v58 = vld [vmem:[%s1 + $0x128] sm:$0xff]
  %v59 = vld [vmem:[%s1 + $0x130] sm:$0xff]
  %v60 = vld [vmem:[%s1 + $0x138] sm:$0xff]
  %v61 = vld [vmem:[%s1 + $0x140] sm:$0xff]
  %v62 = vld [vmem:[%s1 + $0x148] sm:$0xff]
  %v63 = vld [vmem:[%s1 + $0x150] sm:$0xff]
  %v64 = vld [vmem:[%s1 + $0x158] sm:$0xff]
  %v65 = vld [vmem:[%s1 + $0x160] sm:$0xff]
  %v66 = vld [vmem:[%s1 + $0x168] sm:$0xff]
  %v67 = vld [vmem:[%s1 + $0x170] sm:$0xff]
  %v68 = vld [vmem:[%s1 + $0x178] sm:$0xff]
  %v69 = vld [vmem:[%s1 + $0x180] sm:$0xff]
  %v70 = vld [vmem:[%s1 + $0x188] sm:$0xff]
  %v71 = vld [vmem:[%s1 + $0x190] sm:$0xff]
  %v72 = vld [vmem:[%s1 + $0x198] sm:$0xff]
  %v73 = vld [vmem:[%s1 + $0x1a0] sm:$0xff]
  %v74 = vld [vmem:[%s1 + $0x1a8] sm:$0xff]
  %v75 = vld [vmem:[%s1 + $0x1b0] sm:$0xff]
  %v76 = vld [vmem:[%s1 + $0x1b8] sm:$0xff]
  %v77 = vld [vmem:[%s1 + $0x1c0] sm:$0xff]
  %v78 = vld [vmem:[%s1 + $0x1c8] sm:$0xff]
  %v79 = vld [vmem:[%s1 + $0x1d0] sm:$0xff]
  %v80 = vld [vmem:[%s1 + $0x1d8] sm:$0xff]
  %v81 = vld [vmem:[%s1 + $0x1e0] sm:$0xff]
  %v82 = vld [vmem:[%s1 + $0x1e8] sm:$0xff]
  %v83 = vld [vmem:[%s1 + $0x1f0] sm:$0xff]
  %v84 = vld [vmem:[%s1 + $0x1f8] sm:$0xff]
  %v85 = vld [vmem:[%s1 + $0x200] sm:$0xff]
  %v86 = vld [vmem:[%s1 + $0x208] sm:$0xff]
  %v87 = vld [vmem:[%s1 + $0x210] sm:$0xff]
  %v88 = vld [vmem:[%s1 + $0x218] sm:$0xff]
  %v89 = vld [vmem:[%s1 + $0x220] sm:$0xff]
  %v90 = vld [vmem:[%s1 + $0x228] sm:$0xff]
  %v91 = vld [vmem:[%s1 + $0x230] sm:$0xff]
  %v92 = vld [vmem:[%s1 + $0x238] sm:$0xff]
  %v93 = vld [vmem:[%s1 + $0x240] sm:$0xff]
  %v94 = vld [vmem:[%s1 + $0x248] sm:$0xff]
  %v95 = vld [vmem:[%s1 + $0x250] sm:$0xff]
  %v96 = vld [vmem:[%s1 + $0x258] sm:$0xff]
  %v97 = vld [vmem:[%s1 + $0x260] sm:$0xff]
  %v98 = vld [vmem:[%s1 + $0x268] sm:$0xff]
  %v99 = vld [vmem:[%s1 + $0x270] sm:$0xff]
  %v100 = vld [vmem:[%s1 + $0x278] sm:$0xff]
  %v101 = vld [vmem:[%s1 + $0x280] sm:$0xff]
  %v102 = vld [vmem:[%s1 + $0x288] sm:$0xff]
  %v103 = vld [vmem:[%s1 + $0x290] sm:$0xff]
  %v104 = vld [vmem:[%s1 + $0x298] sm:$0xff]
  %v105 = vld [vmem:[%s1 + $0x2a0] sm:$0xff]
  %v106 = vld [vmem:[%s1 + $0x2a8] sm:$0xff]
  %v107 = vld [vmem:[%s1 + $0x2b0] sm:$0xff]
  %v108 = vld [vmem:[%s1 + $0x2b8] sm:$0xff]
  %v109 = vld [vmem:[%s1 + $0x2c0] sm:$0xff]
  %v110 = vld [vmem:[%s1 + $0x2c8] sm:$0xff]
  %v111 = vld [vmem:[%s1 + $0x2d0] sm:$0xff]
  %v112 = vld [vmem:[%s1 + $0x2d8] sm:$0xff]
  %v113 = vld [vmem:[%s1 + $0x2e0] sm:$0xff]
  %v114 = vld [vmem:[%s1 + $0x2e8] sm:$0xff]
  %v115 = vld [vmem:[%s1 + $0x2f0] sm:$0xff]
  %v116 = vld [vmem:[%s1 + $0x2f8] sm:$0xff]
  %v117 = vld [vmem:[%s1 + $0x300] sm:$0xff]
  %v118 = vld [vmem:[%s1 + $0x308] sm:$0xff]
  %v119 = vld [vmem:[%s1 + $0x310] sm:$0xff]
  %v120 = vld [vmem:[%s1 + $0x318] sm:$0xff]
  %v121 = vld [vmem:[%s1 + $0x320] sm:$0xff]
  %v122 = vld [vmem:[%s1 + $0x328] sm:$0xff]
  %v123 = vld [vmem:[%s1 + $0x330] sm:$0xff]
  %v124 = vld [vmem:[%s1 + $0x338] sm:$0xff]
  %v125 = vld [vmem:[%s1 + $0x340] sm:$0xff]
  %v126 = vld [vmem:[%s1 + $0x348] sm:$0xff]
  %v127 = vld [vmem:[%s1 + $0x350] sm:$0xff]
  %v128 = vld [vmem:[%s1 + $0x358] sm:$0xff]
  %v129 = vld [vmem:[%s1 + $0x360] sm:$0xff]
  %v130 = vld [vmem:[%s1 + $0x368] sm:$0xff]
  %v131 = vld [vmem:[%s1 + $0x370] sm:$0xff]
  %v132 = vld [vmem:[%s1 + $0x378] sm:$0xff]
  %v133 = vld [vmem:[%s1 + $0x380] sm:$0xff]
  %v134 = vld [vmem:[%s1 + $0x388] sm:$0xff]
  %v135 = vld [vmem:[%s1 + $0x390] sm:$0xff]
  %v136 = vld [vmem:[%s1 + $0x398] sm:$0xff]
  %v137 = vld [vmem:[%s1 + $0x3a0] sm:$0xff]
  %v138 = vld [vmem:[%s1 + $0x3a8] sm:$0xff]
  %v139 = vld [vmem:[%s1 + $0x3b0] sm:$0xff]
  %v140 = vld [vmem:[%s1 + $0x3b8] sm:$0xff]
  %v141 = vld [vmem:[%s1 + $0x3c0] sm:$0xff]
  %v142 = vld [vmem:[%s1 + $0x3c8] sm:$0xff]
  %v143 = vld [vmem:[%s1 + $0x3d0] sm:$0xff]
  %v144 = vld [vmem:[%s1 + $0x3d8] sm:$0xff]
  %v145 = vld [vmem:[%s1 + $0x3e0] sm:$0xff]
  %v146 = vld [vmem:[%s1 + $0x3e8] sm:$0xff]
  %v147 = vld [vmem:[%s1 + $0x3f0] sm:$0xff]
  %v148 = vld [vmem:[%s1 + $0x3f8] sm:$0xff]
  %v149 = vld [vmem:[%s1 + $0x400] sm:$0xff]
  %v150 = vld [vmem:[%s1 + $0x408] sm:$0xff]
  %v151 = vld [vmem:[%s1 + $0x410] sm:$0xff]
  %v152 = vld [vmem:[%s1 + $0x418] sm:$0xff]
  %v153 = vld [vmem:[%s1 + $0x420] sm:$0xff]
  %v154 = vld [vmem:[%s1 + $0x428] sm:$0xff]
  %v155 = vld [vmem:[%s1 + $0x430] sm:$0xff]
  %v156 = vld [vmem:[%s1 + $0x438] sm:$0xff]
  %v157 = vld [vmem:[%s1 + $0x440] sm:$0xff]
  %v158 = vld [vmem:[%s1 + $0x448] sm:$0xff]
  %v159 = vld [vmem:[%s1 + $0x450] sm:$0xff]
  %v160 = vld [vmem:[%s1 + $0x458] sm:$0xff]
  %v161 = vld [vmem:[%s1 + $0x460] sm:$0xff]
  %v162 = vld [vmem:[%s1 + $0x468] sm:$0xff]
  %v163 = vld [vmem:[%s1 + $0x470] sm:$0xff]
  %v164 = vld [vmem:[%s1 + $0x478] sm:$0xff]
  %v165 = vld [vmem:[%s1 + $0x480] sm:$0xff]
  %v166 = vld [vmem:[%s1 + $0x488] sm:$0xff]
  %v167 = vld [vmem:[%s1 + $0x490] sm:$0xff]
  %v168 = vld [vmem:[%s1 + $0x498] sm:$0xff]
  %v169 = vld [vmem:[%s1 + $0x4a0] sm:$0xf]
  %v170 = vld [vmem:[%s1 + $0x4a8] sm:$0xf]
  %v171 = vld [vmem:[%s1 + $0x4b0] sm:$0xf]
  %v172 = vld [vmem:[%s1 + $0x4b8] sm:$0xf]
  %v173 = vld [vmem:[%s2] sm:$0xf]
  %v175 = vlaneseq
  %v176 = vshrl.u32 %v175, 7
  %v177 = vsub.s32 0, %v176
  %v178 = vrot.slane %v173, %v177
  %v179 = vlaneseq
  %v180 = vshrl.u32 %v179, 7
  %v181 = vsub.s32 1, %v180
  %v182 = vrot.slane %v173, %v181
  %v183 = vlaneseq
  %v184 = vshrl.u32 %v183, 7
  %v185 = vsub.s32 2, %v184
  %v186 = vrot.slane %v173, %v185
  %v187 = vlaneseq
  %v188 = vshrl.u32 %v187, 7
  %v189 = vsub.s32 3, %v188
  %v190 = vrot.slane %v173, %v189
  %v196 = vcombine.high %v20, %v20
  %v198 = vunpack.c.l.s4 1983009808
  %v199 = vunpack.c.0.s8 %v198
  %v200 = vlaneseq
  %v201 = vshrl.u32 %v200, 7
  %v202 = vsub.s32 %v199, %v201
  %v203 = vrot.slane %v20, %v202
  %v205 = vunpack.c.l.s4 1983009808
  %v206 = vunpack.c.0.s8 %v205
  %v207 = vlaneseq
  %v208 = vshrl.u32 %v207, 7
  %v209 = vsub.s32 %v206, %v208
  %v210 = vrot.slane %v196, %v209
  %v211 = vcombine.high %v203, %v203
  %vm214 = vcmask 359424
  %v215 = vsel %vm214, %v210, 0
  %vm217 = vcmask 1043456
  %v219 = vsel %vm217, %v169, 0
  %v222 = vsel %vm217, %v170, 0
  %v225 = vsel %vm217, %v171, 0
  %v228 = vsel %vm217, %v172, 0
  %230 = vmatprep.subr.mxu0 %v82
  %231 = vmatpush1.msra.mxu0 %v81
  %232 = vmatprep.subr.mxu0 %v78
  %233 = vmatpush1.msra.mxu0 %v77
  %234 = vmatprep.subr.mxu0 %v74
  %235 = vmatpush1.msra.mxu0 %v73
  %236 = vmatprep.subr.mxu0 %v70
  %237 = vmatpush1.msra.mxu0 %v69
  %238 = vmatprep.subr.mxu0 %v66
  %239 = vmatpush1.msra.mxu0 %v65
  %240 = vmatprep.subr.mxu0 %v62
  %241 = vmatpush1.msra.mxu0 %v61
  %242 = vmatprep.subr.mxu0 %v58
  %243 = vmatpush1.msra.mxu0 %v57
  %244 = vmatprep.subr.mxu0 %v54
  %245 = vmatpush1.msra.mxu0 %v53
  %246 = vmatprep.subr.mxu0 %v50
  %247 = vmatpush1.msra.mxu0 %v49
  %248 = vmatprep.subr.mxu0 %v46
  %249 = vmatpush1.msra.mxu0 %v45
  %250 = vmatprep.subr.mxu0 %v42
  %251 = vmatpush1.msra.mxu0 %v41
  %252 = vmatprep.subr.mxu0 %v38
  %253 = vmatpush1.msra.mxu0 %v37
  %254 = vmatprep.subr.mxu0 %v34
  %255 = vmatpush1.msra.mxu0 %v33
  %256 = vmatprep.subr.mxu0 %v30
  %257 = vmatpush1.msra.mxu0 %v29
  %258 = vmatprep.subr.mxu0 %v26
  %259 = vmatpush1.msra.mxu0 %v25
  %260 = vmatprep.subr.mxu0 %v22
  %261 = vmatpush1.msra.mxu0 %v21
  %262 = vmatprep.subr.mxu0 %v146
  %263 = vmatpush2.msra.mxu0 %v145
  %264 = vmatprep.subr.mxu0 %v142
  %265 = vmatpush2.msra.mxu0 %v141
  %266 = vmatprep.subr.mxu0 %v138
  %267 = vmatpush2.msra.mxu0 %v137
  %268 = vmatprep.subr.mxu0 %v134
  %269 = vmatpush2.msra.mxu0 %v133
  %270 = vmatprep.subr.mxu0 %v130
  %271 = vmatpush2.msra.mxu0 %v129
  %272 = vmatprep.subr.mxu0 %v126
  %273 = vmatpush2.msra.mxu0 %v125
  %274 = vmatprep.subr.mxu0 %v122
  %275 = vmatpush2.msra.mxu0 %v121
  %276 = vmatprep.subr.mxu0 %v118
  %277 = vmatpush2.msra.mxu0 %v117
  %278 = vmatprep.subr.mxu0 %v114
  %279 = vmatpush2.msra.mxu0 %v113
  %280 = vmatprep.subr.mxu0 %v110
  %281 = vmatpush2.msra.mxu0 %v109
  %282 = vmatprep.subr.mxu0 %v106
  %283 = vmatpush2.msra.mxu0 %v105
  %284 = vmatprep.subr.mxu0 %v102
  %285 = vmatpush2.msra.mxu0 %v101
  %286 = vmatprep.subr.mxu0 %v98
  %287 = vmatpush2.msra.mxu0 %v97
  %288 = vmatprep.subr.mxu0 %v94
  %289 = vmatpush2.msra.mxu0 %v93
  %290 = vmatprep.subr.mxu0 %v90
  %291 = vmatpush2.msra.mxu0 %v89
  %292 = vmatprep.subr.mxu0 %v86
  %293 = vmatpush2.msra.mxu0 %v85
  %294 = vmatprep.mubr.f32.mxu0 %v211
  %295 = vmatmul.mubr.f32.gmra.mxu0 %v203
  %v296 = vpop.f32.mrf.mxu0
  %v297 = vadd.f32 %v178, %v296
  %v298 = vpop.f32.mrf.mxu0
  %v299 = vadd.f32 %v182, %v298
  %300 = vdwg.mxu0
  %301 = vmatprep.subr.mxu0 0.0
  %302 = vmatpush1.msra.mxu0 0.0
  %303 = vmatprep.subr.mxu0 0.0
  %304 = vmatpush1.msra.mxu0 0.0
  %305 = vmatprep.subr.mxu0 0.0
  %306 = vmatpush1.msra.mxu0 0.0
  %307 = vmatprep.subr.mxu0 0.0
  %308 = vmatpush1.msra.mxu0 0.0
  %309 = vmatprep.subr.mxu0 0.0
  %310 = vmatpush1.msra.mxu0 0.0
  %311 = vmatprep.subr.mxu0 0.0
  %312 = vmatpush1.msra.mxu0 0.0
  %313 = vmatprep.subr.mxu0 0.0
  %314 = vmatpush1.msra.mxu0 0.0
  %315 = vmatprep.subr.mxu0 0.0
  %316 = vmatpush1.msra.mxu0 0.0
  %317 = vmatprep.subr.mxu0 0.0
  %318 = vmatpush1.msra.mxu0 0.0
  %319 = vmatprep.subr.mxu0 0.0
  %320 = vmatpush1.msra.mxu0 0.0
  %321 = vmatprep.subr.mxu0 %v222
  %322 = vmatpush1.msra.mxu0 %v219
  %323 = vmatprep.subr.mxu0 %v166
  %324 = vmatpush1.msra.mxu0 %v165
  %325 = vmatprep.subr.mxu0 %v162
  %326 = vmatpush1.msra.mxu0 %v161
  %327 = vmatprep.subr.mxu0 %v158
  %328 = vmatpush1.msra.mxu0 %v157
  %329 = vmatprep.subr.mxu0 %v154
  %330 = vmatpush1.msra.mxu0 %v153
  %331 = vmatprep.subr.mxu0 %v150
  %332 = vmatpush1.msra.mxu0 %v149
  %333 = vmatprep.subr.mxu0 0.0
  %334 = vmatpush2.msra.mxu0 0.0
  %335 = vmatprep.subr.mxu0 0.0
  %336 = vmatpush2.msra.mxu0 0.0
  %337 = vmatprep.subr.mxu0 0.0
  %338 = vmatpush2.msra.mxu0 0.0
  %339 = vmatprep.subr.mxu0 0.0
  %340 = vmatpush2.msra.mxu0 0.0
  %341 = vmatprep.subr.mxu0 0.0
  %342 = vmatpush2.msra.mxu0 0.0
  %343 = vmatprep.subr.mxu0 0.0
  %344 = vmatpush2.msra.mxu0 0.0
  %345 = vmatprep.subr.mxu0 0.0
  %346 = vmatpush2.msra.mxu0 0.0
  %347 = vmatprep.subr.mxu0 0.0
  %348 = vmatpush2.msra.mxu0 0.0
  %349 = vmatprep.subr.mxu0 0.0
  %350 = vmatpush2.msra.mxu0 0.0
  %351 = vmatprep.subr.mxu0 0.0
  %352 = vmatpush2.msra.mxu0 0.0
  %353 = vmatprep.subr.mxu0 0.0
  %354 = vmatpush2.msra.mxu0 0.0
  %355 = vmatprep.subr.mxu0 0.0
  %356 = vmatpush2.msra.mxu0 0.0
  %357 = vmatprep.subr.mxu0 0.0
  %358 = vmatpush2.msra.mxu0 0.0
  %359 = vmatprep.subr.mxu0 0.0
  %360 = vmatpush2.msra.mxu0 0.0
  %361 = vmatprep.subr.mxu0 0.0
  %362 = vmatpush2.msra.mxu0 0.0
  %363 = vmatprep.subr.mxu0 0.0
  %364 = vmatpush2.msra.mxu0 0.0
  %365 = vmatprep.mubr.f32.mxu0 0.0
  %366 = vmatmul.mubr.f32.gmra.mxu0 %v215
  %v367 = vpop.f32.mrf.mxu0
  %v368 = vadd.f32 %v297, %v367
  %v369 = vpop.f32.mrf.mxu0
  %v370 = vadd.f32 %v299, %v369
  %371 = vdwg.mxu0
  %372 = vmatprep.subr.mxu0 %v84
  %373 = vmatpush1.msra.mxu0 %v83
  %374 = vmatprep.subr.mxu0 %v80
  %375 = vmatpush1.msra.mxu0 %v79
  %376 = vmatprep.subr.mxu0 %v76
  %377 = vmatpush1.msra.mxu0 %v75
  %378 = vmatprep.subr.mxu0 %v72
  %379 = vmatpush1.msra.mxu0 %v71
  %380 = vmatprep.subr.mxu0 %v68
  %381 = vmatpush1.msra.mxu0 %v67
  %382 = vmatprep.subr.mxu0 %v64
  %383 = vmatpush1.msra.mxu0 %v63
  %384 = vmatprep.subr.mxu0 %v60
  %385 = vmatpush1.msra.mxu0 %v59
  %386 = vmatprep.subr.mxu0 %v56
  %387 = vmatpush1.msra.mxu0 %v55
  %388 = vmatprep.subr.mxu0 %v52
  %389 = vmatpush1.msra.mxu0 %v51
  %390 = vmatprep.subr.mxu0 %v48
  %391 = vmatpush1.msra.mxu0 %v47
  %392 = vmatprep.subr.mxu0 %v44
  %393 = vmatpush1.msra.mxu0 %v43
  %394 = vmatprep.subr.mxu0 %v40
  %395 = vmatpush1.msra.mxu0 %v39
  %396 = vmatprep.subr.mxu0 %v36
  %397 = vmatpush1.msra.mxu0 %v35
  %398 = vmatprep.subr.mxu0 %v32
  %399 = vmatpush1.msra.mxu0 %v31
  %400 = vmatprep.subr.mxu0 %v28
  %401 = vmatpush1.msra.mxu0 %v27
  %402 = vmatprep.subr.mxu0 %v24
  %403 = vmatpush1.msra.mxu0 %v23
  %404 = vmatprep.subr.mxu0 %v148
  %405 = vmatpush2.msra.mxu0 %v147
  %406 = vmatprep.subr.mxu0 %v144
  %407 = vmatpush2.msra.mxu0 %v143
  %408 = vmatprep.subr.mxu0 %v140
  %409 = vmatpush2.msra.mxu0 %v139
  %410 = vmatprep.subr.mxu0 %v136
  %411 = vmatpush2.msra.mxu0 %v135
  %412 = vmatprep.subr.mxu0 %v132
  %413 = vmatpush2.msra.mxu0 %v131
  %414 = vmatprep.subr.mxu0 %v128
  %415 = vmatpush2.msra.mxu0 %v127
  %416 = vmatprep.subr.mxu0 %v124
  %417 = vmatpush2.msra.mxu0 %v123
  %418 = vmatprep.subr.mxu0 %v120
  %419 = vmatpush2.msra.mxu0 %v119
  %420 = vmatprep.subr.mxu0 %v116
  %421 = vmatpush2.msra.mxu0 %v115
  %422 = vmatprep.subr.mxu0 %v112
  %423 = vmatpush2.msra.mxu0 %v111
  %424 = vmatprep.subr.mxu0 %v108
  %425 = vmatpush2.msra.mxu0 %v107
  %426 = vmatprep.subr.mxu0 %v104
  %427 = vmatpush2.msra.mxu0 %v103
  %428 = vmatprep.subr.mxu0 %v100
  %429 = vmatpush2.msra.mxu0 %v99
  %430 = vmatprep.subr.mxu0 %v96
  %431 = vmatpush2.msra.mxu0 %v95
  %432 = vmatprep.subr.mxu0 %v92
  %433 = vmatpush2.msra.mxu0 %v91
  %434 = vmatprep.subr.mxu0 %v88
  %435 = vmatpush2.msra.mxu0 %v87
  %436 = vmatprep.mubr.f32.mxu0 %v211
  %437 = vmatmul.mubr.f32.gmra.mxu0 %v203
  %v438 = vpop.f32.mrf.mxu0
  %v439 = vadd.f32 %v186, %v438
  %v440 = vpop.f32.mrf.mxu0
  %v441 = vadd.f32 %v190, %v440
  %442 = vdwg.mxu0
  %443 = vmatprep.subr.mxu0 0.0
  %444 = vmatpush1.msra.mxu0 0.0
  %445 = vmatprep.subr.mxu0 0.0
  %446 = vmatpush1.msra.mxu0 0.0
  %447 = vmatprep.subr.mxu0 0.0
  %448 = vmatpush1.msra.mxu0 0.0
  %449 = vmatprep.subr.mxu0 0.0
  %450 = vmatpush1.msra.mxu0 0.0
  %451 = vmatprep.subr.mxu0 0.0
  %452 = vmatpush1.msra.mxu0 0.0
  %453 = vmatprep.subr.mxu0 0.0
  %454 = vmatpush1.msra.mxu0 0.0
  %455 = vmatprep.subr.mxu0 0.0
  %456 = vmatpush1.msra.mxu0 0.0
  %457 = vmatprep.subr.mxu0 0.0
  %458 = vmatpush1.msra.mxu0 0.0
  %459 = vmatprep.subr.mxu0 0.0
  %460 = vmatpush1.msra.mxu0 0.0
  %461 = vmatprep.subr.mxu0 0.0
  %462 = vmatpush1.msra.mxu0 0.0
  %463 = vmatprep.subr.mxu0 %v228
  %464 = vmatpush1.msra.mxu0 %v225
  %465 = vmatprep.subr.mxu0 %v168
  %466 = vmatpush1.msra.mxu0 %v167
  %467 = vmatprep.subr.mxu0 %v164
  %468 = vmatpush1.msra.mxu0 %v163
  %469 = vmatprep.subr.mxu0 %v160
  %470 = vmatpush1.msra.mxu0 %v159
  %471 = vmatprep.subr.mxu0 %v156
  %472 = vmatpush1.msra.mxu0 %v155
  %473 = vmatprep.subr.mxu0 %v152
  %474 = vmatpush1.msra.mxu0 %v151
  %475 = vmatprep.subr.mxu0 0.0
  %476 = vmatpush2.msra.mxu0 0.0
  %477 = vmatprep.subr.mxu0 0.0
  %478 = vmatpush2.msra.mxu0 0.0
  %479 = vmatprep.subr.mxu0 0.0
  %480 = vmatpush2.msra.mxu0 0.0
  %481 = vmatprep.subr.mxu0 0.0
  %482 = vmatpush2.msra.mxu0 0.0
  %483 = vmatprep.subr.mxu0 0.0
  %484 = vmatpush2.msra.mxu0 0.0
  %485 = vmatprep.subr.mxu0 0.0
  %486 = vmatpush2.msra.mxu0 0.0
  %487 = vmatprep.subr.mxu0 0.0
  %488 = vmatpush2.msra.mxu0 0.0
  %489 = vmatprep.subr.mxu0 0.0
  %490 = vmatpush2.msra.mxu0 0.0
  %491 = vmatprep.subr.mxu0 0.0
  %492 = vmatpush2.msra.mxu0 0.0
  %493 = vmatprep.subr.mxu0 0.0
  %494 = vmatpush2.msra.mxu0 0.0
  %495 = vmatprep.subr.mxu0 0.0
  %496 = vmatpush2.msra.mxu0 0.0
  %497 = vmatprep.subr.mxu0 0.0
  %498 = vmatpush2.msra.mxu0 0.0
  %499 = vmatprep.subr.mxu0 0.0
  %500 = vmatpush2.msra.mxu0 0.0
  %501 = vmatprep.subr.mxu0 0.0
  %502 = vmatpush2.msra.mxu0 0.0
  %503 = vmatprep.subr.mxu0 0.0
  %504 = vmatpush2.msra.mxu0 0.0
  %505 = vmatprep.subr.mxu0 0.0
  %506 = vmatpush2.msra.mxu0 0.0
  %507 = vmatprep.mubr.f32.mxu0 0.0
  %508 = vmatmul.mubr.f32.gmra.mxu0 %v215
  %v509 = vpop.f32.mrf.mxu0
  %v510 = vadd.f32 %v439, %v509
  %v511 = vpop.f32.mrf.mxu0
  %v512 = vadd.f32 %v441, %v511
  %513 = vdwg.mxu0
  %v514 = vmax.f32 %v368, 0.0
  %v515 = vmax.f32 %v370, 0.0
  %v516 = vmax.f32 %v510, 0.0
  %v517 = vmax.f32 %v512, 0.0
  %v518 = vld [vmem:[%s3] sm:$0xff]
  %v519 = vld [vmem:[%s3 + $0x8] sm:$0xff]
  %v520 = vld [vmem:[%s3 + $0x10] sm:$0xff]
  %v521 = vld [vmem:[%s3 + $0x18] sm:$0xff]
  %v522 = vld [vmem:[%s3 + $0x20] sm:$0xff]
  %v523 = vld [vmem:[%s3 + $0x28] sm:$0xff]
  %v524 = vld [vmem:[%s3 + $0x30] sm:$0xff]
  %v525 = vld [vmem:[%s3 + $0x38] sm:$0xff]
  %v526 = vld [vmem:[%s3 + $0x40] sm:$0xff]
  %v527 = vld [vmem:[%s3 + $0x48] sm:$0xff]
  %v528 = vld [vmem:[%s3 + $0x50] sm:$0xff]
  %v529 = vld [vmem:[%s3 + $0x58] sm:$0xff]
  %v530 = vld [vmem:[%s3 + $0x60] sm:$0xff]
  %v531 = vld [vmem:[%s3 + $0x68] sm:$0xff]
  %v532 = vld [vmem:[%s3 + $0x70] sm:$0xff]
  %v533 = vld [vmem:[%s3 + $0x78] sm:$0xff]
  %v534 = vld [vmem:[%s3 + $0x80] sm:$0xff]
  %v535 = vld [vmem:[%s3 + $0x88] sm:$0xff]
  %v536 = vld [vmem:[%s3 + $0x90] sm:$0xff]
  %v537 = vld [vmem:[%s3 + $0x98] sm:$0xff]
  %v538 = vld [vmem:[%s3 + $0xa0] sm:$0xff]
  %v539 = vld [vmem:[%s3 + $0xa8] sm:$0xff]
  %v540 = vld [vmem:[%s3 + $0xb0] sm:$0xff]
  %v541 = vld [vmem:[%s3 + $0xb8] sm:$0xff]
  %v542 = vld [vmem:[%s3 + $0xc0] sm:$0xff]
  %v543 = vld [vmem:[%s3 + $0xc8] sm:$0xff]
  %v544 = vld [vmem:[%s3 + $0xd0] sm:$0xff]
  %v545 = vld [vmem:[%s3 + $0xd8] sm:$0xff]
  %v546 = vld [vmem:[%s3 + $0xe0] sm:$0xff]
  %v547 = vld [vmem:[%s3 + $0xe8] sm:$0xff]
  %v548 = vld [vmem:[%s3 + $0xf0] sm:$0xff]
  %v549 = vld [vmem:[%s3 + $0xf8] sm:$0xff]
  %v550 = vld [vmem:[%s3 + $0x100] sm:$0xff]
  %v551 = vld [vmem:[%s3 + $0x108] sm:$0xff]
  %v552 = vld [vmem:[%s3 + $0x110] sm:$0xff]
  %v553 = vld [vmem:[%s3 + $0x118] sm:$0xff]
  %v554 = vld [vmem:[%s3 + $0x120] sm:$0xff]
  %v555 = vld [vmem:[%s3 + $0x128] sm:$0xff]
  %v556 = vld [vmem:[%s3 + $0x130] sm:$0xff]
  %v557 = vld [vmem:[%s3 + $0x138] sm:$0xff]
  %v558 = vld [vmem:[%s3 + $0x140] sm:$0xff]
  %v559 = vld [vmem:[%s3 + $0x148] sm:$0xff]
  %v560 = vld [vmem:[%s3 + $0x150] sm:$0xff]
  %v561 = vld [vmem:[%s3 + $0x158] sm:$0xff]
  %v562 = vld [vmem:[%s3 + $0x160] sm:$0xff]
  %v563 = vld [vmem:[%s3 + $0x168] sm:$0xff]
  %v564 = vld [vmem:[%s3 + $0x170] sm:$0xff]
  %v565 = vld [vmem:[%s3 + $0x178] sm:$0xff]
  %v566 = vld [vmem:[%s3 + $0x180] sm:$0xff]
  %v567 = vld [vmem:[%s3 + $0x188] sm:$0xff]
  %v568 = vld [vmem:[%s3 + $0x190] sm:$0xff]
  %v569 = vld [vmem:[%s3 + $0x198] sm:$0xff]
  %v570 = vld [vmem:[%s3 + $0x1a0] sm:$0xff]
  %v571 = vld [vmem:[%s3 + $0x1a8] sm:$0xff]
  %v572 = vld [vmem:[%s3 + $0x1b0] sm:$0xff]
  %v573 = vld [vmem:[%s3 + $0x1b8] sm:$0xff]
  %v574 = vld [vmem:[%s3 + $0x1c0] sm:$0xff]
  %v575 = vld [vmem:[%s3 + $0x1c8] sm:$0xff]
  %v576 = vld [vmem:[%s3 + $0x1d0] sm:$0xff]
  %v577 = vld [vmem:[%s3 + $0x1d8] sm:$0xff]
  %v578 = vld [vmem:[%s3 + $0x1e0] sm:$0xff]
  %v579 = vld [vmem:[%s3 + $0x1e8] sm:$0xff]
  %v580 = vld [vmem:[%s3 + $0x1f0] sm:$0xff]
  %v581 = vld [vmem:[%s3 + $0x1f8] sm:$0xff]
  %v582 = vld [vmem:[%s3 + $0x200] sm:$0xff]
  %v583 = vld [vmem:[%s3 + $0x208] sm:$0xff]
  %v584 = vld [vmem:[%s3 + $0x210] sm:$0xff]
  %v585 = vld [vmem:[%s3 + $0x218] sm:$0xff]
  %v586 = vld [vmem:[%s3 + $0x220] sm:$0xff]
  %v587 = vld [vmem:[%s3 + $0x228] sm:$0xff]
  %v588 = vld [vmem:[%s3 + $0x230] sm:$0xff]
  %v589 = vld [vmem:[%s3 + $0x238] sm:$0xff]
  %v590 = vld [vmem:[%s3 + $0x240] sm:$0xff]
  %v591 = vld [vmem:[%s3 + $0x248] sm:$0xff]
  %v592 = vld [vmem:[%s3 + $0x250] sm:$0xff]
  %v593 = vld [vmem:[%s3 + $0x258] sm:$0xff]
  %v594 = vld [vmem:[%s3 + $0x260] sm:$0xff]
  %v595 = vld [vmem:[%s3 + $0x268] sm:$0xff]
  %v596 = vld [vmem:[%s3 + $0x270] sm:$0xff]
  %v597 = vld [vmem:[%s3 + $0x278] sm:$0xff]
  %v598 = vld [vmem:[%s3 + $0x280] sm:$0xff]
  %v599 = vld [vmem:[%s3 + $0x288] sm:$0xff]
  %v600 = vld [vmem:[%s3 + $0x290] sm:$0xff]
  %v601 = vld [vmem:[%s3 + $0x298] sm:$0xff]
  %v602 = vld [vmem:[%s3 + $0x2a0] sm:$0xff]
  %v603 = vld [vmem:[%s3 + $0x2a8] sm:$0xff]
  %v604 = vld [vmem:[%s3 + $0x2b0] sm:$0xff]
  %v605 = vld [vmem:[%s3 + $0x2b8] sm:$0xff]
  %v606 = vld [vmem:[%s3 + $0x2c0] sm:$0xff]
  %v607 = vld [vmem:[%s3 + $0x2c8] sm:$0xff]
  %v608 = vld [vmem:[%s3 + $0x2d0] sm:$0xff]
  %v609 = vld [vmem:[%s3 + $0x2d8] sm:$0xff]
  %v610 = vld [vmem:[%s3 + $0x2e0] sm:$0xff]
  %v611 = vld [vmem:[%s3 + $0x2e8] sm:$0xff]
  %v612 = vld [vmem:[%s3 + $0x2f0] sm:$0xff]
  %v613 = vld [vmem:[%s3 + $0x2f8] sm:$0xff]
  %v614 = vld [vmem:[%s3 + $0x300] sm:$0xff]
  %v615 = vld [vmem:[%s3 + $0x308] sm:$0xff]
  %v616 = vld [vmem:[%s3 + $0x310] sm:$0xff]
  %v617 = vld [vmem:[%s3 + $0x318] sm:$0xff]
  %v618 = vld [vmem:[%s3 + $0x320] sm:$0xff]
  %v619 = vld [vmem:[%s3 + $0x328] sm:$0xff]
  %v620 = vld [vmem:[%s3 + $0x330] sm:$0xff]
  %v621 = vld [vmem:[%s3 + $0x338] sm:$0xff]
  %v622 = vld [vmem:[%s3 + $0x340] sm:$0xff]
  %v623 = vld [vmem:[%s3 + $0x348] sm:$0xff]
  %v624 = vld [vmem:[%s3 + $0x350] sm:$0xff]
  %v625 = vld [vmem:[%s3 + $0x358] sm:$0xff]
  %v626 = vld [vmem:[%s3 + $0x360] sm:$0xff]
  %v627 = vld [vmem:[%s3 + $0x368] sm:$0xff]
  %v628 = vld [vmem:[%s3 + $0x370] sm:$0xff]
  %v629 = vld [vmem:[%s3 + $0x378] sm:$0xff]
  %v630 = vld [vmem:[%s3 + $0x380] sm:$0xff]
  %v631 = vld [vmem:[%s3 + $0x388] sm:$0xff]
  %v632 = vld [vmem:[%s3 + $0x390] sm:$0xff]
  %v633 = vld [vmem:[%s3 + $0x398] sm:$0xff]
  %v634 = vld [vmem:[%s3 + $0x3a0] sm:$0xff]
  %v635 = vld [vmem:[%s3 + $0x3a8] sm:$0xff]
  %v636 = vld [vmem:[%s3 + $0x3b0] sm:$0xff]
  %v637 = vld [vmem:[%s3 + $0x3b8] sm:$0xff]
  %v638 = vld [vmem:[%s3 + $0x3c0] sm:$0xff]
  %v639 = vld [vmem:[%s3 + $0x3c8] sm:$0xff]
  %v640 = vld [vmem:[%s3 + $0x3d0] sm:$0xff]
  %v641 = vld [vmem:[%s3 + $0x3d8] sm:$0xff]
  %v642 = vld [vmem:[%s3 + $0x3e0] sm:$0xff]
  %v643 = vld [vmem:[%s3 + $0x3e8] sm:$0xff]
  %v644 = vld [vmem:[%s3 + $0x3f0] sm:$0xff]
  %v645 = vld [vmem:[%s3 + $0x3f8] sm:$0xff]
  %v646 = vld [vmem:[%s3 + $0x400] sm:$0xff]
  %v647 = vld [vmem:[%s3 + $0x408] sm:$0xff]
  %v648 = vld [vmem:[%s3 + $0x410] sm:$0xff]
  %v649 = vld [vmem:[%s3 + $0x418] sm:$0xff]
  %v650 = vld [vmem:[%s3 + $0x420] sm:$0xff]
  %v651 = vld [vmem:[%s3 + $0x428] sm:$0xff]
  %v652 = vld [vmem:[%s3 + $0x430] sm:$0xff]
  %v653 = vld [vmem:[%s3 + $0x438] sm:$0xff]
  %v654 = vld [vmem:[%s3 + $0x440] sm:$0xff]
  %v655 = vld [vmem:[%s3 + $0x448] sm:$0xff]
  %v656 = vld [vmem:[%s3 + $0x450] sm:$0xff]
  %v657 = vld [vmem:[%s3 + $0x458] sm:$0xff]
  %v658 = vld [vmem:[%s3 + $0x460] sm:$0xff]
  %v659 = vld [vmem:[%s3 + $0x468] sm:$0xff]
  %v660 = vld [vmem:[%s3 + $0x470] sm:$0xff]
  %v661 = vld [vmem:[%s3 + $0x478] sm:$0xff]
  %v662 = vld [vmem:[%s3 + $0x480] sm:$0xff]
  %v663 = vld [vmem:[%s3 + $0x488] sm:$0xff]
  %v664 = vld [vmem:[%s3 + $0x490] sm:$0xff]
  %v665 = vld [vmem:[%s3 + $0x498] sm:$0xff]
  %v666 = vld [vmem:[%s3 + $0x4a0] sm:$0xff]
  %v667 = vld [vmem:[%s3 + $0x4a8] sm:$0xff]
  %v668 = vld [vmem:[%s3 + $0x4b0] sm:$0xff]
  %v669 = vld [vmem:[%s3 + $0x4b8] sm:$0xff]
  %v670 = vld [vmem:[%s3 + $0x4c0] sm:$0xff]
  %v671 = vld [vmem:[%s3 + $0x4c8] sm:$0xff]
  %v672 = vld [vmem:[%s3 + $0x4d0] sm:$0xff]
  %v673 = vld [vmem:[%s3 + $0x4d8] sm:$0xff]
  %v674 = vld [vmem:[%s3 + $0x4e0] sm:$0xff]
  %v675 = vld [vmem:[%s3 + $0x4e8] sm:$0xff]
  %v676 = vld [vmem:[%s3 + $0x4f0] sm:$0xff]
  %v677 = vld [vmem:[%s3 + $0x4f8] sm:$0xff]
  %v678 = vld [vmem:[%s3 + $0x500] sm:$0xff]
  %v679 = vld [vmem:[%s3 + $0x508] sm:$0xff]
  %v680 = vld [vmem:[%s3 + $0x510] sm:$0xff]
  %v681 = vld [vmem:[%s3 + $0x518] sm:$0xff]
  %v682 = vld [vmem:[%s3 + $0x520] sm:$0xff]
  %v683 = vld [vmem:[%s3 + $0x528] sm:$0xff]
  %v684 = vld [vmem:[%s3 + $0x530] sm:$0xff]
  %v685 = vld [vmem:[%s3 + $0x538] sm:$0xff]
  %v686 = vld [vmem:[%s3 + $0x540] sm:$0xff]
  %v687 = vld [vmem:[%s3 + $0x548] sm:$0xff]
  %v688 = vld [vmem:[%s3 + $0x550] sm:$0xff]
  %v689 = vld [vmem:[%s3 + $0x558] sm:$0xff]
  %v690 = vld [vmem:[%s3 + $0x560] sm:$0xff]
  %v691 = vld [vmem:[%s3 + $0x568] sm:$0xff]
  %v692 = vld [vmem:[%s3 + $0x570] sm:$0xff]
  %v693 = vld [vmem:[%s3 + $0x578] sm:$0xff]
  %v694 = vld [vmem:[%s3 + $0x580] sm:$0xff]
  %v695 = vld [vmem:[%s3 + $0x588] sm:$0xff]
  %v696 = vld [vmem:[%s3 + $0x590] sm:$0xff]
  %v697 = vld [vmem:[%s3 + $0x598] sm:$0xff]
  %v698 = vld [vmem:[%s3 + $0x5a0] sm:$0xff]
  %v699 = vld [vmem:[%s3 + $0x5a8] sm:$0xff]
  %v700 = vld [vmem:[%s3 + $0x5b0] sm:$0xff]
  %v701 = vld [vmem:[%s3 + $0x5b8] sm:$0xff]
  %v702 = vld [vmem:[%s3 + $0x5c0] sm:$0xff]
  %v703 = vld [vmem:[%s3 + $0x5c8] sm:$0xff]
  %v704 = vld [vmem:[%s3 + $0x5d0] sm:$0xff]
  %v705 = vld [vmem:[%s3 + $0x5d8] sm:$0xff]
  %v706 = vld [vmem:[%s3 + $0x5e0] sm:$0xff]
  %v707 = vld [vmem:[%s3 + $0x5e8] sm:$0xff]
  %v708 = vld [vmem:[%s3 + $0x5f0] sm:$0xff]
  %v709 = vld [vmem:[%s3 + $0x5f8] sm:$0xff]
  %v710 = vld [vmem:[%s3 + $0x600] sm:$0xff]
  %v711 = vld [vmem:[%s3 + $0x608] sm:$0xff]
  %v712 = vld [vmem:[%s3 + $0x610] sm:$0xff]
  %v713 = vld [vmem:[%s3 + $0x618] sm:$0xff]
  %v714 = vld [vmem:[%s3 + $0x620] sm:$0xff]
  %v715 = vld [vmem:[%s3 + $0x628] sm:$0xff]
  %v716 = vld [vmem:[%s3 + $0x630] sm:$0xff]
  %v717 = vld [vmem:[%s3 + $0x638] sm:$0xff]
  %v718 = vld [vmem:[%s3 + $0x640] sm:$0xff]
  %v719 = vld [vmem:[%s3 + $0x648] sm:$0xff]
  %v720 = vld [vmem:[%s3 + $0x650] sm:$0xff]
  %v721 = vld [vmem:[%s3 + $0x658] sm:$0xff]
  %v722 = vld [vmem:[%s3 + $0x660] sm:$0xff]
  %v723 = vld [vmem:[%s3 + $0x668] sm:$0xff]
  %v724 = vld [vmem:[%s3 + $0x670] sm:$0xff]
  %v725 = vld [vmem:[%s3 + $0x678] sm:$0xff]
  %v726 = vld [vmem:[%s3 + $0x680] sm:$0xff]
  %v727 = vld [vmem:[%s3 + $0x688] sm:$0xff]
  %v728 = vld [vmem:[%s3 + $0x690] sm:$0xff]
  %v729 = vld [vmem:[%s3 + $0x698] sm:$0xff]
  %v730 = vld [vmem:[%s3 + $0x6a0] sm:$0xff]
  %v731 = vld [vmem:[%s3 + $0x6a8] sm:$0xff]
  %v732 = vld [vmem:[%s3 + $0x6b0] sm:$0xff]
  %v733 = vld [vmem:[%s3 + $0x6b8] sm:$0xff]
  %v734 = vld [vmem:[%s3 + $0x6c0] sm:$0xff]
  %v735 = vld [vmem:[%s3 + $0x6c8] sm:$0xff]
  %v736 = vld [vmem:[%s3 + $0x6d0] sm:$0xff]
  %v737 = vld [vmem:[%s3 + $0x6d8] sm:$0xff]
  %v738 = vld [vmem:[%s3 + $0x6e0] sm:$0xff]
  %v739 = vld [vmem:[%s3 + $0x6e8] sm:$0xff]
  %v740 = vld [vmem:[%s3 + $0x6f0] sm:$0xff]
  %v741 = vld [vmem:[%s3 + $0x6f8] sm:$0xff]
  %v742 = vld [vmem:[%s3 + $0x700] sm:$0xff]
  %v743 = vld [vmem:[%s3 + $0x708] sm:$0xff]
  %v744 = vld [vmem:[%s3 + $0x710] sm:$0xff]
  %v745 = vld [vmem:[%s3 + $0x718] sm:$0xff]
  %v746 = vld [vmem:[%s3 + $0x720] sm:$0xff]
  %v747 = vld [vmem:[%s3 + $0x728] sm:$0xff]
  %v748 = vld [vmem:[%s3 + $0x730] sm:$0xff]
  %v749 = vld [vmem:[%s3 + $0x738] sm:$0xff]
  %v750 = vld [vmem:[%s3 + $0x740] sm:$0xff]
  %v751 = vld [vmem:[%s3 + $0x748] sm:$0xff]
  %v752 = vld [vmem:[%s3 + $0x750] sm:$0xff]
  %v753 = vld [vmem:[%s3 + $0x758] sm:$0xff]
  %v754 = vld [vmem:[%s3 + $0x760] sm:$0xff]
  %v755 = vld [vmem:[%s3 + $0x768] sm:$0xff]
  %v756 = vld [vmem:[%s3 + $0x770] sm:$0xff]
  %v757 = vld [vmem:[%s3 + $0x778] sm:$0xff]
  %v758 = vld [vmem:[%s3 + $0x780] sm:$0xff]
  %v759 = vld [vmem:[%s3 + $0x788] sm:$0xff]
  %v760 = vld [vmem:[%s3 + $0x790] sm:$0xff]
  %v761 = vld [vmem:[%s3 + $0x798] sm:$0xff]
  %v762 = vld [vmem:[%s3 + $0x7a0] sm:$0xff]
  %v763 = vld [vmem:[%s3 + $0x7a8] sm:$0xff]
  %v764 = vld [vmem:[%s3 + $0x7b0] sm:$0xff]
  %v765 = vld [vmem:[%s3 + $0x7b8] sm:$0xff]
  %v766 = vld [vmem:[%s3 + $0x7c0] sm:$0xff]
  %v767 = vld [vmem:[%s3 + $0x7c8] sm:$0xff]
  %v768 = vld [vmem:[%s3 + $0x7d0] sm:$0xff]
  %v769 = vld [vmem:[%s3 + $0x7d8] sm:$0xff]
  %v770 = vld [vmem:[%s3 + $0x7e0] sm:$0xff]
  %v771 = vld [vmem:[%s3 + $0x7e8] sm:$0xff]
  %v772 = vld [vmem:[%s3 + $0x7f0] sm:$0xff]
  %v773 = vld [vmem:[%s3 + $0x7f8] sm:$0xff]
  %v774 = vld [vmem:[%s3 + $0x800] sm:$0xff]
  %v775 = vld [vmem:[%s3 + $0x808] sm:$0xff]
  %v776 = vld [vmem:[%s3 + $0x810] sm:$0xff]
  %v777 = vld [vmem:[%s3 + $0x818] sm:$0xff]
  %v778 = vld [vmem:[%s3 + $0x820] sm:$0xff]
  %v779 = vld [vmem:[%s3 + $0x828] sm:$0xff]
  %v780 = vld [vmem:[%s3 + $0x830] sm:$0xff]
  %v781 = vld [vmem:[%s3 + $0x838] sm:$0xff]
  %v782 = vld [vmem:[%s3 + $0x840] sm:$0xff]
  %v783 = vld [vmem:[%s3 + $0x848] sm:$0xff]
  %v784 = vld [vmem:[%s3 + $0x850] sm:$0xff]
  %v785 = vld [vmem:[%s3 + $0x858] sm:$0xff]
  %v786 = vld [vmem:[%s3 + $0x860] sm:$0xff]
  %v787 = vld [vmem:[%s3 + $0x868] sm:$0xff]
  %v788 = vld [vmem:[%s3 + $0x870] sm:$0xff]
  %v789 = vld [vmem:[%s3 + $0x878] sm:$0xff]
  %v790 = vld [vmem:[%s3 + $0x880] sm:$0xff]
  %v791 = vld [vmem:[%s3 + $0x888] sm:$0xff]
  %v792 = vld [vmem:[%s3 + $0x890] sm:$0xff]
  %v793 = vld [vmem:[%s3 + $0x898] sm:$0xff]
  %v794 = vld [vmem:[%s3 + $0x8a0] sm:$0xff]
  %v795 = vld [vmem:[%s3 + $0x8a8] sm:$0xff]
  %v796 = vld [vmem:[%s3 + $0x8b0] sm:$0xff]
  %v797 = vld [vmem:[%s3 + $0x8b8] sm:$0xff]
  %v798 = vld [vmem:[%s3 + $0x8c0] sm:$0xff]
  %v799 = vld [vmem:[%s3 + $0x8c8] sm:$0xff]
  %v800 = vld [vmem:[%s3 + $0x8d0] sm:$0xff]
  %v801 = vld [vmem:[%s3 + $0x8d8] sm:$0xff]
  %v802 = vld [vmem:[%s3 + $0x8e0] sm:$0xff]
  %v803 = vld [vmem:[%s3 + $0x8e8] sm:$0xff]
  %v804 = vld [vmem:[%s3 + $0x8f0] sm:$0xff]
  %v805 = vld [vmem:[%s3 + $0x8f8] sm:$0xff]
  %v806 = vld [vmem:[%s3 + $0x900] sm:$0xff]
  %v807 = vld [vmem:[%s3 + $0x908] sm:$0xff]
  %v808 = vld [vmem:[%s3 + $0x910] sm:$0xff]
  %v809 = vld [vmem:[%s3 + $0x918] sm:$0xff]
  %v810 = vld [vmem:[%s3 + $0x920] sm:$0xff]
  %v811 = vld [vmem:[%s3 + $0x928] sm:$0xff]
  %v812 = vld [vmem:[%s3 + $0x930] sm:$0xff]
  %v813 = vld [vmem:[%s3 + $0x938] sm:$0xff]
  %v814 = vld [vmem:[%s3 + $0x940] sm:$0xff]
  %v815 = vld [vmem:[%s3 + $0x948] sm:$0xff]
  %v816 = vld [vmem:[%s3 + $0x950] sm:$0xff]
  %v817 = vld [vmem:[%s3 + $0x958] sm:$0xff]
  %v818 = vld [vmem:[%s3 + $0x960] sm:$0xff]
  %v819 = vld [vmem:[%s3 + $0x968] sm:$0xff]
  %v820 = vld [vmem:[%s3 + $0x970] sm:$0xff]
  %v821 = vld [vmem:[%s3 + $0x978] sm:$0xff]
  %v822 = vld [vmem:[%s3 + $0x980] sm:$0xff]
  %v823 = vld [vmem:[%s3 + $0x988] sm:$0xff]
  %v824 = vld [vmem:[%s3 + $0x990] sm:$0xff]
  %v825 = vld [vmem:[%s3 + $0x998] sm:$0xff]
  %v826 = vld [vmem:[%s3 + $0x9a0] sm:$0xff]
  %v827 = vld [vmem:[%s3 + $0x9a8] sm:$0xff]
  %v828 = vld [vmem:[%s3 + $0x9b0] sm:$0xff]
  %v829 = vld [vmem:[%s3 + $0x9b8] sm:$0xff]
  %v830 = vld [vmem:[%s3 + $0x9c0] sm:$0xff]
  %v831 = vld [vmem:[%s3 + $0x9c8] sm:$0xff]
  %v832 = vld [vmem:[%s3 + $0x9d0] sm:$0xff]
  %v833 = vld [vmem:[%s3 + $0x9d8] sm:$0xff]
  %v834 = vld [vmem:[%s3 + $0x9e0] sm:$0xff]
  %v835 = vld [vmem:[%s3 + $0x9e8] sm:$0xff]
  %v836 = vld [vmem:[%s3 + $0x9f0] sm:$0xff]
  %v837 = vld [vmem:[%s3 + $0x9f8] sm:$0xff]
  %v838 = vld [vmem:[%s3 + $0xa00] sm:$0xff]
  %v839 = vld [vmem:[%s3 + $0xa08] sm:$0xff]
  %v840 = vld [vmem:[%s3 + $0xa10] sm:$0xff]
  %v841 = vld [vmem:[%s3 + $0xa18] sm:$0xff]
  %v842 = vld [vmem:[%s3 + $0xa20] sm:$0xff]
  %v843 = vld [vmem:[%s3 + $0xa28] sm:$0xff]
  %v844 = vld [vmem:[%s3 + $0xa30] sm:$0xff]
  %v845 = vld [vmem:[%s3 + $0xa38] sm:$0xff]
  %v846 = vld [vmem:[%s3 + $0xa40] sm:$0xff]
  %v847 = vld [vmem:[%s3 + $0xa48] sm:$0xff]
  %v848 = vld [vmem:[%s3 + $0xa50] sm:$0xff]
  %v849 = vld [vmem:[%s3 + $0xa58] sm:$0xff]
  %v850 = vld [vmem:[%s3 + $0xa60] sm:$0xff]
  %v851 = vld [vmem:[%s3 + $0xa68] sm:$0xff]
  %v852 = vld [vmem:[%s3 + $0xa70] sm:$0xff]
  %v853 = vld [vmem:[%s3 + $0xa78] sm:$0xff]
  %v854 = vld [vmem:[%s3 + $0xa80] sm:$0xff]
  %v855 = vld [vmem:[%s3 + $0xa88] sm:$0xff]
  %v856 = vld [vmem:[%s3 + $0xa90] sm:$0xff]
  %v857 = vld [vmem:[%s3 + $0xa98] sm:$0xff]
  %v858 = vld [vmem:[%s3 + $0xaa0] sm:$0xff]
  %v859 = vld [vmem:[%s3 + $0xaa8] sm:$0xff]
  %v860 = vld [vmem:[%s3 + $0xab0] sm:$0xff]
  %v861 = vld [vmem:[%s3 + $0xab8] sm:$0xff]
  %v862 = vld [vmem:[%s3 + $0xac0] sm:$0xff]
  %v863 = vld [vmem:[%s3 + $0xac8] sm:$0xff]
  %v864 = vld [vmem:[%s3 + $0xad0] sm:$0xff]
  %v865 = vld [vmem:[%s3 + $0xad8] sm:$0xff]
  %v866 = vld [vmem:[%s3 + $0xae0] sm:$0xff]
  %v867 = vld [vmem:[%s3 + $0xae8] sm:$0xff]
  %v868 = vld [vmem:[%s3 + $0xaf0] sm:$0xff]
  %v869 = vld [vmem:[%s3 + $0xaf8] sm:$0xff]
  %v870 = vld [vmem:[%s3 + $0xb00] sm:$0xff]
  %v871 = vld [vmem:[%s3 + $0xb08] sm:$0xff]
  %v872 = vld [vmem:[%s3 + $0xb10] sm:$0xff]
  %v873 = vld [vmem:[%s3 + $0xb18] sm:$0xff]
  %v874 = vld [vmem:[%s3 + $0xb20] sm:$0xff]
  %v875 = vld [vmem:[%s3 + $0xb28] sm:$0xff]
  %v876 = vld [vmem:[%s3 + $0xb30] sm:$0xff]
  %v877 = vld [vmem:[%s3 + $0xb38] sm:$0xff]
  %v878 = vld [vmem:[%s3 + $0xb40] sm:$0xff]
  %v879 = vld [vmem:[%s3 + $0xb48] sm:$0xff]
  %v880 = vld [vmem:[%s3 + $0xb50] sm:$0xff]
  %v881 = vld [vmem:[%s3 + $0xb58] sm:$0xff]
  %v882 = vld [vmem:[%s3 + $0xb60] sm:$0xff]
  %v883 = vld [vmem:[%s3 + $0xb68] sm:$0xff]
  %v884 = vld [vmem:[%s3 + $0xb70] sm:$0xff]
  %v885 = vld [vmem:[%s3 + $0xb78] sm:$0xff]
  %v886 = vld [vmem:[%s3 + $0xb80] sm:$0xff]
  %v887 = vld [vmem:[%s3 + $0xb88] sm:$0xff]
  %v888 = vld [vmem:[%s3 + $0xb90] sm:$0xff]
  %v889 = vld [vmem:[%s3 + $0xb98] sm:$0xff]
  %v890 = vld [vmem:[%s3 + $0xba0] sm:$0xff]
  %v891 = vld [vmem:[%s3 + $0xba8] sm:$0xff]
  %v892 = vld [vmem:[%s3 + $0xbb0] sm:$0xff]
  %v893 = vld [vmem:[%s3 + $0xbb8] sm:$0xff]
  %v894 = vld [vmem:[%s3 + $0xbc0] sm:$0xff]
  %v895 = vld [vmem:[%s3 + $0xbc8] sm:$0xff]
  %v896 = vld [vmem:[%s3 + $0xbd0] sm:$0xff]
  %v897 = vld [vmem:[%s3 + $0xbd8] sm:$0xff]
  %v898 = vld [vmem:[%s3 + $0xbe0] sm:$0xff]
  %v899 = vld [vmem:[%s3 + $0xbe8] sm:$0xff]
  %v900 = vld [vmem:[%s3 + $0xbf0] sm:$0xff]
  %v901 = vld [vmem:[%s3 + $0xbf8] sm:$0xff]
  %v902 = vld [vmem:[%s3 + $0xc00] sm:$0xff]
  %v903 = vld [vmem:[%s3 + $0xc08] sm:$0xff]
  %v904 = vld [vmem:[%s3 + $0xc10] sm:$0xff]
  %v905 = vld [vmem:[%s3 + $0xc18] sm:$0xff]
  %v906 = vld [vmem:[%s3 + $0xc20] sm:$0xff]
  %v907 = vld [vmem:[%s3 + $0xc28] sm:$0xff]
  %v908 = vld [vmem:[%s3 + $0xc30] sm:$0xff]
  %v909 = vld [vmem:[%s3 + $0xc38] sm:$0xff]
  %v910 = vld [vmem:[%s3 + $0xc40] sm:$0xff]
  %v911 = vld [vmem:[%s3 + $0xc48] sm:$0xff]
  %v912 = vld [vmem:[%s3 + $0xc50] sm:$0xff]
  %v913 = vld [vmem:[%s3 + $0xc58] sm:$0xff]
  %v914 = vld [vmem:[%s3 + $0xc60] sm:$0xff]
  %v915 = vld [vmem:[%s3 + $0xc68] sm:$0xff]
  %v916 = vld [vmem:[%s3 + $0xc70] sm:$0xff]
  %v917 = vld [vmem:[%s3 + $0xc78] sm:$0xff]
  %v918 = vld [vmem:[%s3 + $0xc80] sm:$0xff]
  %v919 = vld [vmem:[%s3 + $0xc88] sm:$0xff]
  %v920 = vld [vmem:[%s3 + $0xc90] sm:$0xff]
  %v921 = vld [vmem:[%s3 + $0xc98] sm:$0xff]
  %v922 = vld [vmem:[%s3 + $0xca0] sm:$0xff]
  %v923 = vld [vmem:[%s3 + $0xca8] sm:$0xff]
  %v924 = vld [vmem:[%s3 + $0xcb0] sm:$0xff]
  %v925 = vld [vmem:[%s3 + $0xcb8] sm:$0xff]
  %v926 = vld [vmem:[%s3 + $0xcc0] sm:$0xff]
  %v927 = vld [vmem:[%s3 + $0xcc8] sm:$0xff]
  %v928 = vld [vmem:[%s3 + $0xcd0] sm:$0xff]
  %v929 = vld [vmem:[%s3 + $0xcd8] sm:$0xff]
  %v930 = vld [vmem:[%s3 + $0xce0] sm:$0xff]
  %v931 = vld [vmem:[%s3 + $0xce8] sm:$0xff]
  %v932 = vld [vmem:[%s3 + $0xcf0] sm:$0xff]
  %v933 = vld [vmem:[%s3 + $0xcf8] sm:$0xff]
  %v934 = vld [vmem:[%s3 + $0xd00] sm:$0xff]
  %v935 = vld [vmem:[%s3 + $0xd08] sm:$0xff]
  %v936 = vld [vmem:[%s3 + $0xd10] sm:$0xff]
  %v937 = vld [vmem:[%s3 + $0xd18] sm:$0xff]
  %v938 = vld [vmem:[%s3 + $0xd20] sm:$0xff]
  %v939 = vld [vmem:[%s3 + $0xd28] sm:$0xff]
  %v940 = vld [vmem:[%s3 + $0xd30] sm:$0xff]
  %v941 = vld [vmem:[%s3 + $0xd38] sm:$0xff]
  %v942 = vld [vmem:[%s3 + $0xd40] sm:$0xff]
  %v943 = vld [vmem:[%s3 + $0xd48] sm:$0xff]
  %v944 = vld [vmem:[%s3 + $0xd50] sm:$0xff]
  %v945 = vld [vmem:[%s3 + $0xd58] sm:$0xff]
  %v946 = vld [vmem:[%s3 + $0xd60] sm:$0xff]
  %v947 = vld [vmem:[%s3 + $0xd68] sm:$0xff]
  %v948 = vld [vmem:[%s3 + $0xd70] sm:$0xff]
  %v949 = vld [vmem:[%s3 + $0xd78] sm:$0xff]
  %v950 = vld [vmem:[%s3 + $0xd80] sm:$0xff]
  %v951 = vld [vmem:[%s3 + $0xd88] sm:$0xff]
  %v952 = vld [vmem:[%s3 + $0xd90] sm:$0xff]
  %v953 = vld [vmem:[%s3 + $0xd98] sm:$0xff]
  %v954 = vld [vmem:[%s3 + $0xda0] sm:$0xff]
  %v955 = vld [vmem:[%s3 + $0xda8] sm:$0xff]
  %v956 = vld [vmem:[%s3 + $0xdb0] sm:$0xff]
  %v957 = vld [vmem:[%s3 + $0xdb8] sm:$0xff]
  %v958 = vld [vmem:[%s3 + $0xdc0] sm:$0xff]
  %v959 = vld [vmem:[%s3 + $0xdc8] sm:$0xff]
  %v960 = vld [vmem:[%s3 + $0xdd0] sm:$0xff]
  %v961 = vld [vmem:[%s3 + $0xdd8] sm:$0xff]
  %v962 = vld [vmem:[%s3 + $0xde0] sm:$0xff]
  %v963 = vld [vmem:[%s3 + $0xde8] sm:$0xff]
  %v964 = vld [vmem:[%s3 + $0xdf0] sm:$0xff]
  %v965 = vld [vmem:[%s3 + $0xdf8] sm:$0xff]
  %v966 = vld [vmem:[%s3 + $0xe00] sm:$0xff]
  %v967 = vld [vmem:[%s3 + $0xe08] sm:$0xff]
  %v968 = vld [vmem:[%s3 + $0xe10] sm:$0xff]
  %v969 = vld [vmem:[%s3 + $0xe18] sm:$0xff]
  %v970 = vld [vmem:[%s3 + $0xe20] sm:$0xff]
  %v971 = vld [vmem:[%s3 + $0xe28] sm:$0xff]
  %v972 = vld [vmem:[%s3 + $0xe30] sm:$0xff]
  %v973 = vld [vmem:[%s3 + $0xe38] sm:$0xff]
  %v974 = vld [vmem:[%s3 + $0xe40] sm:$0xff]
  %v975 = vld [vmem:[%s3 + $0xe48] sm:$0xff]
  %v976 = vld [vmem:[%s3 + $0xe50] sm:$0xff]
  %v977 = vld [vmem:[%s3 + $0xe58] sm:$0xff]
  %v978 = vld [vmem:[%s3 + $0xe60] sm:$0xff]
  %v979 = vld [vmem:[%s3 + $0xe68] sm:$0xff]
  %v980 = vld [vmem:[%s3 + $0xe70] sm:$0xff]
  %v981 = vld [vmem:[%s3 + $0xe78] sm:$0xff]
  %v982 = vld [vmem:[%s3 + $0xe80] sm:$0xff]
  %v983 = vld [vmem:[%s3 + $0xe88] sm:$0xff]
  %v984 = vld [vmem:[%s3 + $0xe90] sm:$0xff]
  %v985 = vld [vmem:[%s3 + $0xe98] sm:$0xff]
  %v986 = vld [vmem:[%s3 + $0xea0] sm:$0xff]
  %v987 = vld [vmem:[%s3 + $0xea8] sm:$0xff]
  %v988 = vld [vmem:[%s3 + $0xeb0] sm:$0xff]
  %v989 = vld [vmem:[%s3 + $0xeb8] sm:$0xff]
  %v990 = vld [vmem:[%s3 + $0xec0] sm:$0xff]
  %v991 = vld [vmem:[%s3 + $0xec8] sm:$0xff]
  %v992 = vld [vmem:[%s3 + $0xed0] sm:$0xff]
  %v993 = vld [vmem:[%s3 + $0xed8] sm:$0xff]
  %v994 = vld [vmem:[%s3 + $0xee0] sm:$0xff]
  %v995 = vld [vmem:[%s3 + $0xee8] sm:$0xff]
  %v996 = vld [vmem:[%s3 + $0xef0] sm:$0xff]
  %v997 = vld [vmem:[%s3 + $0xef8] sm:$0xff]
  %v998 = vld [vmem:[%s3 + $0xf00] sm:$0xff]
  %v999 = vld [vmem:[%s3 + $0xf08] sm:$0xff]
  %v1000 = vld [vmem:[%s3 + $0xf10] sm:$0xff]
  %v1001 = vld [vmem:[%s3 + $0xf18] sm:$0xff]
  %v1002 = vld [vmem:[%s3 + $0xf20] sm:$0xff]
  %v1003 = vld [vmem:[%s3 + $0xf28] sm:$0xff]
  %v1004 = vld [vmem:[%s3 + $0xf30] sm:$0xff]
  %v1005 = vld [vmem:[%s3 + $0xf38] sm:$0xff]
  %v1006 = vld [vmem:[%s3 + $0xf40] sm:$0xff]
  %v1007 = vld [vmem:[%s3 + $0xf48] sm:$0xff]
  %v1008 = vld [vmem:[%s3 + $0xf50] sm:$0xff]
  %v1009 = vld [vmem:[%s3 + $0xf58] sm:$0xff]
  %v1010 = vld [vmem:[%s3 + $0xf60] sm:$0xff]
  %v1011 = vld [vmem:[%s3 + $0xf68] sm:$0xff]
  %v1012 = vld [vmem:[%s3 + $0xf70] sm:$0xff]
  %v1013 = vld [vmem:[%s3 + $0xf78] sm:$0xff]
  %v1014 = vld [vmem:[%s3 + $0xf80] sm:$0xff]
  %v1015 = vld [vmem:[%s3 + $0xf88] sm:$0xff]
  %v1016 = vld [vmem:[%s3 + $0xf90] sm:$0xff]
  %v1017 = vld [vmem:[%s3 + $0xf98] sm:$0xff]
  %v1018 = vld [vmem:[%s3 + $0xfa0] sm:$0xff]
  %v1019 = vld [vmem:[%s3 + $0xfa8] sm:$0xff]
  %v1020 = vld [vmem:[%s3 + $0xfb0] sm:$0xff]
  %v1021 = vld [vmem:[%s3 + $0xfb8] sm:$0xff]
  %v1022 = vld [vmem:[%s3 + $0xfc0] sm:$0xff]
  %v1023 = vld [vmem:[%s3 + $0xfc8] sm:$0xff]
  %v1024 = vld [vmem:[%s3 + $0xfd0] sm:$0xff]
  %v1025 = vld [vmem:[%s3 + $0xfd8] sm:$0xff]
  %v1026 = vld [vmem:[%s3 + $0xfe0] sm:$0xff]
  %v1027 = vld [vmem:[%s3 + $0xfe8] sm:$0xff]
  %v1028 = vld [vmem:[%s3 + $0xff0] sm:$0xff]
  %v1029 = vld [vmem:[%s3 + $0xff8] sm:$0xff]
  %v1030 = vld [vmem:[%s4] sm:$0xff]
  %v1032 = vlaneseq
  %v1033 = vshrl.u32 %v1032, 7
  %v1034 = vsub.s32 0, %v1033
  %v1035 = vrot.slane %v1030, %v1034
  %v1036 = vlaneseq
  %v1037 = vshrl.u32 %v1036, 7
  %v1038 = vsub.s32 1, %v1037
  %v1039 = vrot.slane %v1030, %v1038
  %v1040 = vlaneseq
  %v1041 = vshrl.u32 %v1040, 7
  %v1042 = vsub.s32 2, %v1041
  %v1043 = vrot.slane %v1030, %v1042
  %v1044 = vlaneseq
  %v1045 = vshrl.u32 %v1044, 7
  %v1046 = vsub.s32 3, %v1045
  %v1047 = vrot.slane %v1030, %v1046
  %v1048 = vlaneseq
  %v1049 = vshrl.u32 %v1048, 7
  %v1050 = vsub.s32 4, %v1049
  %v1051 = vrot.slane %v1030, %v1050
  %v1052 = vlaneseq
  %v1053 = vshrl.u32 %v1052, 7
  %v1054 = vsub.s32 5, %v1053
  %v1055 = vrot.slane %v1030, %v1054
  %v1056 = vlaneseq
  %v1057 = vshrl.u32 %v1056, 7
  %v1058 = vsub.s32 6, %v1057
  %v1059 = vrot.slane %v1030, %v1058
  %v1060 = vlaneseq
  %v1061 = vshrl.u32 %v1060, 7
  %v1062 = vsub.s32 7, %v1061
  %v1063 = vrot.slane %v1030, %v1062
  %1072 = vmatprep.subr.mxu0 %v639
  %1073 = vmatpush1.msra.mxu0 %v638
  %1074 = vmatprep.subr.mxu0 %v631
  %1075 = vmatpush1.msra.mxu0 %v630
  %1076 = vmatprep.subr.mxu0 %v623
  %1077 = vmatpush1.msra.mxu0 %v622
  %1078 = vmatprep.subr.mxu0 %v615
  %1079 = vmatpush1.msra.mxu0 %v614
  %1080 = vmatprep.subr.mxu0 %v607
  %1081 = vmatpush1.msra.mxu0 %v606
  %1082 = vmatprep.subr.mxu0 %v599
  %1083 = vmatpush1.msra.mxu0 %v598
  %1084 = vmatprep.subr.mxu0 %v591
  %1085 = vmatpush1.msra.mxu0 %v590
  %1086 = vmatprep.subr.mxu0 %v583
  %1087 = vmatpush1.msra.mxu0 %v582
  %1088 = vmatprep.subr.mxu0 %v575
  %1089 = vmatpush1.msra.mxu0 %v574
  %1090 = vmatprep.subr.mxu0 %v567
  %1091 = vmatpush1.msra.mxu0 %v566
  %1092 = vmatprep.subr.mxu0 %v559
  %1093 = vmatpush1.msra.mxu0 %v558
  %1094 = vmatprep.subr.mxu0 %v551
  %1095 = vmatpush1.msra.mxu0 %v550
  %1096 = vmatprep.subr.mxu0 %v543
  %1097 = vmatpush1.msra.mxu0 %v542
  %1098 = vmatprep.subr.mxu0 %v535
  %1099 = vmatpush1.msra.mxu0 %v534
  %1100 = vmatprep.subr.mxu0 %v527
  %1101 = vmatpush1.msra.mxu0 %v526
  %1102 = vmatprep.subr.mxu0 %v519
  %1103 = vmatpush1.msra.mxu0 %v518
  %1104 = vmatprep.subr.mxu0 %v767
  %1105 = vmatpush2.msra.mxu0 %v766
  %1106 = vmatprep.subr.mxu0 %v759
  %1107 = vmatpush2.msra.mxu0 %v758
  %1108 = vmatprep.subr.mxu0 %v751
  %1109 = vmatpush2.msra.mxu0 %v750
  %1110 = vmatprep.subr.mxu0 %v743
  %1111 = vmatpush2.msra.mxu0 %v742
  %1112 = vmatprep.subr.mxu0 %v735
  %1113 = vmatpush2.msra.mxu0 %v734
  %1114 = vmatprep.subr.mxu0 %v727
  %1115 = vmatpush2.msra.mxu0 %v726
  %1116 = vmatprep.subr.mxu0 %v719
  %1117 = vmatpush2.msra.mxu0 %v718
  %1118 = vmatprep.subr.mxu0 %v711
  %1119 = vmatpush2.msra.mxu0 %v710
  %1120 = vmatprep.subr.mxu0 %v703
  %1121 = vmatpush2.msra.mxu0 %v702
  %1122 = vmatprep.subr.mxu0 %v695
  %1123 = vmatpush2.msra.mxu0 %v694
  %1124 = vmatprep.subr.mxu0 %v687
  %1125 = vmatpush2.msra.mxu0 %v686
  %1126 = vmatprep.subr.mxu0 %v679
  %1127 = vmatpush2.msra.mxu0 %v678
  %1128 = vmatprep.subr.mxu0 %v671
  %1129 = vmatpush2.msra.mxu0 %v670
  %1130 = vmatprep.subr.mxu0 %v663
  %1131 = vmatpush2.msra.mxu0 %v662
  %1132 = vmatprep.subr.mxu0 %v655
  %1133 = vmatpush2.msra.mxu0 %v654
  %1134 = vmatprep.subr.mxu0 %v647
  %1135 = vmatpush2.msra.mxu0 %v646
  %1136 = vmatprep.mubr.f32.mxu0 %v515
  %1137 = vmatmul.mubr.f32.gmra.mxu0 %v514
  %v1138 = vpop.f32.mrf.mxu0
  %v1139 = vadd.f32 %v1035, %v1138
  %v1140 = vpop.f32.mrf.mxu0
  %v1141 = vadd.f32 %v1039, %v1140
  %1142 = vdwg.mxu0
  %1143 = vmatprep.subr.mxu0 %v895
  %1144 = vmatpush1.msra.mxu0 %v894
  %1145 = vmatprep.subr.mxu0 %v887
  %1146 = vmatpush1.msra.mxu0 %v886
  %1147 = vmatprep.subr.mxu0 %v879
  %1148 = vmatpush1.msra.mxu0 %v878
  %1149 = vmatprep.subr.mxu0 %v871
  %1150 = vmatpush1.msra.mxu0 %v870
  %1151 = vmatprep.subr.mxu0 %v863
  %1152 = vmatpush1.msra.mxu0 %v862
  %1153 = vmatprep.subr.mxu0 %v855
  %1154 = vmatpush1.msra.mxu0 %v854
  %1155 = vmatprep.subr.mxu0 %v847
  %1156 = vmatpush1.msra.mxu0 %v846
  %1157 = vmatprep.subr.mxu0 %v839
  %1158 = vmatpush1.msra.mxu0 %v838
  %1159 = vmatprep.subr.mxu0 %v831
  %1160 = vmatpush1.msra.mxu0 %v830
  %1161 = vmatprep.subr.mxu0 %v823
  %1162 = vmatpush1.msra.mxu0 %v822
  %1163 = vmatprep.subr.mxu0 %v815
  %1164 = vmatpush1.msra.mxu0 %v814
  %1165 = vmatprep.subr.mxu0 %v807
  %1166 = vmatpush1.msra.mxu0 %v806
  %1167 = vmatprep.subr.mxu0 %v799
  %1168 = vmatpush1.msra.mxu0 %v798
  %1169 = vmatprep.subr.mxu0 %v791
  %1170 = vmatpush1.msra.mxu0 %v790
  %1171 = vmatprep.subr.mxu0 %v783
  %1172 = vmatpush1.msra.mxu0 %v782
  %1173 = vmatprep.subr.mxu0 %v775
  %1174 = vmatpush1.msra.mxu0 %v774
  %1175 = vmatprep.subr.mxu0 %v1023
  %1176 = vmatpush2.msra.mxu0 %v1022
  %1177 = vmatprep.subr.mxu0 %v1015
  %1178 = vmatpush2.msra.mxu0 %v1014
  %1179 = vmatprep.subr.mxu0 %v1007
  %1180 = vmatpush2.msra.mxu0 %v1006
  %1181 = vmatprep.subr.mxu0 %v999
  %1182 = vmatpush2.msra.mxu0 %v998
  %1183 = vmatprep.subr.mxu0 %v991
  %1184 = vmatpush2.msra.mxu0 %v990
  %1185 = vmatprep.subr.mxu0 %v983
  %1186 = vmatpush2.msra.mxu0 %v982
  %1187 = vmatprep.subr.mxu0 %v975
  %1188 = vmatpush2.msra.mxu0 %v974
  %1189 = vmatprep.subr.mxu0 %v967
  %1190 = vmatpush2.msra.mxu0 %v966
  %1191 = vmatprep.subr.mxu0 %v959
  %1192 = vmatpush2.msra.mxu0 %v958
  %1193 = vmatprep.subr.mxu0 %v951
  %1194 = vmatpush2.msra.mxu0 %v950
  %1195 = vmatprep.subr.mxu0 %v943
  %1196 = vmatpush2.msra.mxu0 %v942
  %1197 = vmatprep.subr.mxu0 %v935
  %1198 = vmatpush2.msra.mxu0 %v934
  %1199 = vmatprep.subr.mxu0 %v927
  %1200 = vmatpush2.msra.mxu0 %v926
  %1201 = vmatprep.subr.mxu0 %v919
  %1202 = vmatpush2.msra.mxu0 %v918
  %1203 = vmatprep.subr.mxu0 %v911
  %1204 = vmatpush2.msra.mxu0 %v910
  %1205 = vmatprep.subr.mxu0 %v903
  %1206 = vmatpush2.msra.mxu0 %v902
  %1207 = vmatprep.mubr.f32.mxu0 %v517
  %1208 = vmatmul.mubr.f32.gmra.mxu0 %v516
  %v1209 = vpop.f32.mrf.mxu0
  %v1210 = vadd.f32 %v1139, %v1209
  %v1211 = vpop.f32.mrf.mxu0
  %v1212 = vadd.f32 %v1141, %v1211
  %1213 = vdwg.mxu0
  %1214 = vmatprep.subr.mxu0 %v641
  %1215 = vmatpush1.msra.mxu0 %v640
  %1216 = vmatprep.subr.mxu0 %v633
  %1217 = vmatpush1.msra.mxu0 %v632
  %1218 = vmatprep.subr.mxu0 %v625
  %1219 = vmatpush1.msra.mxu0 %v624
  %1220 = vmatprep.subr.mxu0 %v617
  %1221 = vmatpush1.msra.mxu0 %v616
  %1222 = vmatprep.subr.mxu0 %v609
  %1223 = vmatpush1.msra.mxu0 %v608
  %1224 = vmatprep.subr.mxu0 %v601
  %1225 = vmatpush1.msra.mxu0 %v600
  %1226 = vmatprep.subr.mxu0 %v593
  %1227 = vmatpush1.msra.mxu0 %v592
  %1228 = vmatprep.subr.mxu0 %v585
  %1229 = vmatpush1.msra.mxu0 %v584
  %1230 = vmatprep.subr.mxu0 %v577
  %1231 = vmatpush1.msra.mxu0 %v576
  %1232 = vmatprep.subr.mxu0 %v569
  %1233 = vmatpush1.msra.mxu0 %v568
  %1234 = vmatprep.subr.mxu0 %v561
  %1235 = vmatpush1.msra.mxu0 %v560
  %1236 = vmatprep.subr.mxu0 %v553
  %1237 = vmatpush1.msra.mxu0 %v552
  %1238 = vmatprep.subr.mxu0 %v545
  %1239 = vmatpush1.msra.mxu0 %v544
  %1240 = vmatprep.subr.mxu0 %v537
  %1241 = vmatpush1.msra.mxu0 %v536
  %1242 = vmatprep.subr.mxu0 %v529
  %1243 = vmatpush1.msra.mxu0 %v528
  %1244 = vmatprep.subr.mxu0 %v521
  %1245 = vmatpush1.msra.mxu0 %v520
  %1246 = vmatprep.subr.mxu0 %v769
  %1247 = vmatpush2.msra.mxu0 %v768
  %1248 = vmatprep.subr.mxu0 %v761
  %1249 = vmatpush2.msra.mxu0 %v760
  %1250 = vmatprep.subr.mxu0 %v753
  %1251 = vmatpush2.msra.mxu0 %v752
  %1252 = vmatprep.subr.mxu0 %v745
  %1253 = vmatpush2.msra.mxu0 %v744
  %1254 = vmatprep.subr.mxu0 %v737
  %1255 = vmatpush2.msra.mxu0 %v736
  %1256 = vmatprep.subr.mxu0 %v729
  %1257 = vmatpush2.msra.mxu0 %v728
  %1258 = vmatprep.subr.mxu0 %v721
  %1259 = vmatpush2.msra.mxu0 %v720
  %1260 = vmatprep.subr.mxu0 %v713
  %1261 = vmatpush2.msra.mxu0 %v712
  %1262 = vmatprep.subr.mxu0 %v705
  %1263 = vmatpush2.msra.mxu0 %v704
  %1264 = vmatprep.subr.mxu0 %v697
  %1265 = vmatpush2.msra.mxu0 %v696
  %1266 = vmatprep.subr.mxu0 %v689
  %1267 = vmatpush2.msra.mxu0 %v688
  %1268 = vmatprep.subr.mxu0 %v681
  %1269 = vmatpush2.msra.mxu0 %v680
  %1270 = vmatprep.subr.mxu0 %v673
  %1271 = vmatpush2.msra.mxu0 %v672
  %1272 = vmatprep.subr.mxu0 %v665
  %1273 = vmatpush2.msra.mxu0 %v664
  %1274 = vmatprep.subr.mxu0 %v657
  %1275 = vmatpush2.msra.mxu0 %v656
  %1276 = vmatprep.subr.mxu0 %v649
  %1277 = vmatpush2.msra.mxu0 %v648
  %1278 = vmatprep.mubr.f32.mxu0 %v515
  %1279 = vmatmul.mubr.f32.gmra.mxu0 %v514
  %v1280 = vpop.f32.mrf.mxu0
  %v1281 = vadd.f32 %v1043, %v1280
  %v1282 = vpop.f32.mrf.mxu0
  %v1283 = vadd.f32 %v1047, %v1282
  %1284 = vdwg.mxu0
  %1285 = vmatprep.subr.mxu0 %v897
  %1286 = vmatpush1.msra.mxu0 %v896
  %1287 = vmatprep.subr.mxu0 %v889
  %1288 = vmatpush1.msra.mxu0 %v888
  %1289 = vmatprep.subr.mxu0 %v881
  %1290 = vmatpush1.msra.mxu0 %v880
  %1291 = vmatprep.subr.mxu0 %v873
  %1292 = vmatpush1.msra.mxu0 %v872
  %1293 = vmatprep.subr.mxu0 %v865
  %1294 = vmatpush1.msra.mxu0 %v864
  %1295 = vmatprep.subr.mxu0 %v857
  %1296 = vmatpush1.msra.mxu0 %v856
  %1297 = vmatprep.subr.mxu0 %v849
  %1298 = vmatpush1.msra.mxu0 %v848
  %1299 = vmatprep.subr.mxu0 %v841
  %1300 = vmatpush1.msra.mxu0 %v840
  %1301 = vmatprep.subr.mxu0 %v833
  %1302 = vmatpush1.msra.mxu0 %v832
  %1303 = vmatprep.subr.mxu0 %v825
  %1304 = vmatpush1.msra.mxu0 %v824
  %1305 = vmatprep.subr.mxu0 %v817
  %1306 = vmatpush1.msra.mxu0 %v816
  %1307 = vmatprep.subr.mxu0 %v809
  %1308 = vmatpush1.msra.mxu0 %v808
  %1309 = vmatprep.subr.mxu0 %v801
  %1310 = vmatpush1.msra.mxu0 %v800
  %1311 = vmatprep.subr.mxu0 %v793
  %1312 = vmatpush1.msra.mxu0 %v792
  %1313 = vmatprep.subr.mxu0 %v785
  %1314 = vmatpush1.msra.mxu0 %v784
  %1315 = vmatprep.subr.mxu0 %v777
  %1316 = vmatpush1.msra.mxu0 %v776
  %1317 = vmatprep.subr.mxu0 %v1025
  %1318 = vmatpush2.msra.mxu0 %v1024
  %1319 = vmatprep.subr.mxu0 %v1017
  %1320 = vmatpush2.msra.mxu0 %v1016
  %1321 = vmatprep.subr.mxu0 %v1009
  %1322 = vmatpush2.msra.mxu0 %v1008
  %1323 = vmatprep.subr.mxu0 %v1001
  %1324 = vmatpush2.msra.mxu0 %v1000
  %1325 = vmatprep.subr.mxu0 %v993
  %1326 = vmatpush2.msra.mxu0 %v992
  %1327 = vmatprep.subr.mxu0 %v985
  %1328 = vmatpush2.msra.mxu0 %v984
  %1329 = vmatprep.subr.mxu0 %v977
  %1330 = vmatpush2.msra.mxu0 %v976
  %1331 = vmatprep.subr.mxu0 %v969
  %1332 = vmatpush2.msra.mxu0 %v968
  %1333 = vmatprep.subr.mxu0 %v961
  %1334 = vmatpush2.msra.mxu0 %v960
  %1335 = vmatprep.subr.mxu0 %v953
  %1336 = vmatpush2.msra.mxu0 %v952
  %1337 = vmatprep.subr.mxu0 %v945
  %1338 = vmatpush2.msra.mxu0 %v944
  %1339 = vmatprep.subr.mxu0 %v937
  %1340 = vmatpush2.msra.mxu0 %v936
  %1341 = vmatprep.subr.mxu0 %v929
  %1342 = vmatpush2.msra.mxu0 %v928
  %1343 = vmatprep.subr.mxu0 %v921
  %1344 = vmatpush2.msra.mxu0 %v920
  %1345 = vmatprep.subr.mxu0 %v913
  %1346 = vmatpush2.msra.mxu0 %v912
  %1347 = vmatprep.subr.mxu0 %v905
  %1348 = vmatpush2.msra.mxu0 %v904
  %1349 = vmatprep.mubr.f32.mxu0 %v517
  %1350 = vmatmul.mubr.f32.gmra.mxu0 %v516
  %v1351 = vpop.f32.mrf.mxu0
  %v1352 = vadd.f32 %v1281, %v1351
  %v1353 = vpop.f32.mrf.mxu0
  %v1354 = vadd.f32 %v1283, %v1353
  %1355 = vdwg.mxu0
  %1356 = vmatprep.subr.mxu0 %v643
  %1357 = vmatpush1.msra.mxu0 %v642
  %1358 = vmatprep.subr.mxu0 %v635
  %1359 = vmatpush1.msra.mxu0 %v634
  %1360 = vmatprep.subr.mxu0 %v627
  %1361 = vmatpush1.msra.mxu0 %v626
  %1362 = vmatprep.subr.mxu0 %v619
  %1363 = vmatpush1.msra.mxu0 %v618
  %1364 = vmatprep.subr.mxu0 %v611
  %1365 = vmatpush1.msra.mxu0 %v610
  %1366 = vmatprep.subr.mxu0 %v603
  %1367 = vmatpush1.msra.mxu0 %v602
  %1368 = vmatprep.subr.mxu0 %v595
  %1369 = vmatpush1.msra.mxu0 %v594
  %1370 = vmatprep.subr.mxu0 %v587
  %1371 = vmatpush1.msra.mxu0 %v586
  %1372 = vmatprep.subr.mxu0 %v579
  %1373 = vmatpush1.msra.mxu0 %v578
  %1374 = vmatprep.subr.mxu0 %v571
  %1375 = vmatpush1.msra.mxu0 %v570
  %1376 = vmatprep.subr.mxu0 %v563
  %1377 = vmatpush1.msra.mxu0 %v562
  %1378 = vmatprep.subr.mxu0 %v555
  %1379 = vmatpush1.msra.mxu0 %v554
  %1380 = vmatprep.subr.mxu0 %v547
  %1381 = vmatpush1.msra.mxu0 %v546
  %1382 = vmatprep.subr.mxu0 %v539
  %1383 = vmatpush1.msra.mxu0 %v538
  %1384 = vmatprep.subr.mxu0 %v531
  %1385 = vmatpush1.msra.mxu0 %v530
  %1386 = vmatprep.subr.mxu0 %v523
  %1387 = vmatpush1.msra.mxu0 %v522
  %1388 = vmatprep.subr.mxu0 %v771
  %1389 = vmatpush2.msra.mxu0 %v770
  %1390 = vmatprep.subr.mxu0 %v763
  %1391 = vmatpush2.msra.mxu0 %v762
  %1392 = vmatprep.subr.mxu0 %v755
  %1393 = vmatpush2.msra.mxu0 %v754
  %1394 = vmatprep.subr.mxu0 %v747
  %1395 = vmatpush2.msra.mxu0 %v746
  %1396 = vmatprep.subr.mxu0 %v739
  %1397 = vmatpush2.msra.mxu0 %v738
  %1398 = vmatprep.subr.mxu0 %v731
  %1399 = vmatpush2.msra.mxu0 %v730
  %1400 = vmatprep.subr.mxu0 %v723
  %1401 = vmatpush2.msra.mxu0 %v722
  %1402 = vmatprep.subr.mxu0 %v715
  %1403 = vmatpush2.msra.mxu0 %v714
  %1404 = vmatprep.subr.mxu0 %v707
  %1405 = vmatpush2.msra.mxu0 %v706
  %1406 = vmatprep.subr.mxu0 %v699
  %1407 = vmatpush2.msra.mxu0 %v698
  %1408 = vmatprep.subr.mxu0 %v691
  %1409 = vmatpush2.msra.mxu0 %v690
  %1410 = vmatprep.subr.mxu0 %v683
  %1411 = vmatpush2.msra.mxu0 %v682
  %1412 = vmatprep.subr.mxu0 %v675
  %1413 = vmatpush2.msra.mxu0 %v674
  %1414 = vmatprep.subr.mxu0 %v667
  %1415 = vmatpush2.msra.mxu0 %v666
  %1416 = vmatprep.subr.mxu0 %v659
  %1417 = vmatpush2.msra.mxu0 %v658
  %1418 = vmatprep.subr.mxu0 %v651
  %1419 = vmatpush2.msra.mxu0 %v650
  %1420 = vmatprep.mubr.f32.mxu0 %v515
  %1421 = vmatmul.mubr.f32.gmra.mxu0 %v514
  %v1422 = vpop.f32.mrf.mxu0
  %v1423 = vadd.f32 %v1051, %v1422
  %v1424 = vpop.f32.mrf.mxu0
  %v1425 = vadd.f32 %v1055, %v1424
  %1426 = vdwg.mxu0
  %1427 = vmatprep.subr.mxu0 %v899
  %1428 = vmatpush1.msra.mxu0 %v898
  %1429 = vmatprep.subr.mxu0 %v891
  %1430 = vmatpush1.msra.mxu0 %v890
  %1431 = vmatprep.subr.mxu0 %v883
  %1432 = vmatpush1.msra.mxu0 %v882
  %1433 = vmatprep.subr.mxu0 %v875
  %1434 = vmatpush1.msra.mxu0 %v874
  %1435 = vmatprep.subr.mxu0 %v867
  %1436 = vmatpush1.msra.mxu0 %v866
  %1437 = vmatprep.subr.mxu0 %v859
  %1438 = vmatpush1.msra.mxu0 %v858
  %1439 = vmatprep.subr.mxu0 %v851
  %1440 = vmatpush1.msra.mxu0 %v850
  %1441 = vmatprep.subr.mxu0 %v843
  %1442 = vmatpush1.msra.mxu0 %v842
  %1443 = vmatprep.subr.mxu0 %v835
  %1444 = vmatpush1.msra.mxu0 %v834
  %1445 = vmatprep.subr.mxu0 %v827
  %1446 = vmatpush1.msra.mxu0 %v826
  %1447 = vmatprep.subr.mxu0 %v819
  %1448 = vmatpush1.msra.mxu0 %v818
  %1449 = vmatprep.subr.mxu0 %v811
  %1450 = vmatpush1.msra.mxu0 %v810
  %1451 = vmatprep.subr.mxu0 %v803
  %1452 = vmatpush1.msra.mxu0 %v802
  %1453 = vmatprep.subr.mxu0 %v795
  %1454 = vmatpush1.msra.mxu0 %v794
  %1455 = vmatprep.subr.mxu0 %v787
  %1456 = vmatpush1.msra.mxu0 %v786
  %1457 = vmatprep.subr.mxu0 %v779
  %1458 = vmatpush1.msra.mxu0 %v778
  %1459 = vmatprep.subr.mxu0 %v1027
  %1460 = vmatpush2.msra.mxu0 %v1026
  %1461 = vmatprep.subr.mxu0 %v1019
  %1462 = vmatpush2.msra.mxu0 %v1018
  %1463 = vmatprep.subr.mxu0 %v1011
  %1464 = vmatpush2.msra.mxu0 %v1010
  %1465 = vmatprep.subr.mxu0 %v1003
  %1466 = vmatpush2.msra.mxu0 %v1002
  %1467 = vmatprep.subr.mxu0 %v995
  %1468 = vmatpush2.msra.mxu0 %v994
  %1469 = vmatprep.subr.mxu0 %v987
  %1470 = vmatpush2.msra.mxu0 %v986
  %1471 = vmatprep.subr.mxu0 %v979
  %1472 = vmatpush2.msra.mxu0 %v978
  %1473 = vmatprep.subr.mxu0 %v971
  %1474 = vmatpush2.msra.mxu0 %v970
  %1475 = vmatprep.subr.mxu0 %v963
  %1476 = vmatpush2.msra.mxu0 %v962
  %1477 = vmatprep.subr.mxu0 %v955
  %1478 = vmatpush2.msra.mxu0 %v954
  %1479 = vmatprep.subr.mxu0 %v947
  %1480 = vmatpush2.msra.mxu0 %v946
  %1481 = vmatprep.subr.mxu0 %v939
  %1482 = vmatpush2.msra.mxu0 %v938
  %1483 = vmatprep.subr.mxu0 %v931
  %1484 = vmatpush2.msra.mxu0 %v930
  %1485 = vmatprep.subr.mxu0 %v923
  %1486 = vmatpush2.msra.mxu0 %v922
  %1487 = vmatprep.subr.mxu0 %v915
  %1488 = vmatpush2.msra.mxu0 %v914
  %1489 = vmatprep.subr.mxu0 %v907
  %1490 = vmatpush2.msra.mxu0 %v906
  %1491 = vmatprep.mubr.f32.mxu0 %v517
  %1492 = vmatmul.mubr.f32.gmra.mxu0 %v516
  %v1493 = vpop.f32.mrf.mxu0
  %v1494 = vadd.f32 %v1423, %v1493
  %v1495 = vpop.f32.mrf.mxu0
  %v1496 = vadd.f32 %v1425, %v1495
  %1497 = vdwg.mxu0
  %1498 = vmatprep.subr.mxu0 %v645
  %1499 = vmatpush1.msra.mxu0 %v644
  %1500 = vmatprep.subr.mxu0 %v637
  %1501 = vmatpush1.msra.mxu0 %v636
  %1502 = vmatprep.subr.mxu0 %v629
  %1503 = vmatpush1.msra.mxu0 %v628
  %1504 = vmatprep.subr.mxu0 %v621
  %1505 = vmatpush1.msra.mxu0 %v620
  %1506 = vmatprep.subr.mxu0 %v613
  %1507 = vmatpush1.msra.mxu0 %v612
  %1508 = vmatprep.subr.mxu0 %v605
  %1509 = vmatpush1.msra.mxu0 %v604
  %1510 = vmatprep.subr.mxu0 %v597
  %1511 = vmatpush1.msra.mxu0 %v596
  %1512 = vmatprep.subr.mxu0 %v589
  %1513 = vmatpush1.msra.mxu0 %v588
  %1514 = vmatprep.subr.mxu0 %v581
  %1515 = vmatpush1.msra.mxu0 %v580
  %1516 = vmatprep.subr.mxu0 %v573
  %1517 = vmatpush1.msra.mxu0 %v572
  %1518 = vmatprep.subr.mxu0 %v565
  %1519 = vmatpush1.msra.mxu0 %v564
  %1520 = vmatprep.subr.mxu0 %v557
  %1521 = vmatpush1.msra.mxu0 %v556
  %1522 = vmatprep.subr.mxu0 %v549
  %1523 = vmatpush1.msra.mxu0 %v548
  %1524 = vmatprep.subr.mxu0 %v541
  %1525 = vmatpush1.msra.mxu0 %v540
  %1526 = vmatprep.subr.mxu0 %v533
  %1527 = vmatpush1.msra.mxu0 %v532
  %1528 = vmatprep.subr.mxu0 %v525
  %1529 = vmatpush1.msra.mxu0 %v524
  %1530 = vmatprep.subr.mxu0 %v773
  %1531 = vmatpush2.msra.mxu0 %v772
  %1532 = vmatprep.subr.mxu0 %v765
  %1533 = vmatpush2.msra.mxu0 %v764
  %1534 = vmatprep.subr.mxu0 %v757
  %1535 = vmatpush2.msra.mxu0 %v756
  %1536 = vmatprep.subr.mxu0 %v749
  %1537 = vmatpush2.msra.mxu0 %v748
  %1538 = vmatprep.subr.mxu0 %v741
  %1539 = vmatpush2.msra.mxu0 %v740
  %1540 = vmatprep.subr.mxu0 %v733
  %1541 = vmatpush2.msra.mxu0 %v732
  %1542 = vmatprep.subr.mxu0 %v725
  %1543 = vmatpush2.msra.mxu0 %v724
  %1544 = vmatprep.subr.mxu0 %v717
  %1545 = vmatpush2.msra.mxu0 %v716
  %1546 = vmatprep.subr.mxu0 %v709
  %1547 = vmatpush2.msra.mxu0 %v708
  %1548 = vmatprep.subr.mxu0 %v701
  %1549 = vmatpush2.msra.mxu0 %v700
  %1550 = vmatprep.subr.mxu0 %v693
  %1551 = vmatpush2.msra.mxu0 %v692
  %1552 = vmatprep.subr.mxu0 %v685
  %1553 = vmatpush2.msra.mxu0 %v684
  %1554 = vmatprep.subr.mxu0 %v677
  %1555 = vmatpush2.msra.mxu0 %v676
  %1556 = vmatprep.subr.mxu0 %v669
  %1557 = vmatpush2.msra.mxu0 %v668
  %1558 = vmatprep.subr.mxu0 %v661
  %1559 = vmatpush2.msra.mxu0 %v660
  %1560 = vmatprep.subr.mxu0 %v653
  %1561 = vmatpush2.msra.mxu0 %v652
  %1562 = vmatprep.mubr.f32.mxu0 %v515
  %1563 = vmatmul.mubr.f32.gmra.mxu0 %v514
  %v1564 = vpop.f32.mrf.mxu0
  %v1565 = vadd.f32 %v1059, %v1564
  %v1566 = vpop.f32.mrf.mxu0
  %v1567 = vadd.f32 %v1063, %v1566
  %1568 = vdwg.mxu0
  %1569 = vmatprep.subr.mxu0 %v901
  %1570 = vmatpush1.msra.mxu0 %v900
  %1571 = vmatprep.subr.mxu0 %v893
  %1572 = vmatpush1.msra.mxu0 %v892
  %1573 = vmatprep.subr.mxu0 %v885
  %1574 = vmatpush1.msra.mxu0 %v884
  %1575 = vmatprep.subr.mxu0 %v877
  %1576 = vmatpush1.msra.mxu0 %v876
  %1577 = vmatprep.subr.mxu0 %v869
  %1578 = vmatpush1.msra.mxu0 %v868
  %1579 = vmatprep.subr.mxu0 %v861
  %1580 = vmatpush1.msra.mxu0 %v860
  %1581 = vmatprep.subr.mxu0 %v853
  %1582 = vmatpush1.msra.mxu0 %v852
  %1583 = vmatprep.subr.mxu0 %v845
  %1584 = vmatpush1.msra.mxu0 %v844
  %1585 = vmatprep.subr.mxu0 %v837
  %1586 = vmatpush1.msra.mxu0 %v836
  %1587 = vmatprep.subr.mxu0 %v829
  %1588 = vmatpush1.msra.mxu0 %v828
  %1589 = vmatprep.subr.mxu0 %v821
  %1590 = vmatpush1.msra.mxu0 %v820
  %1591 = vmatprep.subr.mxu0 %v813
  %1592 = vmatpush1.msra.mxu0 %v812
  %1593 = vmatprep.subr.mxu0 %v805
  %1594 = vmatpush1.msra.mxu0 %v804
  %1595 = vmatprep.subr.mxu0 %v797
  %1596 = vmatpush1.msra.mxu0 %v796
  %1597 = vmatprep.subr.mxu0 %v789
  %1598 = vmatpush1.msra.mxu0 %v788
  %1599 = vmatprep.subr.mxu0 %v781
  %1600 = vmatpush1.msra.mxu0 %v780
  %1601 = vmatprep.subr.mxu0 %v1029
  %1602 = vmatpush2.msra.mxu0 %v1028
  %1603 = vmatprep.subr.mxu0 %v1021
  %1604 = vmatpush2.msra.mxu0 %v1020
  %1605 = vmatprep.subr.mxu0 %v1013
  %1606 = vmatpush2.msra.mxu0 %v1012
  %1607 = vmatprep.subr.mxu0 %v1005
  %1608 = vmatpush2.msra.mxu0 %v1004
  %1609 = vmatprep.subr.mxu0 %v997
  %1610 = vmatpush2.msra.mxu0 %v996
  %1611 = vmatprep.subr.mxu0 %v989
  %1612 = vmatpush2.msra.mxu0 %v988
  %1613 = vmatprep.subr.mxu0 %v981
  %1614 = vmatpush2.msra.mxu0 %v980
  %1615 = vmatprep.subr.mxu0 %v973
  %1616 = vmatpush2.msra.mxu0 %v972
  %1617 = vmatprep.subr.mxu0 %v965
  %1618 = vmatpush2.msra.mxu0 %v964
  %1619 = vmatprep.subr.mxu0 %v957
  %1620 = vmatpush2.msra.mxu0 %v956
  %1621 = vmatprep.subr.mxu0 %v949
  %1622 = vmatpush2.msra.mxu0 %v948
  %1623 = vmatprep.subr.mxu0 %v941
  %1624 = vmatpush2.msra.mxu0 %v940
  %1625 = vmatprep.subr.mxu0 %v933
  %1626 = vmatpush2.msra.mxu0 %v932
  %1627 = vmatprep.subr.mxu0 %v925
  %1628 = vmatpush2.msra.mxu0 %v924
  %1629 = vmatprep.subr.mxu0 %v917
  %1630 = vmatpush2.msra.mxu0 %v916
  %1631 = vmatprep.subr.mxu0 %v909
  %1632 = vmatpush2.msra.mxu0 %v908
  %1633 = vmatprep.mubr.f32.mxu0 %v517
  %1634 = vmatmul.mubr.f32.gmra.mxu0 %v516
  %v1635 = vpop.f32.mrf.mxu0
  %v1636 = vadd.f32 %v1565, %v1635
  %v1637 = vpop.f32.mrf.mxu0
  %v1638 = vadd.f32 %v1567, %v1637
  %1639 = vdwg.mxu0
  %v1640 = vmax.f32 %v1210, 0.0
  %v1641 = vmax.f32 %v1212, 0.0
  %v1642 = vmax.f32 %v1352, 0.0
  %v1643 = vmax.f32 %v1354, 0.0
  %v1644 = vmax.f32 %v1494, 0.0
  %v1645 = vmax.f32 %v1496, 0.0
  %v1646 = vmax.f32 %v1636, 0.0
  %v1647 = vmax.f32 %v1638, 0.0
  %v1656 = vcombine.low %v1640, %v1641
  %v1657 = vcombine.low %v1642, %v1643
  %v1659 = vunpack.c.l.s4 1983009808
  %v1660 = vunpack.c.0.s8 %v1659
  %v1661 = vlaneseq
  %v1662 = vshrl.u32 %v1661, 7
  %v1663 = vsub.s32 %v1660, %v1662
  %v1664 = vrot.slane %v1656, %v1663
  %v1666 = vunpack.c.l.s4 1983009808
  %v1667 = vunpack.c.0.s8 %v1666
  %v1668 = vlaneseq
  %v1669 = vshrl.u32 %v1668, 7
  %v1670 = vsub.s32 %v1667, %v1669
  %v1671 = vrot.slane %v1657, %v1670
  %v1672 = vcombine.low %v1664, %v1671
  %v1673 = vcombine.low %v1644, %v1645
  %v1674 = vcombine.low %v1646, %v1647
  %v1676 = vunpack.c.l.s4 1983009808
  %v1677 = vunpack.c.0.s8 %v1676
  %v1678 = vlaneseq
  %v1679 = vshrl.u32 %v1678, 7
  %v1680 = vsub.s32 %v1677, %v1679
  %v1681 = vrot.slane %v1673, %v1680
  %v1683 = vunpack.c.l.s4 1983009808
  %v1684 = vunpack.c.0.s8 %v1683
  %v1685 = vlaneseq
  %v1686 = vshrl.u32 %v1685, 7
  %v1687 = vsub.s32 %v1684, %v1686
  %v1688 = vrot.slane %v1674, %v1687
  %v1689 = vcombine.low %v1681, %v1688
  %1692 = vst [vmem:[%s5] sm:$0xff] %v1672
  %1693 = vst [vmem:[%s5 + $0x8] sm:$0xff] %v1689
  // Predicated region
  $region22: #{forward.6} parent=0 // pred_check
    _
  $region23: #{forward.6} parent=0 // pred_check_branch
    %1695 = sbr.rel (0) target = $region25
  $region24: #{forward.6} parent=0 // pred_region
    _
  $region25: #{forward.6} parent=0 // pred_fallthru
    _
  // Predicated region
  $region26: #{forward.6} parent=0 // pred_check
    _
  $region27: #{forward.6} parent=0 // pred_check_branch
    %1697 = sbr.rel (0) target = $region29
  $region28: #{forward.6} parent=0 // pred_region
    _
  $region29: #{forward.6} parent=0 // pred_fallthru
    _

// kernel: forward.11
$region0: #{forward.11}
  #allocation0 [shape = 'u32[]', space=smem, size = 0x4, offset = 0x4, fixed_abs, tag = 'smem constant byte address 0x4 - core index']
  #allocation1 [shape = 'u32[144,128]{1,0:T(1,128)}', space=vmem, size = 0x12000, scoped, tag = 'internal scratch']
  %s0 = inlined_call_operand.vmem [shape: f32[2,1024], index: 0, kind: input, shape index: {}]
  %s1 = inlined_call_operand.vmem [shape: f32[2,128], index: 1, kind: input, shape index: {}]
  %s2 = inlined_call_operand.vmem [shape: f32[1024,512], index: 2, kind: input, shape index: {}]
  %s3 = inlined_call_operand.vmem [shape: f32[128,512], index: 3, kind: input, shape index: {}]
  %s4 = inlined_call_operand.vmem [shape: f32[1,512], index: 4, kind: input, shape index: {}]
  %s5 = inlined_call_operand.vmem [shape: f32[512,1024], index: 5, kind: input, shape index: {}]
  %s6 = inlined_call_operand.vmem [shape: f32[1,1024], index: 6, kind: input, shape index: {}]
  %s7 = inlined_call_operand.vmem [shape: f32[1024,2], index: 7, kind: input, shape index: {}]
  %s8 = inlined_call_operand.vmem [shape: f32[1,2], index: 8, kind: input, shape index: {}]
  %s9 = inlined_call_operand.hbm [shape: f32[2,2], index: 9, kind: output, shape index: {}]
  %s10 = sld [smem:[#allocation0]]
  $region46: #{forward.11} parent=0
    _
  %s12 = ssub.s32 1, %s10
  %s13 = scalar_select 0, %s12, %s10
  $region1: #{forward.11} parent=0
    #allocation2 [shape = 'u8[1024]{0}', space=vmem, size = 0x400, scoped, tag = 'output window, operand 0, single buffered']
    #allocation3 [shape = 's32[1]{0}', space=sflag, size = 0x4, scoped, tag = 'scoped memory for forward.11']
    %14 = vsyncpa [#allocation3], 0
    // Predicated region
    $region2: #{forward.11} parent=1 // pred_check
      _
    $region3: #{forward.11} parent=1 // pred_check_branch
      %16 = sbr.rel (0) target = $region5
    $region4: #{forward.11} parent=1 // pred_region
      _
    $region5: #{forward.11} parent=1 // pred_fallthru
      _
    // Predicated region
    $region6: #{forward.11} parent=1 // pred_check
      _
    $region7: #{forward.11} parent=1 // pred_check_branch
      %18 = sbr.rel (0) target = $region9
    $region8: #{forward.11} parent=1 // pred_region
      _
    $region9: #{forward.11} parent=1 // pred_fallthru
      _
    // Predicated region
    $region10: #{forward.11} parent=1 // pred_check
      _
    $region11: #{forward.11} parent=1 // pred_check_branch
      %20 = sbr.rel (0) target = $region13
    $region12: #{forward.11} parent=1 // pred_region
      _
    $region13: #{forward.11} parent=1 // pred_fallthru
      _
    // Predicated region
    $region14: #{forward.11} parent=1 // pred_check
      _
    $region15: #{forward.11} parent=1 // pred_check_branch
      %22 = sbr.rel (0) target = $region17
    $region16: #{forward.11} parent=1 // pred_region
      _
    $region17: #{forward.11} parent=1 // pred_fallthru
      _
    // Predicated region
    $region18: #{forward.11} parent=1 // pred_check
      _
    $region19: #{forward.11} parent=1 // pred_check_branch
      %24 = sbr.rel (0) target = $region21
    $region20: #{forward.11} parent=1 // pred_region
      _
    $region21: #{forward.11} parent=1 // pred_fallthru
      _
    // Predicated region
    $region22: #{forward.11} parent=1 // pred_check
      _
    $region23: #{forward.11} parent=1 // pred_check_branch
      %26 = sbr.rel (0) target = $region25
    $region24: #{forward.11} parent=1 // pred_region
      _
    $region25: #{forward.11} parent=1 // pred_fallthru
      _
    // Predicated region
    $region26: #{forward.11} parent=1 // pred_check
      _
    $region27: #{forward.11} parent=1 // pred_check_branch
      %28 = sbr.rel (0) target = $region29
    $region28: #{forward.11} parent=1 // pred_region
      _
    $region29: #{forward.11} parent=1 // pred_fallthru
      _
    // Predicated region
    $region30: #{forward.11} parent=1 // pred_check
      _
    $region31: #{forward.11} parent=1 // pred_check_branch
      %30 = sbr.rel (0) target = $region33
    $region32: #{forward.11} parent=1 // pred_region
      _
    $region33: #{forward.11} parent=1 // pred_fallthru
      _
    // Predicated region
    $region34: #{forward.11} parent=1 // pred_check
      _
    $region35: #{forward.11} parent=1 // pred_check_branch
      %32 = sbr.rel (0) target = $region37
    $region36: #{forward.11} parent=1 // pred_region
      _
    $region37: #{forward.11} parent=1 // pred_fallthru
      _
    %v33 = vld [vmem:[%s0] sm:$0xff]
    %v34 = vld [vmem:[%s0 + $0x8] sm:$0xff]
    %v35 = vld [vmem:[%s2] sm:$0xff]
    %v36 = vld [vmem:[%s2 + $0x8] sm:$0xff]
    %v37 = vld [vmem:[%s2 + $0x10] sm:$0xff]
    %v38 = vld [vmem:[%s2 + $0x18] sm:$0xff]
    %v39 = vld [vmem:[%s2 + $0x20] sm:$0xff]
    %v40 = vld [vmem:[%s2 + $0x28] sm:$0xff]
    %v41 = vld [vmem:[%s2 + $0x30] sm:$0xff]
    %v42 = vld [vmem:[%s2 + $0x38] sm:$0xff]
    %v43 = vld [vmem:[%s2 + $0x40] sm:$0xff]
    %v44 = vld [vmem:[%s2 + $0x48] sm:$0xff]
    %v45 = vld [vmem:[%s2 + $0x50] sm:$0xff]
    %v46 = vld [vmem:[%s2 + $0x58] sm:$0xff]
    %v47 = vld [vmem:[%s2 + $0x60] sm:$0xff]
    %v48 = vld [vmem:[%s2 + $0x68] sm:$0xff]
    %v49 = vld [vmem:[%s2 + $0x70] sm:$0xff]
    %v50 = vld [vmem:[%s2 + $0x78] sm:$0xff]
    %v51 = vld [vmem:[%s2 + $0x80] sm:$0xff]
    %v52 = vld [vmem:[%s2 + $0x88] sm:$0xff]
    %v53 = vld [vmem:[%s2 + $0x90] sm:$0xff]
    %v54 = vld [vmem:[%s2 + $0x98] sm:$0xff]
    %v55 = vld [vmem:[%s2 + $0xa0] sm:$0xff]
    %v56 = vld [vmem:[%s2 + $0xa8] sm:$0xff]
    %v57 = vld [vmem:[%s2 + $0xb0] sm:$0xff]
    %v58 = vld [vmem:[%s2 + $0xb8] sm:$0xff]
    %v59 = vld [vmem:[%s2 + $0xc0] sm:$0xff]
    %v60 = vld [vmem:[%s2 + $0xc8] sm:$0xff]
    %v61 = vld [vmem:[%s2 + $0xd0] sm:$0xff]
    %v62 = vld [vmem:[%s2 + $0xd8] sm:$0xff]
    %v63 = vld [vmem:[%s2 + $0xe0] sm:$0xff]
    %v64 = vld [vmem:[%s2 + $0xe8] sm:$0xff]
    %v65 = vld [vmem:[%s2 + $0xf0] sm:$0xff]
    %v66 = vld [vmem:[%s2 + $0xf8] sm:$0xff]
    %v67 = vld [vmem:[%s2 + $0x100] sm:$0xff]
    %v68 = vld [vmem:[%s2 + $0x108] sm:$0xff]
    %v69 = vld [vmem:[%s2 + $0x110] sm:$0xff]
    %v70 = vld [vmem:[%s2 + $0x118] sm:$0xff]
    %v71 = vld [vmem:[%s2 + $0x120] sm:$0xff]
    %v72 = vld [vmem:[%s2 + $0x128] sm:$0xff]
    %v73 = vld [vmem:[%s2 + $0x130] sm:$0xff]
    %v74 = vld [vmem:[%s2 + $0x138] sm:$0xff]
    %v75 = vld [vmem:[%s2 + $0x140] sm:$0xff]
    %v76 = vld [vmem:[%s2 + $0x148] sm:$0xff]
    %v77 = vld [vmem:[%s2 + $0x150] sm:$0xff]
    %v78 = vld [vmem:[%s2 + $0x158] sm:$0xff]
    %v79 = vld [vmem:[%s2 + $0x160] sm:$0xff]
    %v80 = vld [vmem:[%s2 + $0x168] sm:$0xff]
    %v81 = vld [vmem:[%s2 + $0x170] sm:$0xff]
    %v82 = vld [vmem:[%s2 + $0x178] sm:$0xff]
    %v83 = vld [vmem:[%s2 + $0x180] sm:$0xff]
    %v84 = vld [vmem:[%s2 + $0x188] sm:$0xff]
    %v85 = vld [vmem:[%s2 + $0x190] sm:$0xff]
    %v86 = vld [vmem:[%s2 + $0x198] sm:$0xff]
    %v87 = vld [vmem:[%s2 + $0x1a0] sm:$0xff]
    %v88 = vld [vmem:[%s2 + $0x1a8] sm:$0xff]
    %v89 = vld [vmem:[%s2 + $0x1b0] sm:$0xff]
    %v90 = vld [vmem:[%s2 + $0x1b8] sm:$0xff]
    %v91 = vld [vmem:[%s2 + $0x1c0] sm:$0xff]
    %v92 = vld [vmem:[%s2 + $0x1c8] sm:$0xff]
    %v93 = vld [vmem:[%s2 + $0x1d0] sm:$0xff]
    %v94 = vld [vmem:[%s2 + $0x1d8] sm:$0xff]
    %v95 = vld [vmem:[%s2 + $0x1e0] sm:$0xff]
    %v96 = vld [vmem:[%s2 + $0x1e8] sm:$0xff]
    %v97 = vld [vmem:[%s2 + $0x1f0] sm:$0xff]
    %v98 = vld [vmem:[%s2 + $0x1f8] sm:$0xff]
    %v99 = vld [vmem:[%s2 + $0x200] sm:$0xff]
    %v100 = vld [vmem:[%s2 + $0x208] sm:$0xff]
    %v101 = vld [vmem:[%s2 + $0x210] sm:$0xff]
    %v102 = vld [vmem:[%s2 + $0x218] sm:$0xff]
    %v103 = vld [vmem:[%s2 + $0x220] sm:$0xff]
    %v104 = vld [vmem:[%s2 + $0x228] sm:$0xff]
    %v105 = vld [vmem:[%s2 + $0x230] sm:$0xff]
    %v106 = vld [vmem:[%s2 + $0x238] sm:$0xff]
    %v107 = vld [vmem:[%s2 + $0x240] sm:$0xff]
    %v108 = vld [vmem:[%s2 + $0x248] sm:$0xff]
    %v109 = vld [vmem:[%s2 + $0x250] sm:$0xff]
    %v110 = vld [vmem:[%s2 + $0x258] sm:$0xff]
    %v111 = vld [vmem:[%s2 + $0x260] sm:$0xff]
    %v112 = vld [vmem:[%s2 + $0x268] sm:$0xff]
    %v113 = vld [vmem:[%s2 + $0x270] sm:$0xff]
    %v114 = vld [vmem:[%s2 + $0x278] sm:$0xff]
    %v115 = vld [vmem:[%s2 + $0x280] sm:$0xff]
    %v116 = vld [vmem:[%s2 + $0x288] sm:$0xff]
    %v117 = vld [vmem:[%s2 + $0x290] sm:$0xff]
    %v118 = vld [vmem:[%s2 + $0x298] sm:$0xff]
    %v119 = vld [vmem:[%s2 + $0x2a0] sm:$0xff]
    %v120 = vld [vmem:[%s2 + $0x2a8] sm:$0xff]
    %v121 = vld [vmem:[%s2 + $0x2b0] sm:$0xff]
    %v122 = vld [vmem:[%s2 + $0x2b8] sm:$0xff]
    %v123 = vld [vmem:[%s2 + $0x2c0] sm:$0xff]
    %v124 = vld [vmem:[%s2 + $0x2c8] sm:$0xff]
    %v125 = vld [vmem:[%s2 + $0x2d0] sm:$0xff]
    %v126 = vld [vmem:[%s2 + $0x2d8] sm:$0xff]
    %v127 = vld [vmem:[%s2 + $0x2e0] sm:$0xff]
    %v128 = vld [vmem:[%s2 + $0x2e8] sm:$0xff]
    %v129 = vld [vmem:[%s2 + $0x2f0] sm:$0xff]
    %v130 = vld [vmem:[%s2 + $0x2f8] sm:$0xff]
    %v131 = vld [vmem:[%s2 + $0x300] sm:$0xff]
    %v132 = vld [vmem:[%s2 + $0x308] sm:$0xff]
    %v133 = vld [vmem:[%s2 + $0x310] sm:$0xff]
    %v134 = vld [vmem:[%s2 + $0x318] sm:$0xff]
    %v135 = vld [vmem:[%s2 + $0x320] sm:$0xff]
    %v136 = vld [vmem:[%s2 + $0x328] sm:$0xff]
    %v137 = vld [vmem:[%s2 + $0x330] sm:$0xff]
    %v138 = vld [vmem:[%s2 + $0x338] sm:$0xff]
    %v139 = vld [vmem:[%s2 + $0x340] sm:$0xff]
    %v140 = vld [vmem:[%s2 + $0x348] sm:$0xff]
    %v141 = vld [vmem:[%s2 + $0x350] sm:$0xff]
    %v142 = vld [vmem:[%s2 + $0x358] sm:$0xff]
    %v143 = vld [vmem:[%s2 + $0x360] sm:$0xff]
    %v144 = vld [vmem:[%s2 + $0x368] sm:$0xff]
    %v145 = vld [vmem:[%s2 + $0x370] sm:$0xff]
    %v146 = vld [vmem:[%s2 + $0x378] sm:$0xff]
    %v147 = vld [vmem:[%s2 + $0x380] sm:$0xff]
    %v148 = vld [vmem:[%s2 + $0x388] sm:$0xff]
    %v149 = vld [vmem:[%s2 + $0x390] sm:$0xff]
    %v150 = vld [vmem:[%s2 + $0x398] sm:$0xff]
    %v151 = vld [vmem:[%s2 + $0x3a0] sm:$0xff]
    %v152 = vld [vmem:[%s2 + $0x3a8] sm:$0xff]
    %v153 = vld [vmem:[%s2 + $0x3b0] sm:$0xff]
    %v154 = vld [vmem:[%s2 + $0x3b8] sm:$0xff]
    %v155 = vld [vmem:[%s2 + $0x3c0] sm:$0xff]
    %v156 = vld [vmem:[%s2 + $0x3c8] sm:$0xff]
    %v157 = vld [vmem:[%s2 + $0x3d0] sm:$0xff]
    %v158 = vld [vmem:[%s2 + $0x3d8] sm:$0xff]
    %v159 = vld [vmem:[%s2 + $0x3e0] sm:$0xff]
    %v160 = vld [vmem:[%s2 + $0x3e8] sm:$0xff]
    %v161 = vld [vmem:[%s2 + $0x3f0] sm:$0xff]
    %v162 = vld [vmem:[%s2 + $0x3f8] sm:$0xff]
    %v163 = vld [vmem:[%s2 + $0x400] sm:$0xff]
    %v164 = vld [vmem:[%s2 + $0x408] sm:$0xff]
    %v165 = vld [vmem:[%s2 + $0x410] sm:$0xff]
    %v166 = vld [vmem:[%s2 + $0x418] sm:$0xff]
    %v167 = vld [vmem:[%s2 + $0x420] sm:$0xff]
    %v168 = vld [vmem:[%s2 + $0x428] sm:$0xff]
    %v169 = vld [vmem:[%s2 + $0x430] sm:$0xff]
    %v170 = vld [vmem:[%s2 + $0x438] sm:$0xff]
    %v171 = vld [vmem:[%s2 + $0x440] sm:$0xff]
    %v172 = vld [vmem:[%s2 + $0x448] sm:$0xff]
    %v173 = vld [vmem:[%s2 + $0x450] sm:$0xff]
    %v174 = vld [vmem:[%s2 + $0x458] sm:$0xff]
    %v175 = vld [vmem:[%s2 + $0x460] sm:$0xff]
    %v176 = vld [vmem:[%s2 + $0x468] sm:$0xff]
    %v177 = vld [vmem:[%s2 + $0x470] sm:$0xff]
    %v178 = vld [vmem:[%s2 + $0x478] sm:$0xff]
    %v179 = vld [vmem:[%s2 + $0x480] sm:$0xff]
    %v180 = vld [vmem:[%s2 + $0x488] sm:$0xff]
    %v181 = vld [vmem:[%s2 + $0x490] sm:$0xff]
    %v182 = vld [vmem:[%s2 + $0x498] sm:$0xff]
    %v183 = vld [vmem:[%s2 + $0x4a0] sm:$0xff]
    %v184 = vld [vmem:[%s2 + $0x4a8] sm:$0xff]
    %v185 = vld [vmem:[%s2 + $0x4b0] sm:$0xff]
    %v186 = vld [vmem:[%s2 + $0x4b8] sm:$0xff]
    %v187 = vld [vmem:[%s2 + $0x4c0] sm:$0xff]
    %v188 = vld [vmem:[%s2 + $0x4c8] sm:$0xff]
    %v189 = vld [vmem:[%s2 + $0x4d0] sm:$0xff]
    %v190 = vld [vmem:[%s2 + $0x4d8] sm:$0xff]
    %v191 = vld [vmem:[%s2 + $0x4e0] sm:$0xff]
    %v192 = vld [vmem:[%s2 + $0x4e8] sm:$0xff]
    %v193 = vld [vmem:[%s2 + $0x4f0] sm:$0xff]
    %v194 = vld [vmem:[%s2 + $0x4f8] sm:$0xff]
    %v195 = vld [vmem:[%s2 + $0x500] sm:$0xff]
    %v196 = vld [vmem:[%s2 + $0x508] sm:$0xff]
    %v197 = vld [vmem:[%s2 + $0x510] sm:$0xff]
    %v198 = vld [vmem:[%s2 + $0x518] sm:$0xff]
    %v199 = vld [vmem:[%s2 + $0x520] sm:$0xff]
    %v200 = vld [vmem:[%s2 + $0x528] sm:$0xff]
    %v201 = vld [vmem:[%s2 + $0x530] sm:$0xff]
    %v202 = vld [vmem:[%s2 + $0x538] sm:$0xff]
    %v203 = vld [vmem:[%s2 + $0x540] sm:$0xff]
    %v204 = vld [vmem:[%s2 + $0x548] sm:$0xff]
    %v205 = vld [vmem:[%s2 + $0x550] sm:$0xff]
    %v206 = vld [vmem:[%s2 + $0x558] sm:$0xff]
    %v207 = vld [vmem:[%s2 + $0x560] sm:$0xff]
    %v208 = vld [vmem:[%s2 + $0x568] sm:$0xff]
    %v209 = vld [vmem:[%s2 + $0x570] sm:$0xff]
    %v210 = vld [vmem:[%s2 + $0x578] sm:$0xff]
    %v211 = vld [vmem:[%s2 + $0x580] sm:$0xff]
    %v212 = vld [vmem:[%s2 + $0x588] sm:$0xff]
    %v213 = vld [vmem:[%s2 + $0x590] sm:$0xff]
    %v214 = vld [vmem:[%s2 + $0x598] sm:$0xff]
    %v215 = vld [vmem:[%s2 + $0x5a0] sm:$0xff]
    %v216 = vld [vmem:[%s2 + $0x5a8] sm:$0xff]
    %v217 = vld [vmem:[%s2 + $0x5b0] sm:$0xff]
    %v218 = vld [vmem:[%s2 + $0x5b8] sm:$0xff]
    %v219 = vld [vmem:[%s2 + $0x5c0] sm:$0xff]
    %v220 = vld [vmem:[%s2 + $0x5c8] sm:$0xff]
    %v221 = vld [vmem:[%s2 + $0x5d0] sm:$0xff]
    %v222 = vld [vmem:[%s2 + $0x5d8] sm:$0xff]
    %v223 = vld [vmem:[%s2 + $0x5e0] sm:$0xff]
    %v224 = vld [vmem:[%s2 + $0x5e8] sm:$0xff]
    %v225 = vld [vmem:[%s2 + $0x5f0] sm:$0xff]
    %v226 = vld [vmem:[%s2 + $0x5f8] sm:$0xff]
    %v227 = vld [vmem:[%s2 + $0x600] sm:$0xff]
    %v228 = vld [vmem:[%s2 + $0x608] sm:$0xff]
    %v229 = vld [vmem:[%s2 + $0x610] sm:$0xff]
    %v230 = vld [vmem:[%s2 + $0x618] sm:$0xff]
    %v231 = vld [vmem:[%s2 + $0x620] sm:$0xff]
    %v232 = vld [vmem:[%s2 + $0x628] sm:$0xff]
    %v233 = vld [vmem:[%s2 + $0x630] sm:$0xff]
    %v234 = vld [vmem:[%s2 + $0x638] sm:$0xff]
    %v235 = vld [vmem:[%s2 + $0x640] sm:$0xff]
    %v236 = vld [vmem:[%s2 + $0x648] sm:$0xff]
    %v237 = vld [vmem:[%s2 + $0x650] sm:$0xff]
    %v238 = vld [vmem:[%s2 + $0x658] sm:$0xff]
    %v239 = vld [vmem:[%s2 + $0x660] sm:$0xff]
    %v240 = vld [vmem:[%s2 + $0x668] sm:$0xff]
    %v241 = vld [vmem:[%s2 + $0x670] sm:$0xff]
    %v242 = vld [vmem:[%s2 + $0x678] sm:$0xff]
    %v243 = vld [vmem:[%s2 + $0x680] sm:$0xff]
    %v244 = vld [vmem:[%s2 + $0x688] sm:$0xff]
    %v245 = vld [vmem:[%s2 + $0x690] sm:$0xff]
    %v246 = vld [vmem:[%s2 + $0x698] sm:$0xff]
    %v247 = vld [vmem:[%s2 + $0x6a0] sm:$0xff]
    %v248 = vld [vmem:[%s2 + $0x6a8] sm:$0xff]
    %v249 = vld [vmem:[%s2 + $0x6b0] sm:$0xff]
    %v250 = vld [vmem:[%s2 + $0x6b8] sm:$0xff]
    %v251 = vld [vmem:[%s2 + $0x6c0] sm:$0xff]
    %v252 = vld [vmem:[%s2 + $0x6c8] sm:$0xff]
    %v253 = vld [vmem:[%s2 + $0x6d0] sm:$0xff]
    %v254 = vld [vmem:[%s2 + $0x6d8] sm:$0xff]
    %v255 = vld [vmem:[%s2 + $0x6e0] sm:$0xff]
    %v256 = vld [vmem:[%s2 + $0x6e8] sm:$0xff]
    %v257 = vld [vmem:[%s2 + $0x6f0] sm:$0xff]
    %v258 = vld [vmem:[%s2 + $0x6f8] sm:$0xff]
    %v259 = vld [vmem:[%s2 + $0x700] sm:$0xff]
    %v260 = vld [vmem:[%s2 + $0x708] sm:$0xff]
    %v261 = vld [vmem:[%s2 + $0x710] sm:$0xff]
    %v262 = vld [vmem:[%s2 + $0x718] sm:$0xff]
    %v263 = vld [vmem:[%s2 + $0x720] sm:$0xff]
    %v264 = vld [vmem:[%s2 + $0x728] sm:$0xff]
    %v265 = vld [vmem:[%s2 + $0x730] sm:$0xff]
    %v266 = vld [vmem:[%s2 + $0x738] sm:$0xff]
    %v267 = vld [vmem:[%s2 + $0x740] sm:$0xff]
    %v268 = vld [vmem:[%s2 + $0x748] sm:$0xff]
    %v269 = vld [vmem:[%s2 + $0x750] sm:$0xff]
    %v270 = vld [vmem:[%s2 + $0x758] sm:$0xff]
    %v271 = vld [vmem:[%s2 + $0x760] sm:$0xff]
    %v272 = vld [vmem:[%s2 + $0x768] sm:$0xff]
    %v273 = vld [vmem:[%s2 + $0x770] sm:$0xff]
    %v274 = vld [vmem:[%s2 + $0x778] sm:$0xff]
    %v275 = vld [vmem:[%s2 + $0x780] sm:$0xff]
    %v276 = vld [vmem:[%s2 + $0x788] sm:$0xff]
    %v277 = vld [vmem:[%s2 + $0x790] sm:$0xff]
    %v278 = vld [vmem:[%s2 + $0x798] sm:$0xff]
    %v279 = vld [vmem:[%s2 + $0x7a0] sm:$0xff]
    %v280 = vld [vmem:[%s2 + $0x7a8] sm:$0xff]
    %v281 = vld [vmem:[%s2 + $0x7b0] sm:$0xff]
    %v282 = vld [vmem:[%s2 + $0x7b8] sm:$0xff]
    %v283 = vld [vmem:[%s2 + $0x7c0] sm:$0xff]
    %v284 = vld [vmem:[%s2 + $0x7c8] sm:$0xff]
    %v285 = vld [vmem:[%s2 + $0x7d0] sm:$0xff]
    %v286 = vld [vmem:[%s2 + $0x7d8] sm:$0xff]
    %v287 = vld [vmem:[%s2 + $0x7e0] sm:$0xff]
    %v288 = vld [vmem:[%s2 + $0x7e8] sm:$0xff]
    %v289 = vld [vmem:[%s2 + $0x7f0] sm:$0xff]
    %v290 = vld [vmem:[%s2 + $0x7f8] sm:$0xff]
    %v291 = vld [vmem:[%s2 + $0x800] sm:$0xff]
    %v292 = vld [vmem:[%s2 + $0x808] sm:$0xff]
    %v293 = vld [vmem:[%s2 + $0x810] sm:$0xff]
    %v294 = vld [vmem:[%s2 + $0x818] sm:$0xff]
    %v295 = vld [vmem:[%s2 + $0x820] sm:$0xff]
    %v296 = vld [vmem:[%s2 + $0x828] sm:$0xff]
    %v297 = vld [vmem:[%s2 + $0x830] sm:$0xff]
    %v298 = vld [vmem:[%s2 + $0x838] sm:$0xff]
    %v299 = vld [vmem:[%s2 + $0x840] sm:$0xff]
    %v300 = vld [vmem:[%s2 + $0x848] sm:$0xff]
    %v301 = vld [vmem:[%s2 + $0x850] sm:$0xff]
    %v302 = vld [vmem:[%s2 + $0x858] sm:$0xff]
    %v303 = vld [vmem:[%s2 + $0x860] sm:$0xff]
    %v304 = vld [vmem:[%s2 + $0x868] sm:$0xff]
    %v305 = vld [vmem:[%s2 + $0x870] sm:$0xff]
    %v306 = vld [vmem:[%s2 + $0x878] sm:$0xff]
    %v307 = vld [vmem:[%s2 + $0x880] sm:$0xff]
    %v308 = vld [vmem:[%s2 + $0x888] sm:$0xff]
    %v309 = vld [vmem:[%s2 + $0x890] sm:$0xff]
    %v310 = vld [vmem:[%s2 + $0x898] sm:$0xff]
    %v311 = vld [vmem:[%s2 + $0x8a0] sm:$0xff]
    %v312 = vld [vmem:[%s2 + $0x8a8] sm:$0xff]
    %v313 = vld [vmem:[%s2 + $0x8b0] sm:$0xff]
    %v314 = vld [vmem:[%s2 + $0x8b8] sm:$0xff]
    %v315 = vld [vmem:[%s2 + $0x8c0] sm:$0xff]
    %v316 = vld [vmem:[%s2 + $0x8c8] sm:$0xff]
    %v317 = vld [vmem:[%s2 + $0x8d0] sm:$0xff]
    %v318 = vld [vmem:[%s2 + $0x8d8] sm:$0xff]
    %v319 = vld [vmem:[%s2 + $0x8e0] sm:$0xff]
    %v320 = vld [vmem:[%s2 + $0x8e8] sm:$0xff]
    %v321 = vld [vmem:[%s2 + $0x8f0] sm:$0xff]
    %v322 = vld [vmem:[%s2 + $0x8f8] sm:$0xff]
    %v323 = vld [vmem:[%s2 + $0x900] sm:$0xff]
    %v324 = vld [vmem:[%s2 + $0x908] sm:$0xff]
    %v325 = vld [vmem:[%s2 + $0x910] sm:$0xff]
    %v326 = vld [vmem:[%s2 + $0x918] sm:$0xff]
    %v327 = vld [vmem:[%s2 + $0x920] sm:$0xff]
    %v328 = vld [vmem:[%s2 + $0x928] sm:$0xff]
    %v329 = vld [vmem:[%s2 + $0x930] sm:$0xff]
    %v330 = vld [vmem:[%s2 + $0x938] sm:$0xff]
    %v331 = vld [vmem:[%s2 + $0x940] sm:$0xff]
    %v332 = vld [vmem:[%s2 + $0x948] sm:$0xff]
    %v333 = vld [vmem:[%s2 + $0x950] sm:$0xff]
    %v334 = vld [vmem:[%s2 + $0x958] sm:$0xff]
    %v335 = vld [vmem:[%s2 + $0x960] sm:$0xff]
    %v336 = vld [vmem:[%s2 + $0x968] sm:$0xff]
    %v337 = vld [vmem:[%s2 + $0x970] sm:$0xff]
    %v338 = vld [vmem:[%s2 + $0x978] sm:$0xff]
    %v339 = vld [vmem:[%s2 + $0x980] sm:$0xff]
    %v340 = vld [vmem:[%s2 + $0x988] sm:$0xff]
    %v341 = vld [vmem:[%s2 + $0x990] sm:$0xff]
    %v342 = vld [vmem:[%s2 + $0x998] sm:$0xff]
    %v343 = vld [vmem:[%s2 + $0x9a0] sm:$0xff]
    %v344 = vld [vmem:[%s2 + $0x9a8] sm:$0xff]
    %v345 = vld [vmem:[%s2 + $0x9b0] sm:$0xff]
    %v346 = vld [vmem:[%s2 + $0x9b8] sm:$0xff]
    %v347 = vld [vmem:[%s2 + $0x9c0] sm:$0xff]
    %v348 = vld [vmem:[%s2 + $0x9c8] sm:$0xff]
    %v349 = vld [vmem:[%s2 + $0x9d0] sm:$0xff]
    %v350 = vld [vmem:[%s2 + $0x9d8] sm:$0xff]
    %v351 = vld [vmem:[%s2 + $0x9e0] sm:$0xff]
    %v352 = vld [vmem:[%s2 + $0x9e8] sm:$0xff]
    %v353 = vld [vmem:[%s2 + $0x9f0] sm:$0xff]
    %v354 = vld [vmem:[%s2 + $0x9f8] sm:$0xff]
    %v355 = vld [vmem:[%s2 + $0xa00] sm:$0xff]
    %v356 = vld [vmem:[%s2 + $0xa08] sm:$0xff]
    %v357 = vld [vmem:[%s2 + $0xa10] sm:$0xff]
    %v358 = vld [vmem:[%s2 + $0xa18] sm:$0xff]
    %v359 = vld [vmem:[%s2 + $0xa20] sm:$0xff]
    %v360 = vld [vmem:[%s2 + $0xa28] sm:$0xff]
    %v361 = vld [vmem:[%s2 + $0xa30] sm:$0xff]
    %v362 = vld [vmem:[%s2 + $0xa38] sm:$0xff]
    %v363 = vld [vmem:[%s2 + $0xa40] sm:$0xff]
    %v364 = vld [vmem:[%s2 + $0xa48] sm:$0xff]
    %v365 = vld [vmem:[%s2 + $0xa50] sm:$0xff]
    %v366 = vld [vmem:[%s2 + $0xa58] sm:$0xff]
    %v367 = vld [vmem:[%s2 + $0xa60] sm:$0xff]
    %v368 = vld [vmem:[%s2 + $0xa68] sm:$0xff]
    %v369 = vld [vmem:[%s2 + $0xa70] sm:$0xff]
    %v370 = vld [vmem:[%s2 + $0xa78] sm:$0xff]
    %v371 = vld [vmem:[%s2 + $0xa80] sm:$0xff]
    %v372 = vld [vmem:[%s2 + $0xa88] sm:$0xff]
    %v373 = vld [vmem:[%s2 + $0xa90] sm:$0xff]
    %v374 = vld [vmem:[%s2 + $0xa98] sm:$0xff]
    %v375 = vld [vmem:[%s2 + $0xaa0] sm:$0xff]
    %v376 = vld [vmem:[%s2 + $0xaa8] sm:$0xff]
    %v377 = vld [vmem:[%s2 + $0xab0] sm:$0xff]
    %v378 = vld [vmem:[%s2 + $0xab8] sm:$0xff]
    %v379 = vld [vmem:[%s2 + $0xac0] sm:$0xff]
    %v380 = vld [vmem:[%s2 + $0xac8] sm:$0xff]
    %v381 = vld [vmem:[%s2 + $0xad0] sm:$0xff]
    %v382 = vld [vmem:[%s2 + $0xad8] sm:$0xff]
    %v383 = vld [vmem:[%s2 + $0xae0] sm:$0xff]
    %v384 = vld [vmem:[%s2 + $0xae8] sm:$0xff]
    %v385 = vld [vmem:[%s2 + $0xaf0] sm:$0xff]
    %v386 = vld [vmem:[%s2 + $0xaf8] sm:$0xff]
    %v387 = vld [vmem:[%s2 + $0xb00] sm:$0xff]
    %v388 = vld [vmem:[%s2 + $0xb08] sm:$0xff]
    %v389 = vld [vmem:[%s2 + $0xb10] sm:$0xff]
    %v390 = vld [vmem:[%s2 + $0xb18] sm:$0xff]
    %v391 = vld [vmem:[%s2 + $0xb20] sm:$0xff]
    %v392 = vld [vmem:[%s2 + $0xb28] sm:$0xff]
    %v393 = vld [vmem:[%s2 + $0xb30] sm:$0xff]
    %v394 = vld [vmem:[%s2 + $0xb38] sm:$0xff]
    %v395 = vld [vmem:[%s2 + $0xb40] sm:$0xff]
    %v396 = vld [vmem:[%s2 + $0xb48] sm:$0xff]
    %v397 = vld [vmem:[%s2 + $0xb50] sm:$0xff]
    %v398 = vld [vmem:[%s2 + $0xb58] sm:$0xff]
    %v399 = vld [vmem:[%s2 + $0xb60] sm:$0xff]
    %v400 = vld [vmem:[%s2 + $0xb68] sm:$0xff]
    %v401 = vld [vmem:[%s2 + $0xb70] sm:$0xff]
    %v402 = vld [vmem:[%s2 + $0xb78] sm:$0xff]
    %v403 = vld [vmem:[%s2 + $0xb80] sm:$0xff]
    %v404 = vld [vmem:[%s2 + $0xb88] sm:$0xff]
    %v405 = vld [vmem:[%s2 + $0xb90] sm:$0xff]
    %v406 = vld [vmem:[%s2 + $0xb98] sm:$0xff]
    %v407 = vld [vmem:[%s2 + $0xba0] sm:$0xff]
    %v408 = vld [vmem:[%s2 + $0xba8] sm:$0xff]
    %v409 = vld [vmem:[%s2 + $0xbb0] sm:$0xff]
    %v410 = vld [vmem:[%s2 + $0xbb8] sm:$0xff]
    %v411 = vld [vmem:[%s2 + $0xbc0] sm:$0xff]
    %v412 = vld [vmem:[%s2 + $0xbc8] sm:$0xff]
    %v413 = vld [vmem:[%s2 + $0xbd0] sm:$0xff]
    %v414 = vld [vmem:[%s2 + $0xbd8] sm:$0xff]
    %v415 = vld [vmem:[%s2 + $0xbe0] sm:$0xff]
    %v416 = vld [vmem:[%s2 + $0xbe8] sm:$0xff]
    %v417 = vld [vmem:[%s2 + $0xbf0] sm:$0xff]
    %v418 = vld [vmem:[%s2 + $0xbf8] sm:$0xff]
    %v419 = vld [vmem:[%s2 + $0xc00] sm:$0xff]
    %v420 = vld [vmem:[%s2 + $0xc08] sm:$0xff]
    %v421 = vld [vmem:[%s2 + $0xc10] sm:$0xff]
    %v422 = vld [vmem:[%s2 + $0xc18] sm:$0xff]
    %v423 = vld [vmem:[%s2 + $0xc20] sm:$0xff]
    %v424 = vld [vmem:[%s2 + $0xc28] sm:$0xff]
    %v425 = vld [vmem:[%s2 + $0xc30] sm:$0xff]
    %v426 = vld [vmem:[%s2 + $0xc38] sm:$0xff]
    %v427 = vld [vmem:[%s2 + $0xc40] sm:$0xff]
    %v428 = vld [vmem:[%s2 + $0xc48] sm:$0xff]
    %v429 = vld [vmem:[%s2 + $0xc50] sm:$0xff]
    %v430 = vld [vmem:[%s2 + $0xc58] sm:$0xff]
    %v431 = vld [vmem:[%s2 + $0xc60] sm:$0xff]
    %v432 = vld [vmem:[%s2 + $0xc68] sm:$0xff]
    %v433 = vld [vmem:[%s2 + $0xc70] sm:$0xff]
    %v434 = vld [vmem:[%s2 + $0xc78] sm:$0xff]
    %v435 = vld [vmem:[%s2 + $0xc80] sm:$0xff]
    %v436 = vld [vmem:[%s2 + $0xc88] sm:$0xff]
    %v437 = vld [vmem:[%s2 + $0xc90] sm:$0xff]
    %v438 = vld [vmem:[%s2 + $0xc98] sm:$0xff]
    %v439 = vld [vmem:[%s2 + $0xca0] sm:$0xff]
    %v440 = vld [vmem:[%s2 + $0xca8] sm:$0xff]
    %v441 = vld [vmem:[%s2 + $0xcb0] sm:$0xff]
    %v442 = vld [vmem:[%s2 + $0xcb8] sm:$0xff]
    %v443 = vld [vmem:[%s2 + $0xcc0] sm:$0xff]
    %v444 = vld [vmem:[%s2 + $0xcc8] sm:$0xff]
    %v445 = vld [vmem:[%s2 + $0xcd0] sm:$0xff]
    %v446 = vld [vmem:[%s2 + $0xcd8] sm:$0xff]
    %v447 = vld [vmem:[%s2 + $0xce0] sm:$0xff]
    %v448 = vld [vmem:[%s2 + $0xce8] sm:$0xff]
    %v449 = vld [vmem:[%s2 + $0xcf0] sm:$0xff]
    %v450 = vld [vmem:[%s2 + $0xcf8] sm:$0xff]
    %v451 = vld [vmem:[%s2 + $0xd00] sm:$0xff]
    %v452 = vld [vmem:[%s2 + $0xd08] sm:$0xff]
    %v453 = vld [vmem:[%s2 + $0xd10] sm:$0xff]
    %v454 = vld [vmem:[%s2 + $0xd18] sm:$0xff]
    %v455 = vld [vmem:[%s2 + $0xd20] sm:$0xff]
    %v456 = vld [vmem:[%s2 + $0xd28] sm:$0xff]
    %v457 = vld [vmem:[%s2 + $0xd30] sm:$0xff]
    %v458 = vld [vmem:[%s2 + $0xd38] sm:$0xff]
    %v459 = vld [vmem:[%s2 + $0xd40] sm:$0xff]
    %v460 = vld [vmem:[%s2 + $0xd48] sm:$0xff]
    %v461 = vld [vmem:[%s2 + $0xd50] sm:$0xff]
    %v462 = vld [vmem:[%s2 + $0xd58] sm:$0xff]
    %v463 = vld [vmem:[%s2 + $0xd60] sm:$0xff]
    %v464 = vld [vmem:[%s2 + $0xd68] sm:$0xff]
    %v465 = vld [vmem:[%s2 + $0xd70] sm:$0xff]
    %v466 = vld [vmem:[%s2 + $0xd78] sm:$0xff]
    %v467 = vld [vmem:[%s2 + $0xd80] sm:$0xff]
    %v468 = vld [vmem:[%s2 + $0xd88] sm:$0xff]
    %v469 = vld [vmem:[%s2 + $0xd90] sm:$0xff]
    %v470 = vld [vmem:[%s2 + $0xd98] sm:$0xff]
    %v471 = vld [vmem:[%s2 + $0xda0] sm:$0xff]
    %v472 = vld [vmem:[%s2 + $0xda8] sm:$0xff]
    %v473 = vld [vmem:[%s2 + $0xdb0] sm:$0xff]
    %v474 = vld [vmem:[%s2 + $0xdb8] sm:$0xff]
    %v475 = vld [vmem:[%s2 + $0xdc0] sm:$0xff]
    %v476 = vld [vmem:[%s2 + $0xdc8] sm:$0xff]
    %v477 = vld [vmem:[%s2 + $0xdd0] sm:$0xff]
    %v478 = vld [vmem:[%s2 + $0xdd8] sm:$0xff]
    %v479 = vld [vmem:[%s2 + $0xde0] sm:$0xff]
    %v480 = vld [vmem:[%s2 + $0xde8] sm:$0xff]
    %v481 = vld [vmem:[%s2 + $0xdf0] sm:$0xff]
    %v482 = vld [vmem:[%s2 + $0xdf8] sm:$0xff]
    %v483 = vld [vmem:[%s2 + $0xe00] sm:$0xff]
    %v484 = vld [vmem:[%s2 + $0xe08] sm:$0xff]
    %v485 = vld [vmem:[%s2 + $0xe10] sm:$0xff]
    %v486 = vld [vmem:[%s2 + $0xe18] sm:$0xff]
    %v487 = vld [vmem:[%s2 + $0xe20] sm:$0xff]
    %v488 = vld [vmem:[%s2 + $0xe28] sm:$0xff]
    %v489 = vld [vmem:[%s2 + $0xe30] sm:$0xff]
    %v490 = vld [vmem:[%s2 + $0xe38] sm:$0xff]
    %v491 = vld [vmem:[%s2 + $0xe40] sm:$0xff]
    %v492 = vld [vmem:[%s2 + $0xe48] sm:$0xff]
    %v493 = vld [vmem:[%s2 + $0xe50] sm:$0xff]
    %v494 = vld [vmem:[%s2 + $0xe58] sm:$0xff]
    %v495 = vld [vmem:[%s2 + $0xe60] sm:$0xff]
    %v496 = vld [vmem:[%s2 + $0xe68] sm:$0xff]
    %v497 = vld [vmem:[%s2 + $0xe70] sm:$0xff]
    %v498 = vld [vmem:[%s2 + $0xe78] sm:$0xff]
    %v499 = vld [vmem:[%s2 + $0xe80] sm:$0xff]
    %v500 = vld [vmem:[%s2 + $0xe88] sm:$0xff]
    %v501 = vld [vmem:[%s2 + $0xe90] sm:$0xff]
    %v502 = vld [vmem:[%s2 + $0xe98] sm:$0xff]
    %v503 = vld [vmem:[%s2 + $0xea0] sm:$0xff]
    %v504 = vld [vmem:[%s2 + $0xea8] sm:$0xff]
    %v505 = vld [vmem:[%s2 + $0xeb0] sm:$0xff]
    %v506 = vld [vmem:[%s2 + $0xeb8] sm:$0xff]
    %v507 = vld [vmem:[%s2 + $0xec0] sm:$0xff]
    %v508 = vld [vmem:[%s2 + $0xec8] sm:$0xff]
    %v509 = vld [vmem:[%s2 + $0xed0] sm:$0xff]
    %v510 = vld [vmem:[%s2 + $0xed8] sm:$0xff]
    %v511 = vld [vmem:[%s2 + $0xee0] sm:$0xff]
    %v512 = vld [vmem:[%s2 + $0xee8] sm:$0xff]
    %v513 = vld [vmem:[%s2 + $0xef0] sm:$0xff]
    %v514 = vld [vmem:[%s2 + $0xef8] sm:$0xff]
    %v515 = vld [vmem:[%s2 + $0xf00] sm:$0xff]
    %v516 = vld [vmem:[%s2 + $0xf08] sm:$0xff]
    %v517 = vld [vmem:[%s2 + $0xf10] sm:$0xff]
    %v518 = vld [vmem:[%s2 + $0xf18] sm:$0xff]
    %v519 = vld [vmem:[%s2 + $0xf20] sm:$0xff]
    %v520 = vld [vmem:[%s2 + $0xf28] sm:$0xff]
    %v521 = vld [vmem:[%s2 + $0xf30] sm:$0xff]
    %v522 = vld [vmem:[%s2 + $0xf38] sm:$0xff]
    %v523 = vld [vmem:[%s2 + $0xf40] sm:$0xff]
    %v524 = vld [vmem:[%s2 + $0xf48] sm:$0xff]
    %v525 = vld [vmem:[%s2 + $0xf50] sm:$0xff]
    %v526 = vld [vmem:[%s2 + $0xf58] sm:$0xff]
    %v527 = vld [vmem:[%s2 + $0xf60] sm:$0xff]
    %v528 = vld [vmem:[%s2 + $0xf68] sm:$0xff]
    %v529 = vld [vmem:[%s2 + $0xf70] sm:$0xff]
    %v530 = vld [vmem:[%s2 + $0xf78] sm:$0xff]
    %v531 = vld [vmem:[%s2 + $0xf80] sm:$0xff]
    %v532 = vld [vmem:[%s2 + $0xf88] sm:$0xff]
    %v533 = vld [vmem:[%s2 + $0xf90] sm:$0xff]
    %v534 = vld [vmem:[%s2 + $0xf98] sm:$0xff]
    %v535 = vld [vmem:[%s2 + $0xfa0] sm:$0xff]
    %v536 = vld [vmem:[%s2 + $0xfa8] sm:$0xff]
    %v537 = vld [vmem:[%s2 + $0xfb0] sm:$0xff]
    %v538 = vld [vmem:[%s2 + $0xfb8] sm:$0xff]
    %v539 = vld [vmem:[%s2 + $0xfc0] sm:$0xff]
    %v540 = vld [vmem:[%s2 + $0xfc8] sm:$0xff]
    %v541 = vld [vmem:[%s2 + $0xfd0] sm:$0xff]
    %v542 = vld [vmem:[%s2 + $0xfd8] sm:$0xff]
    %v543 = vld [vmem:[%s2 + $0xfe0] sm:$0xff]
    %v544 = vld [vmem:[%s2 + $0xfe8] sm:$0xff]
    %v545 = vld [vmem:[%s2 + $0xff0] sm:$0xff]
    %v546 = vld [vmem:[%s2 + $0xff8] sm:$0xff]
    %v547 = vld [vmem:[%s1] sm:$0x3]
    %v548 = vld [vmem:[%s3] sm:$0xff]
    %v549 = vld [vmem:[%s3 + $0x8] sm:$0xff]
    %v550 = vld [vmem:[%s3 + $0x10] sm:$0xff]
    %v551 = vld [vmem:[%s3 + $0x18] sm:$0xff]
    %v552 = vld [vmem:[%s3 + $0x20] sm:$0xff]
    %v553 = vld [vmem:[%s3 + $0x28] sm:$0xff]
    %v554 = vld [vmem:[%s3 + $0x30] sm:$0xff]
    %v555 = vld [vmem:[%s3 + $0x38] sm:$0xff]
    %v556 = vld [vmem:[%s3 + $0x40] sm:$0xff]
    %v557 = vld [vmem:[%s3 + $0x48] sm:$0xff]
    %v558 = vld [vmem:[%s3 + $0x50] sm:$0xff]
    %v559 = vld [vmem:[%s3 + $0x58] sm:$0xff]
    %v560 = vld [vmem:[%s3 + $0x60] sm:$0xff]
    %v561 = vld [vmem:[%s3 + $0x68] sm:$0xff]
    %v562 = vld [vmem:[%s3 + $0x70] sm:$0xff]
    %v563 = vld [vmem:[%s3 + $0x78] sm:$0xff]
    %v564 = vld [vmem:[%s3 + $0x80] sm:$0xff]
    %v565 = vld [vmem:[%s3 + $0x88] sm:$0xff]
    %v566 = vld [vmem:[%s3 + $0x90] sm:$0xff]
    %v567 = vld [vmem:[%s3 + $0x98] sm:$0xff]
    %v568 = vld [vmem:[%s3 + $0xa0] sm:$0xff]
    %v569 = vld [vmem:[%s3 + $0xa8] sm:$0xff]
    %v570 = vld [vmem:[%s3 + $0xb0] sm:$0xff]
    %v571 = vld [vmem:[%s3 + $0xb8] sm:$0xff]
    %v572 = vld [vmem:[%s3 + $0xc0] sm:$0xff]
    %v573 = vld [vmem:[%s3 + $0xc8] sm:$0xff]
    %v574 = vld [vmem:[%s3 + $0xd0] sm:$0xff]
    %v575 = vld [vmem:[%s3 + $0xd8] sm:$0xff]
    %v576 = vld [vmem:[%s3 + $0xe0] sm:$0xff]
    %v577 = vld [vmem:[%s3 + $0xe8] sm:$0xff]
    %v578 = vld [vmem:[%s3 + $0xf0] sm:$0xff]
    %v579 = vld [vmem:[%s3 + $0xf8] sm:$0xff]
    %v580 = vld [vmem:[%s3 + $0x100] sm:$0xff]
    %v581 = vld [vmem:[%s3 + $0x108] sm:$0xff]
    %v582 = vld [vmem:[%s3 + $0x110] sm:$0xff]
    %v583 = vld [vmem:[%s3 + $0x118] sm:$0xff]
    %v584 = vld [vmem:[%s3 + $0x120] sm:$0xff]
    %v585 = vld [vmem:[%s3 + $0x128] sm:$0xff]
    %v586 = vld [vmem:[%s3 + $0x130] sm:$0xff]
    %v587 = vld [vmem:[%s3 + $0x138] sm:$0xff]
    %v588 = vld [vmem:[%s3 + $0x140] sm:$0xff]
    %v589 = vld [vmem:[%s3 + $0x148] sm:$0xff]
    %v590 = vld [vmem:[%s3 + $0x150] sm:$0xff]
    %v591 = vld [vmem:[%s3 + $0x158] sm:$0xff]
    %v592 = vld [vmem:[%s3 + $0x160] sm:$0xff]
    %v593 = vld [vmem:[%s3 + $0x168] sm:$0xff]
    %v594 = vld [vmem:[%s3 + $0x170] sm:$0xff]
    %v595 = vld [vmem:[%s3 + $0x178] sm:$0xff]
    %v596 = vld [vmem:[%s3 + $0x180] sm:$0xff]
    %v597 = vld [vmem:[%s3 + $0x188] sm:$0xff]
    %v598 = vld [vmem:[%s3 + $0x190] sm:$0xff]
    %v599 = vld [vmem:[%s3 + $0x198] sm:$0xff]
    %v600 = vld [vmem:[%s3 + $0x1a0] sm:$0xff]
    %v601 = vld [vmem:[%s3 + $0x1a8] sm:$0xff]
    %v602 = vld [vmem:[%s3 + $0x1b0] sm:$0xff]
    %v603 = vld [vmem:[%s3 + $0x1b8] sm:$0xff]
    %v604 = vld [vmem:[%s3 + $0x1c0] sm:$0xff]
    %v605 = vld [vmem:[%s3 + $0x1c8] sm:$0xff]
    %v606 = vld [vmem:[%s3 + $0x1d0] sm:$0xff]
    %v607 = vld [vmem:[%s3 + $0x1d8] sm:$0xff]
    %v608 = vld [vmem:[%s3 + $0x1e0] sm:$0xff]
    %v609 = vld [vmem:[%s3 + $0x1e8] sm:$0xff]
    %v610 = vld [vmem:[%s3 + $0x1f0] sm:$0xff]
    %v611 = vld [vmem:[%s3 + $0x1f8] sm:$0xff]
    %612 = vmatprep.subr.mxu0 %v609
    %613 = vmatpush1.msra.mxu0 %v608
    %614 = vmatprep.subr.mxu0 %v605
    %615 = vmatpush1.msra.mxu0 %v604
    %616 = vmatprep.subr.mxu0 %v601
    %617 = vmatpush1.msra.mxu0 %v600
    %618 = vmatprep.subr.mxu0 %v597
    %619 = vmatpush1.msra.mxu0 %v596
    %620 = vmatprep.subr.mxu0 %v593
    %621 = vmatpush1.msra.mxu0 %v592
    %622 = vmatprep.subr.mxu0 %v589
    %623 = vmatpush1.msra.mxu0 %v588
    %624 = vmatprep.subr.mxu0 %v585
    %625 = vmatpush1.msra.mxu0 %v584
    %626 = vmatprep.subr.mxu0 %v581
    %627 = vmatpush1.msra.mxu0 %v580
    %628 = vmatprep.subr.mxu0 %v577
    %629 = vmatpush1.msra.mxu0 %v576
    %630 = vmatprep.subr.mxu0 %v573
    %631 = vmatpush1.msra.mxu0 %v572
    %632 = vmatprep.subr.mxu0 %v569
    %633 = vmatpush1.msra.mxu0 %v568
    %634 = vmatprep.subr.mxu0 %v565
    %635 = vmatpush1.msra.mxu0 %v564
    %636 = vmatprep.subr.mxu0 %v561
    %637 = vmatpush1.msra.mxu0 %v560
    %638 = vmatprep.subr.mxu0 %v557
    %639 = vmatpush1.msra.mxu0 %v556
    %640 = vmatprep.subr.mxu0 %v553
    %641 = vmatpush1.msra.mxu0 %v552
    %642 = vmatprep.subr.mxu0 %v549
    %643 = vmatpush1.msra.mxu0 %v548
    %644 = vmatprep.subr.mxu0 0.0
    %645 = vmatpush2.msra.mxu0 0.0
    %646 = vmatprep.subr.mxu0 0.0
    %647 = vmatpush2.msra.mxu0 0.0
    %648 = vmatprep.subr.mxu0 0.0
    %649 = vmatpush2.msra.mxu0 0.0
    %650 = vmatprep.subr.mxu0 0.0
    %651 = vmatpush2.msra.mxu0 0.0
    %652 = vmatprep.subr.mxu0 0.0
    %653 = vmatpush2.msra.mxu0 0.0
    %654 = vmatprep.subr.mxu0 0.0
    %655 = vmatpush2.msra.mxu0 0.0
    %656 = vmatprep.subr.mxu0 0.0
    %657 = vmatpush2.msra.mxu0 0.0
    %658 = vmatprep.subr.mxu0 0.0
    %659 = vmatpush2.msra.mxu0 0.0
    %660 = vmatprep.subr.mxu0 0.0
    %661 = vmatpush2.msra.mxu0 0.0
    %662 = vmatprep.subr.mxu0 0.0
    %663 = vmatpush2.msra.mxu0 0.0
    %664 = vmatprep.subr.mxu0 0.0
    %665 = vmatpush2.msra.mxu0 0.0
    %666 = vmatprep.subr.mxu0 0.0
    %667 = vmatpush2.msra.mxu0 0.0
    %668 = vmatprep.subr.mxu0 0.0
    %669 = vmatpush2.msra.mxu0 0.0
    %670 = vmatprep.subr.mxu0 0.0
    %671 = vmatpush2.msra.mxu0 0.0
    %672 = vmatprep.subr.mxu0 0.0
    %673 = vmatpush2.msra.mxu0 0.0
    %674 = vmatprep.subr.mxu0 0.0
    %675 = vmatpush2.msra.mxu0 0.0
    %676 = vmatprep.mubr.f32.mxu0 0.0
    %677 = vmatmul.mubr.f32.gmra.mxu0 %v547
    %v678 = vpop.f32.mrf.mxu0
    %v679 = vadd.f32 0.0, %v678
    %v680 = vpop.f32.mrf.mxu0
    %v681 = vadd.f32 0.0, %v680
    %682 = vdwg.mxu0
    %683 = vmatprep.subr.mxu0 %v611
    %684 = vmatpush1.msra.mxu0 %v610
    %685 = vmatprep.subr.mxu0 %v607
    %686 = vmatpush1.msra.mxu0 %v606
    %687 = vmatprep.subr.mxu0 %v603
    %688 = vmatpush1.msra.mxu0 %v602
    %689 = vmatprep.subr.mxu0 %v599
    %690 = vmatpush1.msra.mxu0 %v598
    %691 = vmatprep.subr.mxu0 %v595
    %692 = vmatpush1.msra.mxu0 %v594
    %693 = vmatprep.subr.mxu0 %v591
    %694 = vmatpush1.msra.mxu0 %v590
    %695 = vmatprep.subr.mxu0 %v587
    %696 = vmatpush1.msra.mxu0 %v586
    %697 = vmatprep.subr.mxu0 %v583
    %698 = vmatpush1.msra.mxu0 %v582
    %699 = vmatprep.subr.mxu0 %v579
    %700 = vmatpush1.msra.mxu0 %v578
    %701 = vmatprep.subr.mxu0 %v575
    %702 = vmatpush1.msra.mxu0 %v574
    %703 = vmatprep.subr.mxu0 %v571
    %704 = vmatpush1.msra.mxu0 %v570
    %705 = vmatprep.subr.mxu0 %v567
    %706 = vmatpush1.msra.mxu0 %v566
    %707 = vmatprep.subr.mxu0 %v563
    %708 = vmatpush1.msra.mxu0 %v562
    %709 = vmatprep.subr.mxu0 %v559
    %710 = vmatpush1.msra.mxu0 %v558
    %711 = vmatprep.subr.mxu0 %v555
    %712 = vmatpush1.msra.mxu0 %v554
    %713 = vmatprep.subr.mxu0 %v551
    %714 = vmatpush1.msra.mxu0 %v550
    %715 = vmatprep.subr.mxu0 0.0
    %716 = vmatpush2.msra.mxu0 0.0
    %717 = vmatprep.subr.mxu0 0.0
    %718 = vmatpush2.msra.mxu0 0.0
    %719 = vmatprep.subr.mxu0 0.0
    %720 = vmatpush2.msra.mxu0 0.0
    %721 = vmatprep.subr.mxu0 0.0
    %722 = vmatpush2.msra.mxu0 0.0
    %723 = vmatprep.subr.mxu0 0.0
    %724 = vmatpush2.msra.mxu0 0.0
    %725 = vmatprep.subr.mxu0 0.0
    %726 = vmatpush2.msra.mxu0 0.0
    %727 = vmatprep.subr.mxu0 0.0
    %728 = vmatpush2.msra.mxu0 0.0
    %729 = vmatprep.subr.mxu0 0.0
    %730 = vmatpush2.msra.mxu0 0.0
    %731 = vmatprep.subr.mxu0 0.0
    %732 = vmatpush2.msra.mxu0 0.0
    %733 = vmatprep.subr.mxu0 0.0
    %734 = vmatpush2.msra.mxu0 0.0
    %735 = vmatprep.subr.mxu0 0.0
    %736 = vmatpush2.msra.mxu0 0.0
    %737 = vmatprep.subr.mxu0 0.0
    %738 = vmatpush2.msra.mxu0 0.0
    %739 = vmatprep.subr.mxu0 0.0
    %740 = vmatpush2.msra.mxu0 0.0
    %741 = vmatprep.subr.mxu0 0.0
    %742 = vmatpush2.msra.mxu0 0.0
    %743 = vmatprep.subr.mxu0 0.0
    %744 = vmatpush2.msra.mxu0 0.0
    %745 = vmatprep.subr.mxu0 0.0
    %746 = vmatpush2.msra.mxu0 0.0
    %747 = vmatprep.mubr.f32.mxu0 0.0
    %748 = vmatmul.mubr.f32.gmra.mxu0 %v547
    %v749 = vpop.f32.mrf.mxu0
    %v750 = vadd.f32 0.0, %v749
    %v751 = vpop.f32.mrf.mxu0
    %v752 = vadd.f32 0.0, %v751
    %753 = vdwg.mxu0
    %v756 = vcombine.high %v33, %v33
    %v758 = vunpack.c.l.s4 1983009808
    %v759 = vunpack.c.0.s8 %v758
    %v760 = vlaneseq
    %v761 = vshrl.u32 %v760, 7
    %v762 = vsub.s32 %v759, %v761
    %v763 = vrot.slane %v33, %v762
    %v765 = vunpack.c.l.s4 1983009808
    %v766 = vunpack.c.0.s8 %v765
    %v767 = vlaneseq
    %v768 = vshrl.u32 %v767, 7
    %v769 = vsub.s32 %v766, %v768
    %v770 = vrot.slane %v756, %v769
    %v771 = vcombine.high %v763, %v763
    %v772 = vcombine.high %v770, %v770
    %v773 = vcombine.high %v34, %v34
    %v775 = vunpack.c.l.s4 1983009808
    %v776 = vunpack.c.0.s8 %v775
    %v777 = vlaneseq
    %v778 = vshrl.u32 %v777, 7
    %v779 = vsub.s32 %v776, %v778
    %v780 = vrot.slane %v34, %v779
    %v782 = vunpack.c.l.s4 1983009808
    %v783 = vunpack.c.0.s8 %v782
    %v784 = vlaneseq
    %v785 = vshrl.u32 %v784, 7
    %v786 = vsub.s32 %v783, %v785
    %v787 = vrot.slane %v773, %v786
    %v788 = vcombine.high %v780, %v780
    %v789 = vcombine.high %v787, %v787
    %798 = vmatprep.subr.mxu0 %v96
    %799 = vmatpush1.msra.mxu0 %v95
    %800 = vmatprep.subr.mxu0 %v92
    %801 = vmatpush1.msra.mxu0 %v91
    %802 = vmatprep.subr.mxu0 %v88
    %803 = vmatpush1.msra.mxu0 %v87
    %804 = vmatprep.subr.mxu0 %v84
    %805 = vmatpush1.msra.mxu0 %v83
    %806 = vmatprep.subr.mxu0 %v80
    %807 = vmatpush1.msra.mxu0 %v79
    %808 = vmatprep.subr.mxu0 %v76
    %809 = vmatpush1.msra.mxu0 %v75
    %810 = vmatprep.subr.mxu0 %v72
    %811 = vmatpush1.msra.mxu0 %v71
    %812 = vmatprep.subr.mxu0 %v68
    %813 = vmatpush1.msra.mxu0 %v67
    %814 = vmatprep.subr.mxu0 %v64
    %815 = vmatpush1.msra.mxu0 %v63
    %816 = vmatprep.subr.mxu0 %v60
    %817 = vmatpush1.msra.mxu0 %v59
    %818 = vmatprep.subr.mxu0 %v56
    %819 = vmatpush1.msra.mxu0 %v55
    %820 = vmatprep.subr.mxu0 %v52
    %821 = vmatpush1.msra.mxu0 %v51
    %822 = vmatprep.subr.mxu0 %v48
    %823 = vmatpush1.msra.mxu0 %v47
    %824 = vmatprep.subr.mxu0 %v44
    %825 = vmatpush1.msra.mxu0 %v43
    %826 = vmatprep.subr.mxu0 %v40
    %827 = vmatpush1.msra.mxu0 %v39
    %828 = vmatprep.subr.mxu0 %v36
    %829 = vmatpush1.msra.mxu0 %v35
    %830 = vmatprep.subr.mxu0 %v160
    %831 = vmatpush2.msra.mxu0 %v159
    %832 = vmatprep.subr.mxu0 %v156
    %833 = vmatpush2.msra.mxu0 %v155
    %834 = vmatprep.subr.mxu0 %v152
    %835 = vmatpush2.msra.mxu0 %v151
    %836 = vmatprep.subr.mxu0 %v148
    %837 = vmatpush2.msra.mxu0 %v147
    %838 = vmatprep.subr.mxu0 %v144
    %839 = vmatpush2.msra.mxu0 %v143
    %840 = vmatprep.subr.mxu0 %v140
    %841 = vmatpush2.msra.mxu0 %v139
    %842 = vmatprep.subr.mxu0 %v136
    %843 = vmatpush2.msra.mxu0 %v135
    %844 = vmatprep.subr.mxu0 %v132
    %845 = vmatpush2.msra.mxu0 %v131
    %846 = vmatprep.subr.mxu0 %v128
    %847 = vmatpush2.msra.mxu0 %v127
    %848 = vmatprep.subr.mxu0 %v124
    %849 = vmatpush2.msra.mxu0 %v123
    %850 = vmatprep.subr.mxu0 %v120
    %851 = vmatpush2.msra.mxu0 %v119
    %852 = vmatprep.subr.mxu0 %v116
    %853 = vmatpush2.msra.mxu0 %v115
    %854 = vmatprep.subr.mxu0 %v112
    %855 = vmatpush2.msra.mxu0 %v111
    %856 = vmatprep.subr.mxu0 %v108
    %857 = vmatpush2.msra.mxu0 %v107
    %858 = vmatprep.subr.mxu0 %v104
    %859 = vmatpush2.msra.mxu0 %v103
    %860 = vmatprep.subr.mxu0 %v100
    %861 = vmatpush2.msra.mxu0 %v99
    %862 = vmatprep.mubr.f32.mxu0 %v771
    %863 = vmatmul.mubr.f32.gmra.mxu0 %v763
    %v864 = vpop.f32.mrf.mxu0
    %v865 = vadd.f32 %v679, %v864
    %v866 = vpop.f32.mrf.mxu0
    %v867 = vadd.f32 %v681, %v866
    %868 = vdwg.mxu0
    %869 = vmatprep.subr.mxu0 %v224
    %870 = vmatpush1.msra.mxu0 %v223
    %871 = vmatprep.subr.mxu0 %v220
    %872 = vmatpush1.msra.mxu0 %v219
    %873 = vmatprep.subr.mxu0 %v216
    %874 = vmatpush1.msra.mxu0 %v215
    %875 = vmatprep.subr.mxu0 %v212
    %876 = vmatpush1.msra.mxu0 %v211
    %877 = vmatprep.subr.mxu0 %v208
    %878 = vmatpush1.msra.mxu0 %v207
    %879 = vmatprep.subr.mxu0 %v204
    %880 = vmatpush1.msra.mxu0 %v203
    %881 = vmatprep.subr.mxu0 %v200
    %882 = vmatpush1.msra.mxu0 %v199
    %883 = vmatprep.subr.mxu0 %v196
    %884 = vmatpush1.msra.mxu0 %v195
    %885 = vmatprep.subr.mxu0 %v192
    %886 = vmatpush1.msra.mxu0 %v191
    %887 = vmatprep.subr.mxu0 %v188
    %888 = vmatpush1.msra.mxu0 %v187
    %889 = vmatprep.subr.mxu0 %v184
    %890 = vmatpush1.msra.mxu0 %v183
    %891 = vmatprep.subr.mxu0 %v180
    %892 = vmatpush1.msra.mxu0 %v179
    %893 = vmatprep.subr.mxu0 %v176
    %894 = vmatpush1.msra.mxu0 %v175
    %895 = vmatprep.subr.mxu0 %v172
    %896 = vmatpush1.msra.mxu0 %v171
    %897 = vmatprep.subr.mxu0 %v168
    %898 = vmatpush1.msra.mxu0 %v167
    %899 = vmatprep.subr.mxu0 %v164
    %900 = vmatpush1.msra.mxu0 %v163
    %901 = vmatprep.subr.mxu0 %v288
    %902 = vmatpush2.msra.mxu0 %v287
    %903 = vmatprep.subr.mxu0 %v284
    %904 = vmatpush2.msra.mxu0 %v283
    %905 = vmatprep.subr.mxu0 %v280
    %906 = vmatpush2.msra.mxu0 %v279
    %907 = vmatprep.subr.mxu0 %v276
    %908 = vmatpush2.msra.mxu0 %v275
    %909 = vmatprep.subr.mxu0 %v272
    %910 = vmatpush2.msra.mxu0 %v271
    %911 = vmatprep.subr.mxu0 %v268
    %912 = vmatpush2.msra.mxu0 %v267
    %913 = vmatprep.subr.mxu0 %v264
    %914 = vmatpush2.msra.mxu0 %v263
    %915 = vmatprep.subr.mxu0 %v260
    %916 = vmatpush2.msra.mxu0 %v259
    %917 = vmatprep.subr.mxu0 %v256
    %918 = vmatpush2.msra.mxu0 %v255
    %919 = vmatprep.subr.mxu0 %v252
    %920 = vmatpush2.msra.mxu0 %v251
    %921 = vmatprep.subr.mxu0 %v248
    %922 = vmatpush2.msra.mxu0 %v247
    %923 = vmatprep.subr.mxu0 %v244
    %924 = vmatpush2.msra.mxu0 %v243
    %925 = vmatprep.subr.mxu0 %v240
    %926 = vmatpush2.msra.mxu0 %v239
    %927 = vmatprep.subr.mxu0 %v236
    %928 = vmatpush2.msra.mxu0 %v235
    %929 = vmatprep.subr.mxu0 %v232
    %930 = vmatpush2.msra.mxu0 %v231
    %931 = vmatprep.subr.mxu0 %v228
    %932 = vmatpush2.msra.mxu0 %v227
    %933 = vmatprep.mubr.f32.mxu0 %v772
    %934 = vmatmul.mubr.f32.gmra.mxu0 %v770
    %v935 = vpop.f32.mrf.mxu0
    %v936 = vadd.f32 %v865, %v935
    %v937 = vpop.f32.mrf.mxu0
    %v938 = vadd.f32 %v867, %v937
    %939 = vdwg.mxu0
    %940 = vmatprep.subr.mxu0 %v352
    %941 = vmatpush1.msra.mxu0 %v351
    %942 = vmatprep.subr.mxu0 %v348
    %943 = vmatpush1.msra.mxu0 %v347
    %944 = vmatprep.subr.mxu0 %v344
    %945 = vmatpush1.msra.mxu0 %v343
    %946 = vmatprep.subr.mxu0 %v340
    %947 = vmatpush1.msra.mxu0 %v339
    %948 = vmatprep.subr.mxu0 %v336
    %949 = vmatpush1.msra.mxu0 %v335
    %950 = vmatprep.subr.mxu0 %v332
    %951 = vmatpush1.msra.mxu0 %v331
    %952 = vmatprep.subr.mxu0 %v328
    %953 = vmatpush1.msra.mxu0 %v327
    %954 = vmatprep.subr.mxu0 %v324
    %955 = vmatpush1.msra.mxu0 %v323
    %956 = vmatprep.subr.mxu0 %v320
    %957 = vmatpush1.msra.mxu0 %v319
    %958 = vmatprep.subr.mxu0 %v316
    %959 = vmatpush1.msra.mxu0 %v315
    %960 = vmatprep.subr.mxu0 %v312
    %961 = vmatpush1.msra.mxu0 %v311
    %962 = vmatprep.subr.mxu0 %v308
    %963 = vmatpush1.msra.mxu0 %v307
    %964 = vmatprep.subr.mxu0 %v304
    %965 = vmatpush1.msra.mxu0 %v303
    %966 = vmatprep.subr.mxu0 %v300
    %967 = vmatpush1.msra.mxu0 %v299
    %968 = vmatprep.subr.mxu0 %v296
    %969 = vmatpush1.msra.mxu0 %v295
    %970 = vmatprep.subr.mxu0 %v292
    %971 = vmatpush1.msra.mxu0 %v291
    %972 = vmatprep.subr.mxu0 %v416
    %973 = vmatpush2.msra.mxu0 %v415
    %974 = vmatprep.subr.mxu0 %v412
    %975 = vmatpush2.msra.mxu0 %v411
    %976 = vmatprep.subr.mxu0 %v408
    %977 = vmatpush2.msra.mxu0 %v407
    %978 = vmatprep.subr.mxu0 %v404
    %979 = vmatpush2.msra.mxu0 %v403
    %980 = vmatprep.subr.mxu0 %v400
    %981 = vmatpush2.msra.mxu0 %v399
    %982 = vmatprep.subr.mxu0 %v396
    %983 = vmatpush2.msra.mxu0 %v395
    %984 = vmatprep.subr.mxu0 %v392
    %985 = vmatpush2.msra.mxu0 %v391
    %986 = vmatprep.subr.mxu0 %v388
    %987 = vmatpush2.msra.mxu0 %v387
    %988 = vmatprep.subr.mxu0 %v384
    %989 = vmatpush2.msra.mxu0 %v383
    %990 = vmatprep.subr.mxu0 %v380
    %991 = vmatpush2.msra.mxu0 %v379
    %992 = vmatprep.subr.mxu0 %v376
    %993 = vmatpush2.msra.mxu0 %v375
    %994 = vmatprep.subr.mxu0 %v372
    %995 = vmatpush2.msra.mxu0 %v371
    %996 = vmatprep.subr.mxu0 %v368
    %997 = vmatpush2.msra.mxu0 %v367
    %998 = vmatprep.subr.mxu0 %v364
    %999 = vmatpush2.msra.mxu0 %v363
    %1000 = vmatprep.subr.mxu0 %v360
    %1001 = vmatpush2.msra.mxu0 %v359
    %1002 = vmatprep.subr.mxu0 %v356
    %1003 = vmatpush2.msra.mxu0 %v355
    %1004 = vmatprep.mubr.f32.mxu0 %v788
    %1005 = vmatmul.mubr.f32.gmra.mxu0 %v780
    %v1006 = vpop.f32.mrf.mxu0
    %v1007 = vadd.f32 %v936, %v1006
    %v1008 = vpop.f32.mrf.mxu0
    %v1009 = vadd.f32 %v938, %v1008
    %1010 = vdwg.mxu0
    %1011 = vmatprep.subr.mxu0 %v480
    %1012 = vmatpush1.msra.mxu0 %v479
    %1013 = vmatprep.subr.mxu0 %v476
    %1014 = vmatpush1.msra.mxu0 %v475
    %1015 = vmatprep.subr.mxu0 %v472
    %1016 = vmatpush1.msra.mxu0 %v471
    %1017 = vmatprep.subr.mxu0 %v468
    %1018 = vmatpush1.msra.mxu0 %v467
    %1019 = vmatprep.subr.mxu0 %v464
    %1020 = vmatpush1.msra.mxu0 %v463
    %1021 = vmatprep.subr.mxu0 %v460
    %1022 = vmatpush1.msra.mxu0 %v459
    %1023 = vmatprep.subr.mxu0 %v456
    %1024 = vmatpush1.msra.mxu0 %v455
    %1025 = vmatprep.subr.mxu0 %v452
    %1026 = vmatpush1.msra.mxu0 %v451
    %1027 = vmatprep.subr.mxu0 %v448
    %1028 = vmatpush1.msra.mxu0 %v447
    %1029 = vmatprep.subr.mxu0 %v444
    %1030 = vmatpush1.msra.mxu0 %v443
    %1031 = vmatprep.subr.mxu0 %v440
    %1032 = vmatpush1.msra.mxu0 %v439
    %1033 = vmatprep.subr.mxu0 %v436
    %1034 = vmatpush1.msra.mxu0 %v435
    %1035 = vmatprep.subr.mxu0 %v432
    %1036 = vmatpush1.msra.mxu0 %v431
    %1037 = vmatprep.subr.mxu0 %v428
    %1038 = vmatpush1.msra.mxu0 %v427
    %1039 = vmatprep.subr.mxu0 %v424
    %1040 = vmatpush1.msra.mxu0 %v423
    %1041 = vmatprep.subr.mxu0 %v420
    %1042 = vmatpush1.msra.mxu0 %v419
    %1043 = vmatprep.subr.mxu0 %v544
    %1044 = vmatpush2.msra.mxu0 %v543
    %1045 = vmatprep.subr.mxu0 %v540
    %1046 = vmatpush2.msra.mxu0 %v539
    %1047 = vmatprep.subr.mxu0 %v536
    %1048 = vmatpush2.msra.mxu0 %v535
    %1049 = vmatprep.subr.mxu0 %v532
    %1050 = vmatpush2.msra.mxu0 %v531
    %1051 = vmatprep.subr.mxu0 %v528
    %1052 = vmatpush2.msra.mxu0 %v527
    %1053 = vmatprep.subr.mxu0 %v524
    %1054 = vmatpush2.msra.mxu0 %v523
    %1055 = vmatprep.subr.mxu0 %v520
    %1056 = vmatpush2.msra.mxu0 %v519
    %1057 = vmatprep.subr.mxu0 %v516
    %1058 = vmatpush2.msra.mxu0 %v515
    %1059 = vmatprep.subr.mxu0 %v512
    %1060 = vmatpush2.msra.mxu0 %v511
    %1061 = vmatprep.subr.mxu0 %v508
    %1062 = vmatpush2.msra.mxu0 %v507
    %1063 = vmatprep.subr.mxu0 %v504
    %1064 = vmatpush2.msra.mxu0 %v503
    %1065 = vmatprep.subr.mxu0 %v500
    %1066 = vmatpush2.msra.mxu0 %v499
    %1067 = vmatprep.subr.mxu0 %v496
    %1068 = vmatpush2.msra.mxu0 %v495
    %1069 = vmatprep.subr.mxu0 %v492
    %1070 = vmatpush2.msra.mxu0 %v491
    %1071 = vmatprep.subr.mxu0 %v488
    %1072 = vmatpush2.msra.mxu0 %v487
    %1073 = vmatprep.subr.mxu0 %v484
    %1074 = vmatpush2.msra.mxu0 %v483
    %1075 = vmatprep.mubr.f32.mxu0 %v789
    %1076 = vmatmul.mubr.f32.gmra.mxu0 %v787
    %v1077 = vpop.f32.mrf.mxu0
    %v1078 = vadd.f32 %v1007, %v1077
    %v1079 = vpop.f32.mrf.mxu0
    %v1080 = vadd.f32 %v1009, %v1079
    %1081 = vdwg.mxu0
    %1082 = vmatprep.subr.mxu0 %v98
    %1083 = vmatpush1.msra.mxu0 %v97
    %1084 = vmatprep.subr.mxu0 %v94
    %1085 = vmatpush1.msra.mxu0 %v93
    %1086 = vmatprep.subr.mxu0 %v90
    %1087 = vmatpush1.msra.mxu0 %v89
    %1088 = vmatprep.subr.mxu0 %v86
    %1089 = vmatpush1.msra.mxu0 %v85
    %1090 = vmatprep.subr.mxu0 %v82
    %1091 = vmatpush1.msra.mxu0 %v81
    %1092 = vmatprep.subr.mxu0 %v78
    %1093 = vmatpush1.msra.mxu0 %v77
    %1094 = vmatprep.subr.mxu0 %v74
    %1095 = vmatpush1.msra.mxu0 %v73
    %1096 = vmatprep.subr.mxu0 %v70
    %1097 = vmatpush1.msra.mxu0 %v69
    %1098 = vmatprep.subr.mxu0 %v66
    %1099 = vmatpush1.msra.mxu0 %v65
    %1100 = vmatprep.subr.mxu0 %v62
    %1101 = vmatpush1.msra.mxu0 %v61
    %1102 = vmatprep.subr.mxu0 %v58
    %1103 = vmatpush1.msra.mxu0 %v57
    %1104 = vmatprep.subr.mxu0 %v54
    %1105 = vmatpush1.msra.mxu0 %v53
    %1106 = vmatprep.subr.mxu0 %v50
    %1107 = vmatpush1.msra.mxu0 %v49
    %1108 = vmatprep.subr.mxu0 %v46
    %1109 = vmatpush1.msra.mxu0 %v45
    %1110 = vmatprep.subr.mxu0 %v42
    %1111 = vmatpush1.msra.mxu0 %v41
    %1112 = vmatprep.subr.mxu0 %v38
    %1113 = vmatpush1.msra.mxu0 %v37
    %1114 = vmatprep.subr.mxu0 %v162
    %1115 = vmatpush2.msra.mxu0 %v161
    %1116 = vmatprep.subr.mxu0 %v158
    %1117 = vmatpush2.msra.mxu0 %v157
    %1118 = vmatprep.subr.mxu0 %v154
    %1119 = vmatpush2.msra.mxu0 %v153
    %1120 = vmatprep.subr.mxu0 %v150
    %1121 = vmatpush2.msra.mxu0 %v149
    %1122 = vmatprep.subr.mxu0 %v146
    %1123 = vmatpush2.msra.mxu0 %v145
    %1124 = vmatprep.subr.mxu0 %v142
    %1125 = vmatpush2.msra.mxu0 %v141
    %1126 = vmatprep.subr.mxu0 %v138
    %1127 = vmatpush2.msra.mxu0 %v137
    %1128 = vmatprep.subr.mxu0 %v134
    %1129 = vmatpush2.msra.mxu0 %v133
    %1130 = vmatprep.subr.mxu0 %v130
    %1131 = vmatpush2.msra.mxu0 %v129
    %1132 = vmatprep.subr.mxu0 %v126
    %1133 = vmatpush2.msra.mxu0 %v125
    %1134 = vmatprep.subr.mxu0 %v122
    %1135 = vmatpush2.msra.mxu0 %v121
    %1136 = vmatprep.subr.mxu0 %v118
    %1137 = vmatpush2.msra.mxu0 %v117
    %1138 = vmatprep.subr.mxu0 %v114
    %1139 = vmatpush2.msra.mxu0 %v113
    %1140 = vmatprep.subr.mxu0 %v110
    %1141 = vmatpush2.msra.mxu0 %v109
    %1142 = vmatprep.subr.mxu0 %v106
    %1143 = vmatpush2.msra.mxu0 %v105
    %1144 = vmatprep.subr.mxu0 %v102
    %1145 = vmatpush2.msra.mxu0 %v101
    %1146 = vmatprep.mubr.f32.mxu0 %v771
    %1147 = vmatmul.mubr.f32.gmra.mxu0 %v763
    %v1148 = vpop.f32.mrf.mxu0
    %v1149 = vadd.f32 %v750, %v1148
    %v1150 = vpop.f32.mrf.mxu0
    %v1151 = vadd.f32 %v752, %v1150
    %1152 = vdwg.mxu0
    %1153 = vmatprep.subr.mxu0 %v226
    %1154 = vmatpush1.msra.mxu0 %v225
    %1155 = vmatprep.subr.mxu0 %v222
    %1156 = vmatpush1.msra.mxu0 %v221
    %1157 = vmatprep.subr.mxu0 %v218
    %1158 = vmatpush1.msra.mxu0 %v217
    %1159 = vmatprep.subr.mxu0 %v214
    %1160 = vmatpush1.msra.mxu0 %v213
    %1161 = vmatprep.subr.mxu0 %v210
    %1162 = vmatpush1.msra.mxu0 %v209
    %1163 = vmatprep.subr.mxu0 %v206
    %1164 = vmatpush1.msra.mxu0 %v205
    %1165 = vmatprep.subr.mxu0 %v202
    %1166 = vmatpush1.msra.mxu0 %v201
    %1167 = vmatprep.subr.mxu0 %v198
    %1168 = vmatpush1.msra.mxu0 %v197
    %1169 = vmatprep.subr.mxu0 %v194
    %1170 = vmatpush1.msra.mxu0 %v193
    %1171 = vmatprep.subr.mxu0 %v190
    %1172 = vmatpush1.msra.mxu0 %v189
    %1173 = vmatprep.subr.mxu0 %v186
    %1174 = vmatpush1.msra.mxu0 %v185
    %1175 = vmatprep.subr.mxu0 %v182
    %1176 = vmatpush1.msra.mxu0 %v181
    %1177 = vmatprep.subr.mxu0 %v178
    %1178 = vmatpush1.msra.mxu0 %v177
    %1179 = vmatprep.subr.mxu0 %v174
    %1180 = vmatpush1.msra.mxu0 %v173
    %1181 = vmatprep.subr.mxu0 %v170
    %1182 = vmatpush1.msra.mxu0 %v169
    %1183 = vmatprep.subr.mxu0 %v166
    %1184 = vmatpush1.msra.mxu0 %v165
    %1185 = vmatprep.subr.mxu0 %v290
    %1186 = vmatpush2.msra.mxu0 %v289
    %1187 = vmatprep.subr.mxu0 %v286
    %1188 = vmatpush2.msra.mxu0 %v285
    %1189 = vmatprep.subr.mxu0 %v282
    %1190 = vmatpush2.msra.mxu0 %v281
    %1191 = vmatprep.subr.mxu0 %v278
    %1192 = vmatpush2.msra.mxu0 %v277
    %1193 = vmatprep.subr.mxu0 %v274
    %1194 = vmatpush2.msra.mxu0 %v273
    %1195 = vmatprep.subr.mxu0 %v270
    %1196 = vmatpush2.msra.mxu0 %v269
    %1197 = vmatprep.subr.mxu0 %v266
    %1198 = vmatpush2.msra.mxu0 %v265
    %1199 = vmatprep.subr.mxu0 %v262
    %1200 = vmatpush2.msra.mxu0 %v261
    %1201 = vmatprep.subr.mxu0 %v258
    %1202 = vmatpush2.msra.mxu0 %v257
    %1203 = vmatprep.subr.mxu0 %v254
    %1204 = vmatpush2.msra.mxu0 %v253
    %1205 = vmatprep.subr.mxu0 %v250
    %1206 = vmatpush2.msra.mxu0 %v249
    %1207 = vmatprep.subr.mxu0 %v246
    %1208 = vmatpush2.msra.mxu0 %v245
    %1209 = vmatprep.subr.mxu0 %v242
    %1210 = vmatpush2.msra.mxu0 %v241
    %1211 = vmatprep.subr.mxu0 %v238
    %1212 = vmatpush2.msra.mxu0 %v237
    %1213 = vmatprep.subr.mxu0 %v234
    %1214 = vmatpush2.msra.mxu0 %v233
    %1215 = vmatprep.subr.mxu0 %v230
    %1216 = vmatpush2.msra.mxu0 %v229
    %1217 = vmatprep.mubr.f32.mxu0 %v772
    %1218 = vmatmul.mubr.f32.gmra.mxu0 %v770
    %v1219 = vpop.f32.mrf.mxu0
    %v1220 = vadd.f32 %v1149, %v1219
    %v1221 = vpop.f32.mrf.mxu0
    %v1222 = vadd.f32 %v1151, %v1221
    %1223 = vdwg.mxu0
    %1224 = vmatprep.subr.mxu0 %v354
    %1225 = vmatpush1.msra.mxu0 %v353
    %1226 = vmatprep.subr.mxu0 %v350
    %1227 = vmatpush1.msra.mxu0 %v349
    %1228 = vmatprep.subr.mxu0 %v346
    %1229 = vmatpush1.msra.mxu0 %v345
    %1230 = vmatprep.subr.mxu0 %v342
    %1231 = vmatpush1.msra.mxu0 %v341
    %1232 = vmatprep.subr.mxu0 %v338
    %1233 = vmatpush1.msra.mxu0 %v337
    %1234 = vmatprep.subr.mxu0 %v334
    %1235 = vmatpush1.msra.mxu0 %v333
    %1236 = vmatprep.subr.mxu0 %v330
    %1237 = vmatpush1.msra.mxu0 %v329
    %1238 = vmatprep.subr.mxu0 %v326
    %1239 = vmatpush1.msra.mxu0 %v325
    %1240 = vmatprep.subr.mxu0 %v322
    %1241 = vmatpush1.msra.mxu0 %v321
    %1242 = vmatprep.subr.mxu0 %v318
    %1243 = vmatpush1.msra.mxu0 %v317
    %1244 = vmatprep.subr.mxu0 %v314
    %1245 = vmatpush1.msra.mxu0 %v313
    %1246 = vmatprep.subr.mxu0 %v310
    %1247 = vmatpush1.msra.mxu0 %v309
    %1248 = vmatprep.subr.mxu0 %v306
    %1249 = vmatpush1.msra.mxu0 %v305
    %1250 = vmatprep.subr.mxu0 %v302
    %1251 = vmatpush1.msra.mxu0 %v301
    %1252 = vmatprep.subr.mxu0 %v298
    %1253 = vmatpush1.msra.mxu0 %v297
    %1254 = vmatprep.subr.mxu0 %v294
    %1255 = vmatpush1.msra.mxu0 %v293
    %1256 = vmatprep.subr.mxu0 %v418
    %1257 = vmatpush2.msra.mxu0 %v417
    %1258 = vmatprep.subr.mxu0 %v414
    %1259 = vmatpush2.msra.mxu0 %v413
    %1260 = vmatprep.subr.mxu0 %v410
    %1261 = vmatpush2.msra.mxu0 %v409
    %1262 = vmatprep.subr.mxu0 %v406
    %1263 = vmatpush2.msra.mxu0 %v405
    %1264 = vmatprep.subr.mxu0 %v402
    %1265 = vmatpush2.msra.mxu0 %v401
    %1266 = vmatprep.subr.mxu0 %v398
    %1267 = vmatpush2.msra.mxu0 %v397
    %1268 = vmatprep.subr.mxu0 %v394
    %1269 = vmatpush2.msra.mxu0 %v393
    %1270 = vmatprep.subr.mxu0 %v390
    %1271 = vmatpush2.msra.mxu0 %v389
    %1272 = vmatprep.subr.mxu0 %v386
    %1273 = vmatpush2.msra.mxu0 %v385
    %1274 = vmatprep.subr.mxu0 %v382
    %1275 = vmatpush2.msra.mxu0 %v381
    %1276 = vmatprep.subr.mxu0 %v378
    %1277 = vmatpush2.msra.mxu0 %v377
    %1278 = vmatprep.subr.mxu0 %v374
    %1279 = vmatpush2.msra.mxu0 %v373
    %1280 = vmatprep.subr.mxu0 %v370
    %1281 = vmatpush2.msra.mxu0 %v369
    %1282 = vmatprep.subr.mxu0 %v366
    %1283 = vmatpush2.msra.mxu0 %v365
    %1284 = vmatprep.subr.mxu0 %v362
    %1285 = vmatpush2.msra.mxu0 %v361
    %1286 = vmatprep.subr.mxu0 %v358
    %1287 = vmatpush2.msra.mxu0 %v357
    %1288 = vmatprep.mubr.f32.mxu0 %v788
    %1289 = vmatmul.mubr.f32.gmra.mxu0 %v780
    %v1290 = vpop.f32.mrf.mxu0
    %v1291 = vadd.f32 %v1220, %v1290
    %v1292 = vpop.f32.mrf.mxu0
    %v1293 = vadd.f32 %v1222, %v1292
    %1294 = vdwg.mxu0
    %1295 = vmatprep.subr.mxu0 %v482
    %1296 = vmatpush1.msra.mxu0 %v481
    %1297 = vmatprep.subr.mxu0 %v478
    %1298 = vmatpush1.msra.mxu0 %v477
    %1299 = vmatprep.subr.mxu0 %v474
    %1300 = vmatpush1.msra.mxu0 %v473
    %1301 = vmatprep.subr.mxu0 %v470
    %1302 = vmatpush1.msra.mxu0 %v469
    %1303 = vmatprep.subr.mxu0 %v466
    %1304 = vmatpush1.msra.mxu0 %v465
    %1305 = vmatprep.subr.mxu0 %v462
    %1306 = vmatpush1.msra.mxu0 %v461
    %1307 = vmatprep.subr.mxu0 %v458
    %1308 = vmatpush1.msra.mxu0 %v457
    %1309 = vmatprep.subr.mxu0 %v454
    %1310 = vmatpush1.msra.mxu0 %v453
    %1311 = vmatprep.subr.mxu0 %v450
    %1312 = vmatpush1.msra.mxu0 %v449
    %1313 = vmatprep.subr.mxu0 %v446
    %1314 = vmatpush1.msra.mxu0 %v445
    %1315 = vmatprep.subr.mxu0 %v442
    %1316 = vmatpush1.msra.mxu0 %v441
    %1317 = vmatprep.subr.mxu0 %v438
    %1318 = vmatpush1.msra.mxu0 %v437
    %1319 = vmatprep.subr.mxu0 %v434
    %1320 = vmatpush1.msra.mxu0 %v433
    %1321 = vmatprep.subr.mxu0 %v430
    %1322 = vmatpush1.msra.mxu0 %v429
    %1323 = vmatprep.subr.mxu0 %v426
    %1324 = vmatpush1.msra.mxu0 %v425
    %1325 = vmatprep.subr.mxu0 %v422
    %1326 = vmatpush1.msra.mxu0 %v421
    %1327 = vmatprep.subr.mxu0 %v546
    %1328 = vmatpush2.msra.mxu0 %v545
    %1329 = vmatprep.subr.mxu0 %v542
    %1330 = vmatpush2.msra.mxu0 %v541
    %1331 = vmatprep.subr.mxu0 %v538
    %1332 = vmatpush2.msra.mxu0 %v537
    %1333 = vmatprep.subr.mxu0 %v534
    %1334 = vmatpush2.msra.mxu0 %v533
    %1335 = vmatprep.subr.mxu0 %v530
    %1336 = vmatpush2.msra.mxu0 %v529
    %1337 = vmatprep.subr.mxu0 %v526
    %1338 = vmatpush2.msra.mxu0 %v525
    %1339 = vmatprep.subr.mxu0 %v522
    %1340 = vmatpush2.msra.mxu0 %v521
    %1341 = vmatprep.subr.mxu0 %v518
    %1342 = vmatpush2.msra.mxu0 %v517
    %1343 = vmatprep.subr.mxu0 %v514
    %1344 = vmatpush2.msra.mxu0 %v513
    %1345 = vmatprep.subr.mxu0 %v510
    %1346 = vmatpush2.msra.mxu0 %v509
    %1347 = vmatprep.subr.mxu0 %v506
    %1348 = vmatpush2.msra.mxu0 %v505
    %1349 = vmatprep.subr.mxu0 %v502
    %1350 = vmatpush2.msra.mxu0 %v501
    %1351 = vmatprep.subr.mxu0 %v498
    %1352 = vmatpush2.msra.mxu0 %v497
    %1353 = vmatprep.subr.mxu0 %v494
    %1354 = vmatpush2.msra.mxu0 %v493
    %1355 = vmatprep.subr.mxu0 %v490
    %1356 = vmatpush2.msra.mxu0 %v489
    %1357 = vmatprep.subr.mxu0 %v486
    %1358 = vmatpush2.msra.mxu0 %v485
    %1359 = vmatprep.mubr.f32.mxu0 %v789
    %1360 = vmatmul.mubr.f32.gmra.mxu0 %v787
    %v1361 = vpop.f32.mrf.mxu0
    %v1362 = vadd.f32 %v1291, %v1361
    %v1363 = vpop.f32.mrf.mxu0
    %v1364 = vadd.f32 %v1293, %v1363
    %1365 = vdwg.mxu0
    %v1366 = vld [vmem:[%s4] sm:$0xf]
    %v1368 = vlaneseq
    %v1369 = vshrl.u32 %v1368, 7
    %v1370 = vsub.s32 0, %v1369
    %v1371 = vrot.slane %v1366, %v1370
    %v1372 = vlaneseq
    %v1373 = vshrl.u32 %v1372, 7
    %v1374 = vsub.s32 1, %v1373
    %v1375 = vrot.slane %v1366, %v1374
    %v1376 = vlaneseq
    %v1377 = vshrl.u32 %v1376, 7
    %v1378 = vsub.s32 2, %v1377
    %v1379 = vrot.slane %v1366, %v1378
    %v1380 = vlaneseq
    %v1381 = vshrl.u32 %v1380, 7
    %v1382 = vsub.s32 3, %v1381
    %v1383 = vrot.slane %v1366, %v1382
    %v1388 = vadd.f32 %v1078, %v1371
    %v1389 = vadd.f32 %v1080, %v1375
    %v1390 = vadd.f32 %v1362, %v1379
    %v1391 = vadd.f32 %v1364, %v1383
    %v1392 = vmul.f32 %v1388, 0.5
    %v1393 = vmul.f32 %v1389, 0.5
    %v1394 = vmul.f32 %v1390, 0.5
    %v1395 = vmul.f32 %v1391, 0.5
    %v1396 = vmul.f32 %v1388, 0.70710677
    %v1397 = vmul.f32 %v1389, 0.70710677
    %v1398 = vmul.f32 %v1390, 0.70710677
    %v1399 = vmul.f32 %v1391, 0.70710677
    %vm1400 = vcmp.ge.f32.partialorder %v1396, 0.0
    %vm1401 = vcmp.ge.f32.partialorder %v1397, 0.0
    %vm1402 = vcmp.ge.f32.partialorder %v1398, 0.0
    %vm1403 = vcmp.ge.f32.partialorder %v1399, 0.0
    %v1404 = vsel %vm1400, 1.0, -1.0
    %v1405 = vsel %vm1401, 1.0, -1.0
    %v1406 = vsel %vm1402, 1.0, -1.0
    %v1407 = vsel %vm1403, 1.0, -1.0
    %v1408 = vand.u32 2147483647, %v1396
    %v1409 = vand.u32 2147483647, %v1397
    %v1410 = vand.u32 2147483647, %v1398
    %v1411 = vand.u32 2147483647, %v1399
    %v1412 = vmul.f32 %v1408, 0.3275911
    %v1413 = vmul.f32 %v1409, 0.3275911
    %v1414 = vmul.f32 %v1410, 0.3275911
    %v1415 = vmul.f32 %v1411, 0.3275911
    %v1416 = vadd.f32 %v1412, 1.0
    %v1417 = vadd.f32 %v1413, 1.0
    %v1418 = vadd.f32 %v1414, 1.0
    %v1419 = vadd.f32 %v1415, 1.0
    %v1420 = vrcp.pop %v1416
    %v1421 = vmul.f32 1.0, %v1420
    %v1422 = vrcp.pop %v1417
    %v1423 = vmul.f32 1.0, %v1422
    %v1424 = vrcp.pop %v1418
    %v1425 = vmul.f32 1.0, %v1424
    %v1426 = vrcp.pop %v1419
    %v1427 = vmul.f32 1.0, %v1426
    %v1428 = vmul.f32 %v1421, 1.0614054
    %v1429 = vmul.f32 %v1423, 1.0614054
    %v1430 = vmul.f32 %v1425, 1.0614054
    %v1431 = vmul.f32 %v1427, 1.0614054
    %v1432 = vadd.f32 %v1428, -1.4531521
    %v1433 = vadd.f32 %v1429, -1.4531521
    %v1434 = vadd.f32 %v1430, -1.4531521
    %v1435 = vadd.f32 %v1431, -1.4531521
    %v1436 = vmul.f32 %v1432, %v1421
    %v1437 = vmul.f32 %v1433, %v1423
    %v1438 = vmul.f32 %v1434, %v1425
    %v1439 = vmul.f32 %v1435, %v1427
    %v1440 = vadd.f32 %v1436, 1.4214138
    %v1441 = vadd.f32 %v1437, 1.4214138
    %v1442 = vadd.f32 %v1438, 1.4214138
    %v1443 = vadd.f32 %v1439, 1.4214138
    %v1444 = vmul.f32 %v1440, %v1421
    %v1445 = vmul.f32 %v1441, %v1423
    %v1446 = vmul.f32 %v1442, %v1425
    %v1447 = vmul.f32 %v1443, %v1427
    %v1448 = vadd.f32 %v1444, -0.28449672
    %v1449 = vadd.f32 %v1445, -0.28449672
    %v1450 = vadd.f32 %v1446, -0.28449672
    %v1451 = vadd.f32 %v1447, -0.28449672
    %v1452 = vmul.f32 %v1448, %v1421
    %v1453 = vmul.f32 %v1449, %v1423
    %v1454 = vmul.f32 %v1450, %v1425
    %v1455 = vmul.f32 %v1451, %v1427
    %v1456 = vadd.f32 %v1452, 0.2548296
    %v1457 = vadd.f32 %v1453, 0.2548296
    %v1458 = vadd.f32 %v1454, 0.2548296
    %v1459 = vadd.f32 %v1455, 0.2548296
    %v1460 = vmul.f32 %v1456, %v1421
    %v1461 = vmul.f32 %v1457, %v1423
    %v1462 = vmul.f32 %v1458, %v1425
    %v1463 = vmul.f32 %v1459, %v1427
    %v1464 = vsub.f32 0.0, %v1408
    %v1465 = vsub.f32 0.0, %v1409
    %v1466 = vsub.f32 0.0, %v1410
    %v1467 = vsub.f32 0.0, %v1411
    %v1468 = vmul.f32 %v1464, %v1408
    %v1469 = vmul.f32 %v1465, %v1409
    %v1470 = vmul.f32 %v1466, %v1410
    %v1471 = vmul.f32 %v1467, %v1411
    %v1472 = vmul.f32 %v1468, 1.442695
    %v1473 = vpow.pop %v1472
    %v1474 = vmul.f32 %v1469, 1.442695
    %v1475 = vpow.pop %v1474
    %v1476 = vmul.f32 %v1470, 1.442695
    %v1477 = vpow.pop %v1476
    %v1478 = vmul.f32 %v1471, 1.442695
    %v1479 = vpow.pop %v1478
    %v1480 = vmul.f32 %v1460, %v1473
    %v1481 = vmul.f32 %v1461, %v1475
    %v1482 = vmul.f32 %v1462, %v1477
    %v1483 = vmul.f32 %v1463, %v1479
    %v1484 = vsub.f32 1.0, %v1480
    %v1485 = vsub.f32 1.0, %v1481
    %v1486 = vsub.f32 1.0, %v1482
    %v1487 = vsub.f32 1.0, %v1483
    %v1488 = vmul.f32 %v1404, %v1484
    %v1489 = vmul.f32 %v1405, %v1485
    %v1490 = vmul.f32 %v1406, %v1486
    %v1491 = vmul.f32 %v1407, %v1487
    %v1492 = vadd.f32 %v1488, 1.0
    %v1493 = vadd.f32 %v1489, 1.0
    %v1494 = vadd.f32 %v1490, 1.0
    %v1495 = vadd.f32 %v1491, 1.0
    %v1496 = vmul.f32 %v1392, %v1492
    %v1497 = vmul.f32 %v1393, %v1493
    %v1498 = vmul.f32 %v1394, %v1494
    %v1499 = vmul.f32 %v1395, %v1495
    %v1500 = vld [vmem:[%s5] sm:$0xff]
    %v1501 = vld [vmem:[%s5 + $0x8] sm:$0xff]
    %v1502 = vld [vmem:[%s5 + $0x10] sm:$0xff]
    %v1503 = vld [vmem:[%s5 + $0x18] sm:$0xff]
    %v1504 = vld [vmem:[%s5 + $0x20] sm:$0xff]
    %v1505 = vld [vmem:[%s5 + $0x28] sm:$0xff]
    %v1506 = vld [vmem:[%s5 + $0x30] sm:$0xff]
    %v1507 = vld [vmem:[%s5 + $0x38] sm:$0xff]
    %v1508 = vld [vmem:[%s5 + $0x40] sm:$0xff]
    %v1509 = vld [vmem:[%s5 + $0x48] sm:$0xff]
    %v1510 = vld [vmem:[%s5 + $0x50] sm:$0xff]
    %v1511 = vld [vmem:[%s5 + $0x58] sm:$0xff]
    %v1512 = vld [vmem:[%s5 + $0x60] sm:$0xff]
    %v1513 = vld [vmem:[%s5 + $0x68] sm:$0xff]
    %v1514 = vld [vmem:[%s5 + $0x70] sm:$0xff]
    %v1515 = vld [vmem:[%s5 + $0x78] sm:$0xff]
    %v1516 = vld [vmem:[%s5 + $0x80] sm:$0xff]
    %v1517 = vld [vmem:[%s5 + $0x88] sm:$0xff]
    %v1518 = vld [vmem:[%s5 + $0x90] sm:$0xff]
    %v1519 = vld [vmem:[%s5 + $0x98] sm:$0xff]
    %v1520 = vld [vmem:[%s5 + $0xa0] sm:$0xff]
    %v1521 = vld [vmem:[%s5 + $0xa8] sm:$0xff]
    %v1522 = vld [vmem:[%s5 + $0xb0] sm:$0xff]
    %v1523 = vld [vmem:[%s5 + $0xb8] sm:$0xff]
    %v1524 = vld [vmem:[%s5 + $0xc0] sm:$0xff]
    %v1525 = vld [vmem:[%s5 + $0xc8] sm:$0xff]
    %v1526 = vld [vmem:[%s5 + $0xd0] sm:$0xff]
    %v1527 = vld [vmem:[%s5 + $0xd8] sm:$0xff]
    %v1528 = vld [vmem:[%s5 + $0xe0] sm:$0xff]
    %v1529 = vld [vmem:[%s5 + $0xe8] sm:$0xff]
    %v1530 = vld [vmem:[%s5 + $0xf0] sm:$0xff]
    %v1531 = vld [vmem:[%s5 + $0xf8] sm:$0xff]
    %v1532 = vld [vmem:[%s5 + $0x100] sm:$0xff]
    %v1533 = vld [vmem:[%s5 + $0x108] sm:$0xff]
    %v1534 = vld [vmem:[%s5 + $0x110] sm:$0xff]
    %v1535 = vld [vmem:[%s5 + $0x118] sm:$0xff]
    %v1536 = vld [vmem:[%s5 + $0x120] sm:$0xff]
    %v1537 = vld [vmem:[%s5 + $0x128] sm:$0xff]
    %v1538 = vld [vmem:[%s5 + $0x130] sm:$0xff]
    %v1539 = vld [vmem:[%s5 + $0x138] sm:$0xff]
    %v1540 = vld [vmem:[%s5 + $0x140] sm:$0xff]
    %v1541 = vld [vmem:[%s5 + $0x148] sm:$0xff]
    %v1542 = vld [vmem:[%s5 + $0x150] sm:$0xff]
    %v1543 = vld [vmem:[%s5 + $0x158] sm:$0xff]
    %v1544 = vld [vmem:[%s5 + $0x160] sm:$0xff]
    %v1545 = vld [vmem:[%s5 + $0x168] sm:$0xff]
    %v1546 = vld [vmem:[%s5 + $0x170] sm:$0xff]
    %v1547 = vld [vmem:[%s5 + $0x178] sm:$0xff]
    %v1548 = vld [vmem:[%s5 + $0x180] sm:$0xff]
    %v1549 = vld [vmem:[%s5 + $0x188] sm:$0xff]
    %v1550 = vld [vmem:[%s5 + $0x190] sm:$0xff]
    %v1551 = vld [vmem:[%s5 + $0x198] sm:$0xff]
    %v1552 = vld [vmem:[%s5 + $0x1a0] sm:$0xff]
    %v1553 = vld [vmem:[%s5 + $0x1a8] sm:$0xff]
    %v1554 = vld [vmem:[%s5 + $0x1b0] sm:$0xff]
    %v1555 = vld [vmem:[%s5 + $0x1b8] sm:$0xff]
    %v1556 = vld [vmem:[%s5 + $0x1c0] sm:$0xff]
    %v1557 = vld [vmem:[%s5 + $0x1c8] sm:$0xff]
    %v1558 = vld [vmem:[%s5 + $0x1d0] sm:$0xff]
    %v1559 = vld [vmem:[%s5 + $0x1d8] sm:$0xff]
    %v1560 = vld [vmem:[%s5 + $0x1e0] sm:$0xff]
    %v1561 = vld [vmem:[%s5 + $0x1e8] sm:$0xff]
    %v1562 = vld [vmem:[%s5 + $0x1f0] sm:$0xff]
    %v1563 = vld [vmem:[%s5 + $0x1f8] sm:$0xff]
    %v1564 = vld [vmem:[%s5 + $0x200] sm:$0xff]
    %v1565 = vld [vmem:[%s5 + $0x208] sm:$0xff]
    %v1566 = vld [vmem:[%s5 + $0x210] sm:$0xff]
    %v1567 = vld [vmem:[%s5 + $0x218] sm:$0xff]
    %v1568 = vld [vmem:[%s5 + $0x220] sm:$0xff]
    %v1569 = vld [vmem:[%s5 + $0x228] sm:$0xff]
    %v1570 = vld [vmem:[%s5 + $0x230] sm:$0xff]
    %v1571 = vld [vmem:[%s5 + $0x238] sm:$0xff]
    %v1572 = vld [vmem:[%s5 + $0x240] sm:$0xff]
    %v1573 = vld [vmem:[%s5 + $0x248] sm:$0xff]
    %v1574 = vld [vmem:[%s5 + $0x250] sm:$0xff]
    %v1575 = vld [vmem:[%s5 + $0x258] sm:$0xff]
    %v1576 = vld [vmem:[%s5 + $0x260] sm:$0xff]
    %v1577 = vld [vmem:[%s5 + $0x268] sm:$0xff]
    %v1578 = vld [vmem:[%s5 + $0x270] sm:$0xff]
    %v1579 = vld [vmem:[%s5 + $0x278] sm:$0xff]
    %v1580 = vld [vmem:[%s5 + $0x280] sm:$0xff]
    %v1581 = vld [vmem:[%s5 + $0x288] sm:$0xff]
    %v1582 = vld [vmem:[%s5 + $0x290] sm:$0xff]
    %v1583 = vld [vmem:[%s5 + $0x298] sm:$0xff]
    %v1584 = vld [vmem:[%s5 + $0x2a0] sm:$0xff]
    %v1585 = vld [vmem:[%s5 + $0x2a8] sm:$0xff]
    %v1586 = vld [vmem:[%s5 + $0x2b0] sm:$0xff]
    %v1587 = vld [vmem:[%s5 + $0x2b8] sm:$0xff]
    %v1588 = vld [vmem:[%s5 + $0x2c0] sm:$0xff]
    %v1589 = vld [vmem:[%s5 + $0x2c8] sm:$0xff]
    %v1590 = vld [vmem:[%s5 + $0x2d0] sm:$0xff]
    %v1591 = vld [vmem:[%s5 + $0x2d8] sm:$0xff]
    %v1592 = vld [vmem:[%s5 + $0x2e0] sm:$0xff]
    %v1593 = vld [vmem:[%s5 + $0x2e8] sm:$0xff]
    %v1594 = vld [vmem:[%s5 + $0x2f0] sm:$0xff]
    %v1595 = vld [vmem:[%s5 + $0x2f8] sm:$0xff]
    %v1596 = vld [vmem:[%s5 + $0x300] sm:$0xff]
    %v1597 = vld [vmem:[%s5 + $0x308] sm:$0xff]
    %v1598 = vld [vmem:[%s5 + $0x310] sm:$0xff]
    %v1599 = vld [vmem:[%s5 + $0x318] sm:$0xff]
    %v1600 = vld [vmem:[%s5 + $0x320] sm:$0xff]
    %v1601 = vld [vmem:[%s5 + $0x328] sm:$0xff]
    %v1602 = vld [vmem:[%s5 + $0x330] sm:$0xff]
    %v1603 = vld [vmem:[%s5 + $0x338] sm:$0xff]
    %v1604 = vld [vmem:[%s5 + $0x340] sm:$0xff]
    %v1605 = vld [vmem:[%s5 + $0x348] sm:$0xff]
    %v1606 = vld [vmem:[%s5 + $0x350] sm:$0xff]
    %v1607 = vld [vmem:[%s5 + $0x358] sm:$0xff]
    %v1608 = vld [vmem:[%s5 + $0x360] sm:$0xff]
    %v1609 = vld [vmem:[%s5 + $0x368] sm:$0xff]
    %v1610 = vld [vmem:[%s5 + $0x370] sm:$0xff]
    %v1611 = vld [vmem:[%s5 + $0x378] sm:$0xff]
    %v1612 = vld [vmem:[%s5 + $0x380] sm:$0xff]
    %v1613 = vld [vmem:[%s5 + $0x388] sm:$0xff]
    %v1614 = vld [vmem:[%s5 + $0x390] sm:$0xff]
    %v1615 = vld [vmem:[%s5 + $0x398] sm:$0xff]
    %v1616 = vld [vmem:[%s5 + $0x3a0] sm:$0xff]
    %v1617 = vld [vmem:[%s5 + $0x3a8] sm:$0xff]
    %v1618 = vld [vmem:[%s5 + $0x3b0] sm:$0xff]
    %v1619 = vld [vmem:[%s5 + $0x3b8] sm:$0xff]
    %v1620 = vld [vmem:[%s5 + $0x3c0] sm:$0xff]
    %v1621 = vld [vmem:[%s5 + $0x3c8] sm:$0xff]
    %v1622 = vld [vmem:[%s5 + $0x3d0] sm:$0xff]
    %v1623 = vld [vmem:[%s5 + $0x3d8] sm:$0xff]
    %v1624 = vld [vmem:[%s5 + $0x3e0] sm:$0xff]
    %v1625 = vld [vmem:[%s5 + $0x3e8] sm:$0xff]
    %v1626 = vld [vmem:[%s5 + $0x3f0] sm:$0xff]
    %v1627 = vld [vmem:[%s5 + $0x3f8] sm:$0xff]
    %v1628 = vld [vmem:[%s5 + $0x400] sm:$0xff]
    %v1629 = vld [vmem:[%s5 + $0x408] sm:$0xff]
    %v1630 = vld [vmem:[%s5 + $0x410] sm:$0xff]
    %v1631 = vld [vmem:[%s5 + $0x418] sm:$0xff]
    %v1632 = vld [vmem:[%s5 + $0x420] sm:$0xff]
    %v1633 = vld [vmem:[%s5 + $0x428] sm:$0xff]
    %v1634 = vld [vmem:[%s5 + $0x430] sm:$0xff]
    %v1635 = vld [vmem:[%s5 + $0x438] sm:$0xff]
    %v1636 = vld [vmem:[%s5 + $0x440] sm:$0xff]
    %v1637 = vld [vmem:[%s5 + $0x448] sm:$0xff]
    %v1638 = vld [vmem:[%s5 + $0x450] sm:$0xff]
    %v1639 = vld [vmem:[%s5 + $0x458] sm:$0xff]
    %v1640 = vld [vmem:[%s5 + $0x460] sm:$0xff]
    %v1641 = vld [vmem:[%s5 + $0x468] sm:$0xff]
    %v1642 = vld [vmem:[%s5 + $0x470] sm:$0xff]
    %v1643 = vld [vmem:[%s5 + $0x478] sm:$0xff]
    %v1644 = vld [vmem:[%s5 + $0x480] sm:$0xff]
    %v1645 = vld [vmem:[%s5 + $0x488] sm:$0xff]
    %v1646 = vld [vmem:[%s5 + $0x490] sm:$0xff]
    %v1647 = vld [vmem:[%s5 + $0x498] sm:$0xff]
    %v1648 = vld [vmem:[%s5 + $0x4a0] sm:$0xff]
    %v1649 = vld [vmem:[%s5 + $0x4a8] sm:$0xff]
    %v1650 = vld [vmem:[%s5 + $0x4b0] sm:$0xff]
    %v1651 = vld [vmem:[%s5 + $0x4b8] sm:$0xff]
    %v1652 = vld [vmem:[%s5 + $0x4c0] sm:$0xff]
    %v1653 = vld [vmem:[%s5 + $0x4c8] sm:$0xff]
    %v1654 = vld [vmem:[%s5 + $0x4d0] sm:$0xff]
    %v1655 = vld [vmem:[%s5 + $0x4d8] sm:$0xff]
    %v1656 = vld [vmem:[%s5 + $0x4e0] sm:$0xff]
    %v1657 = vld [vmem:[%s5 + $0x4e8] sm:$0xff]
    %v1658 = vld [vmem:[%s5 + $0x4f0] sm:$0xff]
    %v1659 = vld [vmem:[%s5 + $0x4f8] sm:$0xff]
    %v1660 = vld [vmem:[%s5 + $0x500] sm:$0xff]
    %v1661 = vld [vmem:[%s5 + $0x508] sm:$0xff]
    %v1662 = vld [vmem:[%s5 + $0x510] sm:$0xff]
    %v1663 = vld [vmem:[%s5 + $0x518] sm:$0xff]
    %v1664 = vld [vmem:[%s5 + $0x520] sm:$0xff]
    %v1665 = vld [vmem:[%s5 + $0x528] sm:$0xff]
    %v1666 = vld [vmem:[%s5 + $0x530] sm:$0xff]
    %v1667 = vld [vmem:[%s5 + $0x538] sm:$0xff]
    %v1668 = vld [vmem:[%s5 + $0x540] sm:$0xff]
    %v1669 = vld [vmem:[%s5 + $0x548] sm:$0xff]
    %v1670 = vld [vmem:[%s5 + $0x550] sm:$0xff]
    %v1671 = vld [vmem:[%s5 + $0x558] sm:$0xff]
    %v1672 = vld [vmem:[%s5 + $0x560] sm:$0xff]
    %v1673 = vld [vmem:[%s5 + $0x568] sm:$0xff]
    %v1674 = vld [vmem:[%s5 + $0x570] sm:$0xff]
    %v1675 = vld [vmem:[%s5 + $0x578] sm:$0xff]
    %v1676 = vld [vmem:[%s5 + $0x580] sm:$0xff]
    %v1677 = vld [vmem:[%s5 + $0x588] sm:$0xff]
    %v1678 = vld [vmem:[%s5 + $0x590] sm:$0xff]
    %v1679 = vld [vmem:[%s5 + $0x598] sm:$0xff]
    %v1680 = vld [vmem:[%s5 + $0x5a0] sm:$0xff]
    %v1681 = vld [vmem:[%s5 + $0x5a8] sm:$0xff]
    %v1682 = vld [vmem:[%s5 + $0x5b0] sm:$0xff]
    %v1683 = vld [vmem:[%s5 + $0x5b8] sm:$0xff]
    %v1684 = vld [vmem:[%s5 + $0x5c0] sm:$0xff]
    %v1685 = vld [vmem:[%s5 + $0x5c8] sm:$0xff]
    %v1686 = vld [vmem:[%s5 + $0x5d0] sm:$0xff]
    %v1687 = vld [vmem:[%s5 + $0x5d8] sm:$0xff]
    %v1688 = vld [vmem:[%s5 + $0x5e0] sm:$0xff]
    %v1689 = vld [vmem:[%s5 + $0x5e8] sm:$0xff]
    %v1690 = vld [vmem:[%s5 + $0x5f0] sm:$0xff]
    %v1691 = vld [vmem:[%s5 + $0x5f8] sm:$0xff]
    %v1692 = vld [vmem:[%s5 + $0x600] sm:$0xff]
    %v1693 = vld [vmem:[%s5 + $0x608] sm:$0xff]
    %v1694 = vld [vmem:[%s5 + $0x610] sm:$0xff]
    %v1695 = vld [vmem:[%s5 + $0x618] sm:$0xff]
    %v1696 = vld [vmem:[%s5 + $0x620] sm:$0xff]
    %v1697 = vld [vmem:[%s5 + $0x628] sm:$0xff]
    %v1698 = vld [vmem:[%s5 + $0x630] sm:$0xff]
    %v1699 = vld [vmem:[%s5 + $0x638] sm:$0xff]
    %v1700 = vld [vmem:[%s5 + $0x640] sm:$0xff]
    %v1701 = vld [vmem:[%s5 + $0x648] sm:$0xff]
    %v1702 = vld [vmem:[%s5 + $0x650] sm:$0xff]
    %v1703 = vld [vmem:[%s5 + $0x658] sm:$0xff]
    %v1704 = vld [vmem:[%s5 + $0x660] sm:$0xff]
    %v1705 = vld [vmem:[%s5 + $0x668] sm:$0xff]
    %v1706 = vld [vmem:[%s5 + $0x670] sm:$0xff]
    %v1707 = vld [vmem:[%s5 + $0x678] sm:$0xff]
    %v1708 = vld [vmem:[%s5 + $0x680] sm:$0xff]
    %v1709 = vld [vmem:[%s5 + $0x688] sm:$0xff]
    %v1710 = vld [vmem:[%s5 + $0x690] sm:$0xff]
    %v1711 = vld [vmem:[%s5 + $0x698] sm:$0xff]
    %v1712 = vld [vmem:[%s5 + $0x6a0] sm:$0xff]
    %v1713 = vld [vmem:[%s5 + $0x6a8] sm:$0xff]
    %v1714 = vld [vmem:[%s5 + $0x6b0] sm:$0xff]
    %v1715 = vld [vmem:[%s5 + $0x6b8] sm:$0xff]
    %v1716 = vld [vmem:[%s5 + $0x6c0] sm:$0xff]
    %v1717 = vld [vmem:[%s5 + $0x6c8] sm:$0xff]
    %v1718 = vld [vmem:[%s5 + $0x6d0] sm:$0xff]
    %v1719 = vld [vmem:[%s5 + $0x6d8] sm:$0xff]
    %v1720 = vld [vmem:[%s5 + $0x6e0] sm:$0xff]
    %v1721 = vld [vmem:[%s5 + $0x6e8] sm:$0xff]
    %v1722 = vld [vmem:[%s5 + $0x6f0] sm:$0xff]
    %v1723 = vld [vmem:[%s5 + $0x6f8] sm:$0xff]
    %v1724 = vld [vmem:[%s5 + $0x700] sm:$0xff]
    %v1725 = vld [vmem:[%s5 + $0x708] sm:$0xff]
    %v1726 = vld [vmem:[%s5 + $0x710] sm:$0xff]
    %v1727 = vld [vmem:[%s5 + $0x718] sm:$0xff]
    %v1728 = vld [vmem:[%s5 + $0x720] sm:$0xff]
    %v1729 = vld [vmem:[%s5 + $0x728] sm:$0xff]
    %v1730 = vld [vmem:[%s5 + $0x730] sm:$0xff]
    %v1731 = vld [vmem:[%s5 + $0x738] sm:$0xff]
    %v1732 = vld [vmem:[%s5 + $0x740] sm:$0xff]
    %v1733 = vld [vmem:[%s5 + $0x748] sm:$0xff]
    %v1734 = vld [vmem:[%s5 + $0x750] sm:$0xff]
    %v1735 = vld [vmem:[%s5 + $0x758] sm:$0xff]
    %v1736 = vld [vmem:[%s5 + $0x760] sm:$0xff]
    %v1737 = vld [vmem:[%s5 + $0x768] sm:$0xff]
    %v1738 = vld [vmem:[%s5 + $0x770] sm:$0xff]
    %v1739 = vld [vmem:[%s5 + $0x778] sm:$0xff]
    %v1740 = vld [vmem:[%s5 + $0x780] sm:$0xff]
    %v1741 = vld [vmem:[%s5 + $0x788] sm:$0xff]
    %v1742 = vld [vmem:[%s5 + $0x790] sm:$0xff]
    %v1743 = vld [vmem:[%s5 + $0x798] sm:$0xff]
    %v1744 = vld [vmem:[%s5 + $0x7a0] sm:$0xff]
    %v1745 = vld [vmem:[%s5 + $0x7a8] sm:$0xff]
    %v1746 = vld [vmem:[%s5 + $0x7b0] sm:$0xff]
    %v1747 = vld [vmem:[%s5 + $0x7b8] sm:$0xff]
    %v1748 = vld [vmem:[%s5 + $0x7c0] sm:$0xff]
    %v1749 = vld [vmem:[%s5 + $0x7c8] sm:$0xff]
    %v1750 = vld [vmem:[%s5 + $0x7d0] sm:$0xff]
    %v1751 = vld [vmem:[%s5 + $0x7d8] sm:$0xff]
    %v1752 = vld [vmem:[%s5 + $0x7e0] sm:$0xff]
    %v1753 = vld [vmem:[%s5 + $0x7e8] sm:$0xff]
    %v1754 = vld [vmem:[%s5 + $0x7f0] sm:$0xff]
    %v1755 = vld [vmem:[%s5 + $0x7f8] sm:$0xff]
    %v1756 = vld [vmem:[%s5 + $0x800] sm:$0xff]
    %v1757 = vld [vmem:[%s5 + $0x808] sm:$0xff]
    %v1758 = vld [vmem:[%s5 + $0x810] sm:$0xff]
    %v1759 = vld [vmem:[%s5 + $0x818] sm:$0xff]
    %v1760 = vld [vmem:[%s5 + $0x820] sm:$0xff]
    %v1761 = vld [vmem:[%s5 + $0x828] sm:$0xff]
    %v1762 = vld [vmem:[%s5 + $0x830] sm:$0xff]
    %v1763 = vld [vmem:[%s5 + $0x838] sm:$0xff]
    %v1764 = vld [vmem:[%s5 + $0x840] sm:$0xff]
    %v1765 = vld [vmem:[%s5 + $0x848] sm:$0xff]
    %v1766 = vld [vmem:[%s5 + $0x850] sm:$0xff]
    %v1767 = vld [vmem:[%s5 + $0x858] sm:$0xff]
    %v1768 = vld [vmem:[%s5 + $0x860] sm:$0xff]
    %v1769 = vld [vmem:[%s5 + $0x868] sm:$0xff]
    %v1770 = vld [vmem:[%s5 + $0x870] sm:$0xff]
    %v1771 = vld [vmem:[%s5 + $0x878] sm:$0xff]
    %v1772 = vld [vmem:[%s5 + $0x880] sm:$0xff]
    %v1773 = vld [vmem:[%s5 + $0x888] sm:$0xff]
    %v1774 = vld [vmem:[%s5 + $0x890] sm:$0xff]
    %v1775 = vld [vmem:[%s5 + $0x898] sm:$0xff]
    %v1776 = vld [vmem:[%s5 + $0x8a0] sm:$0xff]
    %v1777 = vld [vmem:[%s5 + $0x8a8] sm:$0xff]
    %v1778 = vld [vmem:[%s5 + $0x8b0] sm:$0xff]
    %v1779 = vld [vmem:[%s5 + $0x8b8] sm:$0xff]
    %v1780 = vld [vmem:[%s5 + $0x8c0] sm:$0xff]
    %v1781 = vld [vmem:[%s5 + $0x8c8] sm:$0xff]
    %v1782 = vld [vmem:[%s5 + $0x8d0] sm:$0xff]
    %v1783 = vld [vmem:[%s5 + $0x8d8] sm:$0xff]
    %v1784 = vld [vmem:[%s5 + $0x8e0] sm:$0xff]
    %v1785 = vld [vmem:[%s5 + $0x8e8] sm:$0xff]
    %v1786 = vld [vmem:[%s5 + $0x8f0] sm:$0xff]
    %v1787 = vld [vmem:[%s5 + $0x8f8] sm:$0xff]
    %v1788 = vld [vmem:[%s5 + $0x900] sm:$0xff]
    %v1789 = vld [vmem:[%s5 + $0x908] sm:$0xff]
    %v1790 = vld [vmem:[%s5 + $0x910] sm:$0xff]
    %v1791 = vld [vmem:[%s5 + $0x918] sm:$0xff]
    %v1792 = vld [vmem:[%s5 + $0x920] sm:$0xff]
    %v1793 = vld [vmem:[%s5 + $0x928] sm:$0xff]
    %v1794 = vld [vmem:[%s5 + $0x930] sm:$0xff]
    %v1795 = vld [vmem:[%s5 + $0x938] sm:$0xff]
    %v1796 = vld [vmem:[%s5 + $0x940] sm:$0xff]
    %v1797 = vld [vmem:[%s5 + $0x948] sm:$0xff]
    %v1798 = vld [vmem:[%s5 + $0x950] sm:$0xff]
    %v1799 = vld [vmem:[%s5 + $0x958] sm:$0xff]
    %v1800 = vld [vmem:[%s5 + $0x960] sm:$0xff]
    %v1801 = vld [vmem:[%s5 + $0x968] sm:$0xff]
    %v1802 = vld [vmem:[%s5 + $0x970] sm:$0xff]
    %v1803 = vld [vmem:[%s5 + $0x978] sm:$0xff]
    %v1804 = vld [vmem:[%s5 + $0x980] sm:$0xff]
    %v1805 = vld [vmem:[%s5 + $0x988] sm:$0xff]
    %v1806 = vld [vmem:[%s5 + $0x990] sm:$0xff]
    %v1807 = vld [vmem:[%s5 + $0x998] sm:$0xff]
    %v1808 = vld [vmem:[%s5 + $0x9a0] sm:$0xff]
    %v1809 = vld [vmem:[%s5 + $0x9a8] sm:$0xff]
    %v1810 = vld [vmem:[%s5 + $0x9b0] sm:$0xff]
    %v1811 = vld [vmem:[%s5 + $0x9b8] sm:$0xff]
    %v1812 = vld [vmem:[%s5 + $0x9c0] sm:$0xff]
    %v1813 = vld [vmem:[%s5 + $0x9c8] sm:$0xff]
    %v1814 = vld [vmem:[%s5 + $0x9d0] sm:$0xff]
    %v1815 = vld [vmem:[%s5 + $0x9d8] sm:$0xff]
    %v1816 = vld [vmem:[%s5 + $0x9e0] sm:$0xff]
    %v1817 = vld [vmem:[%s5 + $0x9e8] sm:$0xff]
    %v1818 = vld [vmem:[%s5 + $0x9f0] sm:$0xff]
    %v1819 = vld [vmem:[%s5 + $0x9f8] sm:$0xff]
    %v1820 = vld [vmem:[%s5 + $0xa00] sm:$0xff]
    %v1821 = vld [vmem:[%s5 + $0xa08] sm:$0xff]
    %v1822 = vld [vmem:[%s5 + $0xa10] sm:$0xff]
    %v1823 = vld [vmem:[%s5 + $0xa18] sm:$0xff]
    %v1824 = vld [vmem:[%s5 + $0xa20] sm:$0xff]
    %v1825 = vld [vmem:[%s5 + $0xa28] sm:$0xff]
    %v1826 = vld [vmem:[%s5 + $0xa30] sm:$0xff]
    %v1827 = vld [vmem:[%s5 + $0xa38] sm:$0xff]
    %v1828 = vld [vmem:[%s5 + $0xa40] sm:$0xff]
    %v1829 = vld [vmem:[%s5 + $0xa48] sm:$0xff]
    %v1830 = vld [vmem:[%s5 + $0xa50] sm:$0xff]
    %v1831 = vld [vmem:[%s5 + $0xa58] sm:$0xff]
    %v1832 = vld [vmem:[%s5 + $0xa60] sm:$0xff]
    %v1833 = vld [vmem:[%s5 + $0xa68] sm:$0xff]
    %v1834 = vld [vmem:[%s5 + $0xa70] sm:$0xff]
    %v1835 = vld [vmem:[%s5 + $0xa78] sm:$0xff]
    %v1836 = vld [vmem:[%s5 + $0xa80] sm:$0xff]
    %v1837 = vld [vmem:[%s5 + $0xa88] sm:$0xff]
    %v1838 = vld [vmem:[%s5 + $0xa90] sm:$0xff]
    %v1839 = vld [vmem:[%s5 + $0xa98] sm:$0xff]
    %v1840 = vld [vmem:[%s5 + $0xaa0] sm:$0xff]
    %v1841 = vld [vmem:[%s5 + $0xaa8] sm:$0xff]
    %v1842 = vld [vmem:[%s5 + $0xab0] sm:$0xff]
    %v1843 = vld [vmem:[%s5 + $0xab8] sm:$0xff]
    %v1844 = vld [vmem:[%s5 + $0xac0] sm:$0xff]
    %v1845 = vld [vmem:[%s5 + $0xac8] sm:$0xff]
    %v1846 = vld [vmem:[%s5 + $0xad0] sm:$0xff]
    %v1847 = vld [vmem:[%s5 + $0xad8] sm:$0xff]
    %v1848 = vld [vmem:[%s5 + $0xae0] sm:$0xff]
    %v1849 = vld [vmem:[%s5 + $0xae8] sm:$0xff]
    %v1850 = vld [vmem:[%s5 + $0xaf0] sm:$0xff]
    %v1851 = vld [vmem:[%s5 + $0xaf8] sm:$0xff]
    %v1852 = vld [vmem:[%s5 + $0xb00] sm:$0xff]
    %v1853 = vld [vmem:[%s5 + $0xb08] sm:$0xff]
    %v1854 = vld [vmem:[%s5 + $0xb10] sm:$0xff]
    %v1855 = vld [vmem:[%s5 + $0xb18] sm:$0xff]
    %v1856 = vld [vmem:[%s5 + $0xb20] sm:$0xff]
    %v1857 = vld [vmem:[%s5 + $0xb28] sm:$0xff]
    %v1858 = vld [vmem:[%s5 + $0xb30] sm:$0xff]
    %v1859 = vld [vmem:[%s5 + $0xb38] sm:$0xff]
    %v1860 = vld [vmem:[%s5 + $0xb40] sm:$0xff]
    %v1861 = vld [vmem:[%s5 + $0xb48] sm:$0xff]
    %v1862 = vld [vmem:[%s5 + $0xb50] sm:$0xff]
    %v1863 = vld [vmem:[%s5 + $0xb58] sm:$0xff]
    %v1864 = vld [vmem:[%s5 + $0xb60] sm:$0xff]
    %v1865 = vld [vmem:[%s5 + $0xb68] sm:$0xff]
    %v1866 = vld [vmem:[%s5 + $0xb70] sm:$0xff]
    %v1867 = vld [vmem:[%s5 + $0xb78] sm:$0xff]
    %v1868 = vld [vmem:[%s5 + $0xb80] sm:$0xff]
    %v1869 = vld [vmem:[%s5 + $0xb88] sm:$0xff]
    %v1870 = vld [vmem:[%s5 + $0xb90] sm:$0xff]
    %v1871 = vld [vmem:[%s5 + $0xb98] sm:$0xff]
    %v1872 = vld [vmem:[%s5 + $0xba0] sm:$0xff]
    %v1873 = vld [vmem:[%s5 + $0xba8] sm:$0xff]
    %v1874 = vld [vmem:[%s5 + $0xbb0] sm:$0xff]
    %v1875 = vld [vmem:[%s5 + $0xbb8] sm:$0xff]
    %v1876 = vld [vmem:[%s5 + $0xbc0] sm:$0xff]
    %v1877 = vld [vmem:[%s5 + $0xbc8] sm:$0xff]
    %v1878 = vld [vmem:[%s5 + $0xbd0] sm:$0xff]
    %v1879 = vld [vmem:[%s5 + $0xbd8] sm:$0xff]
    %v1880 = vld [vmem:[%s5 + $0xbe0] sm:$0xff]
    %v1881 = vld [vmem:[%s5 + $0xbe8] sm:$0xff]
    %v1882 = vld [vmem:[%s5 + $0xbf0] sm:$0xff]
    %v1883 = vld [vmem:[%s5 + $0xbf8] sm:$0xff]
    %v1884 = vld [vmem:[%s5 + $0xc00] sm:$0xff]
    %v1885 = vld [vmem:[%s5 + $0xc08] sm:$0xff]
    %v1886 = vld [vmem:[%s5 + $0xc10] sm:$0xff]
    %v1887 = vld [vmem:[%s5 + $0xc18] sm:$0xff]
    %v1888 = vld [vmem:[%s5 + $0xc20] sm:$0xff]
    %v1889 = vld [vmem:[%s5 + $0xc28] sm:$0xff]
    %v1890 = vld [vmem:[%s5 + $0xc30] sm:$0xff]
    %v1891 = vld [vmem:[%s5 + $0xc38] sm:$0xff]
    %v1892 = vld [vmem:[%s5 + $0xc40] sm:$0xff]
    %v1893 = vld [vmem:[%s5 + $0xc48] sm:$0xff]
    %v1894 = vld [vmem:[%s5 + $0xc50] sm:$0xff]
    %v1895 = vld [vmem:[%s5 + $0xc58] sm:$0xff]
    %v1896 = vld [vmem:[%s5 + $0xc60] sm:$0xff]
    %v1897 = vld [vmem:[%s5 + $0xc68] sm:$0xff]
    %v1898 = vld [vmem:[%s5 + $0xc70] sm:$0xff]
    %v1899 = vld [vmem:[%s5 + $0xc78] sm:$0xff]
    %v1900 = vld [vmem:[%s5 + $0xc80] sm:$0xff]
    %v1901 = vld [vmem:[%s5 + $0xc88] sm:$0xff]
    %v1902 = vld [vmem:[%s5 + $0xc90] sm:$0xff]
    %v1903 = vld [vmem:[%s5 + $0xc98] sm:$0xff]
    %v1904 = vld [vmem:[%s5 + $0xca0] sm:$0xff]
    %v1905 = vld [vmem:[%s5 + $0xca8] sm:$0xff]
    %v1906 = vld [vmem:[%s5 + $0xcb0] sm:$0xff]
    %v1907 = vld [vmem:[%s5 + $0xcb8] sm:$0xff]
    %v1908 = vld [vmem:[%s5 + $0xcc0] sm:$0xff]
    %v1909 = vld [vmem:[%s5 + $0xcc8] sm:$0xff]
    %v1910 = vld [vmem:[%s5 + $0xcd0] sm:$0xff]
    %v1911 = vld [vmem:[%s5 + $0xcd8] sm:$0xff]
    %v1912 = vld [vmem:[%s5 + $0xce0] sm:$0xff]
    %v1913 = vld [vmem:[%s5 + $0xce8] sm:$0xff]
    %v1914 = vld [vmem:[%s5 + $0xcf0] sm:$0xff]
    %v1915 = vld [vmem:[%s5 + $0xcf8] sm:$0xff]
    %v1916 = vld [vmem:[%s5 + $0xd00] sm:$0xff]
    %v1917 = vld [vmem:[%s5 + $0xd08] sm:$0xff]
    %v1918 = vld [vmem:[%s5 + $0xd10] sm:$0xff]
    %v1919 = vld [vmem:[%s5 + $0xd18] sm:$0xff]
    %v1920 = vld [vmem:[%s5 + $0xd20] sm:$0xff]
    %v1921 = vld [vmem:[%s5 + $0xd28] sm:$0xff]
    %v1922 = vld [vmem:[%s5 + $0xd30] sm:$0xff]
    %v1923 = vld [vmem:[%s5 + $0xd38] sm:$0xff]
    %v1924 = vld [vmem:[%s5 + $0xd40] sm:$0xff]
    %v1925 = vld [vmem:[%s5 + $0xd48] sm:$0xff]
    %v1926 = vld [vmem:[%s5 + $0xd50] sm:$0xff]
    %v1927 = vld [vmem:[%s5 + $0xd58] sm:$0xff]
    %v1928 = vld [vmem:[%s5 + $0xd60] sm:$0xff]
    %v1929 = vld [vmem:[%s5 + $0xd68] sm:$0xff]
    %v1930 = vld [vmem:[%s5 + $0xd70] sm:$0xff]
    %v1931 = vld [vmem:[%s5 + $0xd78] sm:$0xff]
    %v1932 = vld [vmem:[%s5 + $0xd80] sm:$0xff]
    %v1933 = vld [vmem:[%s5 + $0xd88] sm:$0xff]
    %v1934 = vld [vmem:[%s5 + $0xd90] sm:$0xff]
    %v1935 = vld [vmem:[%s5 + $0xd98] sm:$0xff]
    %v1936 = vld [vmem:[%s5 + $0xda0] sm:$0xff]
    %v1937 = vld [vmem:[%s5 + $0xda8] sm:$0xff]
    %v1938 = vld [vmem:[%s5 + $0xdb0] sm:$0xff]
    %v1939 = vld [vmem:[%s5 + $0xdb8] sm:$0xff]
    %v1940 = vld [vmem:[%s5 + $0xdc0] sm:$0xff]
    %v1941 = vld [vmem:[%s5 + $0xdc8] sm:$0xff]
    %v1942 = vld [vmem:[%s5 + $0xdd0] sm:$0xff]
    %v1943 = vld [vmem:[%s5 + $0xdd8] sm:$0xff]
    %v1944 = vld [vmem:[%s5 + $0xde0] sm:$0xff]
    %v1945 = vld [vmem:[%s5 + $0xde8] sm:$0xff]
    %v1946 = vld [vmem:[%s5 + $0xdf0] sm:$0xff]
    %v1947 = vld [vmem:[%s5 + $0xdf8] sm:$0xff]
    %v1948 = vld [vmem:[%s5 + $0xe00] sm:$0xff]
    %v1949 = vld [vmem:[%s5 + $0xe08] sm:$0xff]
    %v1950 = vld [vmem:[%s5 + $0xe10] sm:$0xff]
    %v1951 = vld [vmem:[%s5 + $0xe18] sm:$0xff]
    %v1952 = vld [vmem:[%s5 + $0xe20] sm:$0xff]
    %v1953 = vld [vmem:[%s5 + $0xe28] sm:$0xff]
    %v1954 = vld [vmem:[%s5 + $0xe30] sm:$0xff]
    %v1955 = vld [vmem:[%s5 + $0xe38] sm:$0xff]
    %v1956 = vld [vmem:[%s5 + $0xe40] sm:$0xff]
    %v1957 = vld [vmem:[%s5 + $0xe48] sm:$0xff]
    %v1958 = vld [vmem:[%s5 + $0xe50] sm:$0xff]
    %v1959 = vld [vmem:[%s5 + $0xe58] sm:$0xff]
    %v1960 = vld [vmem:[%s5 + $0xe60] sm:$0xff]
    %v1961 = vld [vmem:[%s5 + $0xe68] sm:$0xff]
    %v1962 = vld [vmem:[%s5 + $0xe70] sm:$0xff]
    %v1963 = vld [vmem:[%s5 + $0xe78] sm:$0xff]
    %v1964 = vld [vmem:[%s5 + $0xe80] sm:$0xff]
    %v1965 = vld [vmem:[%s5 + $0xe88] sm:$0xff]
    %v1966 = vld [vmem:[%s5 + $0xe90] sm:$0xff]
    %v1967 = vld [vmem:[%s5 + $0xe98] sm:$0xff]
    %v1968 = vld [vmem:[%s5 + $0xea0] sm:$0xff]
    %v1969 = vld [vmem:[%s5 + $0xea8] sm:$0xff]
    %v1970 = vld [vmem:[%s5 + $0xeb0] sm:$0xff]
    %v1971 = vld [vmem:[%s5 + $0xeb8] sm:$0xff]
    %v1972 = vld [vmem:[%s5 + $0xec0] sm:$0xff]
    %v1973 = vld [vmem:[%s5 + $0xec8] sm:$0xff]
    %v1974 = vld [vmem:[%s5 + $0xed0] sm:$0xff]
    %v1975 = vld [vmem:[%s5 + $0xed8] sm:$0xff]
    %v1976 = vld [vmem:[%s5 + $0xee0] sm:$0xff]
    %v1977 = vld [vmem:[%s5 + $0xee8] sm:$0xff]
    %v1978 = vld [vmem:[%s5 + $0xef0] sm:$0xff]
    %v1979 = vld [vmem:[%s5 + $0xef8] sm:$0xff]
    %v1980 = vld [vmem:[%s5 + $0xf00] sm:$0xff]
    %v1981 = vld [vmem:[%s5 + $0xf08] sm:$0xff]
    %v1982 = vld [vmem:[%s5 + $0xf10] sm:$0xff]
    %v1983 = vld [vmem:[%s5 + $0xf18] sm:$0xff]
    %v1984 = vld [vmem:[%s5 + $0xf20] sm:$0xff]
    %v1985 = vld [vmem:[%s5 + $0xf28] sm:$0xff]
    %v1986 = vld [vmem:[%s5 + $0xf30] sm:$0xff]
    %v1987 = vld [vmem:[%s5 + $0xf38] sm:$0xff]
    %v1988 = vld [vmem:[%s5 + $0xf40] sm:$0xff]
    %v1989 = vld [vmem:[%s5 + $0xf48] sm:$0xff]
    %v1990 = vld [vmem:[%s5 + $0xf50] sm:$0xff]
    %v1991 = vld [vmem:[%s5 + $0xf58] sm:$0xff]
    %v1992 = vld [vmem:[%s5 + $0xf60] sm:$0xff]
    %v1993 = vld [vmem:[%s5 + $0xf68] sm:$0xff]
    %v1994 = vld [vmem:[%s5 + $0xf70] sm:$0xff]
    %v1995 = vld [vmem:[%s5 + $0xf78] sm:$0xff]
    %v1996 = vld [vmem:[%s5 + $0xf80] sm:$0xff]
    %v1997 = vld [vmem:[%s5 + $0xf88] sm:$0xff]
    %v1998 = vld [vmem:[%s5 + $0xf90] sm:$0xff]
    %v1999 = vld [vmem:[%s5 + $0xf98] sm:$0xff]
    %v2000 = vld [vmem:[%s5 + $0xfa0] sm:$0xff]
    %v2001 = vld [vmem:[%s5 + $0xfa8] sm:$0xff]
    %v2002 = vld [vmem:[%s5 + $0xfb0] sm:$0xff]
    %v2003 = vld [vmem:[%s5 + $0xfb8] sm:$0xff]
    %v2004 = vld [vmem:[%s5 + $0xfc0] sm:$0xff]
    %v2005 = vld [vmem:[%s5 + $0xfc8] sm:$0xff]
    %v2006 = vld [vmem:[%s5 + $0xfd0] sm:$0xff]
    %v2007 = vld [vmem:[%s5 + $0xfd8] sm:$0xff]
    %v2008 = vld [vmem:[%s5 + $0xfe0] sm:$0xff]
    %v2009 = vld [vmem:[%s5 + $0xfe8] sm:$0xff]
    %v2010 = vld [vmem:[%s5 + $0xff0] sm:$0xff]
    %v2011 = vld [vmem:[%s5 + $0xff8] sm:$0xff]
    %v2012 = vld [vmem:[%s6] sm:$0xff]
    %v2014 = vlaneseq
    %v2015 = vshrl.u32 %v2014, 7
    %v2016 = vsub.s32 0, %v2015
    %v2017 = vrot.slane %v2012, %v2016
    %v2018 = vlaneseq
    %v2019 = vshrl.u32 %v2018, 7
    %v2020 = vsub.s32 1, %v2019
    %v2021 = vrot.slane %v2012, %v2020
    %v2022 = vlaneseq
    %v2023 = vshrl.u32 %v2022, 7
    %v2024 = vsub.s32 2, %v2023
    %v2025 = vrot.slane %v2012, %v2024
    %v2026 = vlaneseq
    %v2027 = vshrl.u32 %v2026, 7
    %v2028 = vsub.s32 3, %v2027
    %v2029 = vrot.slane %v2012, %v2028
    %v2030 = vlaneseq
    %v2031 = vshrl.u32 %v2030, 7
    %v2032 = vsub.s32 4, %v2031
    %v2033 = vrot.slane %v2012, %v2032
    %v2034 = vlaneseq
    %v2035 = vshrl.u32 %v2034, 7
    %v2036 = vsub.s32 5, %v2035
    %v2037 = vrot.slane %v2012, %v2036
    %v2038 = vlaneseq
    %v2039 = vshrl.u32 %v2038, 7
    %v2040 = vsub.s32 6, %v2039
    %v2041 = vrot.slane %v2012, %v2040
    %v2042 = vlaneseq
    %v2043 = vshrl.u32 %v2042, 7
    %v2044 = vsub.s32 7, %v2043
    %v2045 = vrot.slane %v2012, %v2044
    %2054 = vmatprep.subr.mxu0 %v1621
    %2055 = vmatpush1.msra.mxu0 %v1620
    %2056 = vmatprep.subr.mxu0 %v1613
    %2057 = vmatpush1.msra.mxu0 %v1612
    %2058 = vmatprep.subr.mxu0 %v1605
    %2059 = vmatpush1.msra.mxu0 %v1604
    %2060 = vmatprep.subr.mxu0 %v1597
    %2061 = vmatpush1.msra.mxu0 %v1596
    %2062 = vmatprep.subr.mxu0 %v1589
    %2063 = vmatpush1.msra.mxu0 %v1588
    %2064 = vmatprep.subr.mxu0 %v1581
    %2065 = vmatpush1.msra.mxu0 %v1580
    %2066 = vmatprep.subr.mxu0 %v1573
    %2067 = vmatpush1.msra.mxu0 %v1572
    %2068 = vmatprep.subr.mxu0 %v1565
    %2069 = vmatpush1.msra.mxu0 %v1564
    %2070 = vmatprep.subr.mxu0 %v1557
    %2071 = vmatpush1.msra.mxu0 %v1556
    %2072 = vmatprep.subr.mxu0 %v1549
    %2073 = vmatpush1.msra.mxu0 %v1548
    %2074 = vmatprep.subr.mxu0 %v1541
    %2075 = vmatpush1.msra.mxu0 %v1540
    %2076 = vmatprep.subr.mxu0 %v1533
    %2077 = vmatpush1.msra.mxu0 %v1532
    %2078 = vmatprep.subr.mxu0 %v1525
    %2079 = vmatpush1.msra.mxu0 %v1524
    %2080 = vmatprep.subr.mxu0 %v1517
    %2081 = vmatpush1.msra.mxu0 %v1516
    %2082 = vmatprep.subr.mxu0 %v1509
    %2083 = vmatpush1.msra.mxu0 %v1508
    %2084 = vmatprep.subr.mxu0 %v1501
    %2085 = vmatpush1.msra.mxu0 %v1500
    %2086 = vmatprep.subr.mxu0 %v1749
    %2087 = vmatpush2.msra.mxu0 %v1748
    %2088 = vmatprep.subr.mxu0 %v1741
    %2089 = vmatpush2.msra.mxu0 %v1740
    %2090 = vmatprep.subr.mxu0 %v1733
    %2091 = vmatpush2.msra.mxu0 %v1732
    %2092 = vmatprep.subr.mxu0 %v1725
    %2093 = vmatpush2.msra.mxu0 %v1724
    %2094 = vmatprep.subr.mxu0 %v1717
    %2095 = vmatpush2.msra.mxu0 %v1716
    %2096 = vmatprep.subr.mxu0 %v1709
    %2097 = vmatpush2.msra.mxu0 %v1708
    %2098 = vmatprep.subr.mxu0 %v1701
    %2099 = vmatpush2.msra.mxu0 %v1700
    %2100 = vmatprep.subr.mxu0 %v1693
    %2101 = vmatpush2.msra.mxu0 %v1692
    %2102 = vmatprep.subr.mxu0 %v1685
    %2103 = vmatpush2.msra.mxu0 %v1684
    %2104 = vmatprep.subr.mxu0 %v1677
    %2105 = vmatpush2.msra.mxu0 %v1676
    %2106 = vmatprep.subr.mxu0 %v1669
    %2107 = vmatpush2.msra.mxu0 %v1668
    %2108 = vmatprep.subr.mxu0 %v1661
    %2109 = vmatpush2.msra.mxu0 %v1660
    %2110 = vmatprep.subr.mxu0 %v1653
    %2111 = vmatpush2.msra.mxu0 %v1652
    %2112 = vmatprep.subr.mxu0 %v1645
    %2113 = vmatpush2.msra.mxu0 %v1644
    %2114 = vmatprep.subr.mxu0 %v1637
    %2115 = vmatpush2.msra.mxu0 %v1636
    %2116 = vmatprep.subr.mxu0 %v1629
    %2117 = vmatpush2.msra.mxu0 %v1628
    %2118 = vmatprep.mubr.f32.mxu0 %v1497
    %2119 = vmatmul.mubr.f32.gmra.mxu0 %v1496
    %v2120 = vpop.f32.mrf.mxu0
    %v2121 = vadd.f32 %v2017, %v2120
    %v2122 = vpop.f32.mrf.mxu0
    %v2123 = vadd.f32 %v2021, %v2122
    %2124 = vdwg.mxu0
    %2125 = vmatprep.subr.mxu0 %v1877
    %2126 = vmatpush1.msra.mxu0 %v1876
    %2127 = vmatprep.subr.mxu0 %v1869
    %2128 = vmatpush1.msra.mxu0 %v1868
    %2129 = vmatprep.subr.mxu0 %v1861
    %2130 = vmatpush1.msra.mxu0 %v1860
    %2131 = vmatprep.subr.mxu0 %v1853
    %2132 = vmatpush1.msra.mxu0 %v1852
    %2133 = vmatprep.subr.mxu0 %v1845
    %2134 = vmatpush1.msra.mxu0 %v1844
    %2135 = vmatprep.subr.mxu0 %v1837
    %2136 = vmatpush1.msra.mxu0 %v1836
    %2137 = vmatprep.subr.mxu0 %v1829
    %2138 = vmatpush1.msra.mxu0 %v1828
    %2139 = vmatprep.subr.mxu0 %v1821
    %2140 = vmatpush1.msra.mxu0 %v1820
    %2141 = vmatprep.subr.mxu0 %v1813
    %2142 = vmatpush1.msra.mxu0 %v1812
    %2143 = vmatprep.subr.mxu0 %v1805
    %2144 = vmatpush1.msra.mxu0 %v1804
    %2145 = vmatprep.subr.mxu0 %v1797
    %2146 = vmatpush1.msra.mxu0 %v1796
    %2147 = vmatprep.subr.mxu0 %v1789
    %2148 = vmatpush1.msra.mxu0 %v1788
    %2149 = vmatprep.subr.mxu0 %v1781
    %2150 = vmatpush1.msra.mxu0 %v1780
    %2151 = vmatprep.subr.mxu0 %v1773
    %2152 = vmatpush1.msra.mxu0 %v1772
    %2153 = vmatprep.subr.mxu0 %v1765
    %2154 = vmatpush1.msra.mxu0 %v1764
    %2155 = vmatprep.subr.mxu0 %v1757
    %2156 = vmatpush1.msra.mxu0 %v1756
    %2157 = vmatprep.subr.mxu0 %v2005
    %2158 = vmatpush2.msra.mxu0 %v2004
    %2159 = vmatprep.subr.mxu0 %v1997
    %2160 = vmatpush2.msra.mxu0 %v1996
    %2161 = vmatprep.subr.mxu0 %v1989
    %2162 = vmatpush2.msra.mxu0 %v1988
    %2163 = vmatprep.subr.mxu0 %v1981
    %2164 = vmatpush2.msra.mxu0 %v1980
    %2165 = vmatprep.subr.mxu0 %v1973
    %2166 = vmatpush2.msra.mxu0 %v1972
    %2167 = vmatprep.subr.mxu0 %v1965
    %2168 = vmatpush2.msra.mxu0 %v1964
    %2169 = vmatprep.subr.mxu0 %v1957
    %2170 = vmatpush2.msra.mxu0 %v1956
    %2171 = vmatprep.subr.mxu0 %v1949
    %2172 = vmatpush2.msra.mxu0 %v1948
    %2173 = vmatprep.subr.mxu0 %v1941
    %2174 = vmatpush2.msra.mxu0 %v1940
    %2175 = vmatprep.subr.mxu0 %v1933
    %2176 = vmatpush2.msra.mxu0 %v1932
    %2177 = vmatprep.subr.mxu0 %v1925
    %2178 = vmatpush2.msra.mxu0 %v1924
    %2179 = vmatprep.subr.mxu0 %v1917
    %2180 = vmatpush2.msra.mxu0 %v1916
    %2181 = vmatprep.subr.mxu0 %v1909
    %2182 = vmatpush2.msra.mxu0 %v1908
    %2183 = vmatprep.subr.mxu0 %v1901
    %2184 = vmatpush2.msra.mxu0 %v1900
    %2185 = vmatprep.subr.mxu0 %v1893
    %2186 = vmatpush2.msra.mxu0 %v1892
    %2187 = vmatprep.subr.mxu0 %v1885
    %2188 = vmatpush2.msra.mxu0 %v1884
    %2189 = vmatprep.mubr.f32.mxu0 %v1499
    %2190 = vmatmul.mubr.f32.gmra.mxu0 %v1498
    %v2191 = vpop.f32.mrf.mxu0
    %v2192 = vadd.f32 %v2121, %v2191
    %v2193 = vpop.f32.mrf.mxu0
    %v2194 = vadd.f32 %v2123, %v2193
    %2195 = vdwg.mxu0
    %2196 = vmatprep.subr.mxu0 %v1623
    %2197 = vmatpush1.msra.mxu0 %v1622
    %2198 = vmatprep.subr.mxu0 %v1615
    %2199 = vmatpush1.msra.mxu0 %v1614
    %2200 = vmatprep.subr.mxu0 %v1607
    %2201 = vmatpush1.msra.mxu0 %v1606
    %2202 = vmatprep.subr.mxu0 %v1599
    %2203 = vmatpush1.msra.mxu0 %v1598
    %2204 = vmatprep.subr.mxu0 %v1591
    %2205 = vmatpush1.msra.mxu0 %v1590
    %2206 = vmatprep.subr.mxu0 %v1583
    %2207 = vmatpush1.msra.mxu0 %v1582
    %2208 = vmatprep.subr.mxu0 %v1575
    %2209 = vmatpush1.msra.mxu0 %v1574
    %2210 = vmatprep.subr.mxu0 %v1567
    %2211 = vmatpush1.msra.mxu0 %v1566
    %2212 = vmatprep.subr.mxu0 %v1559
    %2213 = vmatpush1.msra.mxu0 %v1558
    %2214 = vmatprep.subr.mxu0 %v1551
    %2215 = vmatpush1.msra.mxu0 %v1550
    %2216 = vmatprep.subr.mxu0 %v1543
    %2217 = vmatpush1.msra.mxu0 %v1542
    %2218 = vmatprep.subr.mxu0 %v1535
    %2219 = vmatpush1.msra.mxu0 %v1534
    %2220 = vmatprep.subr.mxu0 %v1527
    %2221 = vmatpush1.msra.mxu0 %v1526
    %2222 = vmatprep.subr.mxu0 %v1519
    %2223 = vmatpush1.msra.mxu0 %v1518
    %2224 = vmatprep.subr.mxu0 %v1511
    %2225 = vmatpush1.msra.mxu0 %v1510
    %2226 = vmatprep.subr.mxu0 %v1503
    %2227 = vmatpush1.msra.mxu0 %v1502
    %2228 = vmatprep.subr.mxu0 %v1751
    %2229 = vmatpush2.msra.mxu0 %v1750
    %2230 = vmatprep.subr.mxu0 %v1743
    %2231 = vmatpush2.msra.mxu0 %v1742
    %2232 = vmatprep.subr.mxu0 %v1735
    %2233 = vmatpush2.msra.mxu0 %v1734
    %2234 = vmatprep.subr.mxu0 %v1727
    %2235 = vmatpush2.msra.mxu0 %v1726
    %2236 = vmatprep.subr.mxu0 %v1719
    %2237 = vmatpush2.msra.mxu0 %v1718
    %2238 = vmatprep.subr.mxu0 %v1711
    %2239 = vmatpush2.msra.mxu0 %v1710
    %2240 = vmatprep.subr.mxu0 %v1703
    %2241 = vmatpush2.msra.mxu0 %v1702
    %2242 = vmatprep.subr.mxu0 %v1695
    %2243 = vmatpush2.msra.mxu0 %v1694
    %2244 = vmatprep.subr.mxu0 %v1687
    %2245 = vmatpush2.msra.mxu0 %v1686
    %2246 = vmatprep.subr.mxu0 %v1679
    %2247 = vmatpush2.msra.mxu0 %v1678
    %2248 = vmatprep.subr.mxu0 %v1671
    %2249 = vmatpush2.msra.mxu0 %v1670
    %2250 = vmatprep.subr.mxu0 %v1663
    %2251 = vmatpush2.msra.mxu0 %v1662
    %2252 = vmatprep.subr.mxu0 %v1655
    %2253 = vmatpush2.msra.mxu0 %v1654
    %2254 = vmatprep.subr.mxu0 %v1647
    %2255 = vmatpush2.msra.mxu0 %v1646
    %2256 = vmatprep.subr.mxu0 %v1639
    %2257 = vmatpush2.msra.mxu0 %v1638
    %2258 = vmatprep.subr.mxu0 %v1631
    %2259 = vmatpush2.msra.mxu0 %v1630
    %2260 = vmatprep.mubr.f32.mxu0 %v1497
    %2261 = vmatmul.mubr.f32.gmra.mxu0 %v1496
    %v2262 = vpop.f32.mrf.mxu0
    %v2263 = vadd.f32 %v2025, %v2262
    %v2264 = vpop.f32.mrf.mxu0
    %v2265 = vadd.f32 %v2029, %v2264
    %2266 = vdwg.mxu0
    %2267 = vmatprep.subr.mxu0 %v1879
    %2268 = vmatpush1.msra.mxu0 %v1878
    %2269 = vmatprep.subr.mxu0 %v1871
    %2270 = vmatpush1.msra.mxu0 %v1870
    %2271 = vmatprep.subr.mxu0 %v1863
    %2272 = vmatpush1.msra.mxu0 %v1862
    %2273 = vmatprep.subr.mxu0 %v1855
    %2274 = vmatpush1.msra.mxu0 %v1854
    %2275 = vmatprep.subr.mxu0 %v1847
    %2276 = vmatpush1.msra.mxu0 %v1846
    %2277 = vmatprep.subr.mxu0 %v1839
    %2278 = vmatpush1.msra.mxu0 %v1838
    %2279 = vmatprep.subr.mxu0 %v1831
    %2280 = vmatpush1.msra.mxu0 %v1830
    %2281 = vmatprep.subr.mxu0 %v1823
    %2282 = vmatpush1.msra.mxu0 %v1822
    %2283 = vmatprep.subr.mxu0 %v1815
    %2284 = vmatpush1.msra.mxu0 %v1814
    %2285 = vmatprep.subr.mxu0 %v1807
    %2286 = vmatpush1.msra.mxu0 %v1806
    %2287 = vmatprep.subr.mxu0 %v1799
    %2288 = vmatpush1.msra.mxu0 %v1798
    %2289 = vmatprep.subr.mxu0 %v1791
    %2290 = vmatpush1.msra.mxu0 %v1790
    %2291 = vmatprep.subr.mxu0 %v1783
    %2292 = vmatpush1.msra.mxu0 %v1782
    %2293 = vmatprep.subr.mxu0 %v1775
    %2294 = vmatpush1.msra.mxu0 %v1774
    %2295 = vmatprep.subr.mxu0 %v1767
    %2296 = vmatpush1.msra.mxu0 %v1766
    %2297 = vmatprep.subr.mxu0 %v1759
    %2298 = vmatpush1.msra.mxu0 %v1758
    %2299 = vmatprep.subr.mxu0 %v2007
    %2300 = vmatpush2.msra.mxu0 %v2006
    %2301 = vmatprep.subr.mxu0 %v1999
    %2302 = vmatpush2.msra.mxu0 %v1998
    %2303 = vmatprep.subr.mxu0 %v1991
    %2304 = vmatpush2.msra.mxu0 %v1990
    %2305 = vmatprep.subr.mxu0 %v1983
    %2306 = vmatpush2.msra.mxu0 %v1982
    %2307 = vmatprep.subr.mxu0 %v1975
    %2308 = vmatpush2.msra.mxu0 %v1974
    %2309 = vmatprep.subr.mxu0 %v1967
    %2310 = vmatpush2.msra.mxu0 %v1966
    %2311 = vmatprep.subr.mxu0 %v1959
    %2312 = vmatpush2.msra.mxu0 %v1958
    %2313 = vmatprep.subr.mxu0 %v1951
    %2314 = vmatpush2.msra.mxu0 %v1950
    %2315 = vmatprep.subr.mxu0 %v1943
    %2316 = vmatpush2.msra.mxu0 %v1942
    %2317 = vmatprep.subr.mxu0 %v1935
    %2318 = vmatpush2.msra.mxu0 %v1934
    %2319 = vmatprep.subr.mxu0 %v1927
    %2320 = vmatpush2.msra.mxu0 %v1926
    %2321 = vmatprep.subr.mxu0 %v1919
    %2322 = vmatpush2.msra.mxu0 %v1918
    %2323 = vmatprep.subr.mxu0 %v1911
    %2324 = vmatpush2.msra.mxu0 %v1910
    %2325 = vmatprep.subr.mxu0 %v1903
    %2326 = vmatpush2.msra.mxu0 %v1902
    %2327 = vmatprep.subr.mxu0 %v1895
    %2328 = vmatpush2.msra.mxu0 %v1894
    %2329 = vmatprep.subr.mxu0 %v1887
    %2330 = vmatpush2.msra.mxu0 %v1886
    %2331 = vmatprep.mubr.f32.mxu0 %v1499
    %2332 = vmatmul.mubr.f32.gmra.mxu0 %v1498
    %v2333 = vpop.f32.mrf.mxu0
    %v2334 = vadd.f32 %v2263, %v2333
    %v2335 = vpop.f32.mrf.mxu0
    %v2336 = vadd.f32 %v2265, %v2335
    %2337 = vdwg.mxu0
    %2338 = vmatprep.subr.mxu0 %v1625
    %2339 = vmatpush1.msra.mxu0 %v1624
    %2340 = vmatprep.subr.mxu0 %v1617
    %2341 = vmatpush1.msra.mxu0 %v1616
    %2342 = vmatprep.subr.mxu0 %v1609
    %2343 = vmatpush1.msra.mxu0 %v1608
    %2344 = vmatprep.subr.mxu0 %v1601
    %2345 = vmatpush1.msra.mxu0 %v1600
    %2346 = vmatprep.subr.mxu0 %v1593
    %2347 = vmatpush1.msra.mxu0 %v1592
    %2348 = vmatprep.subr.mxu0 %v1585
    %2349 = vmatpush1.msra.mxu0 %v1584
    %2350 = vmatprep.subr.mxu0 %v1577
    %2351 = vmatpush1.msra.mxu0 %v1576
    %2352 = vmatprep.subr.mxu0 %v1569
    %2353 = vmatpush1.msra.mxu0 %v1568
    %2354 = vmatprep.subr.mxu0 %v1561
    %2355 = vmatpush1.msra.mxu0 %v1560
    %2356 = vmatprep.subr.mxu0 %v1553
    %2357 = vmatpush1.msra.mxu0 %v1552
    %2358 = vmatprep.subr.mxu0 %v1545
    %2359 = vmatpush1.msra.mxu0 %v1544
    %2360 = vmatprep.subr.mxu0 %v1537
    %2361 = vmatpush1.msra.mxu0 %v1536
    %2362 = vmatprep.subr.mxu0 %v1529
    %2363 = vmatpush1.msra.mxu0 %v1528
    %2364 = vmatprep.subr.mxu0 %v1521
    %2365 = vmatpush1.msra.mxu0 %v1520
    %2366 = vmatprep.subr.mxu0 %v1513
    %2367 = vmatpush1.msra.mxu0 %v1512
    %2368 = vmatprep.subr.mxu0 %v1505
    %2369 = vmatpush1.msra.mxu0 %v1504
    %2370 = vmatprep.subr.mxu0 %v1753
    %2371 = vmatpush2.msra.mxu0 %v1752
    %2372 = vmatprep.subr.mxu0 %v1745
    %2373 = vmatpush2.msra.mxu0 %v1744
    %2374 = vmatprep.subr.mxu0 %v1737
    %2375 = vmatpush2.msra.mxu0 %v1736
    %2376 = vmatprep.subr.mxu0 %v1729
    %2377 = vmatpush2.msra.mxu0 %v1728
    %2378 = vmatprep.subr.mxu0 %v1721
    %2379 = vmatpush2.msra.mxu0 %v1720
    %2380 = vmatprep.subr.mxu0 %v1713
    %2381 = vmatpush2.msra.mxu0 %v1712
    %2382 = vmatprep.subr.mxu0 %v1705
    %2383 = vmatpush2.msra.mxu0 %v1704
    %2384 = vmatprep.subr.mxu0 %v1697
    %2385 = vmatpush2.msra.mxu0 %v1696
    %2386 = vmatprep.subr.mxu0 %v1689
    %2387 = vmatpush2.msra.mxu0 %v1688
    %2388 = vmatprep.subr.mxu0 %v1681
    %2389 = vmatpush2.msra.mxu0 %v1680
    %2390 = vmatprep.subr.mxu0 %v1673
    %2391 = vmatpush2.msra.mxu0 %v1672
    %2392 = vmatprep.subr.mxu0 %v1665
    %2393 = vmatpush2.msra.mxu0 %v1664
    %2394 = vmatprep.subr.mxu0 %v1657
    %2395 = vmatpush2.msra.mxu0 %v1656
    %2396 = vmatprep.subr.mxu0 %v1649
    %2397 = vmatpush2.msra.mxu0 %v1648
    %2398 = vmatprep.subr.mxu0 %v1641
    %2399 = vmatpush2.msra.mxu0 %v1640
    %2400 = vmatprep.subr.mxu0 %v1633
    %2401 = vmatpush2.msra.mxu0 %v1632
    %2402 = vmatprep.mubr.f32.mxu0 %v1497
    %2403 = vmatmul.mubr.f32.gmra.mxu0 %v1496
    %v2404 = vpop.f32.mrf.mxu0
    %v2405 = vadd.f32 %v2033, %v2404
    %v2406 = vpop.f32.mrf.mxu0
    %v2407 = vadd.f32 %v2037, %v2406
    %2408 = vdwg.mxu0
    %2409 = vmatprep.subr.mxu0 %v1881
    %2410 = vmatpush1.msra.mxu0 %v1880
    %2411 = vmatprep.subr.mxu0 %v1873
    %2412 = vmatpush1.msra.mxu0 %v1872
    %2413 = vmatprep.subr.mxu0 %v1865
    %2414 = vmatpush1.msra.mxu0 %v1864
    %2415 = vmatprep.subr.mxu0 %v1857
    %2416 = vmatpush1.msra.mxu0 %v1856
    %2417 = vmatprep.subr.mxu0 %v1849
    %2418 = vmatpush1.msra.mxu0 %v1848
    %2419 = vmatprep.subr.mxu0 %v1841
    %2420 = vmatpush1.msra.mxu0 %v1840
    %2421 = vmatprep.subr.mxu0 %v1833
    %2422 = vmatpush1.msra.mxu0 %v1832
    %2423 = vmatprep.subr.mxu0 %v1825
    %2424 = vmatpush1.msra.mxu0 %v1824
    %2425 = vmatprep.subr.mxu0 %v1817
    %2426 = vmatpush1.msra.mxu0 %v1816
    %2427 = vmatprep.subr.mxu0 %v1809
    %2428 = vmatpush1.msra.mxu0 %v1808
    %2429 = vmatprep.subr.mxu0 %v1801
    %2430 = vmatpush1.msra.mxu0 %v1800
    %2431 = vmatprep.subr.mxu0 %v1793
    %2432 = vmatpush1.msra.mxu0 %v1792
    %2433 = vmatprep.subr.mxu0 %v1785
    %2434 = vmatpush1.msra.mxu0 %v1784
    %2435 = vmatprep.subr.mxu0 %v1777
    %2436 = vmatpush1.msra.mxu0 %v1776
    %2437 = vmatprep.subr.mxu0 %v1769
    %2438 = vmatpush1.msra.mxu0 %v1768
    %2439 = vmatprep.subr.mxu0 %v1761
    %2440 = vmatpush1.msra.mxu0 %v1760
    %2441 = vmatprep.subr.mxu0 %v2009
    %2442 = vmatpush2.msra.mxu0 %v2008
    %2443 = vmatprep.subr.mxu0 %v2001
    %2444 = vmatpush2.msra.mxu0 %v2000
    %2445 = vmatprep.subr.mxu0 %v1993
    %2446 = vmatpush2.msra.mxu0 %v1992
    %2447 = vmatprep.subr.mxu0 %v1985
    %2448 = vmatpush2.msra.mxu0 %v1984
    %2449 = vmatprep.subr.mxu0 %v1977
    %2450 = vmatpush2.msra.mxu0 %v1976
    %2451 = vmatprep.subr.mxu0 %v1969
    %2452 = vmatpush2.msra.mxu0 %v1968
    %2453 = vmatprep.subr.mxu0 %v1961
    %2454 = vmatpush2.msra.mxu0 %v1960
    %2455 = vmatprep.subr.mxu0 %v1953
    %2456 = vmatpush2.msra.mxu0 %v1952
    %2457 = vmatprep.subr.mxu0 %v1945
    %2458 = vmatpush2.msra.mxu0 %v1944
    %2459 = vmatprep.subr.mxu0 %v1937
    %2460 = vmatpush2.msra.mxu0 %v1936
    %2461 = vmatprep.subr.mxu0 %v1929
    %2462 = vmatpush2.msra.mxu0 %v1928
    %2463 = vmatprep.subr.mxu0 %v1921
    %2464 = vmatpush2.msra.mxu0 %v1920
    %2465 = vmatprep.subr.mxu0 %v1913
    %2466 = vmatpush2.msra.mxu0 %v1912
    %2467 = vmatprep.subr.mxu0 %v1905
    %2468 = vmatpush2.msra.mxu0 %v1904
    %2469 = vmatprep.subr.mxu0 %v1897
    %2470 = vmatpush2.msra.mxu0 %v1896
    %2471 = vmatprep.subr.mxu0 %v1889
    %2472 = vmatpush2.msra.mxu0 %v1888
    %2473 = vmatprep.mubr.f32.mxu0 %v1499
    %2474 = vmatmul.mubr.f32.gmra.mxu0 %v1498
    %v2475 = vpop.f32.mrf.mxu0
    %v2476 = vadd.f32 %v2405, %v2475
    %v2477 = vpop.f32.mrf.mxu0
    %v2478 = vadd.f32 %v2407, %v2477
    %2479 = vdwg.mxu0
    %2480 = vmatprep.subr.mxu0 %v1627
    %2481 = vmatpush1.msra.mxu0 %v1626
    %2482 = vmatprep.subr.mxu0 %v1619
    %2483 = vmatpush1.msra.mxu0 %v1618
    %2484 = vmatprep.subr.mxu0 %v1611
    %2485 = vmatpush1.msra.mxu0 %v1610
    %2486 = vmatprep.subr.mxu0 %v1603
    %2487 = vmatpush1.msra.mxu0 %v1602
    %2488 = vmatprep.subr.mxu0 %v1595
    %2489 = vmatpush1.msra.mxu0 %v1594
    %2490 = vmatprep.subr.mxu0 %v1587
    %2491 = vmatpush1.msra.mxu0 %v1586
    %2492 = vmatprep.subr.mxu0 %v1579
    %2493 = vmatpush1.msra.mxu0 %v1578
    %2494 = vmatprep.subr.mxu0 %v1571
    %2495 = vmatpush1.msra.mxu0 %v1570
    %2496 = vmatprep.subr.mxu0 %v1563
    %2497 = vmatpush1.msra.mxu0 %v1562
    %2498 = vmatprep.subr.mxu0 %v1555
    %2499 = vmatpush1.msra.mxu0 %v1554
    %2500 = vmatprep.subr.mxu0 %v1547
    %2501 = vmatpush1.msra.mxu0 %v1546
    %2502 = vmatprep.subr.mxu0 %v1539
    %2503 = vmatpush1.msra.mxu0 %v1538
    %2504 = vmatprep.subr.mxu0 %v1531
    %2505 = vmatpush1.msra.mxu0 %v1530
    %2506 = vmatprep.subr.mxu0 %v1523
    %2507 = vmatpush1.msra.mxu0 %v1522
    %2508 = vmatprep.subr.mxu0 %v1515
    %2509 = vmatpush1.msra.mxu0 %v1514
    %2510 = vmatprep.subr.mxu0 %v1507
    %2511 = vmatpush1.msra.mxu0 %v1506
    %2512 = vmatprep.subr.mxu0 %v1755
    %2513 = vmatpush2.msra.mxu0 %v1754
    %2514 = vmatprep.subr.mxu0 %v1747
    %2515 = vmatpush2.msra.mxu0 %v1746
    %2516 = vmatprep.subr.mxu0 %v1739
    %2517 = vmatpush2.msra.mxu0 %v1738
    %2518 = vmatprep.subr.mxu0 %v1731
    %2519 = vmatpush2.msra.mxu0 %v1730
    %2520 = vmatprep.subr.mxu0 %v1723
    %2521 = vmatpush2.msra.mxu0 %v1722
    %2522 = vmatprep.subr.mxu0 %v1715
    %2523 = vmatpush2.msra.mxu0 %v1714
    %2524 = vmatprep.subr.mxu0 %v1707
    %2525 = vmatpush2.msra.mxu0 %v1706
    %2526 = vmatprep.subr.mxu0 %v1699
    %2527 = vmatpush2.msra.mxu0 %v1698
    %2528 = vmatprep.subr.mxu0 %v1691
    %2529 = vmatpush2.msra.mxu0 %v1690
    %2530 = vmatprep.subr.mxu0 %v1683
    %2531 = vmatpush2.msra.mxu0 %v1682
    %2532 = vmatprep.subr.mxu0 %v1675
    %2533 = vmatpush2.msra.mxu0 %v1674
    %2534 = vmatprep.subr.mxu0 %v1667
    %2535 = vmatpush2.msra.mxu0 %v1666
    %2536 = vmatprep.subr.mxu0 %v1659
    %2537 = vmatpush2.msra.mxu0 %v1658
    %2538 = vmatprep.subr.mxu0 %v1651
    %2539 = vmatpush2.msra.mxu0 %v1650
    %2540 = vmatprep.subr.mxu0 %v1643
    %2541 = vmatpush2.msra.mxu0 %v1642
    %2542 = vmatprep.subr.mxu0 %v1635
    %2543 = vmatpush2.msra.mxu0 %v1634
    %2544 = vmatprep.mubr.f32.mxu0 %v1497
    %2545 = vmatmul.mubr.f32.gmra.mxu0 %v1496
    %v2546 = vpop.f32.mrf.mxu0
    %v2547 = vadd.f32 %v2041, %v2546
    %v2548 = vpop.f32.mrf.mxu0
    %v2549 = vadd.f32 %v2045, %v2548
    %2550 = vdwg.mxu0
    %2551 = vmatprep.subr.mxu0 %v1883
    %2552 = vmatpush1.msra.mxu0 %v1882
    %2553 = vmatprep.subr.mxu0 %v1875
    %2554 = vmatpush1.msra.mxu0 %v1874
    %2555 = vmatprep.subr.mxu0 %v1867
    %2556 = vmatpush1.msra.mxu0 %v1866
    %2557 = vmatprep.subr.mxu0 %v1859
    %2558 = vmatpush1.msra.mxu0 %v1858
    %2559 = vmatprep.subr.mxu0 %v1851
    %2560 = vmatpush1.msra.mxu0 %v1850
    %2561 = vmatprep.subr.mxu0 %v1843
    %2562 = vmatpush1.msra.mxu0 %v1842
    %2563 = vmatprep.subr.mxu0 %v1835
    %2564 = vmatpush1.msra.mxu0 %v1834
    %2565 = vmatprep.subr.mxu0 %v1827
    %2566 = vmatpush1.msra.mxu0 %v1826
    %2567 = vmatprep.subr.mxu0 %v1819
    %2568 = vmatpush1.msra.mxu0 %v1818
    %2569 = vmatprep.subr.mxu0 %v1811
    %2570 = vmatpush1.msra.mxu0 %v1810
    %2571 = vmatprep.subr.mxu0 %v1803
    %2572 = vmatpush1.msra.mxu0 %v1802
    %2573 = vmatprep.subr.mxu0 %v1795
    %2574 = vmatpush1.msra.mxu0 %v1794
    %2575 = vmatprep.subr.mxu0 %v1787
    %2576 = vmatpush1.msra.mxu0 %v1786
    %2577 = vmatprep.subr.mxu0 %v1779
    %2578 = vmatpush1.msra.mxu0 %v1778
    %2579 = vmatprep.subr.mxu0 %v1771
    %2580 = vmatpush1.msra.mxu0 %v1770
    %2581 = vmatprep.subr.mxu0 %v1763
    %2582 = vmatpush1.msra.mxu0 %v1762
    %2583 = vmatprep.subr.mxu0 %v2011
    %2584 = vmatpush2.msra.mxu0 %v2010
    %2585 = vmatprep.subr.mxu0 %v2003
    %2586 = vmatpush2.msra.mxu0 %v2002
    %2587 = vmatprep.subr.mxu0 %v1995
    %2588 = vmatpush2.msra.mxu0 %v1994
    %2589 = vmatprep.subr.mxu0 %v1987
    %2590 = vmatpush2.msra.mxu0 %v1986
    %2591 = vmatprep.subr.mxu0 %v1979
    %2592 = vmatpush2.msra.mxu0 %v1978
    %2593 = vmatprep.subr.mxu0 %v1971
    %2594 = vmatpush2.msra.mxu0 %v1970
    %2595 = vmatprep.subr.mxu0 %v1963
    %2596 = vmatpush2.msra.mxu0 %v1962
    %2597 = vmatprep.subr.mxu0 %v1955
    %2598 = vmatpush2.msra.mxu0 %v1954
    %2599 = vmatprep.subr.mxu0 %v1947
    %2600 = vmatpush2.msra.mxu0 %v1946
    %2601 = vmatprep.subr.mxu0 %v1939
    %2602 = vmatpush2.msra.mxu0 %v1938
    %2603 = vmatprep.subr.mxu0 %v1931
    %2604 = vmatpush2.msra.mxu0 %v1930
    %2605 = vmatprep.subr.mxu0 %v1923
    %2606 = vmatpush2.msra.mxu0 %v1922
    %2607 = vmatprep.subr.mxu0 %v1915
    %2608 = vmatpush2.msra.mxu0 %v1914
    %2609 = vmatprep.subr.mxu0 %v1907
    %2610 = vmatpush2.msra.mxu0 %v1906
    %2611 = vmatprep.subr.mxu0 %v1899
    %2612 = vmatpush2.msra.mxu0 %v1898
    %2613 = vmatprep.subr.mxu0 %v1891
    %2614 = vmatpush2.msra.mxu0 %v1890
    %2615 = vmatprep.mubr.f32.mxu0 %v1499
    %2616 = vmatmul.mubr.f32.gmra.mxu0 %v1498
    %v2617 = vpop.f32.mrf.mxu0
    %v2618 = vadd.f32 %v2547, %v2617
    %v2619 = vpop.f32.mrf.mxu0
    %v2620 = vadd.f32 %v2549, %v2619
    %2621 = vdwg.mxu0
    %v2622 = vmul.f32 %v2192, 0.5
    %v2623 = vmul.f32 %v2194, 0.5
    %v2624 = vmul.f32 %v2334, 0.5
    %v2625 = vmul.f32 %v2336, 0.5
    %v2626 = vmul.f32 %v2476, 0.5
    %v2627 = vmul.f32 %v2478, 0.5
    %v2628 = vmul.f32 %v2618, 0.5
    %v2629 = vmul.f32 %v2620, 0.5
    %v2630 = vmul.f32 %v2192, 0.70710677
    %v2631 = vmul.f32 %v2194, 0.70710677
    %v2632 = vmul.f32 %v2334, 0.70710677
    %v2633 = vmul.f32 %v2336, 0.70710677
    %v2634 = vmul.f32 %v2476, 0.70710677
    %v2635 = vmul.f32 %v2478, 0.70710677
    %v2636 = vmul.f32 %v2618, 0.70710677
    %v2637 = vmul.f32 %v2620, 0.70710677
    %vm2638 = vcmp.ge.f32.partialorder %v2630, 0.0
    %vm2639 = vcmp.ge.f32.partialorder %v2631, 0.0
    %vm2640 = vcmp.ge.f32.partialorder %v2632, 0.0
    %vm2641 = vcmp.ge.f32.partialorder %v2633, 0.0
    %vm2642 = vcmp.ge.f32.partialorder %v2634, 0.0
    %vm2643 = vcmp.ge.f32.partialorder %v2635, 0.0
    %vm2644 = vcmp.ge.f32.partialorder %v2636, 0.0
    %vm2645 = vcmp.ge.f32.partialorder %v2637, 0.0
    %v2646 = vsel %vm2638, 1.0, -1.0
    %v2647 = vsel %vm2639, 1.0, -1.0
    %v2648 = vsel %vm2640, 1.0, -1.0
    %v2649 = vsel %vm2641, 1.0, -1.0
    %v2650 = vsel %vm2642, 1.0, -1.0
    %v2651 = vsel %vm2643, 1.0, -1.0
    %v2652 = vsel %vm2644, 1.0, -1.0
    %v2653 = vsel %vm2645, 1.0, -1.0
    %v2654 = vand.u32 2147483647, %v2630
    %v2655 = vand.u32 2147483647, %v2631
    %v2656 = vand.u32 2147483647, %v2632
    %v2657 = vand.u32 2147483647, %v2633
    %v2658 = vand.u32 2147483647, %v2634
    %v2659 = vand.u32 2147483647, %v2635
    %v2660 = vand.u32 2147483647, %v2636
    %v2661 = vand.u32 2147483647, %v2637
    %v2662 = vmul.f32 %v2654, 0.3275911
    %v2663 = vmul.f32 %v2655, 0.3275911
    %v2664 = vmul.f32 %v2656, 0.3275911
    %v2665 = vmul.f32 %v2657, 0.3275911
    %v2666 = vmul.f32 %v2658, 0.3275911
    %v2667 = vmul.f32 %v2659, 0.3275911
    %v2668 = vmul.f32 %v2660, 0.3275911
    %v2669 = vmul.f32 %v2661, 0.3275911
    %v2670 = vadd.f32 %v2662, 1.0
    %v2671 = vadd.f32 %v2663, 1.0
    %v2672 = vadd.f32 %v2664, 1.0
    %v2673 = vadd.f32 %v2665, 1.0
    %v2674 = vadd.f32 %v2666, 1.0
    %v2675 = vadd.f32 %v2667, 1.0
    %v2676 = vadd.f32 %v2668, 1.0
    %v2677 = vadd.f32 %v2669, 1.0
    %v2678 = vrcp.pop %v2670
    %v2679 = vmul.f32 1.0, %v2678
    %v2680 = vrcp.pop %v2671
    %v2681 = vmul.f32 1.0, %v2680
    %v2682 = vrcp.pop %v2672
    %v2683 = vmul.f32 1.0, %v2682
    %v2684 = vrcp.pop %v2673
    %v2685 = vmul.f32 1.0, %v2684
    %v2686 = vrcp.pop %v2674
    %v2687 = vmul.f32 1.0, %v2686
    %v2688 = vrcp.pop %v2675
    %v2689 = vmul.f32 1.0, %v2688
    %v2690 = vrcp.pop %v2676
    %v2691 = vmul.f32 1.0, %v2690
    %v2692 = vrcp.pop %v2677
    %v2693 = vmul.f32 1.0, %v2692
    %v2694 = vmul.f32 %v2679, 1.0614054
    %v2695 = vmul.f32 %v2681, 1.0614054
    %v2696 = vmul.f32 %v2683, 1.0614054
    %v2697 = vmul.f32 %v2685, 1.0614054
    %v2698 = vmul.f32 %v2687, 1.0614054
    %v2699 = vmul.f32 %v2689, 1.0614054
    %v2700 = vmul.f32 %v2691, 1.0614054
    %v2701 = vmul.f32 %v2693, 1.0614054
    %v2702 = vadd.f32 %v2694, -1.4531521
    %v2703 = vadd.f32 %v2695, -1.4531521
    %v2704 = vadd.f32 %v2696, -1.4531521
    %v2705 = vadd.f32 %v2697, -1.4531521
    %v2706 = vadd.f32 %v2698, -1.4531521
    %v2707 = vadd.f32 %v2699, -1.4531521
    %v2708 = vadd.f32 %v2700, -1.4531521
    %v2709 = vadd.f32 %v2701, -1.4531521
    %v2710 = vmul.f32 %v2702, %v2679
    %v2711 = vmul.f32 %v2703, %v2681
    %v2712 = vmul.f32 %v2704, %v2683
    %v2713 = vmul.f32 %v2705, %v2685
    %v2714 = vmul.f32 %v2706, %v2687
    %v2715 = vmul.f32 %v2707, %v2689
    %v2716 = vmul.f32 %v2708, %v2691
    %v2717 = vmul.f32 %v2709, %v2693
    %v2718 = vadd.f32 %v2710, 1.4214138
    %v2719 = vadd.f32 %v2711, 1.4214138
    %v2720 = vadd.f32 %v2712, 1.4214138
    %v2721 = vadd.f32 %v2713, 1.4214138
    %v2722 = vadd.f32 %v2714, 1.4214138
    %v2723 = vadd.f32 %v2715, 1.4214138
    %v2724 = vadd.f32 %v2716, 1.4214138
    %v2725 = vadd.f32 %v2717, 1.4214138
    %v2726 = vmul.f32 %v2718, %v2679
    %v2727 = vmul.f32 %v2719, %v2681
    %v2728 = vmul.f32 %v2720, %v2683
    %v2729 = vmul.f32 %v2721, %v2685
    %v2730 = vmul.f32 %v2722, %v2687
    %v2731 = vmul.f32 %v2723, %v2689
    %v2732 = vmul.f32 %v2724, %v2691
    %v2733 = vmul.f32 %v2725, %v2693
    %v2734 = vadd.f32 %v2726, -0.28449672
    %v2735 = vadd.f32 %v2727, -0.28449672
    %v2736 = vadd.f32 %v2728, -0.28449672
    %v2737 = vadd.f32 %v2729, -0.28449672
    %v2738 = vadd.f32 %v2730, -0.28449672
    %v2739 = vadd.f32 %v2731, -0.28449672
    %v2740 = vadd.f32 %v2732, -0.28449672
    %v2741 = vadd.f32 %v2733, -0.28449672
    %v2742 = vmul.f32 %v2734, %v2679
    %v2743 = vmul.f32 %v2735, %v2681
    %v2744 = vmul.f32 %v2736, %v2683
    %v2745 = vmul.f32 %v2737, %v2685
    %v2746 = vmul.f32 %v2738, %v2687
    %v2747 = vmul.f32 %v2739, %v2689
    %v2748 = vmul.f32 %v2740, %v2691
    %v2749 = vmul.f32 %v2741, %v2693
    %v2750 = vadd.f32 %v2742, 0.2548296
    %v2751 = vadd.f32 %v2743, 0.2548296
    %v2752 = vadd.f32 %v2744, 0.2548296
    %v2753 = vadd.f32 %v2745, 0.2548296
    %v2754 = vadd.f32 %v2746, 0.2548296
    %v2755 = vadd.f32 %v2747, 0.2548296
    %v2756 = vadd.f32 %v2748, 0.2548296
    %v2757 = vadd.f32 %v2749, 0.2548296
    %v2758 = vmul.f32 %v2750, %v2679
    %v2759 = vmul.f32 %v2751, %v2681
    %v2760 = vmul.f32 %v2752, %v2683
    %v2761 = vmul.f32 %v2753, %v2685
    %v2762 = vmul.f32 %v2754, %v2687
    %v2763 = vmul.f32 %v2755, %v2689
    %v2764 = vmul.f32 %v2756, %v2691
    %v2765 = vmul.f32 %v2757, %v2693
    %v2766 = vsub.f32 0.0, %v2654
    %v2767 = vsub.f32 0.0, %v2655
    %v2768 = vsub.f32 0.0, %v2656
    %v2769 = vsub.f32 0.0, %v2657
    %v2770 = vsub.f32 0.0, %v2658
    %v2771 = vsub.f32 0.0, %v2659
    %v2772 = vsub.f32 0.0, %v2660
    %v2773 = vsub.f32 0.0, %v2661
    %v2774 = vmul.f32 %v2766, %v2654
    %v2775 = vmul.f32 %v2767, %v2655
    %v2776 = vmul.f32 %v2768, %v2656
    %v2777 = vmul.f32 %v2769, %v2657
    %v2778 = vmul.f32 %v2770, %v2658
    %v2779 = vmul.f32 %v2771, %v2659
    %v2780 = vmul.f32 %v2772, %v2660
    %v2781 = vmul.f32 %v2773, %v2661
    %v2782 = vmul.f32 %v2774, 1.442695
    %v2783 = vpow.pop %v2782
    %v2784 = vmul.f32 %v2775, 1.442695
    %v2785 = vpow.pop %v2784
    %v2786 = vmul.f32 %v2776, 1.442695
    %v2787 = vpow.pop %v2786
    %v2788 = vmul.f32 %v2777, 1.442695
    %v2789 = vpow.pop %v2788
    %v2790 = vmul.f32 %v2778, 1.442695
    %v2791 = vpow.pop %v2790
    %v2792 = vmul.f32 %v2779, 1.442695
    %v2793 = vpow.pop %v2792
    %v2794 = vmul.f32 %v2780, 1.442695
    %v2795 = vpow.pop %v2794
    %v2796 = vmul.f32 %v2781, 1.442695
    %v2797 = vpow.pop %v2796
    %v2798 = vmul.f32 %v2758, %v2783
    %v2799 = vmul.f32 %v2759, %v2785
    %v2800 = vmul.f32 %v2760, %v2787
    %v2801 = vmul.f32 %v2761, %v2789
    %v2802 = vmul.f32 %v2762, %v2791
    %v2803 = vmul.f32 %v2763, %v2793
    %v2804 = vmul.f32 %v2764, %v2795
    %v2805 = vmul.f32 %v2765, %v2797
    %v2806 = vsub.f32 1.0, %v2798
    %v2807 = vsub.f32 1.0, %v2799
    %v2808 = vsub.f32 1.0, %v2800
    %v2809 = vsub.f32 1.0, %v2801
    %v2810 = vsub.f32 1.0, %v2802
    %v2811 = vsub.f32 1.0, %v2803
    %v2812 = vsub.f32 1.0, %v2804
    %v2813 = vsub.f32 1.0, %v2805
    %v2814 = vmul.f32 %v2646, %v2806
    %v2815 = vmul.f32 %v2647, %v2807
    %v2816 = vmul.f32 %v2648, %v2808
    %v2817 = vmul.f32 %v2649, %v2809
    %v2818 = vmul.f32 %v2650, %v2810
    %v2819 = vmul.f32 %v2651, %v2811
    %v2820 = vmul.f32 %v2652, %v2812
    %v2821 = vmul.f32 %v2653, %v2813
    %v2822 = vadd.f32 %v2814, 1.0
    %v2823 = vadd.f32 %v2815, 1.0
    %v2824 = vadd.f32 %v2816, 1.0
    %v2825 = vadd.f32 %v2817, 1.0
    %v2826 = vadd.f32 %v2818, 1.0
    %v2827 = vadd.f32 %v2819, 1.0
    %v2828 = vadd.f32 %v2820, 1.0
    %v2829 = vadd.f32 %v2821, 1.0
    %v2830 = vmul.f32 %v2622, %v2822
    %v2831 = vmul.f32 %v2623, %v2823
    %v2832 = vmul.f32 %v2624, %v2824
    %v2833 = vmul.f32 %v2625, %v2825
    %v2834 = vmul.f32 %v2626, %v2826
    %v2835 = vmul.f32 %v2627, %v2827
    %v2836 = vmul.f32 %v2628, %v2828
    %v2837 = vmul.f32 %v2629, %v2829
    %v2838 = vld [vmem:[%s7] sm:$0xff]
    %v2839 = vld [vmem:[%s7 + $0x8] sm:$0xff]
    %v2840 = vld [vmem:[%s7 + $0x10] sm:$0xff]
    %v2841 = vld [vmem:[%s7 + $0x18] sm:$0xff]
    %v2842 = vld [vmem:[%s7 + $0x20] sm:$0xff]
    %v2843 = vld [vmem:[%s7 + $0x28] sm:$0xff]
    %v2844 = vld [vmem:[%s7 + $0x30] sm:$0xff]
    %v2845 = vld [vmem:[%s7 + $0x38] sm:$0xff]
    %v2846 = vld [vmem:[%s7 + $0x40] sm:$0xff]
    %v2847 = vld [vmem:[%s7 + $0x48] sm:$0xff]
    %v2848 = vld [vmem:[%s7 + $0x50] sm:$0xff]
    %v2849 = vld [vmem:[%s7 + $0x58] sm:$0xff]
    %v2850 = vld [vmem:[%s7 + $0x60] sm:$0xff]
    %v2851 = vld [vmem:[%s7 + $0x68] sm:$0xff]
    %v2852 = vld [vmem:[%s7 + $0x70] sm:$0xff]
    %v2853 = vld [vmem:[%s7 + $0x78] sm:$0xff]
    %v2854 = vld [vmem:[%s7 + $0x80] sm:$0xff]
    %v2855 = vld [vmem:[%s7 + $0x88] sm:$0xff]
    %v2856 = vld [vmem:[%s7 + $0x90] sm:$0xff]
    %v2857 = vld [vmem:[%s7 + $0x98] sm:$0xff]
    %v2858 = vld [vmem:[%s7 + $0xa0] sm:$0xff]
    %v2859 = vld [vmem:[%s7 + $0xa8] sm:$0xff]
    %v2860 = vld [vmem:[%s7 + $0xb0] sm:$0xff]
    %v2861 = vld [vmem:[%s7 + $0xb8] sm:$0xff]
    %v2862 = vld [vmem:[%s7 + $0xc0] sm:$0xff]
    %v2863 = vld [vmem:[%s7 + $0xc8] sm:$0xff]
    %v2864 = vld [vmem:[%s7 + $0xd0] sm:$0xff]
    %v2865 = vld [vmem:[%s7 + $0xd8] sm:$0xff]
    %v2866 = vld [vmem:[%s7 + $0xe0] sm:$0xff]
    %v2867 = vld [vmem:[%s7 + $0xe8] sm:$0xff]
    %v2868 = vld [vmem:[%s7 + $0xf0] sm:$0xff]
    %v2869 = vld [vmem:[%s7 + $0xf8] sm:$0xff]
    %v2870 = vld [vmem:[%s7 + $0x100] sm:$0xff]
    %v2871 = vld [vmem:[%s7 + $0x108] sm:$0xff]
    %v2872 = vld [vmem:[%s7 + $0x110] sm:$0xff]
    %v2873 = vld [vmem:[%s7 + $0x118] sm:$0xff]
    %v2874 = vld [vmem:[%s7 + $0x120] sm:$0xff]
    %v2875 = vld [vmem:[%s7 + $0x128] sm:$0xff]
    %v2876 = vld [vmem:[%s7 + $0x130] sm:$0xff]
    %v2877 = vld [vmem:[%s7 + $0x138] sm:$0xff]
    %v2878 = vld [vmem:[%s7 + $0x140] sm:$0xff]
    %v2879 = vld [vmem:[%s7 + $0x148] sm:$0xff]
    %v2880 = vld [vmem:[%s7 + $0x150] sm:$0xff]
    %v2881 = vld [vmem:[%s7 + $0x158] sm:$0xff]
    %v2882 = vld [vmem:[%s7 + $0x160] sm:$0xff]
    %v2883 = vld [vmem:[%s7 + $0x168] sm:$0xff]
    %v2884 = vld [vmem:[%s7 + $0x170] sm:$0xff]
    %v2885 = vld [vmem:[%s7 + $0x178] sm:$0xff]
    %v2886 = vld [vmem:[%s7 + $0x180] sm:$0xff]
    %v2887 = vld [vmem:[%s7 + $0x188] sm:$0xff]
    %v2888 = vld [vmem:[%s7 + $0x190] sm:$0xff]
    %v2889 = vld [vmem:[%s7 + $0x198] sm:$0xff]
    %v2890 = vld [vmem:[%s7 + $0x1a0] sm:$0xff]
    %v2891 = vld [vmem:[%s7 + $0x1a8] sm:$0xff]
    %v2892 = vld [vmem:[%s7 + $0x1b0] sm:$0xff]
    %v2893 = vld [vmem:[%s7 + $0x1b8] sm:$0xff]
    %v2894 = vld [vmem:[%s7 + $0x1c0] sm:$0xff]
    %v2895 = vld [vmem:[%s7 + $0x1c8] sm:$0xff]
    %v2896 = vld [vmem:[%s7 + $0x1d0] sm:$0xff]
    %v2897 = vld [vmem:[%s7 + $0x1d8] sm:$0xff]
    %v2898 = vld [vmem:[%s7 + $0x1e0] sm:$0xff]
    %v2899 = vld [vmem:[%s7 + $0x1e8] sm:$0xff]
    %v2900 = vld [vmem:[%s7 + $0x1f0] sm:$0xff]
    %v2901 = vld [vmem:[%s7 + $0x1f8] sm:$0xff]
    %v2902 = vld [vmem:[%s7 + $0x200] sm:$0xff]
    %v2903 = vld [vmem:[%s7 + $0x208] sm:$0xff]
    %v2904 = vld [vmem:[%s7 + $0x210] sm:$0xff]
    %v2905 = vld [vmem:[%s7 + $0x218] sm:$0xff]
    %v2906 = vld [vmem:[%s7 + $0x220] sm:$0xff]
    %v2907 = vld [vmem:[%s7 + $0x228] sm:$0xff]
    %v2908 = vld [vmem:[%s7 + $0x230] sm:$0xff]
    %v2909 = vld [vmem:[%s7 + $0x238] sm:$0xff]
    %v2910 = vld [vmem:[%s7 + $0x240] sm:$0xff]
    %v2911 = vld [vmem:[%s7 + $0x248] sm:$0xff]
    %v2912 = vld [vmem:[%s7 + $0x250] sm:$0xff]
    %v2913 = vld [vmem:[%s7 + $0x258] sm:$0xff]
    %v2914 = vld [vmem:[%s7 + $0x260] sm:$0xff]
    %v2915 = vld [vmem:[%s7 + $0x268] sm:$0xff]
    %v2916 = vld [vmem:[%s7 + $0x270] sm:$0xff]
    %v2917 = vld [vmem:[%s7 + $0x278] sm:$0xff]
    %v2918 = vld [vmem:[%s7 + $0x280] sm:$0xff]
    %v2919 = vld [vmem:[%s7 + $0x288] sm:$0xff]
    %v2920 = vld [vmem:[%s7 + $0x290] sm:$0xff]
    %v2921 = vld [vmem:[%s7 + $0x298] sm:$0xff]
    %v2922 = vld [vmem:[%s7 + $0x2a0] sm:$0xff]
    %v2923 = vld [vmem:[%s7 + $0x2a8] sm:$0xff]
    %v2924 = vld [vmem:[%s7 + $0x2b0] sm:$0xff]
    %v2925 = vld [vmem:[%s7 + $0x2b8] sm:$0xff]
    %v2926 = vld [vmem:[%s7 + $0x2c0] sm:$0xff]
    %v2927 = vld [vmem:[%s7 + $0x2c8] sm:$0xff]
    %v2928 = vld [vmem:[%s7 + $0x2d0] sm:$0xff]
    %v2929 = vld [vmem:[%s7 + $0x2d8] sm:$0xff]
    %v2930 = vld [vmem:[%s7 + $0x2e0] sm:$0xff]
    %v2931 = vld [vmem:[%s7 + $0x2e8] sm:$0xff]
    %v2932 = vld [vmem:[%s7 + $0x2f0] sm:$0xff]
    %v2933 = vld [vmem:[%s7 + $0x2f8] sm:$0xff]
    %v2934 = vld [vmem:[%s7 + $0x300] sm:$0xff]
    %v2935 = vld [vmem:[%s7 + $0x308] sm:$0xff]
    %v2936 = vld [vmem:[%s7 + $0x310] sm:$0xff]
    %v2937 = vld [vmem:[%s7 + $0x318] sm:$0xff]
    %v2938 = vld [vmem:[%s7 + $0x320] sm:$0xff]
    %v2939 = vld [vmem:[%s7 + $0x328] sm:$0xff]
    %v2940 = vld [vmem:[%s7 + $0x330] sm:$0xff]
    %v2941 = vld [vmem:[%s7 + $0x338] sm:$0xff]
    %v2942 = vld [vmem:[%s7 + $0x340] sm:$0xff]
    %v2943 = vld [vmem:[%s7 + $0x348] sm:$0xff]
    %v2944 = vld [vmem:[%s7 + $0x350] sm:$0xff]
    %v2945 = vld [vmem:[%s7 + $0x358] sm:$0xff]
    %v2946 = vld [vmem:[%s7 + $0x360] sm:$0xff]
    %v2947 = vld [vmem:[%s7 + $0x368] sm:$0xff]
    %v2948 = vld [vmem:[%s7 + $0x370] sm:$0xff]
    %v2949 = vld [vmem:[%s7 + $0x378] sm:$0xff]
    %v2950 = vld [vmem:[%s7 + $0x380] sm:$0xff]
    %v2951 = vld [vmem:[%s7 + $0x388] sm:$0xff]
    %v2952 = vld [vmem:[%s7 + $0x390] sm:$0xff]
    %v2953 = vld [vmem:[%s7 + $0x398] sm:$0xff]
    %v2954 = vld [vmem:[%s7 + $0x3a0] sm:$0xff]
    %v2955 = vld [vmem:[%s7 + $0x3a8] sm:$0xff]
    %v2956 = vld [vmem:[%s7 + $0x3b0] sm:$0xff]
    %v2957 = vld [vmem:[%s7 + $0x3b8] sm:$0xff]
    %v2958 = vld [vmem:[%s7 + $0x3c0] sm:$0xff]
    %v2959 = vld [vmem:[%s7 + $0x3c8] sm:$0xff]
    %v2960 = vld [vmem:[%s7 + $0x3d0] sm:$0xff]
    %v2961 = vld [vmem:[%s7 + $0x3d8] sm:$0xff]
    %v2962 = vld [vmem:[%s7 + $0x3e0] sm:$0xff]
    %v2963 = vld [vmem:[%s7 + $0x3e8] sm:$0xff]
    %v2964 = vld [vmem:[%s7 + $0x3f0] sm:$0xff]
    %v2965 = vld [vmem:[%s7 + $0x3f8] sm:$0xff]
    %v2966 = vld [vmem:[%s8] sm:$0x1]
    %v2968 = vlaneseq
    %v2969 = vshrl.u32 %v2968, 7
    %v2970 = vsub.s32 0, %v2969
    %v2971 = vrot.slane %v2966, %v2970
    %2973 = vmatprep.subr.mxu0 0.0
    %2974 = vmatpush1.msra.mxu0 %v2853
    %2975 = vmatprep.subr.mxu0 0.0
    %2976 = vmatpush1.msra.mxu0 %v2852
    %2977 = vmatprep.subr.mxu0 0.0
    %2978 = vmatpush1.msra.mxu0 %v2851
    %2979 = vmatprep.subr.mxu0 0.0
    %2980 = vmatpush1.msra.mxu0 %v2850
    %2981 = vmatprep.subr.mxu0 0.0
    %2982 = vmatpush1.msra.mxu0 %v2849
    %2983 = vmatprep.subr.mxu0 0.0
    %2984 = vmatpush1.msra.mxu0 %v2848
    %2985 = vmatprep.subr.mxu0 0.0
    %2986 = vmatpush1.msra.mxu0 %v2847
    %2987 = vmatprep.subr.mxu0 0.0
    %2988 = vmatpush1.msra.mxu0 %v2846
    %2989 = vmatprep.subr.mxu0 0.0
    %2990 = vmatpush1.msra.mxu0 %v2845
    %2991 = vmatprep.subr.mxu0 0.0
    %2992 = vmatpush1.msra.mxu0 %v2844
    %2993 = vmatprep.subr.mxu0 0.0
    %2994 = vmatpush1.msra.mxu0 %v2843
    %2995 = vmatprep.subr.mxu0 0.0
    %2996 = vmatpush1.msra.mxu0 %v2842
    %2997 = vmatprep.subr.mxu0 0.0
    %2998 = vmatpush1.msra.mxu0 %v2841
    %2999 = vmatprep.subr.mxu0 0.0
    %3000 = vmatpush1.msra.mxu0 %v2840
    %3001 = vmatprep.subr.mxu0 0.0
    %3002 = vmatpush1.msra.mxu0 %v2839
    %3003 = vmatprep.subr.mxu0 0.0
    %3004 = vmatpush1.msra.mxu0 %v2838
    %3005 = vmatprep.subr.mxu0 0.0
    %3006 = vmatpush2.msra.mxu0 %v2869
    %3007 = vmatprep.subr.mxu0 0.0
    %3008 = vmatpush2.msra.mxu0 %v2868
    %3009 = vmatprep.subr.mxu0 0.0
    %3010 = vmatpush2.msra.mxu0 %v2867
    %3011 = vmatprep.subr.mxu0 0.0
    %3012 = vmatpush2.msra.mxu0 %v2866
    %3013 = vmatprep.subr.mxu0 0.0
    %3014 = vmatpush2.msra.mxu0 %v2865
    %3015 = vmatprep.subr.mxu0 0.0
    %3016 = vmatpush2.msra.mxu0 %v2864
    %3017 = vmatprep.subr.mxu0 0.0
    %3018 = vmatpush2.msra.mxu0 %v2863
    %3019 = vmatprep.subr.mxu0 0.0
    %3020 = vmatpush2.msra.mxu0 %v2862
    %3021 = vmatprep.subr.mxu0 0.0
    %3022 = vmatpush2.msra.mxu0 %v2861
    %3023 = vmatprep.subr.mxu0 0.0
    %3024 = vmatpush2.msra.mxu0 %v2860
    %3025 = vmatprep.subr.mxu0 0.0
    %3026 = vmatpush2.msra.mxu0 %v2859
    %3027 = vmatprep.subr.mxu0 0.0
    %3028 = vmatpush2.msra.mxu0 %v2858
    %3029 = vmatprep.subr.mxu0 0.0
    %3030 = vmatpush2.msra.mxu0 %v2857
    %3031 = vmatprep.subr.mxu0 0.0
    %3032 = vmatpush2.msra.mxu0 %v2856
    %3033 = vmatprep.subr.mxu0 0.0
    %3034 = vmatpush2.msra.mxu0 %v2855
    %3035 = vmatprep.subr.mxu0 0.0
    %3036 = vmatpush2.msra.mxu0 %v2854
    %3037 = vmatprep.mubr.f32.mxu0 %v2831
    %3038 = vmatmul.mubr.f32.gmra.mxu0 %v2830
    %v3039 = vpop.f32.mrf.mxu0
    %v3040 = vadd.f32 %v2971, %v3039
    %v3041 = vpop.f32.mrf.mxu0
    %3042 = vdwg.mxu0
    %3043 = vmatprep.subr.mxu0 0.0
    %3044 = vmatpush1.msra.mxu0 %v2885
    %3045 = vmatprep.subr.mxu0 0.0
    %3046 = vmatpush1.msra.mxu0 %v2884
    %3047 = vmatprep.subr.mxu0 0.0
    %3048 = vmatpush1.msra.mxu0 %v2883
    %3049 = vmatprep.subr.mxu0 0.0
    %3050 = vmatpush1.msra.mxu0 %v2882
    %3051 = vmatprep.subr.mxu0 0.0
    %3052 = vmatpush1.msra.mxu0 %v2881
    %3053 = vmatprep.subr.mxu0 0.0
    %3054 = vmatpush1.msra.mxu0 %v2880
    %3055 = vmatprep.subr.mxu0 0.0
    %3056 = vmatpush1.msra.mxu0 %v2879
    %3057 = vmatprep.subr.mxu0 0.0
    %3058 = vmatpush1.msra.mxu0 %v2878
    %3059 = vmatprep.subr.mxu0 0.0
    %3060 = vmatpush1.msra.mxu0 %v2877
    %3061 = vmatprep.subr.mxu0 0.0
    %3062 = vmatpush1.msra.mxu0 %v2876
    %3063 = vmatprep.subr.mxu0 0.0
    %3064 = vmatpush1.msra.mxu0 %v2875
    %3065 = vmatprep.subr.mxu0 0.0
    %3066 = vmatpush1.msra.mxu0 %v2874
    %3067 = vmatprep.subr.mxu0 0.0
    %3068 = vmatpush1.msra.mxu0 %v2873
    %3069 = vmatprep.subr.mxu0 0.0
    %3070 = vmatpush1.msra.mxu0 %v2872
    %3071 = vmatprep.subr.mxu0 0.0
    %3072 = vmatpush1.msra.mxu0 %v2871
    %3073 = vmatprep.subr.mxu0 0.0
    %3074 = vmatpush1.msra.mxu0 %v2870
    %3075 = vmatprep.subr.mxu0 0.0
    %3076 = vmatpush2.msra.mxu0 %v2901
    %3077 = vmatprep.subr.mxu0 0.0
    %3078 = vmatpush2.msra.mxu0 %v2900
    %3079 = vmatprep.subr.mxu0 0.0
    %3080 = vmatpush2.msra.mxu0 %v2899
    %3081 = vmatprep.subr.mxu0 0.0
    %3082 = vmatpush2.msra.mxu0 %v2898
    %3083 = vmatprep.subr.mxu0 0.0
    %3084 = vmatpush2.msra.mxu0 %v2897
    %3085 = vmatprep.subr.mxu0 0.0
    %3086 = vmatpush2.msra.mxu0 %v2896
    %3087 = vmatprep.subr.mxu0 0.0
    %3088 = vmatpush2.msra.mxu0 %v2895
    %3089 = vmatprep.subr.mxu0 0.0
    %3090 = vmatpush2.msra.mxu0 %v2894
    %3091 = vmatprep.subr.mxu0 0.0
    %3092 = vmatpush2.msra.mxu0 %v2893
    %3093 = vmatprep.subr.mxu0 0.0
    %3094 = vmatpush2.msra.mxu0 %v2892
    %3095 = vmatprep.subr.mxu0 0.0
    %3096 = vmatpush2.msra.mxu0 %v2891
    %3097 = vmatprep.subr.mxu0 0.0
    %3098 = vmatpush2.msra.mxu0 %v2890
    %3099 = vmatprep.subr.mxu0 0.0
    %3100 = vmatpush2.msra.mxu0 %v2889
    %3101 = vmatprep.subr.mxu0 0.0
    %3102 = vmatpush2.msra.mxu0 %v2888
    %3103 = vmatprep.subr.mxu0 0.0
    %3104 = vmatpush2.msra.mxu0 %v2887
    %3105 = vmatprep.subr.mxu0 0.0
    %3106 = vmatpush2.msra.mxu0 %v2886
    %3107 = vmatprep.mubr.f32.mxu0 %v2833
    %3108 = vmatmul.mubr.f32.gmra.mxu0 %v2832
    %v3109 = vpop.f32.mrf.mxu0
    %v3110 = vadd.f32 %v3040, %v3109
    %v3111 = vpop.f32.mrf.mxu0
    %3112 = vdwg.mxu0
    %3113 = vmatprep.subr.mxu0 0.0
    %3114 = vmatpush1.msra.mxu0 %v2917
    %3115 = vmatprep.subr.mxu0 0.0
    %3116 = vmatpush1.msra.mxu0 %v2916
    %3117 = vmatprep.subr.mxu0 0.0
    %3118 = vmatpush1.msra.mxu0 %v2915
    %3119 = vmatprep.subr.mxu0 0.0
    %3120 = vmatpush1.msra.mxu0 %v2914
    %3121 = vmatprep.subr.mxu0 0.0
    %3122 = vmatpush1.msra.mxu0 %v2913
    %3123 = vmatprep.subr.mxu0 0.0
    %3124 = vmatpush1.msra.mxu0 %v2912
    %3125 = vmatprep.subr.mxu0 0.0
    %3126 = vmatpush1.msra.mxu0 %v2911
    %3127 = vmatprep.subr.mxu0 0.0
    %3128 = vmatpush1.msra.mxu0 %v2910
    %3129 = vmatprep.subr.mxu0 0.0
    %3130 = vmatpush1.msra.mxu0 %v2909
    %3131 = vmatprep.subr.mxu0 0.0
    %3132 = vmatpush1.msra.mxu0 %v2908
    %3133 = vmatprep.subr.mxu0 0.0
    %3134 = vmatpush1.msra.mxu0 %v2907
    %3135 = vmatprep.subr.mxu0 0.0
    %3136 = vmatpush1.msra.mxu0 %v2906
    %3137 = vmatprep.subr.mxu0 0.0
    %3138 = vmatpush1.msra.mxu0 %v2905
    %3139 = vmatprep.subr.mxu0 0.0
    %3140 = vmatpush1.msra.mxu0 %v2904
    %3141 = vmatprep.subr.mxu0 0.0
    %3142 = vmatpush1.msra.mxu0 %v2903
    %3143 = vmatprep.subr.mxu0 0.0
    %3144 = vmatpush1.msra.mxu0 %v2902
    %3145 = vmatprep.subr.mxu0 0.0
    %3146 = vmatpush2.msra.mxu0 %v2933
    %3147 = vmatprep.subr.mxu0 0.0
    %3148 = vmatpush2.msra.mxu0 %v2932
    %3149 = vmatprep.subr.mxu0 0.0
    %3150 = vmatpush2.msra.mxu0 %v2931
    %3151 = vmatprep.subr.mxu0 0.0
    %3152 = vmatpush2.msra.mxu0 %v2930
    %3153 = vmatprep.subr.mxu0 0.0
    %3154 = vmatpush2.msra.mxu0 %v2929
    %3155 = vmatprep.subr.mxu0 0.0
    %3156 = vmatpush2.msra.mxu0 %v2928
    %3157 = vmatprep.subr.mxu0 0.0
    %3158 = vmatpush2.msra.mxu0 %v2927
    %3159 = vmatprep.subr.mxu0 0.0
    %3160 = vmatpush2.msra.mxu0 %v2926
    %3161 = vmatprep.subr.mxu0 0.0
    %3162 = vmatpush2.msra.mxu0 %v2925
    %3163 = vmatprep.subr.mxu0 0.0
    %3164 = vmatpush2.msra.mxu0 %v2924
    %3165 = vmatprep.subr.mxu0 0.0
    %3166 = vmatpush2.msra.mxu0 %v2923
    %3167 = vmatprep.subr.mxu0 0.0
    %3168 = vmatpush2.msra.mxu0 %v2922
    %3169 = vmatprep.subr.mxu0 0.0
    %3170 = vmatpush2.msra.mxu0 %v2921
    %3171 = vmatprep.subr.mxu0 0.0
    %3172 = vmatpush2.msra.mxu0 %v2920
    %3173 = vmatprep.subr.mxu0 0.0
    %3174 = vmatpush2.msra.mxu0 %v2919
    %3175 = vmatprep.subr.mxu0 0.0
    %3176 = vmatpush2.msra.mxu0 %v2918
    %3177 = vmatprep.mubr.f32.mxu0 %v2835
    %3178 = vmatmul.mubr.f32.gmra.mxu0 %v2834
    %v3179 = vpop.f32.mrf.mxu0
    %v3180 = vadd.f32 %v3110, %v3179
    %v3181 = vpop.f32.mrf.mxu0
    %3182 = vdwg.mxu0
    %3183 = vmatprep.subr.mxu0 0.0
    %3184 = vmatpush1.msra.mxu0 %v2949
    %3185 = vmatprep.subr.mxu0 0.0
    %3186 = vmatpush1.msra.mxu0 %v2948
    %3187 = vmatprep.subr.mxu0 0.0
    %3188 = vmatpush1.msra.mxu0 %v2947
    %3189 = vmatprep.subr.mxu0 0.0
    %3190 = vmatpush1.msra.mxu0 %v2946
    %3191 = vmatprep.subr.mxu0 0.0
    %3192 = vmatpush1.msra.mxu0 %v2945
    %3193 = vmatprep.subr.mxu0 0.0
    %3194 = vmatpush1.msra.mxu0 %v2944
    %3195 = vmatprep.subr.mxu0 0.0
    %3196 = vmatpush1.msra.mxu0 %v2943
    %3197 = vmatprep.subr.mxu0 0.0
    %3198 = vmatpush1.msra.mxu0 %v2942
    %3199 = vmatprep.subr.mxu0 0.0
    %3200 = vmatpush1.msra.mxu0 %v2941
    %3201 = vmatprep.subr.mxu0 0.0
    %3202 = vmatpush1.msra.mxu0 %v2940
    %3203 = vmatprep.subr.mxu0 0.0
    %3204 = vmatpush1.msra.mxu0 %v2939
    %3205 = vmatprep.subr.mxu0 0.0
    %3206 = vmatpush1.msra.mxu0 %v2938
    %3207 = vmatprep.subr.mxu0 0.0
    %3208 = vmatpush1.msra.mxu0 %v2937
    %3209 = vmatprep.subr.mxu0 0.0
    %3210 = vmatpush1.msra.mxu0 %v2936
    %3211 = vmatprep.subr.mxu0 0.0
    %3212 = vmatpush1.msra.mxu0 %v2935
    %3213 = vmatprep.subr.mxu0 0.0
    %3214 = vmatpush1.msra.mxu0 %v2934
    %3215 = vmatprep.subr.mxu0 0.0
    %3216 = vmatpush2.msra.mxu0 %v2965
    %3217 = vmatprep.subr.mxu0 0.0
    %3218 = vmatpush2.msra.mxu0 %v2964
    %3219 = vmatprep.subr.mxu0 0.0
    %3220 = vmatpush2.msra.mxu0 %v2963
    %3221 = vmatprep.subr.mxu0 0.0
    %3222 = vmatpush2.msra.mxu0 %v2962
    %3223 = vmatprep.subr.mxu0 0.0
    %3224 = vmatpush2.msra.mxu0 %v2961
    %3225 = vmatprep.subr.mxu0 0.0
    %3226 = vmatpush2.msra.mxu0 %v2960
    %3227 = vmatprep.subr.mxu0 0.0
    %3228 = vmatpush2.msra.mxu0 %v2959
    %3229 = vmatprep.subr.mxu0 0.0
    %3230 = vmatpush2.msra.mxu0 %v2958
    %3231 = vmatprep.subr.mxu0 0.0
    %3232 = vmatpush2.msra.mxu0 %v2957
    %3233 = vmatprep.subr.mxu0 0.0
    %3234 = vmatpush2.msra.mxu0 %v2956
    %3235 = vmatprep.subr.mxu0 0.0
    %3236 = vmatpush2.msra.mxu0 %v2955
    %3237 = vmatprep.subr.mxu0 0.0
    %3238 = vmatpush2.msra.mxu0 %v2954
    %3239 = vmatprep.subr.mxu0 0.0
    %3240 = vmatpush2.msra.mxu0 %v2953
    %3241 = vmatprep.subr.mxu0 0.0
    %3242 = vmatpush2.msra.mxu0 %v2952
    %3243 = vmatprep.subr.mxu0 0.0
    %3244 = vmatpush2.msra.mxu0 %v2951
    %3245 = vmatprep.subr.mxu0 0.0
    %3246 = vmatpush2.msra.mxu0 %v2950
    %3247 = vmatprep.mubr.f32.mxu0 %v2837
    %3248 = vmatmul.mubr.f32.gmra.mxu0 %v2836
    %v3249 = vpop.f32.mrf.mxu0
    %v3250 = vadd.f32 %v3180, %v3249
    %v3251 = vpop.f32.mrf.mxu0
    %3252 = vdwg.mxu0
    %vm3253 = vcmask 9216
    %v3254 = vsel %vm3253, %v3250, -inf
    %3255 = vmax.xlane.f32.xlu0 %v3254
    %v3256 = vpop.xlane.xlu0 %3255
    %v3257 = vsub.f32 %v3250, %v3256
    %v3258 = vmul.f32 %v3257, 1.442695
    %v3259 = vpow.pop %v3258
    %v3260 = vsel %vm3253, %v3259, 0.0
    %3261 = vadd.xlane.f32.xlu0 %v3260
    %v3262 = vpop.xlane.xlu0 %3261
    %v3263 = vlog2.pop %v3262
    %v3264 = vmul.f32 %v3263, 0.6931472
    %v3265 = vsub.f32 %v3257, %v3264
    %3266 = vst.msk [vmem:[#allocation2] sm:$0x3] %vm3253, %v3265
    // Predicated region
    $region38: #{forward.11} parent=1 // pred_check
      _
    $region39: #{forward.11} parent=1 // pred_check_branch
      %3268 = sbr.rel (0) target = $region41
    $region40: #{forward.11} parent=1 // pred_region
      %s3270 = ssub.s32 32, 32
      %3271 = vsyncadd [#allocation3], %s3270
      %s3273 = sshll.u32 [#allocation2], 4
      %s3274 = int_to_ptr.vmem [resolvable:$true] %s3273
      %3276 = dma.vmem_to_hbm [thread:$0]  %s3274, 32, %s9, [#allocation3]
    $region41: #{forward.11} parent=1 // pred_fallthru
      _
    // Predicated region
    $region42: #{forward.11} parent=1 // pred_check
      _
    $region43: #{forward.11} parent=1 // pred_check_branch
      %3278 = sbr.rel (0) target = $region45
    $region44: #{forward.11} parent=1 // pred_region
      %3279 = dma.done [#allocation3], 32
    $region45: #{forward.11} parent=1 // pred_fallthru
      _
    %3280 = vsyncpa [#allocation3], 1

</llo_original>
